<compile_context>
chip_gen: v7x
topology: tpu7x:2x2x1
jax: 0.10.0
libtpu: 0.0.40
codegen_flags: <defaults>
</compile_context>

<pallas_src>
import functools

import jax
import jax.numpy as jnp
import numpy as np
from jax.experimental import pallas as pl
from jax.experimental.pallas import tpu as pltpu

LN_EPS = 1e-5


# ----------------------------- kernel helpers -----------------------------

def _layer_norm(v, gamma, beta):
    # One-pass mean / variance (E[x^2] - E[x]^2): one cross-lane (XLU) reduction fewer per norm.
    mu = jnp.mean(v, axis=-1, keepdims=True)
    ms = jnp.mean(v * v, axis=-1, keepdims=True)
    var = ms - mu * mu
    return (v - mu) * jax.lax.rsqrt(var + LN_EPS) * gamma + beta


def _tap_shift(vf, off, t_idx, L):
    """Causal time shift on batch-flattened (M, D) activations.

    result[b*L + t] = vf[b*L + t - off] for t >= off, else 0.  Implemented as an XLU
    sublane roll over the flattened row axis + per-batch-element mask: the rows that
    would receive data from the previous batch element (or the wrap-around) are exactly
    the masked t < off rows, so no zeros+concatenate copy is needed.
    """
    if off == 0:
        return vf
    if off >= L:                      # receptive field entirely in the zero padding
        return jnp.zeros_like(vf)
    rolled = pltpu.roll(vf, shift=off, axis=0)
    return jnp.where(t_idx >= off, rolled, 0.0)


def _causal_conv(vf, w_ref, b_ref, conv_idx, dil, t_idx, L):
    """Dilated causal Conv1d (kernel_size=3) over time, channels-last, taps fused along K.

    The (up to) 3 shifted copies are concatenated along the lane axis and hit the MXU as
    a single K=3*D matmul (fills the 256-deep MXU on v6e/v7x).  Taps with offset >= L only
    see zero padding and are dropped together with their weight rows.
    """
    bf16 = jnp.bfloat16
    D = vf.shape[-1]
    pieces, first_tap = [], None
    for tap, off in enumerate((2 * dil, dil, 0)):     # tap j pairs with offset (2-j)*dil
        if off >= L:
            continue
        if first_tap is None:
            first_tap = tap
        pieces.append(_tap_shift(vf, off, t_idx, L).astype(bf16))
    xcat = pieces[0] if len(pieces) == 1 else jnp.concatenate(pieces, axis=-1)
    w = w_ref[conv_idx]                               # (3*D, D) bf16
    if first_tap > 0:
        w = w[first_tap * D:, :]                      # static row slice at a 128-multiple
    return jnp.dot(xcat, w, preferred_element_type=jnp.float32) + b_ref[conv_idx]


def _attention_core(q, k, v, n_heads):
    """Multi-head softmax(QK^T)V on already-projected q/k/v (1/sqrt(dh) folded into Wq).

    Per-head static loop (dh=32 lane slices accepted: attention is off the critical path at
    these sequence lengths).  Each head's output lands in a lane-dense (M, D) bf16 slab so the
    output projection is ONE K=D matmul instead of n_heads K=dh matmuls + f32 adds.
    """
    bf16 = jnp.bfloat16
    Bb, Lq, D = q.shape
    dh = D // n_heads
    q3 = q.astype(bf16)
    k3 = k.astype(bf16)
    v3 = v.astype(bf16)
    ohs = []
    for h in range(n_heads):
        lo = h * dh
        qh = q3[:, :, lo:lo + dh]
        kh = k3[:, :, lo:lo + dh]
        vh = v3[:, :, lo:lo + dh]
        s = jnp.einsum("bqd,bkd->bqk", qh, kh, preferred_element_type=jnp.float32)
        s = s - jnp.max(s, axis=-1, keepdims=True)
        p = jnp.exp(s)
        # EUP approximate reciprocal instead of a VALU divide (rows sum to 1 +/- ~2^-12).
        p = p * pl.reciprocal(jnp.sum(p, axis=-1, keepdims=True), approx=True)
        oh = jnp.einsum("bqk,bkd->bqd", p.astype(bf16), vh,
                        preferred_element_type=jnp.float32)
        ohs.append(oh.astype(bf16))
    o = jnp.concatenate(ohs, axis=-1)                 # (Bb, Lq, D) bf16, lane-dense
    return o.reshape(Bb * Lq, D)


# ------------------------------- the kernel -------------------------------

def decoder_layer_kernel(x_ref, cross_ref, tcn_w_ref, tcn_b_ref,
                         sa_wqkv_ref, sa_bqkv_ref, ca_wkv_ref, ca_bkv_ref,
                         proj_w_ref, proj_b_ref, w1_ref, w2_ref,
                         ln_g_ref, ln_b_ref, out_ref,
                         *, n_heads, n_tcn_levels):
    bf16 = jnp.bfloat16
    f32 = jnp.float32
    x = x_ref[...]            # (Bb, L, D) f32
    cross = cross_ref[...]    # (Bb, Lc, D) f32
    Bb, L, D = x.shape
    Lc = cross.shape[1]
    M = Bb * L

    # Time index within each batch element, hoisted (reused by every causal-conv tap mask).
    t_idx = jax.lax.broadcasted_iota(jnp.int32, (M, 1), 0) % L

    # ---- TemporalConvNet on x (channels-last == TCN(x.permute(0,2,1)).permute(0,2,1)) ----
    tf = x.reshape(M, D)
    for lvl in range(n_tcn_levels):
        dil = 2 ** lvl
        h = jnp.maximum(_causal_conv(tf, tcn_w_ref, tcn_b_ref, 2 * lvl, dil, t_idx, L), 0.0)
        h = jnp.maximum(_causal_conv(h, tcn_w_ref, tcn_b_ref, 2 * lvl + 1, dil, t_idx, L), 0.0)
        tf = jnp.maximum(h + tf, 0.0)   # residual (downsample is identity: C_in == C_out)

    # ---- x = norm1(x + self_attention(t, t, t)) ----
    # Fused [Wq|Wk|Wv]: one (M,D)@(D,3D) matmul, single bf16 cast of the shared q/k/v input.
    # TODO(synk): attn_mask not plumbed through; forward defaults (None) assumed.
    qkv = jnp.dot(tf.astype(bf16), sa_wqkv_ref[...],
                  preferred_element_type=f32) + sa_bqkv_ref[...]
    q = qkv[:, :D].reshape(Bb, L, D)
    k = qkv[:, D:2 * D].reshape(Bb, L, D)
    v = qkv[:, 2 * D:].reshape(Bb, L, D)
    o = _attention_core(q, k, v, n_heads)                              # (M, D) bf16
    sa = jnp.dot(o, proj_w_ref[0], preferred_element_type=f32) + proj_b_ref[0]
    x = _layer_norm(x + sa.reshape(Bb, L, D), ln_g_ref[0], ln_b_ref[0])

    # ---- x = norm2(x + cross_attention(x, cross, cross)) ----
    q = (jnp.dot(x.reshape(M, D).astype(bf16), proj_w_ref[1],
                 preferred_element_type=f32) + proj_b_ref[1]).reshape(Bb, L, D)
    kv = jnp.dot(cross.reshape(Bb * Lc, D).astype(bf16), ca_wkv_ref[...],
                 preferred_element_type=f32) + ca_bkv_ref[...]         # fused [Wk|Wv]
    k = kv[:, :D].reshape(Bb, Lc, D)
    v = kv[:, D:].reshape(Bb, Lc, D)
    o = _attention_core(q, k, v, n_heads)
    ca = jnp.dot(o, proj_w_ref[2], preferred_element_type=f32) + proj_b_ref[2]
    x = _layer_norm(x + ca.reshape(Bb, L, D), ln_g_ref[1], ln_b_ref[1])

    # ---- y = conv2(relu(conv1(x^T)))^T  (kernel_size=1 convs, bias=False); dropout = identity ----
    hid = jnp.maximum(jnp.dot(x.reshape(M, D).astype(bf16), w1_ref[...],
                              preferred_element_type=f32), 0.0)
    y = jnp.dot(hid.astype(bf16), w2_ref[...],
                preferred_element_type=f32).reshape(Bb, L, D)

    out_ref[...] = _layer_norm(x + y, ln_g_ref[2], ln_b_ref[2])


# ------------------------------- wrapper -----------------------------------

def _pick_block_batch(B, L, target_rows=512, max_rows=1024, min_steps=2):
    """Pick the per-step batch block: flattened M >= target_rows when possible (MXU-friendly)
    while keeping >= min_steps grid steps (pipeline overlap; both TCs on v7x get work)."""
    divisors = [d for d in range(1, B + 1) if B % d == 0]
    cands = [d for d in divisors if B // d >= min_steps] or divisors
    cands = [d for d in cands if d * L <= max_rows] or [min(cands)]
    good = [d for d in cands if d * L >= target_rows]
    return min(good) if good else max(cands)


def decoder_layer(x, cross, packed, n_heads):
    """x: (B, L, D) f32, cross: (B, Lc, D) f32, packed: output of pack_params."""
    B, L, D = x.shape
    Lc = cross.shape[1]
    n_convs = packed["tcn_b"].shape[0]
    n_tcn_levels = n_convs // 2
    d_ff = packed["w1"].shape[1]

    Bb = _pick_block_batch(B, L)
    grid = (B // Bb,)

    def const_spec(a):
        return pl.BlockSpec(a.shape, lambda b: (0,) * a.ndim)

    in_specs = [
        pl.BlockSpec((Bb, L, D), lambda b: (b, 0, 0)),
        pl.BlockSpec((Bb, Lc, D), lambda b: (b, 0, 0)),
        const_spec(packed["tcn_w"]), const_spec(packed["tcn_b"]),
        const_spec(packed["sa_wqkv"]), const_spec(packed["sa_bqkv"]),
        const_spec(packed["ca_wkv"]), const_spec(packed["ca_bkv"]),
        const_spec(packed["proj_w"]), const_spec(packed["proj_b"]),
        const_spec(packed["w1"]), const_spec(packed["w2"]),
        const_spec(packed["ln_g"]), const_spec(packed["ln_b"]),
    ]
    out_specs = pl.BlockSpec((Bb, L, D), lambda b: (b, 0, 0))

    grid_spec = pltpu.PrefetchScalarGridSpec(
        num_scalar_prefetch=0, grid=grid, in_specs=in_specs, out_specs=out_specs)

    weight_bytes = sum(int(packed[k].size) * packed[k].dtype.itemsize
                       for k in ("tcn_w", "tcn_b", "sa_wqkv", "sa_bqkv", "ca_wkv",
                                 "ca_bkv", "proj_w", "proj_b", "w1", "w2", "ln_g", "ln_b"))
    act_block_bytes = (2 * Bb * L + Bb * Lc) * D * 4
    # Weights + activation blocks are double-buffered by the pipeline; leave headroom for
    # in-kernel temporaries.  Clamp to <= 56 MiB so the sizing also fits v7x's 64 MiB VMEM.
    vmem_limit = int(min(56 << 20,
                         max(32 << 20, 2 * weight_bytes + 16 * act_block_bytes + (16 << 20))))

    # Advisory cost estimate so XLA schedules around the fused call sensibly.
    flops = (2 * B * L * (3 * D) * D * n_convs            # TCN fused-tap matmuls
             + 2 * B * L * D * (3 * D)                    # self-attn fused QKV proj
             + 2 * B * L * D * D                          # self-attn out proj
             + 2 * B * L * D * D                          # cross-attn Q proj
             + 2 * B * Lc * D * (2 * D)                   # cross-attn fused KV proj
             + 2 * B * L * D * D                          # cross-attn out proj
             + 4 * B * L * (L + Lc) * D                   # QK^T + P@V (all heads, both attns)
             + 4 * B * L * D * d_ff)                      # FFN
    transcendentals = B * n_heads * L * (L + Lc)
    bytes_accessed = 4 * (2 * B * L * D + B * Lc * D) + weight_bytes
    cost = pl.CostEstimate(flops=int(flops), transcendentals=int(transcendentals),
                           bytes_accessed=int(bytes_accessed))

    kernel = functools.partial(decoder_layer_kernel, n_heads=n_heads,
                               n_tcn_levels=n_tcn_levels)
    return pl.pallas_call(
        kernel,
        out_shape=jax.ShapeDtypeStruct((B, L, D), jnp.float32),
        grid_spec=grid_spec,
        compiler_params=pltpu.CompilerParams(
            dimension_semantics=("parallel",),
            vmem_limit_bytes=vmem_limit),
        cost_estimate=cost,
    )(x, cross, packed["tcn_w"], packed["tcn_b"], packed["sa_wqkv"], packed["sa_bqkv"],
      packed["ca_wkv"], packed["ca_bkv"], packed["proj_w"], packed["proj_b"],
      packed["w1"], packed["w2"], packed["ln_g"], packed["ln_b"])


# --------------------------- params & packing ------------------------------

def make_params(key, d_model, d_ff, n_tcn_levels=5):
    n_convs = 2 * n_tcn_levels
    ks = jax.random.split(key, 16)

    def w(k, shape, s=0.05):
        return jax.random.normal(k, shape, jnp.float32) * s

    return {
        # TCN: per conv, 3 taps (offsets -2d, -d, 0), each (D_in, D_out); weight_norm folded in.
        "tcn_w": w(ks[0], (n_convs, 3, d_model, d_model)),
        "tcn_b": w(ks[1], (n_convs, d_model), 0.02),
        # attention projections (stored transposed to (in, out)); biases in (q, k, v, o) order
        "sa_wq": w(ks[2], (d_model, d_model)), "sa_wk": w(ks[3], (d_model, d_model)),
        "sa_wv": w(ks[4], (d_model, d_model)), "sa_wo": w(ks[5], (d_model, d_model)),
        "ca_wq": w(ks[6], (d_model, d_model)), "ca_wk": w(ks[7], (d_model, d_model)),
        "ca_wv": w(ks[8], (d_model, d_model)), "ca_wo": w(ks[9], (d_model, d_model)),
        "sa_b": w(ks[10], (4, d_model), 0.02),
        "ca_b": w(ks[11], (4, d_model), 0.02),
        # conv1 / conv2 (kernel_size=1, bias=False), stored transposed to (in, out)
        "w1": w(ks[12], (d_model, d_ff)),
        "w2": w(ks[13], (d_ff, d_model)),
        # LayerNorm affine for norm1/norm2/norm3
        "g": jnp.ones((3, d_model), jnp.float32) + w(ks[14], (3, d_model), 0.02),
        "b": w(ks[15], (3, d_model), 0.02),
    }


def pack_params(p, n_heads):
    """Fold the attention scale into Wq/bq, fuse QKV / KV / TCN-tap weights along N / K,
    stack the remaining (D, D) projections, and cast MXU operands to bf16."""
    d_model = p["w1"].shape[0]
    dh = d_model // n_heads
    scale = 1.0 / float(np.sqrt(dh))
    bf16 = jnp.bfloat16
    n_convs = p["tcn_b"].shape[0]

    sa_wqkv = jnp.concatenate([p["sa_wq"] * scale, p["sa_wk"], p["sa_wv"]], axis=1)   # (D, 3D)
    sa_bqkv = jnp.concatenate([p["sa_b"][0] * scale, p["sa_b"][1], p["sa_b"][2]])[None, :]
    ca_wkv = jnp.concatenate([p["ca_wk"], p["ca_wv"]], axis=1)                        # (D, 2D)
    ca_bkv = jnp.concatenate([p["ca_b"][1], p["ca_b"][2]])[None, :]
    proj_w = jnp.stack([p["sa_wo"], p["ca_wq"] * scale, p["ca_wo"]])                  # (3, D, D)
    proj_b = jnp.stack([p["sa_b"][3], p["ca_b"][0] * scale, p["ca_b"][3]])[:, None, :]

    return {
        # taps stacked along the contraction axis: rows [tap -2d | tap -d | tap 0]
        "tcn_w": p["tcn_w"].reshape(n_convs, 3 * d_model, d_model).astype(bf16),
        "tcn_b": p["tcn_b"][:, None, :],              # (n_convs, 1, D) f32
        "sa_wqkv": sa_wqkv.astype(bf16),              # (D, 3D) bf16
        "sa_bqkv": sa_bqkv,                           # (1, 3D) f32
        "ca_wkv": ca_wkv.astype(bf16),                # (D, 2D) bf16
        "ca_bkv": ca_bkv,                             # (1, 2D) f32
        "proj_w": proj_w.astype(bf16),                # (3, D, D) bf16 [sa_Wo, ca_Wq, ca_Wo]
        "proj_b": proj_b,                             # (3, 1, D) f32
        "w1": p["w1"].astype(bf16),
        "w2": p["w2"].astype(bf16),
        "ln_g": p["g"][:, None, :],                   # (3, 1, D) f32
        "ln_b": p["b"][:, None, :],
    }


# ------------------------------ JAX reference -------------------------------

def decoder_layer_reference(x, cross, packed, n_heads):
    """Pure-JAX reference with identical math (same bf16 matmul inputs, exact softmax divide)."""
    B, L, D = x.shape
    Lc = cross.shape[1]
    dh = D // n_heads
    f32, bf16 = jnp.float32, jnp.bfloat16

    def ln(v, g, b):
        mu = jnp.mean(v, -1, keepdims=True)
        var = jnp.mean((v - mu) ** 2, -1, keepdims=True)
        return (v - mu) * jax.lax.rsqrt(var + LN_EPS) * g + b

    def mm(a, w):
        return jnp.dot(a.astype(bf16), w, preferred_element_type=f32)

    def attn(q, k, v):
        Lq, Lk = q.shape[1], k.shape[1]
        qh = q.reshape(B, Lq, n_heads, dh).astype(bf16)
        kh = k.reshape(B, Lk, n_heads, dh).astype(bf16)
        vh = v.reshape(B, Lk, n_heads, dh).astype(bf16)
        s = jnp.einsum("bqhd,bkhd->bhqk", qh, kh, preferred_element_type=f32)
        s = s - jnp.max(s, -1, keepdims=True)
        p = jnp.exp(s)
        p = p / jnp.sum(p, -1, keepdims=True)
        o = jnp.einsum("bhqk,bkhd->bqhd", p.astype(bf16), vh, preferred_element_type=f32)
        return o.reshape(B, Lq, D)

    def causal_conv(v, conv_idx, dil):
        taps = [jnp.pad(v, ((0, 0), (off, 0), (0, 0)))[:, :L, :] for off in (2 * dil, dil, 0)]
        vcat = jnp.concatenate(taps, axis=-1)
        out = jnp.einsum("blk,kd->bld", vcat.astype(bf16), packed["tcn_w"][conv_idx],
                         preferred_element_type=f32)
        return out + packed["tcn_b"][conv_idx]

    n_levels = packed["tcn_b"].shape[0] // 2
    t = x
    for lvl in range(n_levels):
        dil = 2 ** lvl
        h = jnp.maximum(causal_conv(t, 2 * lvl, dil), 0.0)
        h = jnp.maximum(causal_conv(h, 2 * lvl + 1, dil), 0.0)
        t = jnp.maximum(h + t, 0.0)

    qkv = mm(t.reshape(B * L, D), packed["sa_wqkv"]) + packed["sa_bqkv"]
    q, k, v = (qkv[:, i * D:(i + 1) * D].reshape(B, L, D) for i in range(3))
    o = attn(q, k, v).reshape(B * L, D)
    sa = (mm(o, packed["proj_w"][0]) + packed["proj_b"][0]).reshape(B, L, D)
    x1 = ln(x + sa, packed["ln_g"][0], packed["ln_b"][0])

    q = (mm(x1.reshape(B * L, D), packed["proj_w"][1]) + packed["proj_b"][1]).reshape(B, L, D)
    kv = mm(cross.reshape(B * Lc, D), packed["ca_wkv"]) + packed["ca_bkv"]
    k = kv[:, :D].reshape(B, Lc, D)
    v = kv[:, D:].reshape(B, Lc, D)
    o = attn(q, k, v).reshape(B * L, D)
    ca = (mm(o, packed["proj_w"][2]) + packed["proj_b"][2]).reshape(B, L, D)
    x2 = ln(x1 + ca, packed["ln_g"][1], packed["ln_b"][1])

    hid = jnp.maximum(mm(x2.reshape(B * L, D), packed["w1"]), 0.0)
    y = mm(hid, packed["w2"]).reshape(B, L, D)
    return ln(x2 + y, packed["ln_g"][2], packed["ln_b"][2])


# --------------------------------- main -------------------------------------

if __name__ == "__main__":
    B, L, Lc = 8, 16, 24
    d_model, n_heads = 128, 4          # D = 128 keeps the lane axis dense
    d_ff = 4 * d_model

    key = jax.random.PRNGKey(0)
    kx, kc, kp = jax.random.split(key, 3)
    x = jax.random.normal(kx, (B, L, d_model), jnp.float32)
    cross = jax.random.normal(kc, (B, Lc, d_model), jnp.float32)

    params = make_params(kp, d_model, d_ff)
    packed = pack_params(params, n_heads)

    out = decoder_layer(x, cross, packed, n_heads)
    out = jax.block_until_ready(out)

    ref = decoder_layer_reference(x, cross, packed, n_heads)
    np.testing.assert_allclose(np.asarray(out), np.asarray(ref), atol=2e-2, rtol=2e-2)

    print("KERNEL_OK")
</pallas_src>

<mosaic_0001>
module attributes {stable_mosaic.version = 11 : i64} {
  func.func @decoder_layer_kernel(%arg0: i32, %arg1: memref<4x16x128xf32, #tpu.memory_space<vmem>>, %arg2: memref<4x24x128xf32, #tpu.memory_space<vmem>>, %arg3: memref<10x384x128xbf16, #tpu.memory_space<vmem>>, %arg4: memref<10x1x128xf32, #tpu.memory_space<vmem>>, %arg5: memref<128x384xbf16, #tpu.memory_space<vmem>>, %arg6: memref<1x384xf32, #tpu.memory_space<vmem>>, %arg7: memref<128x256xbf16, #tpu.memory_space<vmem>>, %arg8: memref<1x256xf32, #tpu.memory_space<vmem>>, %arg9: memref<3x128x128xbf16, #tpu.memory_space<vmem>>, %arg10: memref<3x1x128xf32, #tpu.memory_space<vmem>>, %arg11: memref<128x512xbf16, #tpu.memory_space<vmem>>, %arg12: memref<512x128xbf16, #tpu.memory_space<vmem>>, %arg13: memref<3x1x128xf32, #tpu.memory_space<vmem>>, %arg14: memref<3x1x128xf32, #tpu.memory_space<vmem>>, %arg15: memref<4x16x128xf32, #tpu.memory_space<vmem>>) attributes {dimension_semantics = [#tpu.dimension_semantics<parallel>], iteration_bounds = array<i64: 2>, scalar_prefetch = 0 : i64, scratch_operands = 0 : i64, tpu.core_type = #tpu.core_type<tc>, window_params = [{transform_indices = @transform_0, window_bounds = array<i64: 4, 16, 128>}, {transform_indices = @transform_1, window_bounds = array<i64: 4, 24, 128>}, {pipeline_mode = #tpu.pipeline_mode<synchronous>, transform_indices = @transform_2, window_bounds = array<i64: 10, 384, 128>}, {pipeline_mode = #tpu.pipeline_mode<synchronous>, transform_indices = @transform_3, window_bounds = array<i64: 10, 1, 128>}, {pipeline_mode = #tpu.pipeline_mode<synchronous>, transform_indices = @transform_4, window_bounds = array<i64: 128, 384>}, {pipeline_mode = #tpu.pipeline_mode<synchronous>, transform_indices = @transform_5, window_bounds = array<i64: 1, 384>}, {pipeline_mode = #tpu.pipeline_mode<synchronous>, transform_indices = @transform_6, window_bounds = array<i64: 128, 256>}, {pipeline_mode = #tpu.pipeline_mode<synchronous>, transform_indices = @transform_7, window_bounds = array<i64: 1, 256>}, {pipeline_mode = #tpu.pipeline_mode<synchronous>, transform_indices = @transform_8, window_bounds = array<i64: 3, 128, 128>}, {pipeline_mode = #tpu.pipeline_mode<synchronous>, transform_indices = @transform_9, window_bounds = array<i64: 3, 1, 128>}, {pipeline_mode = #tpu.pipeline_mode<synchronous>, transform_indices = @transform_10, window_bounds = array<i64: 128, 512>}, {pipeline_mode = #tpu.pipeline_mode<synchronous>, transform_indices = @transform_11, window_bounds = array<i64: 512, 128>}, {pipeline_mode = #tpu.pipeline_mode<synchronous>, transform_indices = @transform_12, window_bounds = array<i64: 3, 1, 128>}, {pipeline_mode = #tpu.pipeline_mode<synchronous>, transform_indices = @transform_13, window_bounds = array<i64: 3, 1, 128>}, {transform_indices = @transform_14, window_bounds = array<i64: 4, 16, 128>}]} {
    %c0 = arith.constant 0 : index
    %c0_0 = arith.constant 0 : index
    %c0_1 = arith.constant 0 : index
    %0 = vector.load %arg1[%c0, %c0_0, %c0_1] : memref<4x16x128xf32, #tpu.memory_space<vmem>>, vector<4x16x128xf32>
    %c0_2 = arith.constant 0 : index
    %c0_3 = arith.constant 0 : index
    %c0_4 = arith.constant 0 : index
    %1 = vector.load %arg2[%c0_2, %c0_3, %c0_4] : memref<4x24x128xf32, #tpu.memory_space<vmem>>, vector<4x24x128xf32>
    %2 = tpu.iota {dimensions = array<i32: 0>} : vector<64x1xi32>
    %c16_i32 = arith.constant 16 : i32
    %c0_i32 = arith.constant 0 : i32
    %3 = arith.cmpi eq, %c16_i32, %c0_i32 : i32
    %c1_i32 = arith.constant 1 : i32
    %4 = arith.select %3, %c1_i32, %c16_i32 : i32
    %5 = vector.broadcast %4 : i32 to vector<64x1xi32>
    %6 = arith.remsi %2, %5 : vector<64x1xi32>
    %c0_i32_5 = arith.constant 0 : i32
    %7 = vector.broadcast %c0_i32_5 : i32 to vector<64x1xi32>
    %8 = arith.cmpi ne, %6, %7 : vector<64x1xi32>
    %c0_i32_6 = arith.constant 0 : i32
    %9 = vector.broadcast %c0_i32_6 : i32 to vector<64x1xi32>
    %10 = arith.cmpi slt, %6, %9 : vector<64x1xi32>
    %c0_i32_7 = arith.constant 0 : i32
    %11 = arith.cmpi slt, %4, %c0_i32_7 : i32
    %12 = vector.broadcast %11 : i1 to vector<64x1xi1>
    %13 = vector.broadcast %12 : vector<64x1xi1> to vector<64x1xi1>
    %14 = arith.xori %10, %13 : vector<64x1xi1>
    %15 = arith.andi %14, %8 : vector<64x1xi1>
    %16 = vector.broadcast %4 : i32 to vector<64x1xi32>
    %17 = arith.addi %6, %16 : vector<64x1xi32>
    %18 = arith.select %15, %17, %6 : vector<64x1xi1>, vector<64x1xi32>
    %19 = vector.shape_cast %0 : vector<4x16x128xf32> to vector<64x128xf32>
    %c2_i32 = arith.constant 2 : i32
    %20 = tpu.dynamic_rotate %19 by %c2_i32 dim 0 : vector<64x128xf32>, i32 -> vector<64x128xf32>
    %c2_i32_8 = arith.constant 2 : i32
    %21 = vector.broadcast %c2_i32_8 : i32 to vector<64x1xi32>
    %22 = arith.cmpi sge, %18, %21 : vector<64x1xi32>
    %cst = arith.constant 0.000000e+00 : f32
    %23 = vector.shape_cast %22 : vector<64x1xi1> to vector<64x1xi1>
    %24 = vector.broadcast %23 : vector<64x1xi1> to vector<64x128xi1>
    %25 = vector.broadcast %cst : f32 to vector<64x128xf32>
    %26 = arith.select %24, %20, %25 : vector<64x128xi1>, vector<64x128xf32>
    %27 = arith.truncf %26 : vector<64x128xf32> to vector<64x128xbf16>
    %c1_i32_9 = arith.constant 1 : i32
    %28 = tpu.dynamic_rotate %19 by %c1_i32_9 dim 0 : vector<64x128xf32>, i32 -> vector<64x128xf32>
    %c1_i32_10 = arith.constant 1 : i32
    %29 = vector.broadcast %c1_i32_10 : i32 to vector<64x1xi32>
    %30 = arith.cmpi sge, %18, %29 : vector<64x1xi32>
    %cst_11 = arith.constant 0.000000e+00 : f32
    %31 = vector.shape_cast %30 : vector<64x1xi1> to vector<64x1xi1>
    %32 = vector.broadcast %31 : vector<64x1xi1> to vector<64x128xi1>
    %33 = vector.broadcast %cst_11 : f32 to vector<64x128xf32>
    %34 = arith.select %32, %28, %33 : vector<64x128xi1>, vector<64x128xf32>
    %35 = arith.truncf %34 : vector<64x128xf32> to vector<64x128xbf16>
    %36 = arith.truncf %19 : vector<64x128xf32> to vector<64x128xbf16>
    %37 = tpu.concatenate %27, %35, %36 in 1 : vector<64x128xbf16>, vector<64x128xbf16>, vector<64x128xbf16> -> vector<64x384xbf16>
    %c0_12 = arith.constant 0 : index
    %c0_13 = arith.constant 0 : index
    %c0_14 = arith.constant 0 : index
    %38 = vector.load %arg3[%c0_12, %c0_13, %c0_14] : memref<10x384x128xbf16, #tpu.memory_space<vmem>>, vector<1x384x128xbf16>
    %39 = vector.shape_cast %38 : vector<1x384x128xbf16> to vector<384x128xbf16>
    %cst_15 = arith.constant dense<0.000000e+00> : vector<64x128xf32>
    %40 = tpu.matmul %37, %39, %cst_15 {dimension_numbers = #tpu.dot_dimension_numbers<[1], [0], [0], [1], [0, 0, 1, 1], [], []>} : vector<64x384xbf16>, vector<384x128xbf16>, vector<64x128xf32> -> vector<64x128xf32>
    %c0_16 = arith.constant 0 : index
    %c0_17 = arith.constant 0 : index
    %c0_18 = arith.constant 0 : index
    %41 = vector.load %arg4[%c0_16, %c0_17, %c0_18] : memref<10x1x128xf32, #tpu.memory_space<vmem>>, vector<1x1x128xf32>
    %42 = vector.shape_cast %41 : vector<1x1x128xf32> to vector<1x128xf32>
    %43 = vector.broadcast %42 : vector<1x128xf32> to vector<64x128xf32>
    %44 = arith.addf %40, %43 : vector<64x128xf32>
    %cst_19 = arith.constant 0.000000e+00 : f32
    %45 = vector.broadcast %cst_19 : f32 to vector<64x128xf32>
    %46 = arith.maximumf %44, %45 : vector<64x128xf32>
    %c2_i32_20 = arith.constant 2 : i32
    %47 = tpu.dynamic_rotate %46 by %c2_i32_20 dim 0 : vector<64x128xf32>, i32 -> vector<64x128xf32>
    %c2_i32_21 = arith.constant 2 : i32
    %48 = vector.broadcast %c2_i32_21 : i32 to vector<64x1xi32>
    %49 = arith.cmpi sge, %18, %48 : vector<64x1xi32>
    %cst_22 = arith.constant 0.000000e+00 : f32
    %50 = vector.shape_cast %49 : vector<64x1xi1> to vector<64x1xi1>
    %51 = vector.broadcast %50 : vector<64x1xi1> to vector<64x128xi1>
    %52 = vector.broadcast %cst_22 : f32 to vector<64x128xf32>
    %53 = arith.select %51, %47, %52 : vector<64x128xi1>, vector<64x128xf32>
    %54 = arith.truncf %53 : vector<64x128xf32> to vector<64x128xbf16>
    %c1_i32_23 = arith.constant 1 : i32
    %55 = tpu.dynamic_rotate %46 by %c1_i32_23 dim 0 : vector<64x128xf32>, i32 -> vector<64x128xf32>
    %c1_i32_24 = arith.constant 1 : i32
    %56 = vector.broadcast %c1_i32_24 : i32 to vector<64x1xi32>
    %57 = arith.cmpi sge, %18, %56 : vector<64x1xi32>
    %cst_25 = arith.constant 0.000000e+00 : f32
    %58 = vector.shape_cast %57 : vector<64x1xi1> to vector<64x1xi1>
    %59 = vector.broadcast %58 : vector<64x1xi1> to vector<64x128xi1>
    %60 = vector.broadcast %cst_25 : f32 to vector<64x128xf32>
    %61 = arith.select %59, %55, %60 : vector<64x128xi1>, vector<64x128xf32>
    %62 = arith.truncf %61 : vector<64x128xf32> to vector<64x128xbf16>
    %63 = arith.truncf %46 : vector<64x128xf32> to vector<64x128xbf16>
    %64 = tpu.concatenate %54, %62, %63 in 1 : vector<64x128xbf16>, vector<64x128xbf16>, vector<64x128xbf16> -> vector<64x384xbf16>
    %c1 = arith.constant 1 : index
    %c0_26 = arith.constant 0 : index
    %c0_27 = arith.constant 0 : index
    %65 = vector.load %arg3[%c1, %c0_26, %c0_27] : memref<10x384x128xbf16, #tpu.memory_space<vmem>>, vector<1x384x128xbf16>
    %66 = vector.shape_cast %65 : vector<1x384x128xbf16> to vector<384x128xbf16>
    %cst_28 = arith.constant dense<0.000000e+00> : vector<64x128xf32>
    %67 = tpu.matmul %64, %66, %cst_28 {dimension_numbers = #tpu.dot_dimension_numbers<[1], [0], [0], [1], [0, 0, 1, 1], [], []>} : vector<64x384xbf16>, vector<384x128xbf16>, vector<64x128xf32> -> vector<64x128xf32>
    %c1_29 = arith.constant 1 : index
    %c0_30 = arith.constant 0 : index
    %c0_31 = arith.constant 0 : index
    %68 = vector.load %arg4[%c1_29, %c0_30, %c0_31] : memref<10x1x128xf32, #tpu.memory_space<vmem>>, vector<1x1x128xf32>
    %69 = vector.shape_cast %68 : vector<1x1x128xf32> to vector<1x128xf32>
    %70 = vector.broadcast %69 : vector<1x128xf32> to vector<64x128xf32>
    %71 = arith.addf %67, %70 : vector<64x128xf32>
    %cst_32 = arith.constant 0.000000e+00 : f32
    %72 = vector.broadcast %cst_32 : f32 to vector<64x128xf32>
    %73 = arith.maximumf %71, %72 : vector<64x128xf32>
    %74 = arith.addf %73, %19 : vector<64x128xf32>
    %cst_33 = arith.constant 0.000000e+00 : f32
    %75 = vector.broadcast %cst_33 : f32 to vector<64x128xf32>
    %76 = arith.maximumf %74, %75 : vector<64x128xf32>
    %c4_i32 = arith.constant 4 : i32
    %77 = tpu.dynamic_rotate %76 by %c4_i32 dim 0 : vector<64x128xf32>, i32 -> vector<64x128xf32>
    %c4_i32_34 = arith.constant 4 : i32
    %78 = vector.broadcast %c4_i32_34 : i32 to vector<64x1xi32>
    %79 = arith.cmpi sge, %18, %78 : vector<64x1xi32>
    %cst_35 = arith.constant 0.000000e+00 : f32
    %80 = vector.shape_cast %79 : vector<64x1xi1> to vector<64x1xi1>
    %81 = vector.broadcast %80 : vector<64x1xi1> to vector<64x128xi1>
    %82 = vector.broadcast %cst_35 : f32 to vector<64x128xf32>
    %83 = arith.select %81, %77, %82 : vector<64x128xi1>, vector<64x128xf32>
    %84 = arith.truncf %83 : vector<64x128xf32> to vector<64x128xbf16>
    %c2_i32_36 = arith.constant 2 : i32
    %85 = tpu.dynamic_rotate %76 by %c2_i32_36 dim 0 : vector<64x128xf32>, i32 -> vector<64x128xf32>
    %c2_i32_37 = arith.constant 2 : i32
    %86 = vector.broadcast %c2_i32_37 : i32 to vector<64x1xi32>
    %87 = arith.cmpi sge, %18, %86 : vector<64x1xi32>
    %cst_38 = arith.constant 0.000000e+00 : f32
    %88 = vector.shape_cast %87 : vector<64x1xi1> to vector<64x1xi1>
    %89 = vector.broadcast %88 : vector<64x1xi1> to vector<64x128xi1>
    %90 = vector.broadcast %cst_38 : f32 to vector<64x128xf32>
    %91 = arith.select %89, %85, %90 : vector<64x128xi1>, vector<64x128xf32>
    %92 = arith.truncf %91 : vector<64x128xf32> to vector<64x128xbf16>
    %93 = arith.truncf %76 : vector<64x128xf32> to vector<64x128xbf16>
    %94 = tpu.concatenate %84, %92, %93 in 1 : vector<64x128xbf16>, vector<64x128xbf16>, vector<64x128xbf16> -> vector<64x384xbf16>
    %c2 = arith.constant 2 : index
    %c0_39 = arith.constant 0 : index
    %c0_40 = arith.constant 0 : index
    %95 = vector.load %arg3[%c2, %c0_39, %c0_40] : memref<10x384x128xbf16, #tpu.memory_space<vmem>>, vector<1x384x128xbf16>
    %96 = vector.shape_cast %95 : vector<1x384x128xbf16> to vector<384x128xbf16>
    %cst_41 = arith.constant dense<0.000000e+00> : vector<64x128xf32>
    %97 = tpu.matmul %94, %96, %cst_41 {dimension_numbers = #tpu.dot_dimension_numbers<[1], [0], [0], [1], [0, 0, 1, 1], [], []>} : vector<64x384xbf16>, vector<384x128xbf16>, vector<64x128xf32> -> vector<64x128xf32>
    %c2_42 = arith.constant 2 : index
    %c0_43 = arith.constant 0 : index
    %c0_44 = arith.constant 0 : index
    %98 = vector.load %arg4[%c2_42, %c0_43, %c0_44] : memref<10x1x128xf32, #tpu.memory_space<vmem>>, vector<1x1x128xf32>
    %99 = vector.shape_cast %98 : vector<1x1x128xf32> to vector<1x128xf32>
    %100 = vector.broadcast %99 : vector<1x128xf32> to vector<64x128xf32>
    %101 = arith.addf %97, %100 : vector<64x128xf32>
    %cst_45 = arith.constant 0.000000e+00 : f32
    %102 = vector.broadcast %cst_45 : f32 to vector<64x128xf32>
    %103 = arith.maximumf %101, %102 : vector<64x128xf32>
    %c4_i32_46 = arith.constant 4 : i32
    %104 = tpu.dynamic_rotate %103 by %c4_i32_46 dim 0 : vector<64x128xf32>, i32 -> vector<64x128xf32>
    %c4_i32_47 = arith.constant 4 : i32
    %105 = vector.broadcast %c4_i32_47 : i32 to vector<64x1xi32>
    %106 = arith.cmpi sge, %18, %105 : vector<64x1xi32>
    %cst_48 = arith.constant 0.000000e+00 : f32
    %107 = vector.shape_cast %106 : vector<64x1xi1> to vector<64x1xi1>
    %108 = vector.broadcast %107 : vector<64x1xi1> to vector<64x128xi1>
    %109 = vector.broadcast %cst_48 : f32 to vector<64x128xf32>
    %110 = arith.select %108, %104, %109 : vector<64x128xi1>, vector<64x128xf32>
    %111 = arith.truncf %110 : vector<64x128xf32> to vector<64x128xbf16>
    %c2_i32_49 = arith.constant 2 : i32
    %112 = tpu.dynamic_rotate %103 by %c2_i32_49 dim 0 : vector<64x128xf32>, i32 -> vector<64x128xf32>
    %c2_i32_50 = arith.constant 2 : i32
    %113 = vector.broadcast %c2_i32_50 : i32 to vector<64x1xi32>
    %114 = arith.cmpi sge, %18, %113 : vector<64x1xi32>
    %cst_51 = arith.constant 0.000000e+00 : f32
    %115 = vector.shape_cast %114 : vector<64x1xi1> to vector<64x1xi1>
    %116 = vector.broadcast %115 : vector<64x1xi1> to vector<64x128xi1>
    %117 = vector.broadcast %cst_51 : f32 to vector<64x128xf32>
    %118 = arith.select %116, %112, %117 : vector<64x128xi1>, vector<64x128xf32>
    %119 = arith.truncf %118 : vector<64x128xf32> to vector<64x128xbf16>
    %120 = arith.truncf %103 : vector<64x128xf32> to vector<64x128xbf16>
    %121 = tpu.concatenate %111, %119, %120 in 1 : vector<64x128xbf16>, vector<64x128xbf16>, vector<64x128xbf16> -> vector<64x384xbf16>
    %c3 = arith.constant 3 : index
    %c0_52 = arith.constant 0 : index
    %c0_53 = arith.constant 0 : index
    %122 = vector.load %arg3[%c3, %c0_52, %c0_53] : memref<10x384x128xbf16, #tpu.memory_space<vmem>>, vector<1x384x128xbf16>
    %123 = vector.shape_cast %122 : vector<1x384x128xbf16> to vector<384x128xbf16>
    %cst_54 = arith.constant dense<0.000000e+00> : vector<64x128xf32>
    %124 = tpu.matmul %121, %123, %cst_54 {dimension_numbers = #tpu.dot_dimension_numbers<[1], [0], [0], [1], [0, 0, 1, 1], [], []>} : vector<64x384xbf16>, vector<384x128xbf16>, vector<64x128xf32> -> vector<64x128xf32>
    %c3_55 = arith.constant 3 : index
    %c0_56 = arith.constant 0 : index
    %c0_57 = arith.constant 0 : index
    %125 = vector.load %arg4[%c3_55, %c0_56, %c0_57] : memref<10x1x128xf32, #tpu.memory_space<vmem>>, vector<1x1x128xf32>
    %126 = vector.shape_cast %125 : vector<1x1x128xf32> to vector<1x128xf32>
    %127 = vector.broadcast %126 : vector<1x128xf32> to vector<64x128xf32>
    %128 = arith.addf %124, %127 : vector<64x128xf32>
    %cst_58 = arith.constant 0.000000e+00 : f32
    %129 = vector.broadcast %cst_58 : f32 to vector<64x128xf32>
    %130 = arith.maximumf %128, %129 : vector<64x128xf32>
    %131 = arith.addf %130, %76 : vector<64x128xf32>
    %cst_59 = arith.constant 0.000000e+00 : f32
    %132 = vector.broadcast %cst_59 : f32 to vector<64x128xf32>
    %133 = arith.maximumf %131, %132 : vector<64x128xf32>
    %c8_i32 = arith.constant 8 : i32
    %134 = tpu.dynamic_rotate %133 by %c8_i32 dim 0 : vector<64x128xf32>, i32 -> vector<64x128xf32>
    %c8_i32_60 = arith.constant 8 : i32
    %135 = vector.broadcast %c8_i32_60 : i32 to vector<64x1xi32>
    %136 = arith.cmpi sge, %18, %135 : vector<64x1xi32>
    %cst_61 = arith.constant 0.000000e+00 : f32
    %137 = vector.shape_cast %136 : vector<64x1xi1> to vector<64x1xi1>
    %138 = vector.broadcast %137 : vector<64x1xi1> to vector<64x128xi1>
    %139 = vector.broadcast %cst_61 : f32 to vector<64x128xf32>
    %140 = arith.select %138, %134, %139 : vector<64x128xi1>, vector<64x128xf32>
    %141 = arith.truncf %140 : vector<64x128xf32> to vector<64x128xbf16>
    %c4_i32_62 = arith.constant 4 : i32
    %142 = tpu.dynamic_rotate %133 by %c4_i32_62 dim 0 : vector<64x128xf32>, i32 -> vector<64x128xf32>
    %c4_i32_63 = arith.constant 4 : i32
    %143 = vector.broadcast %c4_i32_63 : i32 to vector<64x1xi32>
    %144 = arith.cmpi sge, %18, %143 : vector<64x1xi32>
    %cst_64 = arith.constant 0.000000e+00 : f32
    %145 = vector.shape_cast %144 : vector<64x1xi1> to vector<64x1xi1>
    %146 = vector.broadcast %145 : vector<64x1xi1> to vector<64x128xi1>
    %147 = vector.broadcast %cst_64 : f32 to vector<64x128xf32>
    %148 = arith.select %146, %142, %147 : vector<64x128xi1>, vector<64x128xf32>
    %149 = arith.truncf %148 : vector<64x128xf32> to vector<64x128xbf16>
    %150 = arith.truncf %133 : vector<64x128xf32> to vector<64x128xbf16>
    %151 = tpu.concatenate %141, %149, %150 in 1 : vector<64x128xbf16>, vector<64x128xbf16>, vector<64x128xbf16> -> vector<64x384xbf16>
    %c4 = arith.constant 4 : index
    %c0_65 = arith.constant 0 : index
    %c0_66 = arith.constant 0 : index
    %152 = vector.load %arg3[%c4, %c0_65, %c0_66] : memref<10x384x128xbf16, #tpu.memory_space<vmem>>, vector<1x384x128xbf16>
    %153 = vector.shape_cast %152 : vector<1x384x128xbf16> to vector<384x128xbf16>
    %cst_67 = arith.constant dense<0.000000e+00> : vector<64x128xf32>
    %154 = tpu.matmul %151, %153, %cst_67 {dimension_numbers = #tpu.dot_dimension_numbers<[1], [0], [0], [1], [0, 0, 1, 1], [], []>} : vector<64x384xbf16>, vector<384x128xbf16>, vector<64x128xf32> -> vector<64x128xf32>
    %c4_68 = arith.constant 4 : index
    %c0_69 = arith.constant 0 : index
    %c0_70 = arith.constant 0 : index
    %155 = vector.load %arg4[%c4_68, %c0_69, %c0_70] : memref<10x1x128xf32, #tpu.memory_space<vmem>>, vector<1x1x128xf32>
    %156 = vector.shape_cast %155 : vector<1x1x128xf32> to vector<1x128xf32>
    %157 = vector.broadcast %156 : vector<1x128xf32> to vector<64x128xf32>
    %158 = arith.addf %154, %157 : vector<64x128xf32>
    %cst_71 = arith.constant 0.000000e+00 : f32
    %159 = vector.broadcast %cst_71 : f32 to vector<64x128xf32>
    %160 = arith.maximumf %158, %159 : vector<64x128xf32>
    %c8_i32_72 = arith.constant 8 : i32
    %161 = tpu.dynamic_rotate %160 by %c8_i32_72 dim 0 : vector<64x128xf32>, i32 -> vector<64x128xf32>
    %c8_i32_73 = arith.constant 8 : i32
    %162 = vector.broadcast %c8_i32_73 : i32 to vector<64x1xi32>
    %163 = arith.cmpi sge, %18, %162 : vector<64x1xi32>
    %cst_74 = arith.constant 0.000000e+00 : f32
    %164 = vector.shape_cast %163 : vector<64x1xi1> to vector<64x1xi1>
    %165 = vector.broadcast %164 : vector<64x1xi1> to vector<64x128xi1>
    %166 = vector.broadcast %cst_74 : f32 to vector<64x128xf32>
    %167 = arith.select %165, %161, %166 : vector<64x128xi1>, vector<64x128xf32>
    %168 = arith.truncf %167 : vector<64x128xf32> to vector<64x128xbf16>
    %c4_i32_75 = arith.constant 4 : i32
    %169 = tpu.dynamic_rotate %160 by %c4_i32_75 dim 0 : vector<64x128xf32>, i32 -> vector<64x128xf32>
    %c4_i32_76 = arith.constant 4 : i32
    %170 = vector.broadcast %c4_i32_76 : i32 to vector<64x1xi32>
    %171 = arith.cmpi sge, %18, %170 : vector<64x1xi32>
    %cst_77 = arith.constant 0.000000e+00 : f32
    %172 = vector.shape_cast %171 : vector<64x1xi1> to vector<64x1xi1>
    %173 = vector.broadcast %172 : vector<64x1xi1> to vector<64x128xi1>
    %174 = vector.broadcast %cst_77 : f32 to vector<64x128xf32>
    %175 = arith.select %173, %169, %174 : vector<64x128xi1>, vector<64x128xf32>
    %176 = arith.truncf %175 : vector<64x128xf32> to vector<64x128xbf16>
    %177 = arith.truncf %160 : vector<64x128xf32> to vector<64x128xbf16>
    %178 = tpu.concatenate %168, %176, %177 in 1 : vector<64x128xbf16>, vector<64x128xbf16>, vector<64x128xbf16> -> vector<64x384xbf16>
    %c5 = arith.constant 5 : index
    %c0_78 = arith.constant 0 : index
    %c0_79 = arith.constant 0 : index
    %179 = vector.load %arg3[%c5, %c0_78, %c0_79] : memref<10x384x128xbf16, #tpu.memory_space<vmem>>, vector<1x384x128xbf16>
    %180 = vector.shape_cast %179 : vector<1x384x128xbf16> to vector<384x128xbf16>
    %cst_80 = arith.constant dense<0.000000e+00> : vector<64x128xf32>
    %181 = tpu.matmul %178, %180, %cst_80 {dimension_numbers = #tpu.dot_dimension_numbers<[1], [0], [0], [1], [0, 0, 1, 1], [], []>} : vector<64x384xbf16>, vector<384x128xbf16>, vector<64x128xf32> -> vector<64x128xf32>
    %c5_81 = arith.constant 5 : index
    %c0_82 = arith.constant 0 : index
    %c0_83 = arith.constant 0 : index
    %182 = vector.load %arg4[%c5_81, %c0_82, %c0_83] : memref<10x1x128xf32, #tpu.memory_space<vmem>>, vector<1x1x128xf32>
    %183 = vector.shape_cast %182 : vector<1x1x128xf32> to vector<1x128xf32>
    %184 = vector.broadcast %183 : vector<1x128xf32> to vector<64x128xf32>
    %185 = arith.addf %181, %184 : vector<64x128xf32>
    %cst_84 = arith.constant 0.000000e+00 : f32
    %186 = vector.broadcast %cst_84 : f32 to vector<64x128xf32>
    %187 = arith.maximumf %185, %186 : vector<64x128xf32>
    %188 = arith.addf %187, %133 : vector<64x128xf32>
    %cst_85 = arith.constant 0.000000e+00 : f32
    %189 = vector.broadcast %cst_85 : f32 to vector<64x128xf32>
    %190 = arith.maximumf %188, %189 : vector<64x128xf32>
    %c8_i32_86 = arith.constant 8 : i32
    %191 = tpu.dynamic_rotate %190 by %c8_i32_86 dim 0 : vector<64x128xf32>, i32 -> vector<64x128xf32>
    %c8_i32_87 = arith.constant 8 : i32
    %192 = vector.broadcast %c8_i32_87 : i32 to vector<64x1xi32>
    %193 = arith.cmpi sge, %18, %192 : vector<64x1xi32>
    %cst_88 = arith.constant 0.000000e+00 : f32
    %194 = vector.shape_cast %193 : vector<64x1xi1> to vector<64x1xi1>
    %195 = vector.broadcast %194 : vector<64x1xi1> to vector<64x128xi1>
    %196 = vector.broadcast %cst_88 : f32 to vector<64x128xf32>
    %197 = arith.select %195, %191, %196 : vector<64x128xi1>, vector<64x128xf32>
    %198 = arith.truncf %197 : vector<64x128xf32> to vector<64x128xbf16>
    %199 = arith.truncf %190 : vector<64x128xf32> to vector<64x128xbf16>
    %200 = tpu.concatenate %198, %199 in 1 : vector<64x128xbf16>, vector<64x128xbf16> -> vector<64x256xbf16>
    %c6 = arith.constant 6 : index
    %c0_89 = arith.constant 0 : index
    %c0_90 = arith.constant 0 : index
    %201 = vector.load %arg3[%c6, %c0_89, %c0_90] : memref<10x384x128xbf16, #tpu.memory_space<vmem>>, vector<1x384x128xbf16>
    %202 = vector.shape_cast %201 : vector<1x384x128xbf16> to vector<384x128xbf16>
    %203 = vector.extract_strided_slice %202 {offsets = [128, 0], sizes = [256, 128], strides = [1, 1]} : vector<384x128xbf16> to vector<256x128xbf16>
    %cst_91 = arith.constant dense<0.000000e+00> : vector<64x128xf32>
    %204 = tpu.matmul %200, %203, %cst_91 {dimension_numbers = #tpu.dot_dimension_numbers<[1], [0], [0], [1], [0, 0, 1, 1], [], []>} : vector<64x256xbf16>, vector<256x128xbf16>, vector<64x128xf32> -> vector<64x128xf32>
    %c6_92 = arith.constant 6 : index
    %c0_93 = arith.constant 0 : index
    %c0_94 = arith.constant 0 : index
    %205 = vector.load %arg4[%c6_92, %c0_93, %c0_94] : memref<10x1x128xf32, #tpu.memory_space<vmem>>, vector<1x1x128xf32>
    %206 = vector.shape_cast %205 : vector<1x1x128xf32> to vector<1x128xf32>
    %207 = vector.broadcast %206 : vector<1x128xf32> to vector<64x128xf32>
    %208 = arith.addf %204, %207 : vector<64x128xf32>
    %cst_95 = arith.constant 0.000000e+00 : f32
    %209 = vector.broadcast %cst_95 : f32 to vector<64x128xf32>
    %210 = arith.maximumf %208, %209 : vector<64x128xf32>
    %c8_i32_96 = arith.constant 8 : i32
    %211 = tpu.dynamic_rotate %210 by %c8_i32_96 dim 0 : vector<64x128xf32>, i32 -> vector<64x128xf32>
    %c8_i32_97 = arith.constant 8 : i32
    %212 = vector.broadcast %c8_i32_97 : i32 to vector<64x1xi32>
    %213 = arith.cmpi sge, %18, %212 : vector<64x1xi32>
    %cst_98 = arith.constant 0.000000e+00 : f32
    %214 = vector.shape_cast %213 : vector<64x1xi1> to vector<64x1xi1>
    %215 = vector.broadcast %214 : vector<64x1xi1> to vector<64x128xi1>
    %216 = vector.broadcast %cst_98 : f32 to vector<64x128xf32>
    %217 = arith.select %215, %211, %216 : vector<64x128xi1>, vector<64x128xf32>
    %218 = arith.truncf %217 : vector<64x128xf32> to vector<64x128xbf16>
    %219 = arith.truncf %210 : vector<64x128xf32> to vector<64x128xbf16>
    %220 = tpu.concatenate %218, %219 in 1 : vector<64x128xbf16>, vector<64x128xbf16> -> vector<64x256xbf16>
    %c7 = arith.constant 7 : index
    %c0_99 = arith.constant 0 : index
    %c0_100 = arith.constant 0 : index
    %221 = vector.load %arg3[%c7, %c0_99, %c0_100] : memref<10x384x128xbf16, #tpu.memory_space<vmem>>, vector<1x384x128xbf16>
    %222 = vector.shape_cast %221 : vector<1x384x128xbf16> to vector<384x128xbf16>
    %223 = vector.extract_strided_slice %222 {offsets = [128, 0], sizes = [256, 128], strides = [1, 1]} : vector<384x128xbf16> to vector<256x128xbf16>
    %cst_101 = arith.constant dense<0.000000e+00> : vector<64x128xf32>
    %224 = tpu.matmul %220, %223, %cst_101 {dimension_numbers = #tpu.dot_dimension_numbers<[1], [0], [0], [1], [0, 0, 1, 1], [], []>} : vector<64x256xbf16>, vector<256x128xbf16>, vector<64x128xf32> -> vector<64x128xf32>
    %c7_102 = arith.constant 7 : index
    %c0_103 = arith.constant 0 : index
    %c0_104 = arith.constant 0 : index
    %225 = vector.load %arg4[%c7_102, %c0_103, %c0_104] : memref<10x1x128xf32, #tpu.memory_space<vmem>>, vector<1x1x128xf32>
    %226 = vector.shape_cast %225 : vector<1x1x128xf32> to vector<1x128xf32>
    %227 = vector.broadcast %226 : vector<1x128xf32> to vector<64x128xf32>
    %228 = arith.addf %224, %227 : vector<64x128xf32>
    %cst_105 = arith.constant 0.000000e+00 : f32
    %229 = vector.broadcast %cst_105 : f32 to vector<64x128xf32>
    %230 = arith.maximumf %228, %229 : vector<64x128xf32>
    %231 = arith.addf %230, %190 : vector<64x128xf32>
    %cst_106 = arith.constant 0.000000e+00 : f32
    %232 = vector.broadcast %cst_106 : f32 to vector<64x128xf32>
    %233 = arith.maximumf %231, %232 : vector<64x128xf32>
    %234 = arith.truncf %233 : vector<64x128xf32> to vector<64x128xbf16>
    %c8 = arith.constant 8 : index
    %c0_107 = arith.constant 0 : index
    %c0_108 = arith.constant 0 : index
    %235 = vector.load %arg3[%c8, %c0_107, %c0_108] : memref<10x384x128xbf16, #tpu.memory_space<vmem>>, vector<1x384x128xbf16>
    %236 = vector.shape_cast %235 : vector<1x384x128xbf16> to vector<384x128xbf16>
    %237 = vector.extract_strided_slice %236 {offsets = [256, 0], sizes = [128, 128], strides = [1, 1]} : vector<384x128xbf16> to vector<128x128xbf16>
    %cst_109 = arith.constant dense<0.000000e+00> : vector<64x128xf32>
    %238 = tpu.matmul %234, %237, %cst_109 {dimension_numbers = #tpu.dot_dimension_numbers<[1], [0], [0], [1], [0, 0, 1, 1], [], []>} : vector<64x128xbf16>, vector<128x128xbf16>, vector<64x128xf32> -> vector<64x128xf32>
    %c8_110 = arith.constant 8 : index
    %c0_111 = arith.constant 0 : index
    %c0_112 = arith.constant 0 : index
    %239 = vector.load %arg4[%c8_110, %c0_111, %c0_112] : memref<10x1x128xf32, #tpu.memory_space<vmem>>, vector<1x1x128xf32>
    %240 = vector.shape_cast %239 : vector<1x1x128xf32> to vector<1x128xf32>
    %241 = vector.broadcast %240 : vector<1x128xf32> to vector<64x128xf32>
    %242 = arith.addf %238, %241 : vector<64x128xf32>
    %cst_113 = arith.constant 0.000000e+00 : f32
    %243 = vector.broadcast %cst_113 : f32 to vector<64x128xf32>
    %244 = arith.maximumf %242, %243 : vector<64x128xf32>
    %245 = arith.truncf %244 : vector<64x128xf32> to vector<64x128xbf16>
    %c9 = arith.constant 9 : index
    %c0_114 = arith.constant 0 : index
    %c0_115 = arith.constant 0 : index
    %246 = vector.load %arg3[%c9, %c0_114, %c0_115] : memref<10x384x128xbf16, #tpu.memory_space<vmem>>, vector<1x384x128xbf16>
    %247 = vector.shape_cast %246 : vector<1x384x128xbf16> to vector<384x128xbf16>
    %248 = vector.extract_strided_slice %247 {offsets = [256, 0], sizes = [128, 128], strides = [1, 1]} : vector<384x128xbf16> to vector<128x128xbf16>
    %cst_116 = arith.constant dense<0.000000e+00> : vector<64x128xf32>
    %249 = tpu.matmul %245, %248, %cst_116 {dimension_numbers = #tpu.dot_dimension_numbers<[1], [0], [0], [1], [0, 0, 1, 1], [], []>} : vector<64x128xbf16>, vector<128x128xbf16>, vector<64x128xf32> -> vector<64x128xf32>
    %c9_117 = arith.constant 9 : index
    %c0_118 = arith.constant 0 : index
    %c0_119 = arith.constant 0 : index
    %250 = vector.load %arg4[%c9_117, %c0_118, %c0_119] : memref<10x1x128xf32, #tpu.memory_space<vmem>>, vector<1x1x128xf32>
    %251 = vector.shape_cast %250 : vector<1x1x128xf32> to vector<1x128xf32>
    %252 = vector.broadcast %251 : vector<1x128xf32> to vector<64x128xf32>
    %253 = arith.addf %249, %252 : vector<64x128xf32>
    %cst_120 = arith.constant 0.000000e+00 : f32
    %254 = vector.broadcast %cst_120 : f32 to vector<64x128xf32>
    %255 = arith.maximumf %253, %254 : vector<64x128xf32>
    %256 = arith.addf %255, %233 : vector<64x128xf32>
    %cst_121 = arith.constant 0.000000e+00 : f32
    %257 = vector.broadcast %cst_121 : f32 to vector<64x128xf32>
    %258 = arith.maximumf %256, %257 : vector<64x128xf32>
    %259 = arith.truncf %258 : vector<64x128xf32> to vector<64x128xbf16>
    %c0_122 = arith.constant 0 : index
    %c0_123 = arith.constant 0 : index
    %260 = vector.load %arg5[%c0_122, %c0_123] : memref<128x384xbf16, #tpu.memory_space<vmem>>, vector<128x384xbf16>
    %cst_124 = arith.constant dense<0.000000e+00> : vector<64x384xf32>
    %261 = tpu.matmul %259, %260, %cst_124 {dimension_numbers = #tpu.dot_dimension_numbers<[1], [0], [0], [1], [0, 0, 1, 1], [], []>} : vector<64x128xbf16>, vector<128x384xbf16>, vector<64x384xf32> -> vector<64x384xf32>
    %c0_125 = arith.constant 0 : index
    %c0_126 = arith.constant 0 : index
    %262 = vector.load %arg6[%c0_125, %c0_126] : memref<1x384xf32, #tpu.memory_space<vmem>>, vector<1x384xf32>
    %263 = vector.broadcast %262 : vector<1x384xf32> to vector<64x384xf32>
    %264 = arith.addf %261, %263 : vector<64x384xf32>
    %265 = vector.extract_strided_slice %264 {offsets = [0, 0], sizes = [64, 128], strides = [1, 1]} : vector<64x384xf32> to vector<64x128xf32>
    %266 = vector.shape_cast %265 : vector<64x128xf32> to vector<4x16x128xf32>
    %267 = vector.extract_strided_slice %264 {offsets = [0, 128], sizes = [64, 128], strides = [1, 1]} : vector<64x384xf32> to vector<64x128xf32>
    %268 = vector.shape_cast %267 : vector<64x128xf32> to vector<4x16x128xf32>
    %269 = vector.extract_strided_slice %264 {offsets = [0, 256], sizes = [64, 128], strides = [1, 1]} : vector<64x384xf32> to vector<64x128xf32>
    %270 = vector.shape_cast %269 : vector<64x128xf32> to vector<4x16x128xf32>
    %271 = arith.truncf %266 : vector<4x16x128xf32> to vector<4x16x128xbf16>
    %272 = arith.truncf %268 : vector<4x16x128xf32> to vector<4x16x128xbf16>
    %273 = arith.truncf %270 : vector<4x16x128xf32> to vector<4x16x128xbf16>
    %274 = vector.extract_strided_slice %271 {offsets = [0, 0, 0], sizes = [4, 16, 32], strides = [1, 1, 1]} : vector<4x16x128xbf16> to vector<4x16x32xbf16>
    %275 = vector.extract_strided_slice %272 {offsets = [0, 0, 0], sizes = [4, 16, 32], strides = [1, 1, 1]} : vector<4x16x128xbf16> to vector<4x16x32xbf16>
    %276 = vector.extract_strided_slice %273 {offsets = [0, 0, 0], sizes = [4, 16, 32], strides = [1, 1, 1]} : vector<4x16x128xbf16> to vector<4x16x32xbf16>
    "tpu.trace_start"() <{level = 10 : i32, message = "bqd,bkd->bqk"}> : () -> ()
    %cst_127 = arith.constant dense<0.000000e+00> : vector<4x16x16xf32>
    %277 = tpu.matmul %274, %275, %cst_127 {dimension_numbers = #tpu.dot_dimension_numbers<[2], [2], [1], [1], [0, 0, 0, 1, 1, 1], [0], [0]>} : vector<4x16x32xbf16>, vector<4x16x32xbf16>, vector<4x16x16xf32> -> vector<4x16x16xf32>
    "tpu.trace_stop"() : () -> ()
    %cst_128 = arith.constant dense<0xFF800000> : vector<4x16xf32>
    %278 = vector.multi_reduction <maximumf>, %277, %cst_128 [2] : vector<4x16x16xf32> to vector<4x16xf32>
    %279 = vector.shape_cast %278 : vector<4x16xf32> to vector<4x16x1xf32>
    %280 = vector.broadcast %279 : vector<4x16x1xf32> to vector<4x16x16xf32>
    %281 = arith.subf %277, %280 : vector<4x16x16xf32>
    %282 = math.exp %281 : vector<4x16x16xf32>
    %cst_129 = arith.constant dense<0.000000e+00> : vector<4x16xf32>
    %283 = vector.multi_reduction <add>, %282, %cst_129 [2] : vector<4x16x16xf32> to vector<4x16xf32>
    %284 = vector.shape_cast %283 : vector<4x16xf32> to vector<4x16x1xf32>
    %285 = tpu.reciprocal %284 {approx = true} : vector<4x16x1xf32> -> vector<4x16x1xf32>
    %286 = vector.broadcast %285 : vector<4x16x1xf32> to vector<4x16x16xf32>
    %287 = arith.mulf %282, %286 : vector<4x16x16xf32>
    %288 = arith.truncf %287 : vector<4x16x16xf32> to vector<4x16x16xbf16>
    "tpu.trace_start"() <{level = 10 : i32, message = "bqk,bkd->bqd"}> : () -> ()
    %cst_130 = arith.constant dense<0.000000e+00> : vector<4x16x32xf32>
    %289 = tpu.matmul %288, %276, %cst_130 {dimension_numbers = #tpu.dot_dimension_numbers<[2], [1], [1], [2], [0, 0, 0, 1, 1, 2], [0], [0]>} : vector<4x16x16xbf16>, vector<4x16x32xbf16>, vector<4x16x32xf32> -> vector<4x16x32xf32>
    "tpu.trace_stop"() : () -> ()
    %290 = arith.truncf %289 : vector<4x16x32xf32> to vector<4x16x32xbf16>
    %291 = vector.extract_strided_slice %271 {offsets = [0, 0, 32], sizes = [4, 16, 32], strides = [1, 1, 1]} : vector<4x16x128xbf16> to vector<4x16x32xbf16>
    %292 = vector.extract_strided_slice %272 {offsets = [0, 0, 32], sizes = [4, 16, 32], strides = [1, 1, 1]} : vector<4x16x128xbf16> to vector<4x16x32xbf16>
    %293 = vector.extract_strided_slice %273 {offsets = [0, 0, 32], sizes = [4, 16, 32], strides = [1, 1, 1]} : vector<4x16x128xbf16> to vector<4x16x32xbf16>
    "tpu.trace_start"() <{level = 10 : i32, message = "bqd,bkd->bqk"}> : () -> ()
    %cst_131 = arith.constant dense<0.000000e+00> : vector<4x16x16xf32>
    %294 = tpu.matmul %291, %292, %cst_131 {dimension_numbers = #tpu.dot_dimension_numbers<[2], [2], [1], [1], [0, 0, 0, 1, 1, 1], [0], [0]>} : vector<4x16x32xbf16>, vector<4x16x32xbf16>, vector<4x16x16xf32> -> vector<4x16x16xf32>
    "tpu.trace_stop"() : () -> ()
    %cst_132 = arith.constant dense<0xFF800000> : vector<4x16xf32>
    %295 = vector.multi_reduction <maximumf>, %294, %cst_132 [2] : vector<4x16x16xf32> to vector<4x16xf32>
    %296 = vector.shape_cast %295 : vector<4x16xf32> to vector<4x16x1xf32>
    %297 = vector.broadcast %296 : vector<4x16x1xf32> to vector<4x16x16xf32>
    %298 = arith.subf %294, %297 : vector<4x16x16xf32>
    %299 = math.exp %298 : vector<4x16x16xf32>
    %cst_133 = arith.constant dense<0.000000e+00> : vector<4x16xf32>
    %300 = vector.multi_reduction <add>, %299, %cst_133 [2] : vector<4x16x16xf32> to vector<4x16xf32>
    %301 = vector.shape_cast %300 : vector<4x16xf32> to vector<4x16x1xf32>
    %302 = tpu.reciprocal %301 {approx = true} : vector<4x16x1xf32> -> vector<4x16x1xf32>
    %303 = vector.broadcast %302 : vector<4x16x1xf32> to vector<4x16x16xf32>
    %304 = arith.mulf %299, %303 : vector<4x16x16xf32>
    %305 = arith.truncf %304 : vector<4x16x16xf32> to vector<4x16x16xbf16>
    "tpu.trace_start"() <{level = 10 : i32, message = "bqk,bkd->bqd"}> : () -> ()
    %cst_134 = arith.constant dense<0.000000e+00> : vector<4x16x32xf32>
    %306 = tpu.matmul %305, %293, %cst_134 {dimension_numbers = #tpu.dot_dimension_numbers<[2], [1], [1], [2], [0, 0, 0, 1, 1, 2], [0], [0]>} : vector<4x16x16xbf16>, vector<4x16x32xbf16>, vector<4x16x32xf32> -> vector<4x16x32xf32>
    "tpu.trace_stop"() : () -> ()
    %307 = arith.truncf %306 : vector<4x16x32xf32> to vector<4x16x32xbf16>
    %308 = vector.extract_strided_slice %271 {offsets = [0, 0, 64], sizes = [4, 16, 32], strides = [1, 1, 1]} : vector<4x16x128xbf16> to vector<4x16x32xbf16>
    %309 = vector.extract_strided_slice %272 {offsets = [0, 0, 64], sizes = [4, 16, 32], strides = [1, 1, 1]} : vector<4x16x128xbf16> to vector<4x16x32xbf16>
    %310 = vector.extract_strided_slice %273 {offsets = [0, 0, 64], sizes = [4, 16, 32], strides = [1, 1, 1]} : vector<4x16x128xbf16> to vector<4x16x32xbf16>
    "tpu.trace_start"() <{level = 10 : i32, message = "bqd,bkd->bqk"}> : () -> ()
    %cst_135 = arith.constant dense<0.000000e+00> : vector<4x16x16xf32>
    %311 = tpu.matmul %308, %309, %cst_135 {dimension_numbers = #tpu.dot_dimension_numbers<[2], [2], [1], [1], [0, 0, 0, 1, 1, 1], [0], [0]>} : vector<4x16x32xbf16>, vector<4x16x32xbf16>, vector<4x16x16xf32> -> vector<4x16x16xf32>
    "tpu.trace_stop"() : () -> ()
    %cst_136 = arith.constant dense<0xFF800000> : vector<4x16xf32>
    %312 = vector.multi_reduction <maximumf>, %311, %cst_136 [2] : vector<4x16x16xf32> to vector<4x16xf32>
    %313 = vector.shape_cast %312 : vector<4x16xf32> to vector<4x16x1xf32>
    %314 = vector.broadcast %313 : vector<4x16x1xf32> to vector<4x16x16xf32>
    %315 = arith.subf %311, %314 : vector<4x16x16xf32>
    %316 = math.exp %315 : vector<4x16x16xf32>
    %cst_137 = arith.constant dense<0.000000e+00> : vector<4x16xf32>
    %317 = vector.multi_reduction <add>, %316, %cst_137 [2] : vector<4x16x16xf32> to vector<4x16xf32>
    %318 = vector.shape_cast %317 : vector<4x16xf32> to vector<4x16x1xf32>
    %319 = tpu.reciprocal %318 {approx = true} : vector<4x16x1xf32> -> vector<4x16x1xf32>
    %320 = vector.broadcast %319 : vector<4x16x1xf32> to vector<4x16x16xf32>
    %321 = arith.mulf %316, %320 : vector<4x16x16xf32>
    %322 = arith.truncf %321 : vector<4x16x16xf32> to vector<4x16x16xbf16>
    "tpu.trace_start"() <{level = 10 : i32, message = "bqk,bkd->bqd"}> : () -> ()
    %cst_138 = arith.constant dense<0.000000e+00> : vector<4x16x32xf32>
    %323 = tpu.matmul %322, %310, %cst_138 {dimension_numbers = #tpu.dot_dimension_numbers<[2], [1], [1], [2], [0, 0, 0, 1, 1, 2], [0], [0]>} : vector<4x16x16xbf16>, vector<4x16x32xbf16>, vector<4x16x32xf32> -> vector<4x16x32xf32>
    "tpu.trace_stop"() : () -> ()
    %324 = arith.truncf %323 : vector<4x16x32xf32> to vector<4x16x32xbf16>
    %325 = vector.extract_strided_slice %271 {offsets = [0, 0, 96], sizes = [4, 16, 32], strides = [1, 1, 1]} : vector<4x16x128xbf16> to vector<4x16x32xbf16>
    %326 = vector.extract_strided_slice %272 {offsets = [0, 0, 96], sizes = [4, 16, 32], strides = [1, 1, 1]} : vector<4x16x128xbf16> to vector<4x16x32xbf16>
    %327 = vector.extract_strided_slice %273 {offsets = [0, 0, 96], sizes = [4, 16, 32], strides = [1, 1, 1]} : vector<4x16x128xbf16> to vector<4x16x32xbf16>
    "tpu.trace_start"() <{level = 10 : i32, message = "bqd,bkd->bqk"}> : () -> ()
    %cst_139 = arith.constant dense<0.000000e+00> : vector<4x16x16xf32>
    %328 = tpu.matmul %325, %326, %cst_139 {dimension_numbers = #tpu.dot_dimension_numbers<[2], [2], [1], [1], [0, 0, 0, 1, 1, 1], [0], [0]>} : vector<4x16x32xbf16>, vector<4x16x32xbf16>, vector<4x16x16xf32> -> vector<4x16x16xf32>
    "tpu.trace_stop"() : () -> ()
    %cst_140 = arith.constant dense<0xFF800000> : vector<4x16xf32>
    %329 = vector.multi_reduction <maximumf>, %328, %cst_140 [2] : vector<4x16x16xf32> to vector<4x16xf32>
    %330 = vector.shape_cast %329 : vector<4x16xf32> to vector<4x16x1xf32>
    %331 = vector.broadcast %330 : vector<4x16x1xf32> to vector<4x16x16xf32>
    %332 = arith.subf %328, %331 : vector<4x16x16xf32>
    %333 = math.exp %332 : vector<4x16x16xf32>
    %cst_141 = arith.constant dense<0.000000e+00> : vector<4x16xf32>
    %334 = vector.multi_reduction <add>, %333, %cst_141 [2] : vector<4x16x16xf32> to vector<4x16xf32>
    %335 = vector.shape_cast %334 : vector<4x16xf32> to vector<4x16x1xf32>
    %336 = tpu.reciprocal %335 {approx = true} : vector<4x16x1xf32> -> vector<4x16x1xf32>
    %337 = vector.broadcast %336 : vector<4x16x1xf32> to vector<4x16x16xf32>
    %338 = arith.mulf %333, %337 : vector<4x16x16xf32>
    %339 = arith.truncf %338 : vector<4x16x16xf32> to vector<4x16x16xbf16>
    "tpu.trace_start"() <{level = 10 : i32, message = "bqk,bkd->bqd"}> : () -> ()
    %cst_142 = arith.constant dense<0.000000e+00> : vector<4x16x32xf32>
    %340 = tpu.matmul %339, %327, %cst_142 {dimension_numbers = #tpu.dot_dimension_numbers<[2], [1], [1], [2], [0, 0, 0, 1, 1, 2], [0], [0]>} : vector<4x16x16xbf16>, vector<4x16x32xbf16>, vector<4x16x32xf32> -> vector<4x16x32xf32>
    "tpu.trace_stop"() : () -> ()
    %341 = arith.truncf %340 : vector<4x16x32xf32> to vector<4x16x32xbf16>
    %342 = tpu.concatenate %290, %307, %324, %341 in 2 : vector<4x16x32xbf16>, vector<4x16x32xbf16>, vector<4x16x32xbf16>, vector<4x16x32xbf16> -> vector<4x16x128xbf16>
    %343 = vector.shape_cast %342 : vector<4x16x128xbf16> to vector<64x128xbf16>
    %c0_143 = arith.constant 0 : index
    %c0_144 = arith.constant 0 : index
    %c0_145 = arith.constant 0 : index
    %344 = vector.load %arg9[%c0_143, %c0_144, %c0_145] : memref<3x128x128xbf16, #tpu.memory_space<vmem>>, vector<1x128x128xbf16>
    %345 = vector.shape_cast %344 : vector<1x128x128xbf16> to vector<128x128xbf16>
    %cst_146 = arith.constant dense<0.000000e+00> : vector<64x128xf32>
    %346 = tpu.matmul %343, %345, %cst_146 {dimension_numbers = #tpu.dot_dimension_numbers<[1], [0], [0], [1], [0, 0, 1, 1], [], []>} : vector<64x128xbf16>, vector<128x128xbf16>, vector<64x128xf32> -> vector<64x128xf32>
    %c0_147 = arith.constant 0 : index
    %c0_148 = arith.constant 0 : index
    %c0_149 = arith.constant 0 : index
    %347 = vector.load %arg10[%c0_147, %c0_148, %c0_149] : memref<3x1x128xf32, #tpu.memory_space<vmem>>, vector<1x1x128xf32>
    %348 = vector.shape_cast %347 : vector<1x1x128xf32> to vector<1x128xf32>
    %349 = vector.broadcast %348 : vector<1x128xf32> to vector<64x128xf32>
    %350 = arith.addf %346, %349 : vector<64x128xf32>
    %351 = vector.shape_cast %350 : vector<64x128xf32> to vector<4x16x128xf32>
    %352 = arith.addf %0, %351 : vector<4x16x128xf32>
    %c0_150 = arith.constant 0 : index
    %c0_151 = arith.constant 0 : index
    %c0_152 = arith.constant 0 : index
    %353 = vector.load %arg13[%c0_150, %c0_151, %c0_152] : memref<3x1x128xf32, #tpu.memory_space<vmem>>, vector<1x1x128xf32>
    %354 = vector.shape_cast %353 : vector<1x1x128xf32> to vector<1x128xf32>
    %c0_153 = arith.constant 0 : index
    %c0_154 = arith.constant 0 : index
    %c0_155 = arith.constant 0 : index
    %355 = vector.load %arg14[%c0_153, %c0_154, %c0_155] : memref<3x1x128xf32, #tpu.memory_space<vmem>>, vector<1x1x128xf32>
    %356 = vector.shape_cast %355 : vector<1x1x128xf32> to vector<1x128xf32>
    %cst_156 = arith.constant dense<0.000000e+00> : vector<4x16xf32>
    %357 = vector.multi_reduction <add>, %352, %cst_156 [2] : vector<4x16x128xf32> to vector<4x16xf32>
    %358 = vector.shape_cast %357 : vector<4x16xf32> to vector<4x16x1xf32>
    %cst_157 = arith.constant 1.280000e+02 : f32
    %359 = vector.broadcast %cst_157 : f32 to vector<4x16x1xf32>
    %360 = arith.divf %358, %359 : vector<4x16x1xf32>
    %361 = arith.mulf %352, %352 : vector<4x16x128xf32>
    %cst_158 = arith.constant dense<0.000000e+00> : vector<4x16xf32>
    %362 = vector.multi_reduction <add>, %361, %cst_158 [2] : vector<4x16x128xf32> to vector<4x16xf32>
    %363 = vector.shape_cast %362 : vector<4x16xf32> to vector<4x16x1xf32>
    %cst_159 = arith.constant 1.280000e+02 : f32
    %364 = vector.broadcast %cst_159 : f32 to vector<4x16x1xf32>
    %365 = arith.divf %363, %364 : vector<4x16x1xf32>
    %366 = arith.mulf %360, %360 : vector<4x16x1xf32>
    %367 = arith.subf %365, %366 : vector<4x16x1xf32>
    %368 = vector.broadcast %360 : vector<4x16x1xf32> to vector<4x16x128xf32>
    %369 = arith.subf %352, %368 : vector<4x16x128xf32>
    %cst_160 = arith.constant 9.99999974E-6 : f32
    %370 = vector.broadcast %cst_160 : f32 to vector<4x16x1xf32>
    %371 = arith.addf %367, %370 : vector<4x16x1xf32>
    %372 = math.rsqrt %371 : vector<4x16x1xf32>
    %373 = vector.broadcast %372 : vector<4x16x1xf32> to vector<4x16x128xf32>
    %374 = arith.mulf %369, %373 : vector<4x16x128xf32>
    %375 = vector.shape_cast %354 : vector<1x128xf32> to vector<1x1x128xf32>
    %376 = vector.broadcast %375 : vector<1x1x128xf32> to vector<4x16x128xf32>
    %377 = arith.mulf %374, %376 : vector<4x16x128xf32>
    %378 = vector.shape_cast %356 : vector<1x128xf32> to vector<1x1x128xf32>
    %379 = vector.broadcast %378 : vector<1x1x128xf32> to vector<4x16x128xf32>
    %380 = arith.addf %377, %379 : vector<4x16x128xf32>
    %381 = vector.shape_cast %380 : vector<4x16x128xf32> to vector<64x128xf32>
    %382 = arith.truncf %381 : vector<64x128xf32> to vector<64x128xbf16>
    %c1_161 = arith.constant 1 : index
    %c0_162 = arith.constant 0 : index
    %c0_163 = arith.constant 0 : index
    %383 = vector.load %arg9[%c1_161, %c0_162, %c0_163] : memref<3x128x128xbf16, #tpu.memory_space<vmem>>, vector<1x128x128xbf16>
    %384 = vector.shape_cast %383 : vector<1x128x128xbf16> to vector<128x128xbf16>
    %cst_164 = arith.constant dense<0.000000e+00> : vector<64x128xf32>
    %385 = tpu.matmul %382, %384, %cst_164 {dimension_numbers = #tpu.dot_dimension_numbers<[1], [0], [0], [1], [0, 0, 1, 1], [], []>} : vector<64x128xbf16>, vector<128x128xbf16>, vector<64x128xf32> -> vector<64x128xf32>
    %c1_165 = arith.constant 1 : index
    %c0_166 = arith.constant 0 : index
    %c0_167 = arith.constant 0 : index
    %386 = vector.load %arg10[%c1_165, %c0_166, %c0_167] : memref<3x1x128xf32, #tpu.memory_space<vmem>>, vector<1x1x128xf32>
    %387 = vector.shape_cast %386 : vector<1x1x128xf32> to vector<1x128xf32>
    %388 = vector.broadcast %387 : vector<1x128xf32> to vector<64x128xf32>
    %389 = arith.addf %385, %388 : vector<64x128xf32>
    %390 = vector.shape_cast %389 : vector<64x128xf32> to vector<4x16x128xf32>
    %391 = vector.shape_cast %1 : vector<4x24x128xf32> to vector<96x128xf32>
    %392 = arith.truncf %391 : vector<96x128xf32> to vector<96x128xbf16>
    %c0_168 = arith.constant 0 : index
    %c0_169 = arith.constant 0 : index
    %393 = vector.load %arg7[%c0_168, %c0_169] : memref<128x256xbf16, #tpu.memory_space<vmem>>, vector<128x256xbf16>
    %cst_170 = arith.constant dense<0.000000e+00> : vector<96x256xf32>
    %394 = tpu.matmul %392, %393, %cst_170 {dimension_numbers = #tpu.dot_dimension_numbers<[1], [0], [0], [1], [0, 0, 1, 1], [], []>} : vector<96x128xbf16>, vector<128x256xbf16>, vector<96x256xf32> -> vector<96x256xf32>
    %c0_171 = arith.constant 0 : index
    %c0_172 = arith.constant 0 : index
    %395 = vector.load %arg8[%c0_171, %c0_172] : memref<1x256xf32, #tpu.memory_space<vmem>>, vector<1x256xf32>
    %396 = vector.broadcast %395 : vector<1x256xf32> to vector<96x256xf32>
    %397 = arith.addf %394, %396 : vector<96x256xf32>
    %398 = vector.extract_strided_slice %397 {offsets = [0, 0], sizes = [96, 128], strides = [1, 1]} : vector<96x256xf32> to vector<96x128xf32>
    %399 = vector.shape_cast %398 : vector<96x128xf32> to vector<4x24x128xf32>
    %400 = vector.extract_strided_slice %397 {offsets = [0, 128], sizes = [96, 128], strides = [1, 1]} : vector<96x256xf32> to vector<96x128xf32>
    %401 = vector.shape_cast %400 : vector<96x128xf32> to vector<4x24x128xf32>
    %402 = arith.truncf %390 : vector<4x16x128xf32> to vector<4x16x128xbf16>
    %403 = arith.truncf %399 : vector<4x24x128xf32> to vector<4x24x128xbf16>
    %404 = arith.truncf %401 : vector<4x24x128xf32> to vector<4x24x128xbf16>
    %405 = vector.extract_strided_slice %402 {offsets = [0, 0, 0], sizes = [4, 16, 32], strides = [1, 1, 1]} : vector<4x16x128xbf16> to vector<4x16x32xbf16>
    %406 = vector.extract_strided_slice %403 {offsets = [0, 0, 0], sizes = [4, 24, 32], strides = [1, 1, 1]} : vector<4x24x128xbf16> to vector<4x24x32xbf16>
    %407 = vector.extract_strided_slice %404 {offsets = [0, 0, 0], sizes = [4, 24, 32], strides = [1, 1, 1]} : vector<4x24x128xbf16> to vector<4x24x32xbf16>
    "tpu.trace_start"() <{level = 10 : i32, message = "bqd,bkd->bqk"}> : () -> ()
    %cst_173 = arith.constant dense<0.000000e+00> : vector<4x16x24xf32>
    %408 = tpu.matmul %405, %406, %cst_173 {dimension_numbers = #tpu.dot_dimension_numbers<[2], [2], [1], [1], [0, 0, 0, 1, 1, 1], [0], [0]>} : vector<4x16x32xbf16>, vector<4x24x32xbf16>, vector<4x16x24xf32> -> vector<4x16x24xf32>
    "tpu.trace_stop"() : () -> ()
    %cst_174 = arith.constant dense<0xFF800000> : vector<4x16xf32>
    %409 = vector.multi_reduction <maximumf>, %408, %cst_174 [2] : vector<4x16x24xf32> to vector<4x16xf32>
    %410 = vector.shape_cast %409 : vector<4x16xf32> to vector<4x16x1xf32>
    %411 = vector.broadcast %410 : vector<4x16x1xf32> to vector<4x16x24xf32>
    %412 = arith.subf %408, %411 : vector<4x16x24xf32>
    %413 = math.exp %412 : vector<4x16x24xf32>
    %cst_175 = arith.constant dense<0.000000e+00> : vector<4x16xf32>
    %414 = vector.multi_reduction <add>, %413, %cst_175 [2] : vector<4x16x24xf32> to vector<4x16xf32>
    %415 = vector.shape_cast %414 : vector<4x16xf32> to vector<4x16x1xf32>
    %416 = tpu.reciprocal %415 {approx = true} : vector<4x16x1xf32> -> vector<4x16x1xf32>
    %417 = vector.broadcast %416 : vector<4x16x1xf32> to vector<4x16x24xf32>
    %418 = arith.mulf %413, %417 : vector<4x16x24xf32>
    %419 = arith.truncf %418 : vector<4x16x24xf32> to vector<4x16x24xbf16>
    "tpu.trace_start"() <{level = 10 : i32, message = "bqk,bkd->bqd"}> : () -> ()
    %cst_176 = arith.constant dense<0.000000e+00> : vector<4x16x32xf32>
    %420 = tpu.matmul %419, %407, %cst_176 {dimension_numbers = #tpu.dot_dimension_numbers<[2], [1], [1], [2], [0, 0, 0, 1, 1, 2], [0], [0]>} : vector<4x16x24xbf16>, vector<4x24x32xbf16>, vector<4x16x32xf32> -> vector<4x16x32xf32>
    "tpu.trace_stop"() : () -> ()
    %421 = arith.truncf %420 : vector<4x16x32xf32> to vector<4x16x32xbf16>
    %422 = vector.extract_strided_slice %402 {offsets = [0, 0, 32], sizes = [4, 16, 32], strides = [1, 1, 1]} : vector<4x16x128xbf16> to vector<4x16x32xbf16>
    %423 = vector.extract_strided_slice %403 {offsets = [0, 0, 32], sizes = [4, 24, 32], strides = [1, 1, 1]} : vector<4x24x128xbf16> to vector<4x24x32xbf16>
    %424 = vector.extract_strided_slice %404 {offsets = [0, 0, 32], sizes = [4, 24, 32], strides = [1, 1, 1]} : vector<4x24x128xbf16> to vector<4x24x32xbf16>
    "tpu.trace_start"() <{level = 10 : i32, message = "bqd,bkd->bqk"}> : () -> ()
    %cst_177 = arith.constant dense<0.000000e+00> : vector<4x16x24xf32>
    %425 = tpu.matmul %422, %423, %cst_177 {dimension_numbers = #tpu.dot_dimension_numbers<[2], [2], [1], [1], [0, 0, 0, 1, 1, 1], [0], [0]>} : vector<4x16x32xbf16>, vector<4x24x32xbf16>, vector<4x16x24xf32> -> vector<4x16x24xf32>
    "tpu.trace_stop"() : () -> ()
    %cst_178 = arith.constant dense<0xFF800000> : vector<4x16xf32>
    %426 = vector.multi_reduction <maximumf>, %425, %cst_178 [2] : vector<4x16x24xf32> to vector<4x16xf32>
    %427 = vector.shape_cast %426 : vector<4x16xf32> to vector<4x16x1xf32>
    %428 = vector.broadcast %427 : vector<4x16x1xf32> to vector<4x16x24xf32>
    %429 = arith.subf %425, %428 : vector<4x16x24xf32>
    %430 = math.exp %429 : vector<4x16x24xf32>
    %cst_179 = arith.constant dense<0.000000e+00> : vector<4x16xf32>
    %431 = vector.multi_reduction <add>, %430, %cst_179 [2] : vector<4x16x24xf32> to vector<4x16xf32>
    %432 = vector.shape_cast %431 : vector<4x16xf32> to vector<4x16x1xf32>
    %433 = tpu.reciprocal %432 {approx = true} : vector<4x16x1xf32> -> vector<4x16x1xf32>
    %434 = vector.broadcast %433 : vector<4x16x1xf32> to vector<4x16x24xf32>
    %435 = arith.mulf %430, %434 : vector<4x16x24xf32>
    %436 = arith.truncf %435 : vector<4x16x24xf32> to vector<4x16x24xbf16>
    "tpu.trace_start"() <{level = 10 : i32, message = "bqk,bkd->bqd"}> : () -> ()
    %cst_180 = arith.constant dense<0.000000e+00> : vector<4x16x32xf32>
    %437 = tpu.matmul %436, %424, %cst_180 {dimension_numbers = #tpu.dot_dimension_numbers<[2], [1], [1], [2], [0, 0, 0, 1, 1, 2], [0], [0]>} : vector<4x16x24xbf16>, vector<4x24x32xbf16>, vector<4x16x32xf32> -> vector<4x16x32xf32>
    "tpu.trace_stop"() : () -> ()
    %438 = arith.truncf %437 : vector<4x16x32xf32> to vector<4x16x32xbf16>
    %439 = vector.extract_strided_slice %402 {offsets = [0, 0, 64], sizes = [4, 16, 32], strides = [1, 1, 1]} : vector<4x16x128xbf16> to vector<4x16x32xbf16>
    %440 = vector.extract_strided_slice %403 {offsets = [0, 0, 64], sizes = [4, 24, 32], strides = [1, 1, 1]} : vector<4x24x128xbf16> to vector<4x24x32xbf16>
    %441 = vector.extract_strided_slice %404 {offsets = [0, 0, 64], sizes = [4, 24, 32], strides = [1, 1, 1]} : vector<4x24x128xbf16> to vector<4x24x32xbf16>
    "tpu.trace_start"() <{level = 10 : i32, message = "bqd,bkd->bqk"}> : () -> ()
    %cst_181 = arith.constant dense<0.000000e+00> : vector<4x16x24xf32>
    %442 = tpu.matmul %439, %440, %cst_181 {dimension_numbers = #tpu.dot_dimension_numbers<[2], [2], [1], [1], [0, 0, 0, 1, 1, 1], [0], [0]>} : vector<4x16x32xbf16>, vector<4x24x32xbf16>, vector<4x16x24xf32> -> vector<4x16x24xf32>
    "tpu.trace_stop"() : () -> ()
    %cst_182 = arith.constant dense<0xFF800000> : vector<4x16xf32>
    %443 = vector.multi_reduction <maximumf>, %442, %cst_182 [2] : vector<4x16x24xf32> to vector<4x16xf32>
    %444 = vector.shape_cast %443 : vector<4x16xf32> to vector<4x16x1xf32>
    %445 = vector.broadcast %444 : vector<4x16x1xf32> to vector<4x16x24xf32>
    %446 = arith.subf %442, %445 : vector<4x16x24xf32>
    %447 = math.exp %446 : vector<4x16x24xf32>
    %cst_183 = arith.constant dense<0.000000e+00> : vector<4x16xf32>
    %448 = vector.multi_reduction <add>, %447, %cst_183 [2] : vector<4x16x24xf32> to vector<4x16xf32>
    %449 = vector.shape_cast %448 : vector<4x16xf32> to vector<4x16x1xf32>
    %450 = tpu.reciprocal %449 {approx = true} : vector<4x16x1xf32> -> vector<4x16x1xf32>
    %451 = vector.broadcast %450 : vector<4x16x1xf32> to vector<4x16x24xf32>
    %452 = arith.mulf %447, %451 : vector<4x16x24xf32>
    %453 = arith.truncf %452 : vector<4x16x24xf32> to vector<4x16x24xbf16>
    "tpu.trace_start"() <{level = 10 : i32, message = "bqk,bkd->bqd"}> : () -> ()
    %cst_184 = arith.constant dense<0.000000e+00> : vector<4x16x32xf32>
    %454 = tpu.matmul %453, %441, %cst_184 {dimension_numbers = #tpu.dot_dimension_numbers<[2], [1], [1], [2], [0, 0, 0, 1, 1, 2], [0], [0]>} : vector<4x16x24xbf16>, vector<4x24x32xbf16>, vector<4x16x32xf32> -> vector<4x16x32xf32>
    "tpu.trace_stop"() : () -> ()
    %455 = arith.truncf %454 : vector<4x16x32xf32> to vector<4x16x32xbf16>
    %456 = vector.extract_strided_slice %402 {offsets = [0, 0, 96], sizes = [4, 16, 32], strides = [1, 1, 1]} : vector<4x16x128xbf16> to vector<4x16x32xbf16>
    %457 = vector.extract_strided_slice %403 {offsets = [0, 0, 96], sizes = [4, 24, 32], strides = [1, 1, 1]} : vector<4x24x128xbf16> to vector<4x24x32xbf16>
    %458 = vector.extract_strided_slice %404 {offsets = [0, 0, 96], sizes = [4, 24, 32], strides = [1, 1, 1]} : vector<4x24x128xbf16> to vector<4x24x32xbf16>
    "tpu.trace_start"() <{level = 10 : i32, message = "bqd,bkd->bqk"}> : () -> ()
    %cst_185 = arith.constant dense<0.000000e+00> : vector<4x16x24xf32>
    %459 = tpu.matmul %456, %457, %cst_185 {dimension_numbers = #tpu.dot_dimension_numbers<[2], [2], [1], [1], [0, 0, 0, 1, 1, 1], [0], [0]>} : vector<4x16x32xbf16>, vector<4x24x32xbf16>, vector<4x16x24xf32> -> vector<4x16x24xf32>
    "tpu.trace_stop"() : () -> ()
    %cst_186 = arith.constant dense<0xFF800000> : vector<4x16xf32>
    %460 = vector.multi_reduction <maximumf>, %459, %cst_186 [2] : vector<4x16x24xf32> to vector<4x16xf32>
    %461 = vector.shape_cast %460 : vector<4x16xf32> to vector<4x16x1xf32>
    %462 = vector.broadcast %461 : vector<4x16x1xf32> to vector<4x16x24xf32>
    %463 = arith.subf %459, %462 : vector<4x16x24xf32>
    %464 = math.exp %463 : vector<4x16x24xf32>
    %cst_187 = arith.constant dense<0.000000e+00> : vector<4x16xf32>
    %465 = vector.multi_reduction <add>, %464, %cst_187 [2] : vector<4x16x24xf32> to vector<4x16xf32>
    %466 = vector.shape_cast %465 : vector<4x16xf32> to vector<4x16x1xf32>
    %467 = tpu.reciprocal %466 {approx = true} : vector<4x16x1xf32> -> vector<4x16x1xf32>
    %468 = vector.broadcast %467 : vector<4x16x1xf32> to vector<4x16x24xf32>
    %469 = arith.mulf %464, %468 : vector<4x16x24xf32>
    %470 = arith.truncf %469 : vector<4x16x24xf32> to vector<4x16x24xbf16>
    "tpu.trace_start"() <{level = 10 : i32, message = "bqk,bkd->bqd"}> : () -> ()
    %cst_188 = arith.constant dense<0.000000e+00> : vector<4x16x32xf32>
    %471 = tpu.matmul %470, %458, %cst_188 {dimension_numbers = #tpu.dot_dimension_numbers<[2], [1], [1], [2], [0, 0, 0, 1, 1, 2], [0], [0]>} : vector<4x16x24xbf16>, vector<4x24x32xbf16>, vector<4x16x32xf32> -> vector<4x16x32xf32>
    "tpu.trace_stop"() : () -> ()
    %472 = arith.truncf %471 : vector<4x16x32xf32> to vector<4x16x32xbf16>
    %473 = tpu.concatenate %421, %438, %455, %472 in 2 : vector<4x16x32xbf16>, vector<4x16x32xbf16>, vector<4x16x32xbf16>, vector<4x16x32xbf16> -> vector<4x16x128xbf16>
    %474 = vector.shape_cast %473 : vector<4x16x128xbf16> to vector<64x128xbf16>
    %c2_189 = arith.constant 2 : index
    %c0_190 = arith.constant 0 : index
    %c0_191 = arith.constant 0 : index
    %475 = vector.load %arg9[%c2_189, %c0_190, %c0_191] : memref<3x128x128xbf16, #tpu.memory_space<vmem>>, vector<1x128x128xbf16>
    %476 = vector.shape_cast %475 : vector<1x128x128xbf16> to vector<128x128xbf16>
    %cst_192 = arith.constant dense<0.000000e+00> : vector<64x128xf32>
    %477 = tpu.matmul %474, %476, %cst_192 {dimension_numbers = #tpu.dot_dimension_numbers<[1], [0], [0], [1], [0, 0, 1, 1], [], []>} : vector<64x128xbf16>, vector<128x128xbf16>, vector<64x128xf32> -> vector<64x128xf32>
    %c2_193 = arith.constant 2 : index
    %c0_194 = arith.constant 0 : index
    %c0_195 = arith.constant 0 : index
    %478 = vector.load %arg10[%c2_193, %c0_194, %c0_195] : memref<3x1x128xf32, #tpu.memory_space<vmem>>, vector<1x1x128xf32>
    %479 = vector.shape_cast %478 : vector<1x1x128xf32> to vector<1x128xf32>
    %480 = vector.broadcast %479 : vector<1x128xf32> to vector<64x128xf32>
    %481 = arith.addf %477, %480 : vector<64x128xf32>
    %482 = vector.shape_cast %481 : vector<64x128xf32> to vector<4x16x128xf32>
    %483 = arith.addf %380, %482 : vector<4x16x128xf32>
    %c1_196 = arith.constant 1 : index
    %c0_197 = arith.constant 0 : index
    %c0_198 = arith.constant 0 : index
    %484 = vector.load %arg13[%c1_196, %c0_197, %c0_198] : memref<3x1x128xf32, #tpu.memory_space<vmem>>, vector<1x1x128xf32>
    %485 = vector.shape_cast %484 : vector<1x1x128xf32> to vector<1x128xf32>
    %c1_199 = arith.constant 1 : index
    %c0_200 = arith.constant 0 : index
    %c0_201 = arith.constant 0 : index
    %486 = vector.load %arg14[%c1_199, %c0_200, %c0_201] : memref<3x1x128xf32, #tpu.memory_space<vmem>>, vector<1x1x128xf32>
    %487 = vector.shape_cast %486 : vector<1x1x128xf32> to vector<1x128xf32>
    %cst_202 = arith.constant dense<0.000000e+00> : vector<4x16xf32>
    %488 = vector.multi_reduction <add>, %483, %cst_202 [2] : vector<4x16x128xf32> to vector<4x16xf32>
    %489 = vector.shape_cast %488 : vector<4x16xf32> to vector<4x16x1xf32>
    %cst_203 = arith.constant 1.280000e+02 : f32
    %490 = vector.broadcast %cst_203 : f32 to vector<4x16x1xf32>
    %491 = arith.divf %489, %490 : vector<4x16x1xf32>
    %492 = arith.mulf %483, %483 : vector<4x16x128xf32>
    %cst_204 = arith.constant dense<0.000000e+00> : vector<4x16xf32>
    %493 = vector.multi_reduction <add>, %492, %cst_204 [2] : vector<4x16x128xf32> to vector<4x16xf32>
    %494 = vector.shape_cast %493 : vector<4x16xf32> to vector<4x16x1xf32>
    %cst_205 = arith.constant 1.280000e+02 : f32
    %495 = vector.broadcast %cst_205 : f32 to vector<4x16x1xf32>
    %496 = arith.divf %494, %495 : vector<4x16x1xf32>
    %497 = arith.mulf %491, %491 : vector<4x16x1xf32>
    %498 = arith.subf %496, %497 : vector<4x16x1xf32>
    %499 = vector.broadcast %491 : vector<4x16x1xf32> to vector<4x16x128xf32>
    %500 = arith.subf %483, %499 : vector<4x16x128xf32>
    %cst_206 = arith.constant 9.99999974E-6 : f32
    %501 = vector.broadcast %cst_206 : f32 to vector<4x16x1xf32>
    %502 = arith.addf %498, %501 : vector<4x16x1xf32>
    %503 = math.rsqrt %502 : vector<4x16x1xf32>
    %504 = vector.broadcast %503 : vector<4x16x1xf32> to vector<4x16x128xf32>
    %505 = arith.mulf %500, %504 : vector<4x16x128xf32>
    %506 = vector.shape_cast %485 : vector<1x128xf32> to vector<1x1x128xf32>
    %507 = vector.broadcast %506 : vector<1x1x128xf32> to vector<4x16x128xf32>
    %508 = arith.mulf %505, %507 : vector<4x16x128xf32>
    %509 = vector.shape_cast %487 : vector<1x128xf32> to vector<1x1x128xf32>
    %510 = vector.broadcast %509 : vector<1x1x128xf32> to vector<4x16x128xf32>
    %511 = arith.addf %508, %510 : vector<4x16x128xf32>
    %512 = vector.shape_cast %511 : vector<4x16x128xf32> to vector<64x128xf32>
    %513 = arith.truncf %512 : vector<64x128xf32> to vector<64x128xbf16>
    %c0_207 = arith.constant 0 : index
    %c0_208 = arith.constant 0 : index
    %514 = vector.load %arg11[%c0_207, %c0_208] : memref<128x512xbf16, #tpu.memory_space<vmem>>, vector<128x512xbf16>
    %cst_209 = arith.constant dense<0.000000e+00> : vector<64x512xf32>
    %515 = tpu.matmul %513, %514, %cst_209 {dimension_numbers = #tpu.dot_dimension_numbers<[1], [0], [0], [1], [0, 0, 1, 1], [], []>} : vector<64x128xbf16>, vector<128x512xbf16>, vector<64x512xf32> -> vector<64x512xf32>
    %cst_210 = arith.constant 0.000000e+00 : f32
    %516 = vector.broadcast %cst_210 : f32 to vector<64x512xf32>
    %517 = arith.maximumf %515, %516 : vector<64x512xf32>
    %518 = arith.truncf %517 : vector<64x512xf32> to vector<64x512xbf16>
    %c0_211 = arith.constant 0 : index
    %c0_212 = arith.constant 0 : index
    %519 = vector.load %arg12[%c0_211, %c0_212] : memref<512x128xbf16, #tpu.memory_space<vmem>>, vector<512x128xbf16>
    %cst_213 = arith.constant dense<0.000000e+00> : vector<64x128xf32>
    %520 = tpu.matmul %518, %519, %cst_213 {dimension_numbers = #tpu.dot_dimension_numbers<[1], [0], [0], [1], [0, 0, 1, 1], [], []>} : vector<64x512xbf16>, vector<512x128xbf16>, vector<64x128xf32> -> vector<64x128xf32>
    %521 = vector.shape_cast %520 : vector<64x128xf32> to vector<4x16x128xf32>
    %522 = arith.addf %511, %521 : vector<4x16x128xf32>
    %c2_214 = arith.constant 2 : index
    %c0_215 = arith.constant 0 : index
    %c0_216 = arith.constant 0 : index
    %523 = vector.load %arg13[%c2_214, %c0_215, %c0_216] : memref<3x1x128xf32, #tpu.memory_space<vmem>>, vector<1x1x128xf32>
    %524 = vector.shape_cast %523 : vector<1x1x128xf32> to vector<1x128xf32>
    %c2_217 = arith.constant 2 : index
    %c0_218 = arith.constant 0 : index
    %c0_219 = arith.constant 0 : index
    %525 = vector.load %arg14[%c2_217, %c0_218, %c0_219] : memref<3x1x128xf32, #tpu.memory_space<vmem>>, vector<1x1x128xf32>
    %526 = vector.shape_cast %525 : vector<1x1x128xf32> to vector<1x128xf32>
    %cst_220 = arith.constant dense<0.000000e+00> : vector<4x16xf32>
    %527 = vector.multi_reduction <add>, %522, %cst_220 [2] : vector<4x16x128xf32> to vector<4x16xf32>
    %528 = vector.shape_cast %527 : vector<4x16xf32> to vector<4x16x1xf32>
    %cst_221 = arith.constant 1.280000e+02 : f32
    %529 = vector.broadcast %cst_221 : f32 to vector<4x16x1xf32>
    %530 = arith.divf %528, %529 : vector<4x16x1xf32>
    %531 = arith.mulf %522, %522 : vector<4x16x128xf32>
    %cst_222 = arith.constant dense<0.000000e+00> : vector<4x16xf32>
    %532 = vector.multi_reduction <add>, %531, %cst_222 [2] : vector<4x16x128xf32> to vector<4x16xf32>
    %533 = vector.shape_cast %532 : vector<4x16xf32> to vector<4x16x1xf32>
    %cst_223 = arith.constant 1.280000e+02 : f32
    %534 = vector.broadcast %cst_223 : f32 to vector<4x16x1xf32>
    %535 = arith.divf %533, %534 : vector<4x16x1xf32>
    %536 = arith.mulf %530, %530 : vector<4x16x1xf32>
    %537 = arith.subf %535, %536 : vector<4x16x1xf32>
    %538 = vector.broadcast %530 : vector<4x16x1xf32> to vector<4x16x128xf32>
    %539 = arith.subf %522, %538 : vector<4x16x128xf32>
    %cst_224 = arith.constant 9.99999974E-6 : f32
    %540 = vector.broadcast %cst_224 : f32 to vector<4x16x1xf32>
    %541 = arith.addf %537, %540 : vector<4x16x1xf32>
    %542 = math.rsqrt %541 : vector<4x16x1xf32>
    %543 = vector.broadcast %542 : vector<4x16x1xf32> to vector<4x16x128xf32>
    %544 = arith.mulf %539, %543 : vector<4x16x128xf32>
    %545 = vector.shape_cast %524 : vector<1x128xf32> to vector<1x1x128xf32>
    %546 = vector.broadcast %545 : vector<1x1x128xf32> to vector<4x16x128xf32>
    %547 = arith.mulf %544, %546 : vector<4x16x128xf32>
    %548 = vector.shape_cast %526 : vector<1x128xf32> to vector<1x1x128xf32>
    %549 = vector.broadcast %548 : vector<1x1x128xf32> to vector<4x16x128xf32>
    %550 = arith.addf %547, %549 : vector<4x16x128xf32>
    %c0_225 = arith.constant 0 : index
    %c0_226 = arith.constant 0 : index
    %c0_227 = arith.constant 0 : index
    %551 = vector.load %arg15[%c0_225, %c0_226, %c0_227] : memref<4x16x128xf32, #tpu.memory_space<vmem>>, vector<4x16x128xf32>
    tpu.vector_store %arg15[%c0_225, %c0_226, %c0_227], %550 {strides = array<i32>} : memref<4x16x128xf32, #tpu.memory_space<vmem>>, vector<4x16x128xf32>,
    return
  }
  func.func @transform_0(%arg0: i32) -> (i32, i32, i32) {
    %c0_i32 = arith.constant 0 : i32
    %c0_i32_0 = arith.constant 0 : i32
    %c0_i32_1 = arith.constant 0 : i32
    return %arg0, %c0_i32, %c0_i32_0 : i32, i32, i32
  }
  func.func @transform_1(%arg0: i32) -> (i32, i32, i32) {
    %c0_i32 = arith.constant 0 : i32
    %c0_i32_0 = arith.constant 0 : i32
    %c0_i32_1 = arith.constant 0 : i32
    return %arg0, %c0_i32, %c0_i32_0 : i32, i32, i32
  }
  func.func @transform_2(%arg0: i32) -> (i32, i32, i32) {
    %c0_i32 = arith.constant 0 : i32
    %c0_i32_0 = arith.constant 0 : i32
    %c0_i32_1 = arith.constant 0 : i32
    %c0_i32_2 = arith.constant 0 : i32
    return %c0_i32, %c0_i32_0, %c0_i32_1 : i32, i32, i32
  }
  func.func @transform_3(%arg0: i32) -> (i32, i32, i32) {
    %c0_i32 = arith.constant 0 : i32
    %c0_i32_0 = arith.constant 0 : i32
    %c0_i32_1 = arith.constant 0 : i32
    %c0_i32_2 = arith.constant 0 : i32
    return %c0_i32, %c0_i32_0, %c0_i32_1 : i32, i32, i32
  }
  func.func @transform_4(%arg0: i32) -> (i32, i32) {
    %c0_i32 = arith.constant 0 : i32
    %c0_i32_0 = arith.constant 0 : i32
    %c0_i32_1 = arith.constant 0 : i32
    return %c0_i32, %c0_i32_0 : i32, i32
  }
  func.func @transform_5(%arg0: i32) -> (i32, i32) {
    %c0_i32 = arith.constant 0 : i32
    %c0_i32_0 = arith.constant 0 : i32
    %c0_i32_1 = arith.constant 0 : i32
    return %c0_i32, %c0_i32_0 : i32, i32
  }
  func.func @transform_6(%arg0: i32) -> (i32, i32) {
    %c0_i32 = arith.constant 0 : i32
    %c0_i32_0 = arith.constant 0 : i32
    %c0_i32_1 = arith.constant 0 : i32
    return %c0_i32, %c0_i32_0 : i32, i32
  }
  func.func @transform_7(%arg0: i32) -> (i32, i32) {
    %c0_i32 = arith.constant 0 : i32
    %c0_i32_0 = arith.constant 0 : i32
    %c0_i32_1 = arith.constant 0 : i32
    return %c0_i32, %c0_i32_0 : i32, i32
  }
  func.func @transform_8(%arg0: i32) -> (i32, i32, i32) {
    %c0_i32 = arith.constant 0 : i32
    %c0_i32_0 = arith.constant 0 : i32
    %c0_i32_1 = arith.constant 0 : i32
    %c0_i32_2 = arith.constant 0 : i32
    return %c0_i32, %c0_i32_0, %c0_i32_1 : i32, i32, i32
  }
  func.func @transform_9(%arg0: i32) -> (i32, i32, i32) {
    %c0_i32 = arith.constant 0 : i32
    %c0_i32_0 = arith.constant 0 : i32
    %c0_i32_1 = arith.constant 0 : i32
    %c0_i32_2 = arith.constant 0 : i32
    return %c0_i32, %c0_i32_0, %c0_i32_1 : i32, i32, i32
  }
  func.func @transform_10(%arg0: i32) -> (i32, i32) {
    %c0_i32 = arith.constant 0 : i32
    %c0_i32_0 = arith.constant 0 : i32
    %c0_i32_1 = arith.constant 0 : i32
    return %c0_i32, %c0_i32_0 : i32, i32
  }
  func.func @transform_11(%arg0: i32) -> (i32, i32) {
    %c0_i32 = arith.constant 0 : i32
    %c0_i32_0 = arith.constant 0 : i32
    %c0_i32_1 = arith.constant 0 : i32
    return %c0_i32, %c0_i32_0 : i32, i32
  }
  func.func @transform_12(%arg0: i32) -> (i32, i32, i32) {
    %c0_i32 = arith.constant 0 : i32
    %c0_i32_0 = arith.constant 0 : i32
    %c0_i32_1 = arith.constant 0 : i32
    %c0_i32_2 = arith.constant 0 : i32
    return %c0_i32, %c0_i32_0, %c0_i32_1 : i32, i32, i32
  }
  func.func @transform_13(%arg0: i32) -> (i32, i32, i32) {
    %c0_i32 = arith.constant 0 : i32
    %c0_i32_0 = arith.constant 0 : i32
    %c0_i32_1 = arith.constant 0 : i32
    %c0_i32_2 = arith.constant 0 : i32
    return %c0_i32, %c0_i32_0, %c0_i32_1 : i32, i32, i32
  }
  func.func @transform_14(%arg0: i32) -> (i32, i32, i32) {
    %c0_i32 = arith.constant 0 : i32
    %c0_i32_0 = arith.constant 0 : i32
    %c0_i32_1 = arith.constant 0 : i32
    return %arg0, %c0_i32, %c0_i32_0 : i32, i32, i32
  }
}

</mosaic_0001>

<llo_original>
// kernel: tpu_custom_call.1
$region0: #{tpu_custom_call.1}
  #allocation0 [shape = 'u32[]', space=smem, size = 0x4, offset = 0x4, fixed_abs, tag = 'smem constant byte address 0x4 - core index']
  #allocation1 [shape = 'u32[144,128]{1,0:T(1,128)}', space=vmem, size = 0x12000, scoped, tag = 'internal scratch']
  %s0 = inlined_call_operand.hbm [shape: f32[8,16,128], index: 0, kind: input, shape index: {}]
  %s1 = inlined_call_operand.hbm [shape: f32[8,24,128], index: 1, kind: input, shape index: {}]
  %s2 = inlined_call_operand.hbm [shape: bf16[10,384,128], index: 2, kind: input, shape index: {}]
  %s3 = inlined_call_operand.vmem [shape: f32[10,1,128], index: 3, kind: input, shape index: {}]
  %s4 = inlined_call_operand.hbm [shape: bf16[128,384], index: 4, kind: input, shape index: {}]
  %s5 = inlined_call_operand.vmem [shape: f32[1,384], index: 5, kind: input, shape index: {}]
  %s6 = inlined_call_operand.hbm [shape: bf16[128,256], index: 6, kind: input, shape index: {}]
  %s7 = inlined_call_operand.vmem [shape: f32[1,256], index: 7, kind: input, shape index: {}]
  %s8 = inlined_call_operand.hbm [shape: bf16[3,128,128], index: 8, kind: input, shape index: {}]
  %s9 = inlined_call_operand.vmem [shape: f32[3,1,128], index: 9, kind: input, shape index: {}]
  %s10 = inlined_call_operand.hbm [shape: bf16[128,512], index: 10, kind: input, shape index: {}]
  %s11 = inlined_call_operand.hbm [shape: bf16[512,128], index: 11, kind: input, shape index: {}]
  %s12 = inlined_call_operand.vmem [shape: f32[3,1,128], index: 12, kind: input, shape index: {}]
  %s13 = inlined_call_operand.vmem [shape: f32[3,1,128], index: 13, kind: input, shape index: {}]
  %s14 = inlined_call_operand.hbm [shape: f32[8,16,128], index: 14, kind: output, shape index: {}]
  %s15 = sld [smem:[#allocation0]]
  $region121: #{tpu_custom_call.1} parent=0
    _
  %s17 = ssub.s32 1, %s15
  %s18 = scalar_select 0, %s17, %s15
  $region1: #{tpu_custom_call.1} parent=0
    #allocation2 [shape = 'u8[65536]{0}', space=vmem, size = 0x10000, scoped, tag = 'input window, operand 0']
    #allocation3 [shape = 's32[2]{0}', space=sflag, size = 0x8, scoped, tag = 'scoped memory for tpu_custom_call.1']
    #allocation4 [shape = 's32[2]{0}', space=sflag, size = 0x8, scoped, tag = 'scoped memory for tpu_custom_call.1']
    #allocation5 [shape = 'u8[98304]{0}', space=vmem, size = 0x18000, scoped, tag = 'input window, operand 1']
    #allocation6 [shape = 's32[2]{0}', space=sflag, size = 0x8, scoped, tag = 'scoped memory for tpu_custom_call.1']
    #allocation7 [shape = 'u8[983040]{0}', space=vmem, size = 0xf0000, scoped, tag = 'input window, operand 2, single buffered']
    #allocation8 [shape = 'u8[98304]{0}', space=vmem, size = 0x18000, scoped, tag = 'input window, operand 4, single buffered']
    #allocation9 [shape = 's32[1]{0}', space=sflag, size = 0x4, scoped, tag = 'scoped memory for tpu_custom_call.1']
    #allocation10 [shape = 'u8[65536]{0}', space=vmem, size = 0x10000, scoped, tag = 'input window, operand 6, single buffered']
    #allocation11 [shape = 'u8[98304]{0}', space=vmem, size = 0x18000, scoped, tag = 'input window, operand 8, single buffered']
    #allocation12 [shape = 's32[1]{0}', space=sflag, size = 0x4, scoped, tag = 'scoped memory for tpu_custom_call.1']
    #allocation13 [shape = 'u8[131072]{0}', space=vmem, size = 0x20000, scoped, tag = 'input window, operand 10, single buffered']
    #allocation14 [shape = 'u8[131072]{0}', space=vmem, size = 0x20000, scoped, tag = 'input window, operand 11, single buffered']
    #allocation15 [shape = 's32[1]{0}', space=sflag, size = 0x4, scoped, tag = 'scoped memory for tpu_custom_call.1']
    #allocation16 [shape = 'u8[65536]{0}', space=vmem, size = 0x10000, scoped, tag = 'output window, operand 0']
    %19 = vsyncpa [#allocation3], 0
    %s20 = scalar_lea.sflag [#allocation3], 1
    %21 = vsyncpa %s20, 0
    %22 = vsyncpa [#allocation6], 0
    %s23 = scalar_lea.sflag [#allocation6], 1
    %24 = vsyncpa %s23, 0
    %25 = vsyncpa [#allocation9], 0
    %26 = vsyncpa [#allocation12], 0
    %27 = vsyncpa [#allocation15], 0
    %28 = vsyncpa [#allocation4], 0
    %s29 = scalar_lea.sflag [#allocation4], 1
    %30 = vsyncpa %s29, 0
    loop: start=0, step=1, limit=4
    $region2: #{tpu_custom_call.1} parent=1 // loop_pre_header
      _
    $region3: #{tpu_custom_call.1} parent=1 // loop_header
      %s32 = sphi 0, %s36
      %p33 = scmp.ge.s32.totalorder %s32, 4
      %s42 = sphi 0, %s44
      %s45 = sphi 0, %s42
      %s46 = sphi 0, %s45
      %s62 = sphi 0, %s46
      %s68 = sphi 0, %s70
      %s71 = sphi 0, %s68
      %s72 = sphi 0, %s71
      %s88 = sphi 0, %s72
      %s92 = sphi 0, %s92
      %s94 = sphi 0, %s92
      %s95 = sphi 0, %s94
      %s109 = sphi 0, %s95
      %s113 = sphi 0, %s113
      %s115 = sphi 0, %s113
      %s116 = sphi 0, %s115
      %s130 = sphi 0, %s116
      %s134 = sphi 0, %s134
      %s136 = sphi 0, %s134
      %s137 = sphi 0, %s136
      %s151 = sphi 0, %s137
      %s155 = sphi 0, %s155
      %s157 = sphi 0, %s155
      %s158 = sphi 0, %s157
      %s172 = sphi 0, %s158
      %s176 = sphi 0, %s176
      %s178 = sphi 0, %s176
      %s179 = sphi 0, %s178
      %s193 = sphi 0, %s179
      %s197 = sphi 0, %s197
      %s199 = sphi 0, %s197
      %s200 = sphi 0, %s199
      %s214 = sphi 0, %s200
      %s218 = sphi 0, %s218
      %s220 = sphi 0, %s218
      %s221 = sphi 0, %s220
      %s235 = sphi 0, %s221
      %s239 = sphi 0, %s239
      %s241 = sphi 0, %s239
      %s242 = sphi 0, %s241
      %s256 = sphi 0, %s242
      %s260 = sphi 0, %s260
      %s262 = sphi 0, %s260
      %s263 = sphi 0, %s262
      %s277 = sphi 0, %s263
      %s281 = sphi 0, %s281
      %s283 = sphi 0, %s281
      %s284 = sphi 0, %s283
      %s298 = sphi 0, %s284
      %s302 = sphi 0, %s302
      %s304 = sphi 0, %s302
      %s305 = sphi 0, %s304
      %s319 = sphi 0, %s305
      %s323 = sphi 0, %s323
      %s325 = sphi 0, %s323
      %s326 = sphi 0, %s325
      %s340 = sphi 0, %s326
      %s346 = sphi 0, %s348
      %s349 = sphi 0, %s346
      %s350 = sphi 0, %s349
      %s366 = sphi 0, %s350
    $region4: #{tpu_custom_call.1} parent=1 // loop_header_branch
      %35 = sbr.rel (%p33) target = $region8
    $region5: #{tpu_custom_call.1} parent=1 // loop_body
      %s37 = ssub.s32 %s32, 1
      %s38 = ssub.s32 %s32, 2
      %s39 = sadd.s32 %s32, 1
      %s40 = ssub.s32 %s32, %s39
      %p41 = scmp.eq.s32.totalorder %s40, 0
      %s43 = sadd.s32 %s42, 1
      %s44 = scalar_select %p41, %s42, %s43
      %p47 = pneg %p41
      %p48 = scmp.eq.s32.totalorder %s32, 1
      %p49 = por %p47, %p48
      %p50 = scmp.ne.s32.totalorder %s42, %s45
      %p51 = scmp.eq.s32.totalorder %s32, 0
      %p52 = por %p50, %p51
      %p53 = scmp.ne.s32.totalorder %s42, %s45
      %p54 = scmp.eq.s32.totalorder %s37, 1
      %p55 = por %p53, %p54
      %p56 = scmp.ne.s32.totalorder %s45, %s46
      %p57 = scmp.eq.s32.totalorder %s37, 0
      %p58 = por %p56, %p57
      %p59 = scmp.ne.s32.totalorder %s45, %s46
      %p60 = scmp.eq.s32.totalorder %s38, 1
      %p61 = por %p59, %p60
      %p63 = scmp.ne.s32.totalorder %s46, %s62
      %p64 = scmp.eq.s32.totalorder %s38, 0
      %p65 = por %p63, %p64
      %s66 = ssub.s32 %s32, %s39
      %p67 = scmp.eq.s32.totalorder %s66, 0
      %s69 = sadd.s32 %s68, 1
      %s70 = scalar_select %p67, %s68, %s69
      %p73 = pneg %p67
      %p74 = scmp.eq.s32.totalorder %s32, 1
      %p75 = por %p73, %p74
      %p76 = scmp.ne.s32.totalorder %s68, %s71
      %p77 = scmp.eq.s32.totalorder %s32, 0
      %p78 = por %p76, %p77
      %p79 = scmp.ne.s32.totalorder %s68, %s71
      %p80 = scmp.eq.s32.totalorder %s37, 1
      %p81 = por %p79, %p80
      %p82 = scmp.ne.s32.totalorder %s71, %s72
      %p83 = scmp.eq.s32.totalorder %s37, 0
      %p84 = por %p82, %p83
      %p85 = scmp.ne.s32.totalorder %s71, %s72
      %p86 = scmp.eq.s32.totalorder %s38, 1
      %p87 = por %p85, %p86
      %p89 = scmp.ne.s32.totalorder %s72, %s88
      %p90 = scmp.eq.s32.totalorder %s38, 0
      %p91 = por %p89, %p90
      %s93 = sadd.s32 %s92, 1
      %p96 = scmp.eq.s32.totalorder %s32, 1
      %p97 = scmp.ne.s32.totalorder %s92, %s94
      %p98 = scmp.eq.s32.totalorder %s32, 0
      %p99 = por %p97, %p98
      %p100 = scmp.ne.s32.totalorder %s92, %s94
      %p101 = scmp.eq.s32.totalorder %s37, 1
      %p102 = por %p100, %p101
      %p103 = scmp.ne.s32.totalorder %s94, %s95
      %p104 = scmp.eq.s32.totalorder %s37, 0
      %p105 = por %p103, %p104
      %p106 = scmp.ne.s32.totalorder %s94, %s95
      %p107 = scmp.eq.s32.totalorder %s38, 1
      %p108 = por %p106, %p107
      %p110 = scmp.ne.s32.totalorder %s95, %s109
      %p111 = scmp.eq.s32.totalorder %s38, 0
      %p112 = por %p110, %p111
      %s114 = sadd.s32 %s113, 1
      %p117 = scmp.eq.s32.totalorder %s32, 1
      %p118 = scmp.ne.s32.totalorder %s113, %s115
      %p119 = scmp.eq.s32.totalorder %s32, 0
      %p120 = por %p118, %p119
      %p121 = scmp.ne.s32.totalorder %s113, %s115
      %p122 = scmp.eq.s32.totalorder %s37, 1
      %p123 = por %p121, %p122
      %p124 = scmp.ne.s32.totalorder %s115, %s116
      %p125 = scmp.eq.s32.totalorder %s37, 0
      %p126 = por %p124, %p125
      %p127 = scmp.ne.s32.totalorder %s115, %s116
      %p128 = scmp.eq.s32.totalorder %s38, 1
      %p129 = por %p127, %p128
      %p131 = scmp.ne.s32.totalorder %s116, %s130
      %p132 = scmp.eq.s32.totalorder %s38, 0
      %p133 = por %p131, %p132
      %s135 = sadd.s32 %s134, 1
      %p138 = scmp.eq.s32.totalorder %s32, 1
      %p139 = scmp.ne.s32.totalorder %s134, %s136
      %p140 = scmp.eq.s32.totalorder %s32, 0
      %p141 = por %p139, %p140
      %p142 = scmp.ne.s32.totalorder %s134, %s136
      %p143 = scmp.eq.s32.totalorder %s37, 1
      %p144 = por %p142, %p143
      %p145 = scmp.ne.s32.totalorder %s136, %s137
      %p146 = scmp.eq.s32.totalorder %s37, 0
      %p147 = por %p145, %p146
      %p148 = scmp.ne.s32.totalorder %s136, %s137
      %p149 = scmp.eq.s32.totalorder %s38, 1
      %p150 = por %p148, %p149
      %p152 = scmp.ne.s32.totalorder %s137, %s151
      %p153 = scmp.eq.s32.totalorder %s38, 0
      %p154 = por %p152, %p153
      %s156 = sadd.s32 %s155, 1
      %p159 = scmp.eq.s32.totalorder %s32, 1
      %p160 = scmp.ne.s32.totalorder %s155, %s157
      %p161 = scmp.eq.s32.totalorder %s32, 0
      %p162 = por %p160, %p161
      %p163 = scmp.ne.s32.totalorder %s155, %s157
      %p164 = scmp.eq.s32.totalorder %s37, 1
      %p165 = por %p163, %p164
      %p166 = scmp.ne.s32.totalorder %s157, %s158
      %p167 = scmp.eq.s32.totalorder %s37, 0
      %p168 = por %p166, %p167
      %p169 = scmp.ne.s32.totalorder %s157, %s158
      %p170 = scmp.eq.s32.totalorder %s38, 1
      %p171 = por %p169, %p170
      %p173 = scmp.ne.s32.totalorder %s158, %s172
      %p174 = scmp.eq.s32.totalorder %s38, 0
      %p175 = por %p173, %p174
      %s177 = sadd.s32 %s176, 1
      %p180 = scmp.eq.s32.totalorder %s32, 1
      %p181 = scmp.ne.s32.totalorder %s176, %s178
      %p182 = scmp.eq.s32.totalorder %s32, 0
      %p183 = por %p181, %p182
      %p184 = scmp.ne.s32.totalorder %s176, %s178
      %p185 = scmp.eq.s32.totalorder %s37, 1
      %p186 = por %p184, %p185
      %p187 = scmp.ne.s32.totalorder %s178, %s179
      %p188 = scmp.eq.s32.totalorder %s37, 0
      %p189 = por %p187, %p188
      %p190 = scmp.ne.s32.totalorder %s178, %s179
      %p191 = scmp.eq.s32.totalorder %s38, 1
      %p192 = por %p190, %p191
      %p194 = scmp.ne.s32.totalorder %s179, %s193
      %p195 = scmp.eq.s32.totalorder %s38, 0
      %p196 = por %p194, %p195
      %s198 = sadd.s32 %s197, 1
      %p201 = scmp.eq.s32.totalorder %s32, 1
      %p202 = scmp.ne.s32.totalorder %s197, %s199
      %p203 = scmp.eq.s32.totalorder %s32, 0
      %p204 = por %p202, %p203
      %p205 = scmp.ne.s32.totalorder %s197, %s199
      %p206 = scmp.eq.s32.totalorder %s37, 1
      %p207 = por %p205, %p206
      %p208 = scmp.ne.s32.totalorder %s199, %s200
      %p209 = scmp.eq.s32.totalorder %s37, 0
      %p210 = por %p208, %p209
      %p211 = scmp.ne.s32.totalorder %s199, %s200
      %p212 = scmp.eq.s32.totalorder %s38, 1
      %p213 = por %p211, %p212
      %p215 = scmp.ne.s32.totalorder %s200, %s214
      %p216 = scmp.eq.s32.totalorder %s38, 0
      %p217 = por %p215, %p216
      %s219 = sadd.s32 %s218, 1
      %p222 = scmp.eq.s32.totalorder %s32, 1
      %p223 = scmp.ne.s32.totalorder %s218, %s220
      %p224 = scmp.eq.s32.totalorder %s32, 0
      %p225 = por %p223, %p224
      %p226 = scmp.ne.s32.totalorder %s218, %s220
      %p227 = scmp.eq.s32.totalorder %s37, 1
      %p228 = por %p226, %p227
      %p229 = scmp.ne.s32.totalorder %s220, %s221
      %p230 = scmp.eq.s32.totalorder %s37, 0
      %p231 = por %p229, %p230
      %p232 = scmp.ne.s32.totalorder %s220, %s221
      %p233 = scmp.eq.s32.totalorder %s38, 1
      %p234 = por %p232, %p233
      %p236 = scmp.ne.s32.totalorder %s221, %s235
      %p237 = scmp.eq.s32.totalorder %s38, 0
      %p238 = por %p236, %p237
      %s240 = sadd.s32 %s239, 1
      %p243 = scmp.eq.s32.totalorder %s32, 1
      %p244 = scmp.ne.s32.totalorder %s239, %s241
      %p245 = scmp.eq.s32.totalorder %s32, 0
      %p246 = por %p244, %p245
      %p247 = scmp.ne.s32.totalorder %s239, %s241
      %p248 = scmp.eq.s32.totalorder %s37, 1
      %p249 = por %p247, %p248
      %p250 = scmp.ne.s32.totalorder %s241, %s242
      %p251 = scmp.eq.s32.totalorder %s37, 0
      %p252 = por %p250, %p251
      %p253 = scmp.ne.s32.totalorder %s241, %s242
      %p254 = scmp.eq.s32.totalorder %s38, 1
      %p255 = por %p253, %p254
      %p257 = scmp.ne.s32.totalorder %s242, %s256
      %p258 = scmp.eq.s32.totalorder %s38, 0
      %p259 = por %p257, %p258
      %s261 = sadd.s32 %s260, 1
      %p264 = scmp.eq.s32.totalorder %s32, 1
      %p265 = scmp.ne.s32.totalorder %s260, %s262
      %p266 = scmp.eq.s32.totalorder %s32, 0
      %p267 = por %p265, %p266
      %p268 = scmp.ne.s32.totalorder %s260, %s262
      %p269 = scmp.eq.s32.totalorder %s37, 1
      %p270 = por %p268, %p269
      %p271 = scmp.ne.s32.totalorder %s262, %s263
      %p272 = scmp.eq.s32.totalorder %s37, 0
      %p273 = por %p271, %p272
      %p274 = scmp.ne.s32.totalorder %s262, %s263
      %p275 = scmp.eq.s32.totalorder %s38, 1
      %p276 = por %p274, %p275
      %p278 = scmp.ne.s32.totalorder %s263, %s277
      %p279 = scmp.eq.s32.totalorder %s38, 0
      %p280 = por %p278, %p279
      %s282 = sadd.s32 %s281, 1
      %p285 = scmp.eq.s32.totalorder %s32, 1
      %p286 = scmp.ne.s32.totalorder %s281, %s283
      %p287 = scmp.eq.s32.totalorder %s32, 0
      %p288 = por %p286, %p287
      %p289 = scmp.ne.s32.totalorder %s281, %s283
      %p290 = scmp.eq.s32.totalorder %s37, 1
      %p291 = por %p289, %p290
      %p292 = scmp.ne.s32.totalorder %s283, %s284
      %p293 = scmp.eq.s32.totalorder %s37, 0
      %p294 = por %p292, %p293
      %p295 = scmp.ne.s32.totalorder %s283, %s284
      %p296 = scmp.eq.s32.totalorder %s38, 1
      %p297 = por %p295, %p296
      %p299 = scmp.ne.s32.totalorder %s284, %s298
      %p300 = scmp.eq.s32.totalorder %s38, 0
      %p301 = por %p299, %p300
      %s303 = sadd.s32 %s302, 1
      %p306 = scmp.eq.s32.totalorder %s32, 1
      %p307 = scmp.ne.s32.totalorder %s302, %s304
      %p308 = scmp.eq.s32.totalorder %s32, 0
      %p309 = por %p307, %p308
      %p310 = scmp.ne.s32.totalorder %s302, %s304
      %p311 = scmp.eq.s32.totalorder %s37, 1
      %p312 = por %p310, %p311
      %p313 = scmp.ne.s32.totalorder %s304, %s305
      %p314 = scmp.eq.s32.totalorder %s37, 0
      %p315 = por %p313, %p314
      %p316 = scmp.ne.s32.totalorder %s304, %s305
      %p317 = scmp.eq.s32.totalorder %s38, 1
      %p318 = por %p316, %p317
      %p320 = scmp.ne.s32.totalorder %s305, %s319
      %p321 = scmp.eq.s32.totalorder %s38, 0
      %p322 = por %p320, %p321
      %s324 = sadd.s32 %s323, 1
      %p327 = scmp.eq.s32.totalorder %s32, 1
      %p328 = scmp.ne.s32.totalorder %s323, %s325
      %p329 = scmp.eq.s32.totalorder %s32, 0
      %p330 = por %p328, %p329
      %p331 = scmp.ne.s32.totalorder %s323, %s325
      %p332 = scmp.eq.s32.totalorder %s37, 1
      %p333 = por %p331, %p332
      %p334 = scmp.ne.s32.totalorder %s325, %s326
      %p335 = scmp.eq.s32.totalorder %s37, 0
      %p336 = por %p334, %p335
      %p337 = scmp.ne.s32.totalorder %s325, %s326
      %p338 = scmp.eq.s32.totalorder %s38, 1
      %p339 = por %p337, %p338
      %p341 = scmp.ne.s32.totalorder %s326, %s340
      %p342 = scmp.eq.s32.totalorder %s38, 0
      %p343 = por %p341, %p342
      %s344 = ssub.s32 %s32, %s39
      %p345 = scmp.eq.s32.totalorder %s344, 0
      %s347 = sadd.s32 %s346, 1
      %s348 = scalar_select %p345, %s346, %s347
      %p351 = pneg %p345
      %p352 = scmp.eq.s32.totalorder %s32, 1
      %p353 = por %p351, %p352
      %p354 = scmp.ne.s32.totalorder %s346, %s349
      %p355 = scmp.eq.s32.totalorder %s32, 0
      %p356 = por %p354, %p355
      %p357 = scmp.ne.s32.totalorder %s346, %s349
      %p358 = scmp.eq.s32.totalorder %s37, 1
      %p359 = por %p357, %p358
      %p360 = scmp.ne.s32.totalorder %s349, %s350
      %p361 = scmp.eq.s32.totalorder %s37, 0
      %p362 = por %p360, %p361
      %p363 = scmp.ne.s32.totalorder %s349, %s350
      %p364 = scmp.eq.s32.totalorder %s38, 1
      %p365 = por %p363, %p364
      %p367 = scmp.ne.s32.totalorder %s350, %s366
      %p368 = scmp.eq.s32.totalorder %s38, 0
      %p369 = por %p367, %p368
      %p370 = scmp.le.s32.totalorder 1, %s32
      %p371 = scmp.lt.s32.totalorder %s32, 3
      %p372 = pnand %p370, %p371
      %p373 = pneg %p372
      // Predicated region
      $region9: #{tpu_custom_call.1} parent=5 // pred_check
        _
      $region10: #{tpu_custom_call.1} parent=5 // pred_check_branch
        %375 = sbr.rel (%p372) target = $region12
      $region11: #{tpu_custom_call.1} parent=5 // pred_region
        %s376 = ssub.s32 %s32, 1
        // Predicated region
        $region13: #{tpu_custom_call.1} parent=11 // pred_check
          %p377 = pneg %p105
        $region14: #{tpu_custom_call.1} parent=11 // pred_check_branch
          %379 = sbr.rel (%p377) target = $region16
        $region15: #{tpu_custom_call.1} parent=11 // pred_region
          %s381 = ssub.s32 30720, 30720
          %382 = vsyncadd [#allocation6], %s381
          %s383 = sshll.u32 [#allocation7], 4
          %s384 = int_to_ptr.vmem [resolvable:$true] %s383
          %389 = dma.hbm_to_vmem [thread:$0]  %s2, 30720, %s384, [#allocation6], 64, 64, 4
        $region16: #{tpu_custom_call.1} parent=11 // pred_fallthru
          _
        // Predicated region
        $region17: #{tpu_custom_call.1} parent=11 // pred_check
          %p390 = pneg %p126
        $region18: #{tpu_custom_call.1} parent=11 // pred_check_branch
          %392 = sbr.rel (%p390) target = $region20
        $region19: #{tpu_custom_call.1} parent=11 // pred_region
          _
        $region20: #{tpu_custom_call.1} parent=11 // pred_fallthru
          _
        // Predicated region
        $region21: #{tpu_custom_call.1} parent=11 // pred_check
          %p393 = pneg %p147
        $region22: #{tpu_custom_call.1} parent=11 // pred_check_branch
          %395 = sbr.rel (%p393) target = $region24
        $region23: #{tpu_custom_call.1} parent=11 // pred_region
          %s397 = ssub.s32 3072, 3072
          %398 = vsyncadd [#allocation9], %s397
          %s399 = sshll.u32 [#allocation8], 4
          %s400 = int_to_ptr.vmem [resolvable:$true] %s399
          %405 = dma.hbm_to_vmem [thread:$0]  %s4, 3072, %s400, [#allocation9], 192, 192, 12
        $region24: #{tpu_custom_call.1} parent=11 // pred_fallthru
          _
        // Predicated region
        $region25: #{tpu_custom_call.1} parent=11 // pred_check
          %p406 = pneg %p168
        $region26: #{tpu_custom_call.1} parent=11 // pred_check_branch
          %408 = sbr.rel (%p406) target = $region28
        $region27: #{tpu_custom_call.1} parent=11 // pred_region
          _
        $region28: #{tpu_custom_call.1} parent=11 // pred_fallthru
          _
        // Predicated region
        $region29: #{tpu_custom_call.1} parent=11 // pred_check
          %p409 = pneg %p189
        $region30: #{tpu_custom_call.1} parent=11 // pred_check_branch
          %411 = sbr.rel (%p409) target = $region32
        $region31: #{tpu_custom_call.1} parent=11 // pred_region
          %s413 = ssub.s32 2048, 2048
          %414 = vsyncadd [#allocation9], %s413
          %s415 = sshll.u32 [#allocation10], 4
          %s416 = int_to_ptr.vmem [resolvable:$true] %s415
          %421 = dma.hbm_to_vmem [thread:$0]  %s6, 2048, %s416, [#allocation9], 128, 128, 8
        $region32: #{tpu_custom_call.1} parent=11 // pred_fallthru
          _
        // Predicated region
        $region33: #{tpu_custom_call.1} parent=11 // pred_check
          %p422 = pneg %p210
        $region34: #{tpu_custom_call.1} parent=11 // pred_check_branch
          %424 = sbr.rel (%p422) target = $region36
        $region35: #{tpu_custom_call.1} parent=11 // pred_region
          _
        $region36: #{tpu_custom_call.1} parent=11 // pred_fallthru
          _
        // Predicated region
        $region37: #{tpu_custom_call.1} parent=11 // pred_check
          %p425 = pneg %p231
        $region38: #{tpu_custom_call.1} parent=11 // pred_check_branch
          %427 = sbr.rel (%p425) target = $region40
        $region39: #{tpu_custom_call.1} parent=11 // pred_region
          %s429 = ssub.s32 3072, 3072
          %430 = vsyncadd [#allocation12], %s429
          %s431 = sshll.u32 [#allocation11], 4
          %s432 = int_to_ptr.vmem [resolvable:$true] %s431
          %437 = dma.hbm_to_vmem [thread:$0]  %s8, 3072, %s432, [#allocation12], 64, 64, 4
        $region40: #{tpu_custom_call.1} parent=11 // pred_fallthru
          _
        // Predicated region
        $region41: #{tpu_custom_call.1} parent=11 // pred_check
          %p438 = pneg %p252
        $region42: #{tpu_custom_call.1} parent=11 // pred_check_branch
          %440 = sbr.rel (%p438) target = $region44
        $region43: #{tpu_custom_call.1} parent=11 // pred_region
          _
        $region44: #{tpu_custom_call.1} parent=11 // pred_fallthru
          _
        // Predicated region
        $region45: #{tpu_custom_call.1} parent=11 // pred_check
          %p441 = pneg %p273
        $region46: #{tpu_custom_call.1} parent=11 // pred_check_branch
          %443 = sbr.rel (%p441) target = $region48
        $region47: #{tpu_custom_call.1} parent=11 // pred_region
          %s445 = ssub.s32 4096, 4096
          %446 = vsyncadd [#allocation12], %s445
          %s447 = sshll.u32 [#allocation13], 4
          %s448 = int_to_ptr.vmem [resolvable:$true] %s447
          %453 = dma.hbm_to_vmem [thread:$0]  %s10, 4096, %s448, [#allocation12], 256, 256, 16
        $region48: #{tpu_custom_call.1} parent=11 // pred_fallthru
          _
        // Predicated region
        $region49: #{tpu_custom_call.1} parent=11 // pred_check
          %p454 = pneg %p294
        $region50: #{tpu_custom_call.1} parent=11 // pred_check_branch
          %456 = sbr.rel (%p454) target = $region52
        $region51: #{tpu_custom_call.1} parent=11 // pred_region
          %s458 = ssub.s32 4096, 4096
          %459 = vsyncadd [#allocation15], %s458
          %s460 = sshll.u32 [#allocation14], 4
          %s461 = int_to_ptr.vmem [resolvable:$true] %s460
          %466 = dma.hbm_to_vmem [thread:$0]  %s11, 4096, %s461, [#allocation15], 64, 64, 4
        $region52: #{tpu_custom_call.1} parent=11 // pred_fallthru
          _
        // Predicated region
        $region53: #{tpu_custom_call.1} parent=11 // pred_check
          %p467 = pneg %p315
        $region54: #{tpu_custom_call.1} parent=11 // pred_check_branch
          %469 = sbr.rel (%p467) target = $region56
        $region55: #{tpu_custom_call.1} parent=11 // pred_region
          _
        $region56: #{tpu_custom_call.1} parent=11 // pred_fallthru
          _
        // Predicated region
        $region57: #{tpu_custom_call.1} parent=11 // pred_check
          %p470 = pneg %p336
        $region58: #{tpu_custom_call.1} parent=11 // pred_check_branch
          %472 = sbr.rel (%p470) target = $region60
        $region59: #{tpu_custom_call.1} parent=11 // pred_region
          _
        $region60: #{tpu_custom_call.1} parent=11 // pred_fallthru
          _
      $region12: #{tpu_custom_call.1} parent=5 // pred_fallthru
        _
      %p473 = scmp.lt.s32.totalorder %s32, 2
      // Predicated region
      $region61: #{tpu_custom_call.1} parent=5 // pred_check
        %p474 = pneg %p473
      $region62: #{tpu_custom_call.1} parent=5 // pred_check_branch
        %476 = sbr.rel (%p474) target = $region64
      $region63: #{tpu_custom_call.1} parent=5 // pred_region
        // Predicated region
        $region65: #{tpu_custom_call.1} parent=63 // pred_check
          %p477 = pneg %p52
        $region66: #{tpu_custom_call.1} parent=63 // pred_check_branch
          %479 = sbr.rel (%p477) target = $region68
        $region67: #{tpu_custom_call.1} parent=63 // pred_region
          %s480 = sand.u32 %s42, 1
          %s481 = scalar_lea.sflag [#allocation3], %s480
          %s482 = sand.u32 %s42, 1
          %s483 = smul.addr %s482, 64
          %s484 = scalar_lea.vmem [#allocation2], %s483
          %s485 = smul.u32 4, %s32
          %s487 = ssub.s32 1024, 1024
          %488 = vsyncadd %s481, %s487
          %s489 = smul.addr %s485, 2
          %s490 = smul.addr %s489, 128
          %s491 = scalar_lea.hbm %s0, %s490
          %s492 = sshll.u32 %s484, 4
          %s493 = int_to_ptr.vmem [resolvable:$true] %s492
          %498 = dma.hbm_to_vmem [thread:$0]  %s491, 1024, %s493, %s481, 128, 128, 8
        $region68: #{tpu_custom_call.1} parent=63 // pred_fallthru
          _
        // Predicated region
        $region69: #{tpu_custom_call.1} parent=63 // pred_check
          %p499 = pneg %p78
        $region70: #{tpu_custom_call.1} parent=63 // pred_check_branch
          %501 = sbr.rel (%p499) target = $region72
        $region71: #{tpu_custom_call.1} parent=63 // pred_region
          %s502 = sand.u32 %s32, 1
          %s503 = scalar_lea.sflag [#allocation6], %s502
          %s504 = sand.u32 %s68, 1
          %s505 = smul.addr %s504, 96
          %s506 = scalar_lea.vmem [#allocation5], %s505
          %s507 = smul.u32 4, %s32
          %s509 = ssub.s32 1536, 1536
          %510 = vsyncadd %s503, %s509
          %s511 = smul.addr %s507, 3
          %s512 = smul.addr %s511, 128
          %s513 = scalar_lea.hbm %s1, %s512
          %s514 = sshll.u32 %s506, 4
          %s515 = int_to_ptr.vmem [resolvable:$true] %s514
          %520 = dma.hbm_to_vmem [thread:$0]  %s513, 1536, %s515, %s503, 128, 128, 8
        $region72: #{tpu_custom_call.1} parent=63 // pred_fallthru
          _
      $region64: #{tpu_custom_call.1} parent=5 // pred_fallthru
        _
      %p521 = scmp.le.s32.totalorder 1, %s32
      %p522 = scmp.lt.s32.totalorder %s32, 3
      %p523 = pnand %p521, %p522
      %p524 = pneg %p523
      // Predicated region
      $region73: #{tpu_custom_call.1} parent=5 // pred_check
        _
      $region74: #{tpu_custom_call.1} parent=5 // pred_check_branch
        %526 = sbr.rel (%p523) target = $region76
      $region75: #{tpu_custom_call.1} parent=5 // pred_region
        %s527 = ssub.s32 %s32, 1
        %s528 = sand.u32 %s45, 1
        %s529 = scalar_lea.sflag [#allocation3], %s528
        %s530 = sand.u32 %s45, 1
        %s531 = smul.addr %s530, 64
        %s532 = scalar_lea.vmem [#allocation2], %s531
        // Predicated region
        $region77: #{tpu_custom_call.1} parent=75 // pred_check
          %p533 = pneg %p58
        $region78: #{tpu_custom_call.1} parent=75 // pred_check_branch
          %535 = sbr.rel (%p533) target = $region80
        $region79: #{tpu_custom_call.1} parent=75 // pred_region
          %536 = dma.done %s529, 1024
        $region80: #{tpu_custom_call.1} parent=75 // pred_fallthru
          _
        %s537 = sand.u32 %s37, 1
        %s538 = scalar_lea.sflag [#allocation6], %s537
        %s539 = sand.u32 %s71, 1
        %s540 = smul.addr %s539, 96
        %s541 = scalar_lea.vmem [#allocation5], %s540
        // Predicated region
        $region81: #{tpu_custom_call.1} parent=75 // pred_check
          %p542 = pneg %p84
        $region82: #{tpu_custom_call.1} parent=75 // pred_check_branch
          %544 = sbr.rel (%p542) target = $region84
        $region83: #{tpu_custom_call.1} parent=75 // pred_region
          %545 = dma.done %s538, 1536
        $region84: #{tpu_custom_call.1} parent=75 // pred_fallthru
          _
        // Predicated region
        $region85: #{tpu_custom_call.1} parent=75 // pred_check
          %p546 = pneg %p105
        $region86: #{tpu_custom_call.1} parent=75 // pred_check_branch
          %548 = sbr.rel (%p546) target = $region88
        $region87: #{tpu_custom_call.1} parent=75 // pred_region
          %549 = dma.done [#allocation6], 30720
        $region88: #{tpu_custom_call.1} parent=75 // pred_fallthru
          _
        // Predicated region
        $region89: #{tpu_custom_call.1} parent=75 // pred_check
          %p550 = pneg %p147
        $region90: #{tpu_custom_call.1} parent=75 // pred_check_branch
          %552 = sbr.rel (%p550) target = $region92
        $region91: #{tpu_custom_call.1} parent=75 // pred_region
          %553 = dma.done [#allocation9], 3072
        $region92: #{tpu_custom_call.1} parent=75 // pred_fallthru
          _
        // Predicated region
        $region93: #{tpu_custom_call.1} parent=75 // pred_check
          %p554 = pneg %p189
        $region94: #{tpu_custom_call.1} parent=75 // pred_check_branch
          %556 = sbr.rel (%p554) target = $region96
        $region95: #{tpu_custom_call.1} parent=75 // pred_region
          %557 = dma.done [#allocation9], 2048
        $region96: #{tpu_custom_call.1} parent=75 // pred_fallthru
          _
        // Predicated region
        $region97: #{tpu_custom_call.1} parent=75 // pred_check
          %p558 = pneg %p231
        $region98: #{tpu_custom_call.1} parent=75 // pred_check_branch
          %560 = sbr.rel (%p558) target = $region100
        $region99: #{tpu_custom_call.1} parent=75 // pred_region
          %561 = dma.done [#allocation12], 3072
        $region100: #{tpu_custom_call.1} parent=75 // pred_fallthru
          _
        // Predicated region
        $region101: #{tpu_custom_call.1} parent=75 // pred_check
          %p562 = pneg %p273
        $region102: #{tpu_custom_call.1} parent=75 // pred_check_branch
          %564 = sbr.rel (%p562) target = $region104
        $region103: #{tpu_custom_call.1} parent=75 // pred_region
          %565 = dma.done [#allocation12], 4096
        $region104: #{tpu_custom_call.1} parent=75 // pred_fallthru
          _
        // Predicated region
        $region105: #{tpu_custom_call.1} parent=75 // pred_check
          %p566 = pneg %p294
        $region106: #{tpu_custom_call.1} parent=75 // pred_check_branch
          %568 = sbr.rel (%p566) target = $region108
        $region107: #{tpu_custom_call.1} parent=75 // pred_region
          %569 = dma.done [#allocation15], 4096
        $region108: #{tpu_custom_call.1} parent=75 // pred_fallthru
          _
        %s570 = sand.u32 %s45, 1
        %s571 = scalar_lea.sflag [#allocation3], %s570
        %s572 = sand.u32 %s45, 1
        %s573 = smul.addr %s572, 64
        %s574 = scalar_lea.vmem [#allocation2], %s573
        %p575 = pneg %p58
        %p576 = pneg %p55
        %s577 = sand.u32 %s37, 1
        %s578 = scalar_lea.sflag [#allocation6], %s577
        %s579 = sand.u32 %s71, 1
        %s580 = smul.addr %s579, 96
        %s581 = scalar_lea.vmem [#allocation5], %s580
        %p582 = pneg %p84
        %p583 = pneg %p81
        %p584 = pneg %p105
        %p585 = pneg %p102
        %p586 = pneg %p126
        %p587 = pneg %p123
        %p588 = pneg %p147
        %p589 = pneg %p144
        %p590 = pneg %p168
        %p591 = pneg %p165
        %p592 = pneg %p189
        %p593 = pneg %p186
        %p594 = pneg %p210
        %p595 = pneg %p207
        %p596 = pneg %p231
        %p597 = pneg %p228
        %p598 = pneg %p252
        %p599 = pneg %p249
        %p600 = pneg %p273
        %p601 = pneg %p270
        %p602 = pneg %p294
        %p603 = pneg %p291
        %p604 = pneg %p315
        %p605 = pneg %p312
        %p606 = pneg %p336
        %p607 = pneg %p333
        %p608 = pneg %p362
        %p609 = pneg %p359
        %s610 = sand.u32 %s349, 1
        %s611 = scalar_lea.sflag [#allocation4], %s610
        %s612 = sand.u32 %s349, 1
        %s613 = smul.addr %s612, 64
        %s614 = scalar_lea.vmem [#allocation16], %s613
        %s615 = smul.u32 4, %s37
        %s616 = smul.u32 4, %s37
        %s617 = smul.u32 4, %s37
        %v619 = vld [vmem:[%s532] sm:$0xff]
        %v620 = vld [vmem:[%s532 + $0x8] sm:$0xff]
        %v621 = vld [vmem:[%s532 + $0x10] sm:$0xff]
        %v622 = vld [vmem:[%s532 + $0x18] sm:$0xff]
        %v623 = vld [vmem:[%s532 + $0x20] sm:$0xff]
        %v624 = vld [vmem:[%s532 + $0x28] sm:$0xff]
        %v625 = vld [vmem:[%s532 + $0x30] sm:$0xff]
        %v626 = vld [vmem:[%s532 + $0x38] sm:$0xff]
        %v627 = vld [vmem:[%s541] sm:$0xff]
        %v628 = vld [vmem:[%s541 + $0x8] sm:$0xff]
        %v629 = vld [vmem:[%s541 + $0x10] sm:$0xff]
        %v630 = vld [vmem:[%s541 + $0x18] sm:$0xff]
        %v631 = vld [vmem:[%s541 + $0x20] sm:$0xff]
        %v632 = vld [vmem:[%s541 + $0x28] sm:$0xff]
        %v633 = vld [vmem:[%s541 + $0x30] sm:$0xff]
        %v634 = vld [vmem:[%s541 + $0x38] sm:$0xff]
        %v635 = vld [vmem:[%s541 + $0x40] sm:$0xff]
        %v636 = vld [vmem:[%s541 + $0x48] sm:$0xff]
        %v637 = vld [vmem:[%s541 + $0x50] sm:$0xff]
        %v638 = vld [vmem:[%s541 + $0x58] sm:$0xff]
        %v639 = vlaneseq
        %v640 = vshrl.u32 %v639, 7
        %v641 = vadd.s32 %v640, 8
        %v642 = vadd.s32 %v640, 16
        %v643 = vadd.s32 %v640, 24
        %v644 = vadd.s32 %v640, 32
        %v645 = vadd.s32 %v640, 40
        %v646 = vadd.s32 %v640, 48
        %v647 = vadd.s32 %v640, 56
        %vm648 = vcmp.lt.s32.totalorder %v640, 0
        %v649 = vsub.s32 0, %v640
        %v650 = vsel %vm648, %v649, %v640
        %v651 = vshrl.u32 %v650, 4
        %v652 = vand.u32 %v650, 15
        %v653 = vsub.s32 0, %v652
        %v654 = vsel %vm648, %v653, %v652
        %vm655 = vcmp.lt.s32.totalorder %v641, 0
        %v656 = vsub.s32 0, %v641
        %v657 = vsel %vm655, %v656, %v641
        %v658 = vshrl.u32 %v657, 4
        %v659 = vand.u32 %v657, 15
        %v660 = vsub.s32 0, %v659
        %v661 = vsel %vm655, %v660, %v659
        %vm662 = vcmp.lt.s32.totalorder %v642, 0
        %v663 = vsub.s32 0, %v642
        %v664 = vsel %vm662, %v663, %v642
        %v665 = vshrl.u32 %v664, 4
        %v666 = vand.u32 %v664, 15
        %v667 = vsub.s32 0, %v666
        %v668 = vsel %vm662, %v667, %v666
        %vm669 = vcmp.lt.s32.totalorder %v643, 0
        %v670 = vsub.s32 0, %v643
        %v671 = vsel %vm669, %v670, %v643
        %v672 = vshrl.u32 %v671, 4
        %v673 = vand.u32 %v671, 15
        %v674 = vsub.s32 0, %v673
        %v675 = vsel %vm669, %v674, %v673
        %vm676 = vcmp.lt.s32.totalorder %v644, 0
        %v677 = vsub.s32 0, %v644
        %v678 = vsel %vm676, %v677, %v644
        %v679 = vshrl.u32 %v678, 4
        %v680 = vand.u32 %v678, 15
        %v681 = vsub.s32 0, %v680
        %v682 = vsel %vm676, %v681, %v680
        %vm683 = vcmp.lt.s32.totalorder %v645, 0
        %v684 = vsub.s32 0, %v645
        %v685 = vsel %vm683, %v684, %v645
        %v686 = vshrl.u32 %v685, 4
        %v687 = vand.u32 %v685, 15
        %v688 = vsub.s32 0, %v687
        %v689 = vsel %vm683, %v688, %v687
        %vm690 = vcmp.lt.s32.totalorder %v646, 0
        %v691 = vsub.s32 0, %v646
        %v692 = vsel %vm690, %v691, %v646
        %v693 = vshrl.u32 %v692, 4
        %v694 = vand.u32 %v692, 15
        %v695 = vsub.s32 0, %v694
        %v696 = vsel %vm690, %v695, %v694
        %vm697 = vcmp.lt.s32.totalorder %v647, 0
        %v698 = vsub.s32 0, %v647
        %v699 = vsel %vm697, %v698, %v647
        %v700 = vshrl.u32 %v699, 4
        %v701 = vand.u32 %v699, 15
        %v702 = vsub.s32 0, %v701
        %v703 = vsel %vm697, %v702, %v701
        %vm704 = vcmp.ne.s32.totalorder %v654, 0
        %vm705 = vcmp.ne.s32.totalorder %v661, 0
        %vm706 = vcmp.ne.s32.totalorder %v668, 0
        %vm707 = vcmp.ne.s32.totalorder %v675, 0
        %vm708 = vcmp.ne.s32.totalorder %v682, 0
        %vm709 = vcmp.ne.s32.totalorder %v689, 0
        %vm710 = vcmp.ne.s32.totalorder %v696, 0
        %vm711 = vcmp.ne.s32.totalorder %v703, 0
        %vm712 = vcmp.lt.s32.totalorder %v654, 0
        %vm713 = vcmp.lt.s32.totalorder %v661, 0
        %vm714 = vcmp.lt.s32.totalorder %v668, 0
        %vm715 = vcmp.lt.s32.totalorder %v675, 0
        %vm716 = vcmp.lt.s32.totalorder %v682, 0
        %vm717 = vcmp.lt.s32.totalorder %v689, 0
        %vm718 = vcmp.lt.s32.totalorder %v696, 0
        %vm719 = vcmp.lt.s32.totalorder %v703, 0
        %vm720 = vmand %vm712, %vm704
        %vm721 = vmand %vm713, %vm705
        %vm722 = vmand %vm714, %vm706
        %vm723 = vmand %vm715, %vm707
        %vm724 = vmand %vm716, %vm708
        %vm725 = vmand %vm717, %vm709
        %vm726 = vmand %vm718, %vm710
        %vm727 = vmand %vm719, %vm711
        %v728 = vadd.s32 %v654, 16
        %v729 = vadd.s32 %v661, 16
        %v730 = vadd.s32 %v668, 16
        %v731 = vadd.s32 %v675, 16
        %v732 = vadd.s32 %v682, 16
        %v733 = vadd.s32 %v689, 16
        %v734 = vadd.s32 %v696, 16
        %v735 = vadd.s32 %v703, 16
        %v736 = vsel %vm720, %v728, %v654
        %v737 = vsel %vm721, %v729, %v661
        %v738 = vsel %vm722, %v730, %v668
        %v739 = vsel %vm723, %v731, %v675
        %v740 = vsel %vm724, %v732, %v682
        %v741 = vsel %vm725, %v733, %v689
        %v742 = vsel %vm726, %v734, %v696
        %v743 = vsel %vm727, %v735, %v703
        %v744 = vrot.slane %v619, 6
        %v745 = vrot.slane %v620, 6
        %v746 = vrot.slane %v621, 6
        %v747 = vrot.slane %v622, 6
        %v748 = vrot.slane %v623, 6
        %v749 = vrot.slane %v624, 6
        %v750 = vrot.slane %v625, 6
        %v751 = vrot.slane %v626, 6
        %vm752 = vcmp.lt.s32.totalorder %v640, 2
        %v753 = vsel %vm752, %v750, %v751
        %v754 = vsel %vm752, %v749, %v750
        %v755 = vsel %vm752, %v748, %v749
        %v756 = vsel %vm752, %v747, %v748
        %v757 = vsel %vm752, %v746, %v747
        %v758 = vsel %vm752, %v745, %v746
        %v759 = vsel %vm752, %v744, %v745
        %v760 = vsel %vm752, %v751, %v744
        %vm761 = vcmp.ge.s32.totalorder %v736, 2
        %vm762 = vcmp.ge.s32.totalorder %v737, 2
        %vm763 = vcmp.ge.s32.totalorder %v738, 2
        %vm764 = vcmp.ge.s32.totalorder %v739, 2
        %vm765 = vcmp.ge.s32.totalorder %v740, 2
        %vm766 = vcmp.ge.s32.totalorder %v741, 2
        %vm767 = vcmp.ge.s32.totalorder %v742, 2
        %vm768 = vcmp.ge.s32.totalorder %v743, 2
        %v769 = vsel %vm761, 1, 0
        %v770 = vsel %vm762, 1, 0
        %v771 = vsel %vm763, 1, 0
        %v772 = vsel %vm764, 1, 0
        %v773 = vsel %vm765, 1, 0
        %v774 = vsel %vm766, 1, 0
        %v775 = vsel %vm767, 1, 0
        %v776 = vsel %vm768, 1, 0
        %vm777 = vcmp.eq.s32.totalorder %v769, 1
        %vm778 = vcmp.eq.s32.totalorder %v770, 1
        %vm779 = vcmp.eq.s32.totalorder %v771, 1
        %vm780 = vcmp.eq.s32.totalorder %v772, 1
        %vm781 = vcmp.eq.s32.totalorder %v773, 1
        %vm782 = vcmp.eq.s32.totalorder %v774, 1
        %vm783 = vcmp.eq.s32.totalorder %v775, 1
        %vm784 = vcmp.eq.s32.totalorder %v776, 1
        %v785 = vsel %vm777, %v760, 0.0
        %v786 = vsel %vm778, %v759, 0.0
        %v787 = vsel %vm779, %v758, 0.0
        %v788 = vsel %vm780, %v757, 0.0
        %v789 = vsel %vm781, %v756, 0.0
        %v790 = vsel %vm782, %v755, 0.0
        %v791 = vsel %vm783, %v754, 0.0
        %v792 = vsel %vm784, %v753, 0.0
        %v793 = vpack.c.bf16 %v786, %v785
        %v794 = vpack.c.bf16 %v788, %v787
        %v795 = vpack.c.bf16 %v790, %v789
        %v796 = vpack.c.bf16 %v792, %v791
        %v797 = vrot.slane %v619, 7
        %v798 = vrot.slane %v620, 7
        %v799 = vrot.slane %v621, 7
        %v800 = vrot.slane %v622, 7
        %v801 = vrot.slane %v623, 7
        %v802 = vrot.slane %v624, 7
        %v803 = vrot.slane %v625, 7
        %v804 = vrot.slane %v626, 7
        %vm805 = vcmp.lt.s32.totalorder %v640, 1
        %v806 = vsel %vm805, %v803, %v804
        %v807 = vsel %vm805, %v802, %v803
        %v808 = vsel %vm805, %v801, %v802
        %v809 = vsel %vm805, %v800, %v801
        %v810 = vsel %vm805, %v799, %v800
        %v811 = vsel %vm805, %v798, %v799
        %v812 = vsel %vm805, %v797, %v798
        %v813 = vsel %vm805, %v804, %v797
        %vm814 = vcmp.ge.s32.totalorder %v736, 1
        %vm815 = vcmp.ge.s32.totalorder %v737, 1
        %vm816 = vcmp.ge.s32.totalorder %v738, 1
        %vm817 = vcmp.ge.s32.totalorder %v739, 1
        %vm818 = vcmp.ge.s32.totalorder %v740, 1
        %vm819 = vcmp.ge.s32.totalorder %v741, 1
        %vm820 = vcmp.ge.s32.totalorder %v742, 1
        %vm821 = vcmp.ge.s32.totalorder %v743, 1
        %v822 = vsel %vm814, 1, 0
        %v823 = vsel %vm815, 1, 0
        %v824 = vsel %vm816, 1, 0
        %v825 = vsel %vm817, 1, 0
        %v826 = vsel %vm818, 1, 0
        %v827 = vsel %vm819, 1, 0
        %v828 = vsel %vm820, 1, 0
        %v829 = vsel %vm821, 1, 0
        %vm830 = vcmp.eq.s32.totalorder %v822, 1
        %vm831 = vcmp.eq.s32.totalorder %v823, 1
        %vm832 = vcmp.eq.s32.totalorder %v824, 1
        %vm833 = vcmp.eq.s32.totalorder %v825, 1
        %vm834 = vcmp.eq.s32.totalorder %v826, 1
        %vm835 = vcmp.eq.s32.totalorder %v827, 1
        %vm836 = vcmp.eq.s32.totalorder %v828, 1
        %vm837 = vcmp.eq.s32.totalorder %v829, 1
        %v838 = vsel %vm830, %v813, 0.0
        %v839 = vsel %vm831, %v812, 0.0
        %v840 = vsel %vm832, %v811, 0.0
        %v841 = vsel %vm833, %v810, 0.0
        %v842 = vsel %vm834, %v809, 0.0
        %v843 = vsel %vm835, %v808, 0.0
        %v844 = vsel %vm836, %v807, 0.0
        %v845 = vsel %vm837, %v806, 0.0
        %v846 = vpack.c.bf16 %v839, %v838
        %v847 = vpack.c.bf16 %v841, %v840
        %v848 = vpack.c.bf16 %v843, %v842
        %v849 = vpack.c.bf16 %v845, %v844
        %v850 = vpack.c.bf16 %v620, %v619
        %v851 = vpack.c.bf16 %v622, %v621
        %v852 = vpack.c.bf16 %v624, %v623
        %v853 = vpack.c.bf16 %v626, %v625
        %v854 = vld [vmem:[#allocation7] sm:$0xf]
        %v855 = vld [vmem:[#allocation7 + $0x4] sm:$0xf]
        %v856 = vld [vmem:[#allocation7 + $0x8] sm:$0xf]
        %v857 = vld [vmem:[#allocation7 + $0xc] sm:$0xf]
        %v858 = vld [vmem:[#allocation7 + $0x10] sm:$0xf]
        %v859 = vld [vmem:[#allocation7 + $0x14] sm:$0xf]
        %v860 = vld [vmem:[#allocation7 + $0x18] sm:$0xf]
        %v861 = vld [vmem:[#allocation7 + $0x1c] sm:$0xf]
        %v862 = vld [vmem:[#allocation7 + $0x20] sm:$0xf]
        %v863 = vld [vmem:[#allocation7 + $0x24] sm:$0xf]
        %v864 = vld [vmem:[#allocation7 + $0x28] sm:$0xf]
        %v865 = vld [vmem:[#allocation7 + $0x2c] sm:$0xf]
        %v866 = vld [vmem:[#allocation7 + $0x30] sm:$0xf]
        %v867 = vld [vmem:[#allocation7 + $0x34] sm:$0xf]
        %v868 = vld [vmem:[#allocation7 + $0x38] sm:$0xf]
        %v869 = vld [vmem:[#allocation7 + $0x3c] sm:$0xf]
        %v870 = vld [vmem:[#allocation7 + $0x40] sm:$0xf]
        %v871 = vld [vmem:[#allocation7 + $0x44] sm:$0xf]
        %v872 = vld [vmem:[#allocation7 + $0x48] sm:$0xf]
        %v873 = vld [vmem:[#allocation7 + $0x4c] sm:$0xf]
        %v874 = vld [vmem:[#allocation7 + $0x50] sm:$0xf]
        %v875 = vld [vmem:[#allocation7 + $0x54] sm:$0xf]
        %v876 = vld [vmem:[#allocation7 + $0x58] sm:$0xf]
        %v877 = vld [vmem:[#allocation7 + $0x5c] sm:$0xf]
        %v878 = vld [vmem:[#allocation7 + $0x60] sm:$0xf]
        %v879 = vld [vmem:[#allocation7 + $0x64] sm:$0xf]
        %v880 = vld [vmem:[#allocation7 + $0x68] sm:$0xf]
        %v881 = vld [vmem:[#allocation7 + $0x6c] sm:$0xf]
        %v882 = vld [vmem:[#allocation7 + $0x70] sm:$0xf]
        %v883 = vld [vmem:[#allocation7 + $0x74] sm:$0xf]
        %v884 = vld [vmem:[#allocation7 + $0x78] sm:$0xf]
        %v885 = vld [vmem:[#allocation7 + $0x7c] sm:$0xf]
        %v886 = vld [vmem:[#allocation7 + $0x80] sm:$0xf]
        %v887 = vld [vmem:[#allocation7 + $0x84] sm:$0xf]
        %v888 = vld [vmem:[#allocation7 + $0x88] sm:$0xf]
        %v889 = vld [vmem:[#allocation7 + $0x8c] sm:$0xf]
        %v890 = vld [vmem:[#allocation7 + $0x90] sm:$0xf]
        %v891 = vld [vmem:[#allocation7 + $0x94] sm:$0xf]
        %v892 = vld [vmem:[#allocation7 + $0x98] sm:$0xf]
        %v893 = vld [vmem:[#allocation7 + $0x9c] sm:$0xf]
        %v894 = vld [vmem:[#allocation7 + $0xa0] sm:$0xf]
        %v895 = vld [vmem:[#allocation7 + $0xa4] sm:$0xf]
        %v896 = vld [vmem:[#allocation7 + $0xa8] sm:$0xf]
        %v897 = vld [vmem:[#allocation7 + $0xac] sm:$0xf]
        %v898 = vld [vmem:[#allocation7 + $0xb0] sm:$0xf]
        %v899 = vld [vmem:[#allocation7 + $0xb4] sm:$0xf]
        %v900 = vld [vmem:[#allocation7 + $0xb8] sm:$0xf]
        %v901 = vld [vmem:[#allocation7 + $0xbc] sm:$0xf]
        %v902 = vld [vmem:[%s3] sm:$0x1]
        %v904 = vlaneseq
        %v905 = vshrl.u32 %v904, 7
        %v906 = vsub.s32 0, %v905
        %v907 = vrot.slane %v902, %v906
        %v957 = vunpack.c.l.b16 %v854
        %v958 = vunpack.c.l.b16 %v855
        %v959 = vunpack.c.l.b16 %v856
        %v960 = vunpack.c.l.b16 %v857
        %v961 = vunpack.c.l.b16 %v858
        %v962 = vunpack.c.l.b16 %v859
        %v963 = vunpack.c.l.b16 %v860
        %v964 = vunpack.c.l.b16 %v861
        %v965 = vunpack.c.l.b16 %v862
        %v966 = vunpack.c.l.b16 %v863
        %v967 = vunpack.c.l.b16 %v864
        %v968 = vunpack.c.l.b16 %v865
        %v969 = vunpack.c.l.b16 %v866
        %v970 = vunpack.c.l.b16 %v867
        %v971 = vunpack.c.l.b16 %v868
        %v972 = vunpack.c.l.b16 %v869
        %v973 = vunpack.c.l.b16 %v870
        %v974 = vunpack.c.l.b16 %v871
        %v975 = vunpack.c.l.b16 %v872
        %v976 = vunpack.c.l.b16 %v873
        %v977 = vunpack.c.l.b16 %v874
        %v978 = vunpack.c.l.b16 %v875
        %v979 = vunpack.c.l.b16 %v876
        %v980 = vunpack.c.l.b16 %v877
        %v981 = vunpack.c.l.b16 %v878
        %v982 = vunpack.c.l.b16 %v879
        %v983 = vunpack.c.l.b16 %v880
        %v984 = vunpack.c.l.b16 %v881
        %v985 = vunpack.c.l.b16 %v882
        %v986 = vunpack.c.l.b16 %v883
        %v987 = vunpack.c.l.b16 %v884
        %v988 = vunpack.c.l.b16 %v885
        %v989 = vunpack.c.l.b16 %v886
        %v990 = vunpack.c.l.b16 %v887
        %v991 = vunpack.c.l.b16 %v888
        %v992 = vunpack.c.l.b16 %v889
        %v993 = vunpack.c.l.b16 %v890
        %v994 = vunpack.c.l.b16 %v891
        %v995 = vunpack.c.l.b16 %v892
        %v996 = vunpack.c.l.b16 %v893
        %v997 = vunpack.c.l.b16 %v894
        %v998 = vunpack.c.l.b16 %v895
        %v999 = vunpack.c.l.b16 %v896
        %v1000 = vunpack.c.l.b16 %v897
        %v1001 = vunpack.c.l.b16 %v898
        %v1002 = vunpack.c.l.b16 %v899
        %v1003 = vunpack.c.l.b16 %v900
        %v1004 = vunpack.c.l.b16 %v901
        %v1005 = vpack.c.b16 %v958, %v957
        %v1006 = vpack.c.b16 %v960, %v959
        %v1007 = vpack.c.b16 %v962, %v961
        %v1008 = vpack.c.b16 %v964, %v963
        %v1009 = vpack.c.b16 %v966, %v965
        %v1010 = vpack.c.b16 %v968, %v967
        %v1011 = vpack.c.b16 %v970, %v969
        %v1012 = vpack.c.b16 %v972, %v971
        %v1013 = vpack.c.b16 %v974, %v973
        %v1014 = vpack.c.b16 %v976, %v975
        %v1015 = vpack.c.b16 %v978, %v977
        %v1016 = vpack.c.b16 %v980, %v979
        %v1017 = vpack.c.b16 %v982, %v981
        %v1018 = vpack.c.b16 %v984, %v983
        %v1019 = vpack.c.b16 %v986, %v985
        %v1020 = vpack.c.b16 %v988, %v987
        %v1021 = vpack.c.b16 %v990, %v989
        %v1022 = vpack.c.b16 %v992, %v991
        %v1023 = vpack.c.b16 %v994, %v993
        %v1024 = vpack.c.b16 %v996, %v995
        %v1025 = vpack.c.b16 %v998, %v997
        %v1026 = vpack.c.b16 %v1000, %v999
        %v1027 = vpack.c.b16 %v1002, %v1001
        %v1028 = vpack.c.b16 %v1004, %v1003
        %1053 = vmatprep.subr.bf16.mxu0 0
        %1054 = vmatpush1.bf16.msra.mxu0 %v1005
        %1055 = vmatprep.subr.bf16.mxu0 0
        %1056 = vmatpush1.bf16.msra.mxu0 %v1006
        %1057 = vmatprep.subr.bf16.mxu0 0
        %1058 = vmatpush1.bf16.msra.mxu0 %v1007
        %1059 = vmatprep.subr.bf16.mxu0 0
        %1060 = vmatpush1.bf16.msra.mxu0 %v1008
        %1061 = vmatprep.subr.bf16.mxu0 0
        %1062 = vmatpush1.bf16.msra.mxu0 %v1009
        %1063 = vmatprep.subr.bf16.mxu0 0
        %1064 = vmatpush1.bf16.msra.mxu0 %v1010
        %1065 = vmatprep.subr.bf16.mxu0 0
        %1066 = vmatpush1.bf16.msra.mxu0 %v1011
        %1067 = vmatprep.subr.bf16.mxu0 0
        %1068 = vmatpush1.bf16.msra.mxu0 %v1012
        %1069 = vmatprep.subr.bf16.mxu0 0
        %1070 = vmatpush1.bf16.msra.mxu0 %v1013
        %1071 = vmatprep.subr.bf16.mxu0 0
        %1072 = vmatpush1.bf16.msra.mxu0 %v1014
        %1073 = vmatprep.subr.bf16.mxu0 0
        %1074 = vmatpush1.bf16.msra.mxu0 %v1015
        %1075 = vmatprep.subr.bf16.mxu0 0
        %1076 = vmatpush1.bf16.msra.mxu0 %v1016
        %1077 = vmatprep.subr.bf16.mxu0 0
        %1078 = vmatpush1.bf16.msra.mxu0 %v1017
        %1079 = vmatprep.subr.bf16.mxu0 0
        %1080 = vmatpush1.bf16.msra.mxu0 %v1018
        %1081 = vmatprep.subr.bf16.mxu0 0
        %1082 = vmatpush1.bf16.msra.mxu0 %v1019
        %1083 = vmatprep.subr.bf16.mxu0 0
        %1084 = vmatpush1.bf16.msra.mxu0 %v1020
        %1085 = vmatprep.mubr.bf16.mxu0 %v846
        %1086 = vmatmul.mubr.bf16.gmra.mrb[0].mxu0 %v793
        %v1087 = vpop.f32.mrb[0].mxu0
        %v1088 = vadd.f32 %v907, %v1087
        %v1089 = vpop.f32.mrb[0].mxu0
        %v1090 = vpop.f32.mrb[0].mxu0
        %v1091 = vadd.f32 %v907, %v1090
        %v1092 = vpop.f32.mrb[0].mxu0
        %1093 = vmatprep.mubr.bf16.mxu0 %v847
        %1094 = vmatmul.mubr.bf16.gmra.mrb[0].mxu0 %v794
        %v1095 = vpop.f32.mrb[0].mxu0
        %v1096 = vadd.f32 %v907, %v1095
        %v1097 = vpop.f32.mrb[0].mxu0
        %v1098 = vpop.f32.mrb[0].mxu0
        %v1099 = vadd.f32 %v907, %v1098
        %v1100 = vpop.f32.mrb[0].mxu0
        %1101 = vmatprep.mubr.bf16.mxu0 %v848
        %1102 = vmatmul.mubr.bf16.gmra.mrb[0].mxu0 %v795
        %v1103 = vpop.f32.mrb[0].mxu0
        %v1104 = vadd.f32 %v907, %v1103
        %v1105 = vpop.f32.mrb[0].mxu0
        %v1106 = vpop.f32.mrb[0].mxu0
        %v1107 = vadd.f32 %v907, %v1106
        %v1108 = vpop.f32.mrb[0].mxu0
        %1109 = vmatprep.mubr.bf16.mxu0 %v849
        %1110 = vmatmul.mubr.bf16.gmra.mrb[0].mxu0 %v796
        %v1111 = vpop.f32.mrb[0].mxu0
        %v1112 = vadd.f32 %v907, %v1111
        %v1113 = vpop.f32.mrb[0].mxu0
        %v1114 = vpop.f32.mrb[0].mxu0
        %v1115 = vadd.f32 %v907, %v1114
        %v1116 = vpop.f32.mrb[0].mxu0
        %1117 = vdwg.mxu0
        %1118 = vmatprep.subr.bf16.mxu0 0
        %1119 = vmatpush1.bf16.msra.mxu0 %v1021
        %1120 = vmatprep.subr.bf16.mxu0 0
        %1121 = vmatpush1.bf16.msra.mxu0 %v1022
        %1122 = vmatprep.subr.bf16.mxu0 0
        %1123 = vmatpush1.bf16.msra.mxu0 %v1023
        %1124 = vmatprep.subr.bf16.mxu0 0
        %1125 = vmatpush1.bf16.msra.mxu0 %v1024
        %1126 = vmatprep.subr.bf16.mxu0 0
        %1127 = vmatpush1.bf16.msra.mxu0 %v1025
        %1128 = vmatprep.subr.bf16.mxu0 0
        %1129 = vmatpush1.bf16.msra.mxu0 %v1026
        %1130 = vmatprep.subr.bf16.mxu0 0
        %1131 = vmatpush1.bf16.msra.mxu0 %v1027
        %1132 = vmatprep.subr.bf16.mxu0 0
        %1133 = vmatpush1.bf16.msra.mxu0 %v1028
        %1134 = vmatprep.subr.bf16.mxu0 0
        %1135 = vmatpush1.bf16.msra.mxu0 0
        %1136 = vmatprep.subr.bf16.mxu0 0
        %1137 = vmatpush1.bf16.msra.mxu0 0
        %1138 = vmatprep.subr.bf16.mxu0 0
        %1139 = vmatpush1.bf16.msra.mxu0 0
        %1140 = vmatprep.subr.bf16.mxu0 0
        %1141 = vmatpush1.bf16.msra.mxu0 0
        %1142 = vmatprep.subr.bf16.mxu0 0
        %1143 = vmatpush1.bf16.msra.mxu0 0
        %1144 = vmatprep.subr.bf16.mxu0 0
        %1145 = vmatpush1.bf16.msra.mxu0 0
        %1146 = vmatprep.subr.bf16.mxu0 0
        %1147 = vmatpush1.bf16.msra.mxu0 0
        %1148 = vmatprep.subr.bf16.mxu0 0
        %1149 = vmatpush1.bf16.msra.mxu0 0
        %1150 = vmatprep.mubr.bf16.mxu0 0
        %1151 = vmatmul.mubr.bf16.gmra.mrb[0].mxu0 %v850
        %v1152 = vpop.f32.mrb[0].mxu0
        %v1153 = vadd.f32 %v1088, %v1152
        %v1154 = vpop.f32.mrb[0].mxu0
        %v1155 = vpop.f32.mrb[0].mxu0
        %v1156 = vadd.f32 %v1091, %v1155
        %v1157 = vpop.f32.mrb[0].mxu0
        %1158 = vmatprep.mubr.bf16.mxu0 0
        %1159 = vmatmul.mubr.bf16.gmra.mrb[0].mxu0 %v851
        %v1160 = vpop.f32.mrb[0].mxu0
        %v1161 = vadd.f32 %v1096, %v1160
        %v1162 = vpop.f32.mrb[0].mxu0
        %v1163 = vpop.f32.mrb[0].mxu0
        %v1164 = vadd.f32 %v1099, %v1163
        %v1165 = vpop.f32.mrb[0].mxu0
        %1166 = vmatprep.mubr.bf16.mxu0 0
        %1167 = vmatmul.mubr.bf16.gmra.mrb[0].mxu0 %v852
        %v1168 = vpop.f32.mrb[0].mxu0
        %v1169 = vadd.f32 %v1104, %v1168
        %v1170 = vpop.f32.mrb[0].mxu0
        %v1171 = vpop.f32.mrb[0].mxu0
        %v1172 = vadd.f32 %v1107, %v1171
        %v1173 = vpop.f32.mrb[0].mxu0
        %1174 = vmatprep.mubr.bf16.mxu0 0
        %1175 = vmatmul.mubr.bf16.gmra.mrb[0].mxu0 %v853
        %v1176 = vpop.f32.mrb[0].mxu0
        %v1177 = vadd.f32 %v1112, %v1176
        %v1178 = vpop.f32.mrb[0].mxu0
        %v1179 = vpop.f32.mrb[0].mxu0
        %v1180 = vadd.f32 %v1115, %v1179
        %v1181 = vpop.f32.mrb[0].mxu0
        %1182 = vdwg.mxu0
        %v1183 = vmax.f32 %v1153, 0.0
        %v1184 = vmax.f32 %v1156, 0.0
        %v1185 = vmax.f32 %v1161, 0.0
        %v1186 = vmax.f32 %v1164, 0.0
        %v1187 = vmax.f32 %v1169, 0.0
        %v1188 = vmax.f32 %v1172, 0.0
        %v1189 = vmax.f32 %v1177, 0.0
        %v1190 = vmax.f32 %v1180, 0.0
        %v1191 = vrot.slane %v1183, 6
        %v1192 = vrot.slane %v1184, 6
        %v1193 = vrot.slane %v1185, 6
        %v1194 = vrot.slane %v1186, 6
        %v1195 = vrot.slane %v1187, 6
        %v1196 = vrot.slane %v1188, 6
        %v1197 = vrot.slane %v1189, 6
        %v1198 = vrot.slane %v1190, 6
        %v1199 = vsel %vm752, %v1197, %v1198
        %v1200 = vsel %vm752, %v1196, %v1197
        %v1201 = vsel %vm752, %v1195, %v1196
        %v1202 = vsel %vm752, %v1194, %v1195
        %v1203 = vsel %vm752, %v1193, %v1194
        %v1204 = vsel %vm752, %v1192, %v1193
        %v1205 = vsel %vm752, %v1191, %v1192
        %v1206 = vsel %vm752, %v1198, %v1191
        %v1207 = vsel %vm777, %v1206, 0.0
        %v1208 = vsel %vm778, %v1205, 0.0
        %v1209 = vsel %vm779, %v1204, 0.0
        %v1210 = vsel %vm780, %v1203, 0.0
        %v1211 = vsel %vm781, %v1202, 0.0
        %v1212 = vsel %vm782, %v1201, 0.0
        %v1213 = vsel %vm783, %v1200, 0.0
        %v1214 = vsel %vm784, %v1199, 0.0
        %v1215 = vpack.c.bf16 %v1208, %v1207
        %v1216 = vpack.c.bf16 %v1210, %v1209
        %v1217 = vpack.c.bf16 %v1212, %v1211
        %v1218 = vpack.c.bf16 %v1214, %v1213
        %v1219 = vrot.slane %v1183, 7
        %v1220 = vrot.slane %v1184, 7
        %v1221 = vrot.slane %v1185, 7
        %v1222 = vrot.slane %v1186, 7
        %v1223 = vrot.slane %v1187, 7
        %v1224 = vrot.slane %v1188, 7
        %v1225 = vrot.slane %v1189, 7
        %v1226 = vrot.slane %v1190, 7
        %v1227 = vsel %vm805, %v1225, %v1226
        %v1228 = vsel %vm805, %v1224, %v1225
        %v1229 = vsel %vm805, %v1223, %v1224
        %v1230 = vsel %vm805, %v1222, %v1223
        %v1231 = vsel %vm805, %v1221, %v1222
        %v1232 = vsel %vm805, %v1220, %v1221
        %v1233 = vsel %vm805, %v1219, %v1220
        %v1234 = vsel %vm805, %v1226, %v1219
        %v1235 = vsel %vm830, %v1234, 0.0
        %v1236 = vsel %vm831, %v1233, 0.0
        %v1237 = vsel %vm832, %v1232, 0.0
        %v1238 = vsel %vm833, %v1231, 0.0
        %v1239 = vsel %vm834, %v1230, 0.0
        %v1240 = vsel %vm835, %v1229, 0.0
        %v1241 = vsel %vm836, %v1228, 0.0
        %v1242 = vsel %vm837, %v1227, 0.0
        %v1243 = vpack.c.bf16 %v1236, %v1235
        %v1244 = vpack.c.bf16 %v1238, %v1237
        %v1245 = vpack.c.bf16 %v1240, %v1239
        %v1246 = vpack.c.bf16 %v1242, %v1241
        %v1247 = vpack.c.bf16 %v1184, %v1183
        %v1248 = vpack.c.bf16 %v1186, %v1185
        %v1249 = vpack.c.bf16 %v1188, %v1187
        %v1250 = vpack.c.bf16 %v1190, %v1189
        %s1251 = scalar_lea.vmem [#allocation7], 192
        %v1252 = vld [vmem:[%s1251] sm:$0xf]
        %v1253 = vld [vmem:[%s1251 + $0x4] sm:$0xf]
        %v1254 = vld [vmem:[%s1251 + $0x8] sm:$0xf]
        %v1255 = vld [vmem:[%s1251 + $0xc] sm:$0xf]
        %v1256 = vld [vmem:[%s1251 + $0x10] sm:$0xf]
        %v1257 = vld [vmem:[%s1251 + $0x14] sm:$0xf]
        %v1258 = vld [vmem:[%s1251 + $0x18] sm:$0xf]
        %v1259 = vld [vmem:[%s1251 + $0x1c] sm:$0xf]
        %v1260 = vld [vmem:[%s1251 + $0x20] sm:$0xf]
        %v1261 = vld [vmem:[%s1251 + $0x24] sm:$0xf]
        %v1262 = vld [vmem:[%s1251 + $0x28] sm:$0xf]
        %v1263 = vld [vmem:[%s1251 + $0x2c] sm:$0xf]
        %v1264 = vld [vmem:[%s1251 + $0x30] sm:$0xf]
        %v1265 = vld [vmem:[%s1251 + $0x34] sm:$0xf]
        %v1266 = vld [vmem:[%s1251 + $0x38] sm:$0xf]
        %v1267 = vld [vmem:[%s1251 + $0x3c] sm:$0xf]
        %v1268 = vld [vmem:[%s1251 + $0x40] sm:$0xf]
        %v1269 = vld [vmem:[%s1251 + $0x44] sm:$0xf]
        %v1270 = vld [vmem:[%s1251 + $0x48] sm:$0xf]
        %v1271 = vld [vmem:[%s1251 + $0x4c] sm:$0xf]
        %v1272 = vld [vmem:[%s1251 + $0x50] sm:$0xf]
        %v1273 = vld [vmem:[%s1251 + $0x54] sm:$0xf]
        %v1274 = vld [vmem:[%s1251 + $0x58] sm:$0xf]
        %v1275 = vld [vmem:[%s1251 + $0x5c] sm:$0xf]
        %v1276 = vld [vmem:[%s1251 + $0x60] sm:$0xf]
        %v1277 = vld [vmem:[%s1251 + $0x64] sm:$0xf]
        %v1278 = vld [vmem:[%s1251 + $0x68] sm:$0xf]
        %v1279 = vld [vmem:[%s1251 + $0x6c] sm:$0xf]
        %v1280 = vld [vmem:[%s1251 + $0x70] sm:$0xf]
        %v1281 = vld [vmem:[%s1251 + $0x74] sm:$0xf]
        %v1282 = vld [vmem:[%s1251 + $0x78] sm:$0xf]
        %v1283 = vld [vmem:[%s1251 + $0x7c] sm:$0xf]
        %v1284 = vld [vmem:[%s1251 + $0x80] sm:$0xf]
        %v1285 = vld [vmem:[%s1251 + $0x84] sm:$0xf]
        %v1286 = vld [vmem:[%s1251 + $0x88] sm:$0xf]
        %v1287 = vld [vmem:[%s1251 + $0x8c] sm:$0xf]
        %v1288 = vld [vmem:[%s1251 + $0x90] sm:$0xf]
        %v1289 = vld [vmem:[%s1251 + $0x94] sm:$0xf]
        %v1290 = vld [vmem:[%s1251 + $0x98] sm:$0xf]
        %v1291 = vld [vmem:[%s1251 + $0x9c] sm:$0xf]
        %v1292 = vld [vmem:[%s1251 + $0xa0] sm:$0xf]
        %v1293 = vld [vmem:[%s1251 + $0xa4] sm:$0xf]
        %v1294 = vld [vmem:[%s1251 + $0xa8] sm:$0xf]
        %v1295 = vld [vmem:[%s1251 + $0xac] sm:$0xf]
        %v1296 = vld [vmem:[%s1251 + $0xb0] sm:$0xf]
        %v1297 = vld [vmem:[%s1251 + $0xb4] sm:$0xf]
        %v1298 = vld [vmem:[%s1251 + $0xb8] sm:$0xf]
        %v1299 = vld [vmem:[%s1251 + $0xbc] sm:$0xf]
        %s1300 = scalar_lea.vmem %s3, 1
        %v1301 = vld [vmem:[%s1300] sm:$0x1]
        %v1303 = vlaneseq
        %v1304 = vshrl.u32 %v1303, 7
        %v1305 = vsub.s32 0, %v1304
        %v1306 = vrot.slane %v1301, %v1305
        %v1356 = vunpack.c.l.b16 %v1252
        %v1357 = vunpack.c.l.b16 %v1253
        %v1358 = vunpack.c.l.b16 %v1254
        %v1359 = vunpack.c.l.b16 %v1255
        %v1360 = vunpack.c.l.b16 %v1256
        %v1361 = vunpack.c.l.b16 %v1257
        %v1362 = vunpack.c.l.b16 %v1258
        %v1363 = vunpack.c.l.b16 %v1259
        %v1364 = vunpack.c.l.b16 %v1260
        %v1365 = vunpack.c.l.b16 %v1261
        %v1366 = vunpack.c.l.b16 %v1262
        %v1367 = vunpack.c.l.b16 %v1263
        %v1368 = vunpack.c.l.b16 %v1264
        %v1369 = vunpack.c.l.b16 %v1265
        %v1370 = vunpack.c.l.b16 %v1266
        %v1371 = vunpack.c.l.b16 %v1267
        %v1372 = vunpack.c.l.b16 %v1268
        %v1373 = vunpack.c.l.b16 %v1269
        %v1374 = vunpack.c.l.b16 %v1270
        %v1375 = vunpack.c.l.b16 %v1271
        %v1376 = vunpack.c.l.b16 %v1272
        %v1377 = vunpack.c.l.b16 %v1273
        %v1378 = vunpack.c.l.b16 %v1274
        %v1379 = vunpack.c.l.b16 %v1275
        %v1380 = vunpack.c.l.b16 %v1276
        %v1381 = vunpack.c.l.b16 %v1277
        %v1382 = vunpack.c.l.b16 %v1278
        %v1383 = vunpack.c.l.b16 %v1279
        %v1384 = vunpack.c.l.b16 %v1280
        %v1385 = vunpack.c.l.b16 %v1281
        %v1386 = vunpack.c.l.b16 %v1282
        %v1387 = vunpack.c.l.b16 %v1283
        %v1388 = vunpack.c.l.b16 %v1284
        %v1389 = vunpack.c.l.b16 %v1285
        %v1390 = vunpack.c.l.b16 %v1286
        %v1391 = vunpack.c.l.b16 %v1287
        %v1392 = vunpack.c.l.b16 %v1288
        %v1393 = vunpack.c.l.b16 %v1289
        %v1394 = vunpack.c.l.b16 %v1290
        %v1395 = vunpack.c.l.b16 %v1291
        %v1396 = vunpack.c.l.b16 %v1292
        %v1397 = vunpack.c.l.b16 %v1293
        %v1398 = vunpack.c.l.b16 %v1294
        %v1399 = vunpack.c.l.b16 %v1295
        %v1400 = vunpack.c.l.b16 %v1296
        %v1401 = vunpack.c.l.b16 %v1297
        %v1402 = vunpack.c.l.b16 %v1298
        %v1403 = vunpack.c.l.b16 %v1299
        %v1404 = vpack.c.b16 %v1357, %v1356
        %v1405 = vpack.c.b16 %v1359, %v1358
        %v1406 = vpack.c.b16 %v1361, %v1360
        %v1407 = vpack.c.b16 %v1363, %v1362
        %v1408 = vpack.c.b16 %v1365, %v1364
        %v1409 = vpack.c.b16 %v1367, %v1366
        %v1410 = vpack.c.b16 %v1369, %v1368
        %v1411 = vpack.c.b16 %v1371, %v1370
        %v1412 = vpack.c.b16 %v1373, %v1372
        %v1413 = vpack.c.b16 %v1375, %v1374
        %v1414 = vpack.c.b16 %v1377, %v1376
        %v1415 = vpack.c.b16 %v1379, %v1378
        %v1416 = vpack.c.b16 %v1381, %v1380
        %v1417 = vpack.c.b16 %v1383, %v1382
        %v1418 = vpack.c.b16 %v1385, %v1384
        %v1419 = vpack.c.b16 %v1387, %v1386
        %v1420 = vpack.c.b16 %v1389, %v1388
        %v1421 = vpack.c.b16 %v1391, %v1390
        %v1422 = vpack.c.b16 %v1393, %v1392
        %v1423 = vpack.c.b16 %v1395, %v1394
        %v1424 = vpack.c.b16 %v1397, %v1396
        %v1425 = vpack.c.b16 %v1399, %v1398
        %v1426 = vpack.c.b16 %v1401, %v1400
        %v1427 = vpack.c.b16 %v1403, %v1402
        %1452 = vmatprep.subr.bf16.mxu0 0
        %1453 = vmatpush1.bf16.msra.mxu0 %v1404
        %1454 = vmatprep.subr.bf16.mxu0 0
        %1455 = vmatpush1.bf16.msra.mxu0 %v1405
        %1456 = vmatprep.subr.bf16.mxu0 0
        %1457 = vmatpush1.bf16.msra.mxu0 %v1406
        %1458 = vmatprep.subr.bf16.mxu0 0
        %1459 = vmatpush1.bf16.msra.mxu0 %v1407
        %1460 = vmatprep.subr.bf16.mxu0 0
        %1461 = vmatpush1.bf16.msra.mxu0 %v1408
        %1462 = vmatprep.subr.bf16.mxu0 0
        %1463 = vmatpush1.bf16.msra.mxu0 %v1409
        %1464 = vmatprep.subr.bf16.mxu0 0
        %1465 = vmatpush1.bf16.msra.mxu0 %v1410
        %1466 = vmatprep.subr.bf16.mxu0 0
        %1467 = vmatpush1.bf16.msra.mxu0 %v1411
        %1468 = vmatprep.subr.bf16.mxu0 0
        %1469 = vmatpush1.bf16.msra.mxu0 %v1412
        %1470 = vmatprep.subr.bf16.mxu0 0
        %1471 = vmatpush1.bf16.msra.mxu0 %v1413
        %1472 = vmatprep.subr.bf16.mxu0 0
        %1473 = vmatpush1.bf16.msra.mxu0 %v1414
        %1474 = vmatprep.subr.bf16.mxu0 0
        %1475 = vmatpush1.bf16.msra.mxu0 %v1415
        %1476 = vmatprep.subr.bf16.mxu0 0
        %1477 = vmatpush1.bf16.msra.mxu0 %v1416
        %1478 = vmatprep.subr.bf16.mxu0 0
        %1479 = vmatpush1.bf16.msra.mxu0 %v1417
        %1480 = vmatprep.subr.bf16.mxu0 0
        %1481 = vmatpush1.bf16.msra.mxu0 %v1418
        %1482 = vmatprep.subr.bf16.mxu0 0
        %1483 = vmatpush1.bf16.msra.mxu0 %v1419
        %1484 = vmatprep.mubr.bf16.mxu0 %v1243
        %1485 = vmatmul.mubr.bf16.gmra.mrb[0].mxu0 %v1215
        %v1486 = vpop.f32.mrb[0].mxu0
        %v1487 = vadd.f32 %v1306, %v1486
        %v1488 = vpop.f32.mrb[0].mxu0
        %v1489 = vpop.f32.mrb[0].mxu0
        %v1490 = vadd.f32 %v1306, %v1489
        %v1491 = vpop.f32.mrb[0].mxu0
        %1492 = vmatprep.mubr.bf16.mxu0 %v1244
        %1493 = vmatmul.mubr.bf16.gmra.mrb[0].mxu0 %v1216
        %v1494 = vpop.f32.mrb[0].mxu0
        %v1495 = vadd.f32 %v1306, %v1494
        %v1496 = vpop.f32.mrb[0].mxu0
        %v1497 = vpop.f32.mrb[0].mxu0
        %v1498 = vadd.f32 %v1306, %v1497
        %v1499 = vpop.f32.mrb[0].mxu0
        %1500 = vmatprep.mubr.bf16.mxu0 %v1245
        %1501 = vmatmul.mubr.bf16.gmra.mrb[0].mxu0 %v1217
        %v1502 = vpop.f32.mrb[0].mxu0
        %v1503 = vadd.f32 %v1306, %v1502
        %v1504 = vpop.f32.mrb[0].mxu0
        %v1505 = vpop.f32.mrb[0].mxu0
        %v1506 = vadd.f32 %v1306, %v1505
        %v1507 = vpop.f32.mrb[0].mxu0
        %1508 = vmatprep.mubr.bf16.mxu0 %v1246
        %1509 = vmatmul.mubr.bf16.gmra.mrb[0].mxu0 %v1218
        %v1510 = vpop.f32.mrb[0].mxu0
        %v1511 = vadd.f32 %v1306, %v1510
        %v1512 = vpop.f32.mrb[0].mxu0
        %v1513 = vpop.f32.mrb[0].mxu0
        %v1514 = vadd.f32 %v1306, %v1513
        %v1515 = vpop.f32.mrb[0].mxu0
        %1516 = vdwg.mxu0
        %1517 = vmatprep.subr.bf16.mxu0 0
        %1518 = vmatpush1.bf16.msra.mxu0 %v1420
        %1519 = vmatprep.subr.bf16.mxu0 0
        %1520 = vmatpush1.bf16.msra.mxu0 %v1421
        %1521 = vmatprep.subr.bf16.mxu0 0
        %1522 = vmatpush1.bf16.msra.mxu0 %v1422
        %1523 = vmatprep.subr.bf16.mxu0 0
        %1524 = vmatpush1.bf16.msra.mxu0 %v1423
        %1525 = vmatprep.subr.bf16.mxu0 0
        %1526 = vmatpush1.bf16.msra.mxu0 %v1424
        %1527 = vmatprep.subr.bf16.mxu0 0
        %1528 = vmatpush1.bf16.msra.mxu0 %v1425
        %1529 = vmatprep.subr.bf16.mxu0 0
        %1530 = vmatpush1.bf16.msra.mxu0 %v1426
        %1531 = vmatprep.subr.bf16.mxu0 0
        %1532 = vmatpush1.bf16.msra.mxu0 %v1427
        %1533 = vmatprep.subr.bf16.mxu0 0
        %1534 = vmatpush1.bf16.msra.mxu0 0
        %1535 = vmatprep.subr.bf16.mxu0 0
        %1536 = vmatpush1.bf16.msra.mxu0 0
        %1537 = vmatprep.subr.bf16.mxu0 0
        %1538 = vmatpush1.bf16.msra.mxu0 0
        %1539 = vmatprep.subr.bf16.mxu0 0
        %1540 = vmatpush1.bf16.msra.mxu0 0
        %1541 = vmatprep.subr.bf16.mxu0 0
        %1542 = vmatpush1.bf16.msra.mxu0 0
        %1543 = vmatprep.subr.bf16.mxu0 0
        %1544 = vmatpush1.bf16.msra.mxu0 0
        %1545 = vmatprep.subr.bf16.mxu0 0
        %1546 = vmatpush1.bf16.msra.mxu0 0
        %1547 = vmatprep.subr.bf16.mxu0 0
        %1548 = vmatpush1.bf16.msra.mxu0 0
        %1549 = vmatprep.mubr.bf16.mxu0 0
        %1550 = vmatmul.mubr.bf16.gmra.mrb[0].mxu0 %v1247
        %v1551 = vpop.f32.mrb[0].mxu0
        %v1552 = vadd.f32 %v1487, %v1551
        %v1553 = vpop.f32.mrb[0].mxu0
        %v1554 = vpop.f32.mrb[0].mxu0
        %v1555 = vadd.f32 %v1490, %v1554
        %v1556 = vpop.f32.mrb[0].mxu0
        %1557 = vmatprep.mubr.bf16.mxu0 0
        %1558 = vmatmul.mubr.bf16.gmra.mrb[0].mxu0 %v1248
        %v1559 = vpop.f32.mrb[0].mxu0
        %v1560 = vadd.f32 %v1495, %v1559
        %v1561 = vpop.f32.mrb[0].mxu0
        %v1562 = vpop.f32.mrb[0].mxu0
        %v1563 = vadd.f32 %v1498, %v1562
        %v1564 = vpop.f32.mrb[0].mxu0
        %1565 = vmatprep.mubr.bf16.mxu0 0
        %1566 = vmatmul.mubr.bf16.gmra.mrb[0].mxu0 %v1249
        %v1567 = vpop.f32.mrb[0].mxu0
        %v1568 = vadd.f32 %v1503, %v1567
        %v1569 = vpop.f32.mrb[0].mxu0
        %v1570 = vpop.f32.mrb[0].mxu0
        %v1571 = vadd.f32 %v1506, %v1570
        %v1572 = vpop.f32.mrb[0].mxu0
        %1573 = vmatprep.mubr.bf16.mxu0 0
        %1574 = vmatmul.mubr.bf16.gmra.mrb[0].mxu0 %v1250
        %v1575 = vpop.f32.mrb[0].mxu0
        %v1576 = vadd.f32 %v1511, %v1575
        %v1577 = vpop.f32.mrb[0].mxu0
        %v1578 = vpop.f32.mrb[0].mxu0
        %v1579 = vadd.f32 %v1514, %v1578
        %v1580 = vpop.f32.mrb[0].mxu0
        %1581 = vdwg.mxu0
        %v1582 = vmax.f32 %v1552, 0.0
        %v1583 = vmax.f32 %v1555, 0.0
        %v1584 = vmax.f32 %v1560, 0.0
        %v1585 = vmax.f32 %v1563, 0.0
        %v1586 = vmax.f32 %v1568, 0.0
        %v1587 = vmax.f32 %v1571, 0.0
        %v1588 = vmax.f32 %v1576, 0.0
        %v1589 = vmax.f32 %v1579, 0.0
        %v1590 = vadd.f32 %v1582, %v619
        %v1591 = vadd.f32 %v1583, %v620
        %v1592 = vadd.f32 %v1584, %v621
        %v1593 = vadd.f32 %v1585, %v622
        %v1594 = vadd.f32 %v1586, %v623
        %v1595 = vadd.f32 %v1587, %v624
        %v1596 = vadd.f32 %v1588, %v625
        %v1597 = vadd.f32 %v1589, %v626
        %v1598 = vmax.f32 %v1590, 0.0
        %v1599 = vmax.f32 %v1591, 0.0
        %v1600 = vmax.f32 %v1592, 0.0
        %v1601 = vmax.f32 %v1593, 0.0
        %v1602 = vmax.f32 %v1594, 0.0
        %v1603 = vmax.f32 %v1595, 0.0
        %v1604 = vmax.f32 %v1596, 0.0
        %v1605 = vmax.f32 %v1597, 0.0
        %v1606 = vrot.slane %v1598, 4
        %v1607 = vrot.slane %v1599, 4
        %v1608 = vrot.slane %v1600, 4
        %v1609 = vrot.slane %v1601, 4
        %v1610 = vrot.slane %v1602, 4
        %v1611 = vrot.slane %v1603, 4
        %v1612 = vrot.slane %v1604, 4
        %v1613 = vrot.slane %v1605, 4
        %vm1614 = vcmp.lt.s32.totalorder %v640, 4
        %v1615 = vsel %vm1614, %v1612, %v1613
        %v1616 = vsel %vm1614, %v1611, %v1612
        %v1617 = vsel %vm1614, %v1610, %v1611
        %v1618 = vsel %vm1614, %v1609, %v1610
        %v1619 = vsel %vm1614, %v1608, %v1609
        %v1620 = vsel %vm1614, %v1607, %v1608
        %v1621 = vsel %vm1614, %v1606, %v1607
        %v1622 = vsel %vm1614, %v1613, %v1606
        %vm1623 = vcmp.ge.s32.totalorder %v736, 4
        %vm1624 = vcmp.ge.s32.totalorder %v737, 4
        %vm1625 = vcmp.ge.s32.totalorder %v738, 4
        %vm1626 = vcmp.ge.s32.totalorder %v739, 4
        %vm1627 = vcmp.ge.s32.totalorder %v740, 4
        %vm1628 = vcmp.ge.s32.totalorder %v741, 4
        %vm1629 = vcmp.ge.s32.totalorder %v742, 4
        %vm1630 = vcmp.ge.s32.totalorder %v743, 4
        %v1631 = vsel %vm1623, 1, 0
        %v1632 = vsel %vm1624, 1, 0
        %v1633 = vsel %vm1625, 1, 0
        %v1634 = vsel %vm1626, 1, 0
        %v1635 = vsel %vm1627, 1, 0
        %v1636 = vsel %vm1628, 1, 0
        %v1637 = vsel %vm1629, 1, 0
        %v1638 = vsel %vm1630, 1, 0
        %vm1639 = vcmp.eq.s32.totalorder %v1631, 1
        %vm1640 = vcmp.eq.s32.totalorder %v1632, 1
        %vm1641 = vcmp.eq.s32.totalorder %v1633, 1
        %vm1642 = vcmp.eq.s32.totalorder %v1634, 1
        %vm1643 = vcmp.eq.s32.totalorder %v1635, 1
        %vm1644 = vcmp.eq.s32.totalorder %v1636, 1
        %vm1645 = vcmp.eq.s32.totalorder %v1637, 1
        %vm1646 = vcmp.eq.s32.totalorder %v1638, 1
        %v1647 = vsel %vm1639, %v1622, 0.0
        %v1648 = vsel %vm1640, %v1621, 0.0
        %v1649 = vsel %vm1641, %v1620, 0.0
        %v1650 = vsel %vm1642, %v1619, 0.0
        %v1651 = vsel %vm1643, %v1618, 0.0
        %v1652 = vsel %vm1644, %v1617, 0.0
        %v1653 = vsel %vm1645, %v1616, 0.0
        %v1654 = vsel %vm1646, %v1615, 0.0
        %v1655 = vpack.c.bf16 %v1648, %v1647
        %v1656 = vpack.c.bf16 %v1650, %v1649
        %v1657 = vpack.c.bf16 %v1652, %v1651
        %v1658 = vpack.c.bf16 %v1654, %v1653
        %v1659 = vrot.slane %v1598, 6
        %v1660 = vrot.slane %v1599, 6
        %v1661 = vrot.slane %v1600, 6
        %v1662 = vrot.slane %v1601, 6
        %v1663 = vrot.slane %v1602, 6
        %v1664 = vrot.slane %v1603, 6
        %v1665 = vrot.slane %v1604, 6
        %v1666 = vrot.slane %v1605, 6
        %v1667 = vsel %vm752, %v1665, %v1666
        %v1668 = vsel %vm752, %v1664, %v1665
        %v1669 = vsel %vm752, %v1663, %v1664
        %v1670 = vsel %vm752, %v1662, %v1663
        %v1671 = vsel %vm752, %v1661, %v1662
        %v1672 = vsel %vm752, %v1660, %v1661
        %v1673 = vsel %vm752, %v1659, %v1660
        %v1674 = vsel %vm752, %v1666, %v1659
        %v1675 = vsel %vm777, %v1674, 0.0
        %v1676 = vsel %vm778, %v1673, 0.0
        %v1677 = vsel %vm779, %v1672, 0.0
        %v1678 = vsel %vm780, %v1671, 0.0
        %v1679 = vsel %vm781, %v1670, 0.0
        %v1680 = vsel %vm782, %v1669, 0.0
        %v1681 = vsel %vm783, %v1668, 0.0
        %v1682 = vsel %vm784, %v1667, 0.0
        %v1683 = vpack.c.bf16 %v1676, %v1675
        %v1684 = vpack.c.bf16 %v1678, %v1677
        %v1685 = vpack.c.bf16 %v1680, %v1679
        %v1686 = vpack.c.bf16 %v1682, %v1681
        %v1687 = vpack.c.bf16 %v1599, %v1598
        %v1688 = vpack.c.bf16 %v1601, %v1600
        %v1689 = vpack.c.bf16 %v1603, %v1602
        %v1690 = vpack.c.bf16 %v1605, %v1604
        %s1691 = scalar_lea.vmem [#allocation7], 384
        %v1692 = vld [vmem:[%s1691] sm:$0xf]
        %v1693 = vld [vmem:[%s1691 + $0x4] sm:$0xf]
        %v1694 = vld [vmem:[%s1691 + $0x8] sm:$0xf]
        %v1695 = vld [vmem:[%s1691 + $0xc] sm:$0xf]
        %v1696 = vld [vmem:[%s1691 + $0x10] sm:$0xf]
        %v1697 = vld [vmem:[%s1691 + $0x14] sm:$0xf]
        %v1698 = vld [vmem:[%s1691 + $0x18] sm:$0xf]
        %v1699 = vld [vmem:[%s1691 + $0x1c] sm:$0xf]
        %v1700 = vld [vmem:[%s1691 + $0x20] sm:$0xf]
        %v1701 = vld [vmem:[%s1691 + $0x24] sm:$0xf]
        %v1702 = vld [vmem:[%s1691 + $0x28] sm:$0xf]
        %v1703 = vld [vmem:[%s1691 + $0x2c] sm:$0xf]
        %v1704 = vld [vmem:[%s1691 + $0x30] sm:$0xf]
        %v1705 = vld [vmem:[%s1691 + $0x34] sm:$0xf]
        %v1706 = vld [vmem:[%s1691 + $0x38] sm:$0xf]
        %v1707 = vld [vmem:[%s1691 + $0x3c] sm:$0xf]
        %v1708 = vld [vmem:[%s1691 + $0x40] sm:$0xf]
        %v1709 = vld [vmem:[%s1691 + $0x44] sm:$0xf]
        %v1710 = vld [vmem:[%s1691 + $0x48] sm:$0xf]
        %v1711 = vld [vmem:[%s1691 + $0x4c] sm:$0xf]
        %v1712 = vld [vmem:[%s1691 + $0x50] sm:$0xf]
        %v1713 = vld [vmem:[%s1691 + $0x54] sm:$0xf]
        %v1714 = vld [vmem:[%s1691 + $0x58] sm:$0xf]
        %v1715 = vld [vmem:[%s1691 + $0x5c] sm:$0xf]
        %v1716 = vld [vmem:[%s1691 + $0x60] sm:$0xf]
        %v1717 = vld [vmem:[%s1691 + $0x64] sm:$0xf]
        %v1718 = vld [vmem:[%s1691 + $0x68] sm:$0xf]
        %v1719 = vld [vmem:[%s1691 + $0x6c] sm:$0xf]
        %v1720 = vld [vmem:[%s1691 + $0x70] sm:$0xf]
        %v1721 = vld [vmem:[%s1691 + $0x74] sm:$0xf]
        %v1722 = vld [vmem:[%s1691 + $0x78] sm:$0xf]
        %v1723 = vld [vmem:[%s1691 + $0x7c] sm:$0xf]
        %v1724 = vld [vmem:[%s1691 + $0x80] sm:$0xf]
        %v1725 = vld [vmem:[%s1691 + $0x84] sm:$0xf]
        %v1726 = vld [vmem:[%s1691 + $0x88] sm:$0xf]
        %v1727 = vld [vmem:[%s1691 + $0x8c] sm:$0xf]
        %v1728 = vld [vmem:[%s1691 + $0x90] sm:$0xf]
        %v1729 = vld [vmem:[%s1691 + $0x94] sm:$0xf]
        %v1730 = vld [vmem:[%s1691 + $0x98] sm:$0xf]
        %v1731 = vld [vmem:[%s1691 + $0x9c] sm:$0xf]
        %v1732 = vld [vmem:[%s1691 + $0xa0] sm:$0xf]
        %v1733 = vld [vmem:[%s1691 + $0xa4] sm:$0xf]
        %v1734 = vld [vmem:[%s1691 + $0xa8] sm:$0xf]
        %v1735 = vld [vmem:[%s1691 + $0xac] sm:$0xf]
        %v1736 = vld [vmem:[%s1691 + $0xb0] sm:$0xf]
        %v1737 = vld [vmem:[%s1691 + $0xb4] sm:$0xf]
        %v1738 = vld [vmem:[%s1691 + $0xb8] sm:$0xf]
        %v1739 = vld [vmem:[%s1691 + $0xbc] sm:$0xf]
        %s1740 = scalar_lea.vmem %s3, 2
        %v1741 = vld [vmem:[%s1740] sm:$0x1]
        %v1743 = vlaneseq
        %v1744 = vshrl.u32 %v1743, 7
        %v1745 = vsub.s32 0, %v1744
        %v1746 = vrot.slane %v1741, %v1745
        %v1796 = vunpack.c.l.b16 %v1692
        %v1797 = vunpack.c.l.b16 %v1693
        %v1798 = vunpack.c.l.b16 %v1694
        %v1799 = vunpack.c.l.b16 %v1695
        %v1800 = vunpack.c.l.b16 %v1696
        %v1801 = vunpack.c.l.b16 %v1697
        %v1802 = vunpack.c.l.b16 %v1698
        %v1803 = vunpack.c.l.b16 %v1699
        %v1804 = vunpack.c.l.b16 %v1700
        %v1805 = vunpack.c.l.b16 %v1701
        %v1806 = vunpack.c.l.b16 %v1702
        %v1807 = vunpack.c.l.b16 %v1703
        %v1808 = vunpack.c.l.b16 %v1704
        %v1809 = vunpack.c.l.b16 %v1705
        %v1810 = vunpack.c.l.b16 %v1706
        %v1811 = vunpack.c.l.b16 %v1707
        %v1812 = vunpack.c.l.b16 %v1708
        %v1813 = vunpack.c.l.b16 %v1709
        %v1814 = vunpack.c.l.b16 %v1710
        %v1815 = vunpack.c.l.b16 %v1711
        %v1816 = vunpack.c.l.b16 %v1712
        %v1817 = vunpack.c.l.b16 %v1713
        %v1818 = vunpack.c.l.b16 %v1714
        %v1819 = vunpack.c.l.b16 %v1715
        %v1820 = vunpack.c.l.b16 %v1716
        %v1821 = vunpack.c.l.b16 %v1717
        %v1822 = vunpack.c.l.b16 %v1718
        %v1823 = vunpack.c.l.b16 %v1719
        %v1824 = vunpack.c.l.b16 %v1720
        %v1825 = vunpack.c.l.b16 %v1721
        %v1826 = vunpack.c.l.b16 %v1722
        %v1827 = vunpack.c.l.b16 %v1723
        %v1828 = vunpack.c.l.b16 %v1724
        %v1829 = vunpack.c.l.b16 %v1725
        %v1830 = vunpack.c.l.b16 %v1726
        %v1831 = vunpack.c.l.b16 %v1727
        %v1832 = vunpack.c.l.b16 %v1728
        %v1833 = vunpack.c.l.b16 %v1729
        %v1834 = vunpack.c.l.b16 %v1730
        %v1835 = vunpack.c.l.b16 %v1731
        %v1836 = vunpack.c.l.b16 %v1732
        %v1837 = vunpack.c.l.b16 %v1733
        %v1838 = vunpack.c.l.b16 %v1734
        %v1839 = vunpack.c.l.b16 %v1735
        %v1840 = vunpack.c.l.b16 %v1736
        %v1841 = vunpack.c.l.b16 %v1737
        %v1842 = vunpack.c.l.b16 %v1738
        %v1843 = vunpack.c.l.b16 %v1739
        %v1844 = vpack.c.b16 %v1797, %v1796
        %v1845 = vpack.c.b16 %v1799, %v1798
        %v1846 = vpack.c.b16 %v1801, %v1800
        %v1847 = vpack.c.b16 %v1803, %v1802
        %v1848 = vpack.c.b16 %v1805, %v1804
        %v1849 = vpack.c.b16 %v1807, %v1806
        %v1850 = vpack.c.b16 %v1809, %v1808
        %v1851 = vpack.c.b16 %v1811, %v1810
        %v1852 = vpack.c.b16 %v1813, %v1812
        %v1853 = vpack.c.b16 %v1815, %v1814
        %v1854 = vpack.c.b16 %v1817, %v1816
        %v1855 = vpack.c.b16 %v1819, %v1818
        %v1856 = vpack.c.b16 %v1821, %v1820
        %v1857 = vpack.c.b16 %v1823, %v1822
        %v1858 = vpack.c.b16 %v1825, %v1824
        %v1859 = vpack.c.b16 %v1827, %v1826
        %v1860 = vpack.c.b16 %v1829, %v1828
        %v1861 = vpack.c.b16 %v1831, %v1830
        %v1862 = vpack.c.b16 %v1833, %v1832
        %v1863 = vpack.c.b16 %v1835, %v1834
        %v1864 = vpack.c.b16 %v1837, %v1836
        %v1865 = vpack.c.b16 %v1839, %v1838
        %v1866 = vpack.c.b16 %v1841, %v1840
        %v1867 = vpack.c.b16 %v1843, %v1842
        %1892 = vmatprep.subr.bf16.mxu0 0
        %1893 = vmatpush1.bf16.msra.mxu0 %v1844
        %1894 = vmatprep.subr.bf16.mxu0 0
        %1895 = vmatpush1.bf16.msra.mxu0 %v1845
        %1896 = vmatprep.subr.bf16.mxu0 0
        %1897 = vmatpush1.bf16.msra.mxu0 %v1846
        %1898 = vmatprep.subr.bf16.mxu0 0
        %1899 = vmatpush1.bf16.msra.mxu0 %v1847
        %1900 = vmatprep.subr.bf16.mxu0 0
        %1901 = vmatpush1.bf16.msra.mxu0 %v1848
        %1902 = vmatprep.subr.bf16.mxu0 0
        %1903 = vmatpush1.bf16.msra.mxu0 %v1849
        %1904 = vmatprep.subr.bf16.mxu0 0
        %1905 = vmatpush1.bf16.msra.mxu0 %v1850
        %1906 = vmatprep.subr.bf16.mxu0 0
        %1907 = vmatpush1.bf16.msra.mxu0 %v1851
        %1908 = vmatprep.subr.bf16.mxu0 0
        %1909 = vmatpush1.bf16.msra.mxu0 %v1852
        %1910 = vmatprep.subr.bf16.mxu0 0
        %1911 = vmatpush1.bf16.msra.mxu0 %v1853
        %1912 = vmatprep.subr.bf16.mxu0 0
        %1913 = vmatpush1.bf16.msra.mxu0 %v1854
        %1914 = vmatprep.subr.bf16.mxu0 0
        %1915 = vmatpush1.bf16.msra.mxu0 %v1855
        %1916 = vmatprep.subr.bf16.mxu0 0
        %1917 = vmatpush1.bf16.msra.mxu0 %v1856
        %1918 = vmatprep.subr.bf16.mxu0 0
        %1919 = vmatpush1.bf16.msra.mxu0 %v1857
        %1920 = vmatprep.subr.bf16.mxu0 0
        %1921 = vmatpush1.bf16.msra.mxu0 %v1858
        %1922 = vmatprep.subr.bf16.mxu0 0
        %1923 = vmatpush1.bf16.msra.mxu0 %v1859
        %1924 = vmatprep.mubr.bf16.mxu0 %v1683
        %1925 = vmatmul.mubr.bf16.gmra.mrb[0].mxu0 %v1655
        %v1926 = vpop.f32.mrb[0].mxu0
        %v1927 = vadd.f32 %v1746, %v1926
        %v1928 = vpop.f32.mrb[0].mxu0
        %v1929 = vpop.f32.mrb[0].mxu0
        %v1930 = vadd.f32 %v1746, %v1929
        %v1931 = vpop.f32.mrb[0].mxu0
        %1932 = vmatprep.mubr.bf16.mxu0 %v1684
        %1933 = vmatmul.mubr.bf16.gmra.mrb[0].mxu0 %v1656
        %v1934 = vpop.f32.mrb[0].mxu0
        %v1935 = vadd.f32 %v1746, %v1934
        %v1936 = vpop.f32.mrb[0].mxu0
        %v1937 = vpop.f32.mrb[0].mxu0
        %v1938 = vadd.f32 %v1746, %v1937
        %v1939 = vpop.f32.mrb[0].mxu0
        %1940 = vmatprep.mubr.bf16.mxu0 %v1685
        %1941 = vmatmul.mubr.bf16.gmra.mrb[0].mxu0 %v1657
        %v1942 = vpop.f32.mrb[0].mxu0
        %v1943 = vadd.f32 %v1746, %v1942
        %v1944 = vpop.f32.mrb[0].mxu0
        %v1945 = vpop.f32.mrb[0].mxu0
        %v1946 = vadd.f32 %v1746, %v1945
        %v1947 = vpop.f32.mrb[0].mxu0
        %1948 = vmatprep.mubr.bf16.mxu0 %v1686
        %1949 = vmatmul.mubr.bf16.gmra.mrb[0].mxu0 %v1658
        %v1950 = vpop.f32.mrb[0].mxu0
        %v1951 = vadd.f32 %v1746, %v1950
        %v1952 = vpop.f32.mrb[0].mxu0
        %v1953 = vpop.f32.mrb[0].mxu0
        %v1954 = vadd.f32 %v1746, %v1953
        %v1955 = vpop.f32.mrb[0].mxu0
        %1956 = vdwg.mxu0
        %1957 = vmatprep.subr.bf16.mxu0 0
        %1958 = vmatpush1.bf16.msra.mxu0 %v1860
        %1959 = vmatprep.subr.bf16.mxu0 0
        %1960 = vmatpush1.bf16.msra.mxu0 %v1861
        %1961 = vmatprep.subr.bf16.mxu0 0
        %1962 = vmatpush1.bf16.msra.mxu0 %v1862
        %1963 = vmatprep.subr.bf16.mxu0 0
        %1964 = vmatpush1.bf16.msra.mxu0 %v1863
        %1965 = vmatprep.subr.bf16.mxu0 0
        %1966 = vmatpush1.bf16.msra.mxu0 %v1864
        %1967 = vmatprep.subr.bf16.mxu0 0
        %1968 = vmatpush1.bf16.msra.mxu0 %v1865
        %1969 = vmatprep.subr.bf16.mxu0 0
        %1970 = vmatpush1.bf16.msra.mxu0 %v1866
        %1971 = vmatprep.subr.bf16.mxu0 0
        %1972 = vmatpush1.bf16.msra.mxu0 %v1867
        %1973 = vmatprep.subr.bf16.mxu0 0
        %1974 = vmatpush1.bf16.msra.mxu0 0
        %1975 = vmatprep.subr.bf16.mxu0 0
        %1976 = vmatpush1.bf16.msra.mxu0 0
        %1977 = vmatprep.subr.bf16.mxu0 0
        %1978 = vmatpush1.bf16.msra.mxu0 0
        %1979 = vmatprep.subr.bf16.mxu0 0
        %1980 = vmatpush1.bf16.msra.mxu0 0
        %1981 = vmatprep.subr.bf16.mxu0 0
        %1982 = vmatpush1.bf16.msra.mxu0 0
        %1983 = vmatprep.subr.bf16.mxu0 0
        %1984 = vmatpush1.bf16.msra.mxu0 0
        %1985 = vmatprep.subr.bf16.mxu0 0
        %1986 = vmatpush1.bf16.msra.mxu0 0
        %1987 = vmatprep.subr.bf16.mxu0 0
        %1988 = vmatpush1.bf16.msra.mxu0 0
        %1989 = vmatprep.mubr.bf16.mxu0 0
        %1990 = vmatmul.mubr.bf16.gmra.mrb[0].mxu0 %v1687
        %v1991 = vpop.f32.mrb[0].mxu0
        %v1992 = vadd.f32 %v1927, %v1991
        %v1993 = vpop.f32.mrb[0].mxu0
        %v1994 = vpop.f32.mrb[0].mxu0
        %v1995 = vadd.f32 %v1930, %v1994
        %v1996 = vpop.f32.mrb[0].mxu0
        %1997 = vmatprep.mubr.bf16.mxu0 0
        %1998 = vmatmul.mubr.bf16.gmra.mrb[0].mxu0 %v1688
        %v1999 = vpop.f32.mrb[0].mxu0
        %v2000 = vadd.f32 %v1935, %v1999
        %v2001 = vpop.f32.mrb[0].mxu0
        %v2002 = vpop.f32.mrb[0].mxu0
        %v2003 = vadd.f32 %v1938, %v2002
        %v2004 = vpop.f32.mrb[0].mxu0
        %2005 = vmatprep.mubr.bf16.mxu0 0
        %2006 = vmatmul.mubr.bf16.gmra.mrb[0].mxu0 %v1689
        %v2007 = vpop.f32.mrb[0].mxu0
        %v2008 = vadd.f32 %v1943, %v2007
        %v2009 = vpop.f32.mrb[0].mxu0
        %v2010 = vpop.f32.mrb[0].mxu0
        %v2011 = vadd.f32 %v1946, %v2010
        %v2012 = vpop.f32.mrb[0].mxu0
        %2013 = vmatprep.mubr.bf16.mxu0 0
        %2014 = vmatmul.mubr.bf16.gmra.mrb[0].mxu0 %v1690
        %v2015 = vpop.f32.mrb[0].mxu0
        %v2016 = vadd.f32 %v1951, %v2015
        %v2017 = vpop.f32.mrb[0].mxu0
        %v2018 = vpop.f32.mrb[0].mxu0
        %v2019 = vadd.f32 %v1954, %v2018
        %v2020 = vpop.f32.mrb[0].mxu0
        %2021 = vdwg.mxu0
        %v2022 = vmax.f32 %v1992, 0.0
        %v2023 = vmax.f32 %v1995, 0.0
        %v2024 = vmax.f32 %v2000, 0.0
        %v2025 = vmax.f32 %v2003, 0.0
        %v2026 = vmax.f32 %v2008, 0.0
        %v2027 = vmax.f32 %v2011, 0.0
        %v2028 = vmax.f32 %v2016, 0.0
        %v2029 = vmax.f32 %v2019, 0.0
        %v2030 = vrot.slane %v2022, 4
        %v2031 = vrot.slane %v2023, 4
        %v2032 = vrot.slane %v2024, 4
        %v2033 = vrot.slane %v2025, 4
        %v2034 = vrot.slane %v2026, 4
        %v2035 = vrot.slane %v2027, 4
        %v2036 = vrot.slane %v2028, 4
        %v2037 = vrot.slane %v2029, 4
        %v2038 = vsel %vm1614, %v2036, %v2037
        %v2039 = vsel %vm1614, %v2035, %v2036
        %v2040 = vsel %vm1614, %v2034, %v2035
        %v2041 = vsel %vm1614, %v2033, %v2034
        %v2042 = vsel %vm1614, %v2032, %v2033
        %v2043 = vsel %vm1614, %v2031, %v2032
        %v2044 = vsel %vm1614, %v2030, %v2031
        %v2045 = vsel %vm1614, %v2037, %v2030
        %v2046 = vsel %vm1639, %v2045, 0.0
        %v2047 = vsel %vm1640, %v2044, 0.0
        %v2048 = vsel %vm1641, %v2043, 0.0
        %v2049 = vsel %vm1642, %v2042, 0.0
        %v2050 = vsel %vm1643, %v2041, 0.0
        %v2051 = vsel %vm1644, %v2040, 0.0
        %v2052 = vsel %vm1645, %v2039, 0.0
        %v2053 = vsel %vm1646, %v2038, 0.0
        %v2054 = vpack.c.bf16 %v2047, %v2046
        %v2055 = vpack.c.bf16 %v2049, %v2048
        %v2056 = vpack.c.bf16 %v2051, %v2050
        %v2057 = vpack.c.bf16 %v2053, %v2052
        %v2058 = vrot.slane %v2022, 6
        %v2059 = vrot.slane %v2023, 6
        %v2060 = vrot.slane %v2024, 6
        %v2061 = vrot.slane %v2025, 6
        %v2062 = vrot.slane %v2026, 6
        %v2063 = vrot.slane %v2027, 6
        %v2064 = vrot.slane %v2028, 6
        %v2065 = vrot.slane %v2029, 6
        %v2066 = vsel %vm752, %v2064, %v2065
        %v2067 = vsel %vm752, %v2063, %v2064
        %v2068 = vsel %vm752, %v2062, %v2063
        %v2069 = vsel %vm752, %v2061, %v2062
        %v2070 = vsel %vm752, %v2060, %v2061
        %v2071 = vsel %vm752, %v2059, %v2060
        %v2072 = vsel %vm752, %v2058, %v2059
        %v2073 = vsel %vm752, %v2065, %v2058
        %v2074 = vsel %vm777, %v2073, 0.0
        %v2075 = vsel %vm778, %v2072, 0.0
        %v2076 = vsel %vm779, %v2071, 0.0
        %v2077 = vsel %vm780, %v2070, 0.0
        %v2078 = vsel %vm781, %v2069, 0.0
        %v2079 = vsel %vm782, %v2068, 0.0
        %v2080 = vsel %vm783, %v2067, 0.0
        %v2081 = vsel %vm784, %v2066, 0.0
        %v2082 = vpack.c.bf16 %v2075, %v2074
        %v2083 = vpack.c.bf16 %v2077, %v2076
        %v2084 = vpack.c.bf16 %v2079, %v2078
        %v2085 = vpack.c.bf16 %v2081, %v2080
        %v2086 = vpack.c.bf16 %v2023, %v2022
        %v2087 = vpack.c.bf16 %v2025, %v2024
        %v2088 = vpack.c.bf16 %v2027, %v2026
        %v2089 = vpack.c.bf16 %v2029, %v2028
        %s2090 = scalar_lea.vmem [#allocation7], 576
        %v2091 = vld [vmem:[%s2090] sm:$0xf]
        %v2092 = vld [vmem:[%s2090 + $0x4] sm:$0xf]
        %v2093 = vld [vmem:[%s2090 + $0x8] sm:$0xf]
        %v2094 = vld [vmem:[%s2090 + $0xc] sm:$0xf]
        %v2095 = vld [vmem:[%s2090 + $0x10] sm:$0xf]
        %v2096 = vld [vmem:[%s2090 + $0x14] sm:$0xf]
        %v2097 = vld [vmem:[%s2090 + $0x18] sm:$0xf]
        %v2098 = vld [vmem:[%s2090 + $0x1c] sm:$0xf]
        %v2099 = vld [vmem:[%s2090 + $0x20] sm:$0xf]
        %v2100 = vld [vmem:[%s2090 + $0x24] sm:$0xf]
        %v2101 = vld [vmem:[%s2090 + $0x28] sm:$0xf]
        %v2102 = vld [vmem:[%s2090 + $0x2c] sm:$0xf]
        %v2103 = vld [vmem:[%s2090 + $0x30] sm:$0xf]
        %v2104 = vld [vmem:[%s2090 + $0x34] sm:$0xf]
        %v2105 = vld [vmem:[%s2090 + $0x38] sm:$0xf]
        %v2106 = vld [vmem:[%s2090 + $0x3c] sm:$0xf]
        %v2107 = vld [vmem:[%s2090 + $0x40] sm:$0xf]
        %v2108 = vld [vmem:[%s2090 + $0x44] sm:$0xf]
        %v2109 = vld [vmem:[%s2090 + $0x48] sm:$0xf]
        %v2110 = vld [vmem:[%s2090 + $0x4c] sm:$0xf]
        %v2111 = vld [vmem:[%s2090 + $0x50] sm:$0xf]
        %v2112 = vld [vmem:[%s2090 + $0x54] sm:$0xf]
        %v2113 = vld [vmem:[%s2090 + $0x58] sm:$0xf]
        %v2114 = vld [vmem:[%s2090 + $0x5c] sm:$0xf]
        %v2115 = vld [vmem:[%s2090 + $0x60] sm:$0xf]
        %v2116 = vld [vmem:[%s2090 + $0x64] sm:$0xf]
        %v2117 = vld [vmem:[%s2090 + $0x68] sm:$0xf]
        %v2118 = vld [vmem:[%s2090 + $0x6c] sm:$0xf]
        %v2119 = vld [vmem:[%s2090 + $0x70] sm:$0xf]
        %v2120 = vld [vmem:[%s2090 + $0x74] sm:$0xf]
        %v2121 = vld [vmem:[%s2090 + $0x78] sm:$0xf]
        %v2122 = vld [vmem:[%s2090 + $0x7c] sm:$0xf]
        %v2123 = vld [vmem:[%s2090 + $0x80] sm:$0xf]
        %v2124 = vld [vmem:[%s2090 + $0x84] sm:$0xf]
        %v2125 = vld [vmem:[%s2090 + $0x88] sm:$0xf]
        %v2126 = vld [vmem:[%s2090 + $0x8c] sm:$0xf]
        %v2127 = vld [vmem:[%s2090 + $0x90] sm:$0xf]
        %v2128 = vld [vmem:[%s2090 + $0x94] sm:$0xf]
        %v2129 = vld [vmem:[%s2090 + $0x98] sm:$0xf]
        %v2130 = vld [vmem:[%s2090 + $0x9c] sm:$0xf]
        %v2131 = vld [vmem:[%s2090 + $0xa0] sm:$0xf]
        %v2132 = vld [vmem:[%s2090 + $0xa4] sm:$0xf]
        %v2133 = vld [vmem:[%s2090 + $0xa8] sm:$0xf]
        %v2134 = vld [vmem:[%s2090 + $0xac] sm:$0xf]
        %v2135 = vld [vmem:[%s2090 + $0xb0] sm:$0xf]
        %v2136 = vld [vmem:[%s2090 + $0xb4] sm:$0xf]
        %v2137 = vld [vmem:[%s2090 + $0xb8] sm:$0xf]
        %v2138 = vld [vmem:[%s2090 + $0xbc] sm:$0xf]
        %s2139 = scalar_lea.vmem %s3, 3
        %v2140 = vld [vmem:[%s2139] sm:$0x1]
        %v2142 = vlaneseq
        %v2143 = vshrl.u32 %v2142, 7
        %v2144 = vsub.s32 0, %v2143
        %v2145 = vrot.slane %v2140, %v2144
        %v2195 = vunpack.c.l.b16 %v2091
        %v2196 = vunpack.c.l.b16 %v2092
        %v2197 = vunpack.c.l.b16 %v2093
        %v2198 = vunpack.c.l.b16 %v2094
        %v2199 = vunpack.c.l.b16 %v2095
        %v2200 = vunpack.c.l.b16 %v2096
        %v2201 = vunpack.c.l.b16 %v2097
        %v2202 = vunpack.c.l.b16 %v2098
        %v2203 = vunpack.c.l.b16 %v2099
        %v2204 = vunpack.c.l.b16 %v2100
        %v2205 = vunpack.c.l.b16 %v2101
        %v2206 = vunpack.c.l.b16 %v2102
        %v2207 = vunpack.c.l.b16 %v2103
        %v2208 = vunpack.c.l.b16 %v2104
        %v2209 = vunpack.c.l.b16 %v2105
        %v2210 = vunpack.c.l.b16 %v2106
        %v2211 = vunpack.c.l.b16 %v2107
        %v2212 = vunpack.c.l.b16 %v2108
        %v2213 = vunpack.c.l.b16 %v2109
        %v2214 = vunpack.c.l.b16 %v2110
        %v2215 = vunpack.c.l.b16 %v2111
        %v2216 = vunpack.c.l.b16 %v2112
        %v2217 = vunpack.c.l.b16 %v2113
        %v2218 = vunpack.c.l.b16 %v2114
        %v2219 = vunpack.c.l.b16 %v2115
        %v2220 = vunpack.c.l.b16 %v2116
        %v2221 = vunpack.c.l.b16 %v2117
        %v2222 = vunpack.c.l.b16 %v2118
        %v2223 = vunpack.c.l.b16 %v2119
        %v2224 = vunpack.c.l.b16 %v2120
        %v2225 = vunpack.c.l.b16 %v2121
        %v2226 = vunpack.c.l.b16 %v2122
        %v2227 = vunpack.c.l.b16 %v2123
        %v2228 = vunpack.c.l.b16 %v2124
        %v2229 = vunpack.c.l.b16 %v2125
        %v2230 = vunpack.c.l.b16 %v2126
        %v2231 = vunpack.c.l.b16 %v2127
        %v2232 = vunpack.c.l.b16 %v2128
        %v2233 = vunpack.c.l.b16 %v2129
        %v2234 = vunpack.c.l.b16 %v2130
        %v2235 = vunpack.c.l.b16 %v2131
        %v2236 = vunpack.c.l.b16 %v2132
        %v2237 = vunpack.c.l.b16 %v2133
        %v2238 = vunpack.c.l.b16 %v2134
        %v2239 = vunpack.c.l.b16 %v2135
        %v2240 = vunpack.c.l.b16 %v2136
        %v2241 = vunpack.c.l.b16 %v2137
        %v2242 = vunpack.c.l.b16 %v2138
        %v2243 = vpack.c.b16 %v2196, %v2195
        %v2244 = vpack.c.b16 %v2198, %v2197
        %v2245 = vpack.c.b16 %v2200, %v2199
        %v2246 = vpack.c.b16 %v2202, %v2201
        %v2247 = vpack.c.b16 %v2204, %v2203
        %v2248 = vpack.c.b16 %v2206, %v2205
        %v2249 = vpack.c.b16 %v2208, %v2207
        %v2250 = vpack.c.b16 %v2210, %v2209
        %v2251 = vpack.c.b16 %v2212, %v2211
        %v2252 = vpack.c.b16 %v2214, %v2213
        %v2253 = vpack.c.b16 %v2216, %v2215
        %v2254 = vpack.c.b16 %v2218, %v2217
        %v2255 = vpack.c.b16 %v2220, %v2219
        %v2256 = vpack.c.b16 %v2222, %v2221
        %v2257 = vpack.c.b16 %v2224, %v2223
        %v2258 = vpack.c.b16 %v2226, %v2225
        %v2259 = vpack.c.b16 %v2228, %v2227
        %v2260 = vpack.c.b16 %v2230, %v2229
        %v2261 = vpack.c.b16 %v2232, %v2231
        %v2262 = vpack.c.b16 %v2234, %v2233
        %v2263 = vpack.c.b16 %v2236, %v2235
        %v2264 = vpack.c.b16 %v2238, %v2237
        %v2265 = vpack.c.b16 %v2240, %v2239
        %v2266 = vpack.c.b16 %v2242, %v2241
        %2291 = vmatprep.subr.bf16.mxu0 0
        %2292 = vmatpush1.bf16.msra.mxu0 %v2243
        %2293 = vmatprep.subr.bf16.mxu0 0
        %2294 = vmatpush1.bf16.msra.mxu0 %v2244
        %2295 = vmatprep.subr.bf16.mxu0 0
        %2296 = vmatpush1.bf16.msra.mxu0 %v2245
        %2297 = vmatprep.subr.bf16.mxu0 0
        %2298 = vmatpush1.bf16.msra.mxu0 %v2246
        %2299 = vmatprep.subr.bf16.mxu0 0
        %2300 = vmatpush1.bf16.msra.mxu0 %v2247
        %2301 = vmatprep.subr.bf16.mxu0 0
        %2302 = vmatpush1.bf16.msra.mxu0 %v2248
        %2303 = vmatprep.subr.bf16.mxu0 0
        %2304 = vmatpush1.bf16.msra.mxu0 %v2249
        %2305 = vmatprep.subr.bf16.mxu0 0
        %2306 = vmatpush1.bf16.msra.mxu0 %v2250
        %2307 = vmatprep.subr.bf16.mxu0 0
        %2308 = vmatpush1.bf16.msra.mxu0 %v2251
        %2309 = vmatprep.subr.bf16.mxu0 0
        %2310 = vmatpush1.bf16.msra.mxu0 %v2252
        %2311 = vmatprep.subr.bf16.mxu0 0
        %2312 = vmatpush1.bf16.msra.mxu0 %v2253
        %2313 = vmatprep.subr.bf16.mxu0 0
        %2314 = vmatpush1.bf16.msra.mxu0 %v2254
        %2315 = vmatprep.subr.bf16.mxu0 0
        %2316 = vmatpush1.bf16.msra.mxu0 %v2255
        %2317 = vmatprep.subr.bf16.mxu0 0
        %2318 = vmatpush1.bf16.msra.mxu0 %v2256
        %2319 = vmatprep.subr.bf16.mxu0 0
        %2320 = vmatpush1.bf16.msra.mxu0 %v2257
        %2321 = vmatprep.subr.bf16.mxu0 0
        %2322 = vmatpush1.bf16.msra.mxu0 %v2258
        %2323 = vmatprep.mubr.bf16.mxu0 %v2082
        %2324 = vmatmul.mubr.bf16.gmra.mrb[0].mxu0 %v2054
        %v2325 = vpop.f32.mrb[0].mxu0
        %v2326 = vadd.f32 %v2145, %v2325
        %v2327 = vpop.f32.mrb[0].mxu0
        %v2328 = vpop.f32.mrb[0].mxu0
        %v2329 = vadd.f32 %v2145, %v2328
        %v2330 = vpop.f32.mrb[0].mxu0
        %2331 = vmatprep.mubr.bf16.mxu0 %v2083
        %2332 = vmatmul.mubr.bf16.gmra.mrb[0].mxu0 %v2055
        %v2333 = vpop.f32.mrb[0].mxu0
        %v2334 = vadd.f32 %v2145, %v2333
        %v2335 = vpop.f32.mrb[0].mxu0
        %v2336 = vpop.f32.mrb[0].mxu0
        %v2337 = vadd.f32 %v2145, %v2336
        %v2338 = vpop.f32.mrb[0].mxu0
        %2339 = vmatprep.mubr.bf16.mxu0 %v2084
        %2340 = vmatmul.mubr.bf16.gmra.mrb[0].mxu0 %v2056
        %v2341 = vpop.f32.mrb[0].mxu0
        %v2342 = vadd.f32 %v2145, %v2341
        %v2343 = vpop.f32.mrb[0].mxu0
        %v2344 = vpop.f32.mrb[0].mxu0
        %v2345 = vadd.f32 %v2145, %v2344
        %v2346 = vpop.f32.mrb[0].mxu0
        %2347 = vmatprep.mubr.bf16.mxu0 %v2085
        %2348 = vmatmul.mubr.bf16.gmra.mrb[0].mxu0 %v2057
        %v2349 = vpop.f32.mrb[0].mxu0
        %v2350 = vadd.f32 %v2145, %v2349
        %v2351 = vpop.f32.mrb[0].mxu0
        %v2352 = vpop.f32.mrb[0].mxu0
        %v2353 = vadd.f32 %v2145, %v2352
        %v2354 = vpop.f32.mrb[0].mxu0
        %2355 = vdwg.mxu0
        %2356 = vmatprep.subr.bf16.mxu0 0
        %2357 = vmatpush1.bf16.msra.mxu0 %v2259
        %2358 = vmatprep.subr.bf16.mxu0 0
        %2359 = vmatpush1.bf16.msra.mxu0 %v2260
        %2360 = vmatprep.subr.bf16.mxu0 0
        %2361 = vmatpush1.bf16.msra.mxu0 %v2261
        %2362 = vmatprep.subr.bf16.mxu0 0
        %2363 = vmatpush1.bf16.msra.mxu0 %v2262
        %2364 = vmatprep.subr.bf16.mxu0 0
        %2365 = vmatpush1.bf16.msra.mxu0 %v2263
        %2366 = vmatprep.subr.bf16.mxu0 0
        %2367 = vmatpush1.bf16.msra.mxu0 %v2264
        %2368 = vmatprep.subr.bf16.mxu0 0
        %2369 = vmatpush1.bf16.msra.mxu0 %v2265
        %2370 = vmatprep.subr.bf16.mxu0 0
        %2371 = vmatpush1.bf16.msra.mxu0 %v2266
        %2372 = vmatprep.subr.bf16.mxu0 0
        %2373 = vmatpush1.bf16.msra.mxu0 0
        %2374 = vmatprep.subr.bf16.mxu0 0
        %2375 = vmatpush1.bf16.msra.mxu0 0
        %2376 = vmatprep.subr.bf16.mxu0 0
        %2377 = vmatpush1.bf16.msra.mxu0 0
        %2378 = vmatprep.subr.bf16.mxu0 0
        %2379 = vmatpush1.bf16.msra.mxu0 0
        %2380 = vmatprep.subr.bf16.mxu0 0
        %2381 = vmatpush1.bf16.msra.mxu0 0
        %2382 = vmatprep.subr.bf16.mxu0 0
        %2383 = vmatpush1.bf16.msra.mxu0 0
        %2384 = vmatprep.subr.bf16.mxu0 0
        %2385 = vmatpush1.bf16.msra.mxu0 0
        %2386 = vmatprep.subr.bf16.mxu0 0
        %2387 = vmatpush1.bf16.msra.mxu0 0
        %2388 = vmatprep.mubr.bf16.mxu0 0
        %2389 = vmatmul.mubr.bf16.gmra.mrb[0].mxu0 %v2086
        %v2390 = vpop.f32.mrb[0].mxu0
        %v2391 = vadd.f32 %v2326, %v2390
        %v2392 = vpop.f32.mrb[0].mxu0
        %v2393 = vpop.f32.mrb[0].mxu0
        %v2394 = vadd.f32 %v2329, %v2393
        %v2395 = vpop.f32.mrb[0].mxu0
        %2396 = vmatprep.mubr.bf16.mxu0 0
        %2397 = vmatmul.mubr.bf16.gmra.mrb[0].mxu0 %v2087
        %v2398 = vpop.f32.mrb[0].mxu0
        %v2399 = vadd.f32 %v2334, %v2398
        %v2400 = vpop.f32.mrb[0].mxu0
        %v2401 = vpop.f32.mrb[0].mxu0
        %v2402 = vadd.f32 %v2337, %v2401
        %v2403 = vpop.f32.mrb[0].mxu0
        %2404 = vmatprep.mubr.bf16.mxu0 0
        %2405 = vmatmul.mubr.bf16.gmra.mrb[0].mxu0 %v2088
        %v2406 = vpop.f32.mrb[0].mxu0
        %v2407 = vadd.f32 %v2342, %v2406
        %v2408 = vpop.f32.mrb[0].mxu0
        %v2409 = vpop.f32.mrb[0].mxu0
        %v2410 = vadd.f32 %v2345, %v2409
        %v2411 = vpop.f32.mrb[0].mxu0
        %2412 = vmatprep.mubr.bf16.mxu0 0
        %2413 = vmatmul.mubr.bf16.gmra.mrb[0].mxu0 %v2089
        %v2414 = vpop.f32.mrb[0].mxu0
        %v2415 = vadd.f32 %v2350, %v2414
        %v2416 = vpop.f32.mrb[0].mxu0
        %v2417 = vpop.f32.mrb[0].mxu0
        %v2418 = vadd.f32 %v2353, %v2417
        %v2419 = vpop.f32.mrb[0].mxu0
        %2420 = vdwg.mxu0
        %v2421 = vmax.f32 %v2391, 0.0
        %v2422 = vmax.f32 %v2394, 0.0
        %v2423 = vmax.f32 %v2399, 0.0
        %v2424 = vmax.f32 %v2402, 0.0
        %v2425 = vmax.f32 %v2407, 0.0
        %v2426 = vmax.f32 %v2410, 0.0
        %v2427 = vmax.f32 %v2415, 0.0
        %v2428 = vmax.f32 %v2418, 0.0
        %v2429 = vadd.f32 %v2421, %v1598
        %v2430 = vadd.f32 %v2422, %v1599
        %v2431 = vadd.f32 %v2423, %v1600
        %v2432 = vadd.f32 %v2424, %v1601
        %v2433 = vadd.f32 %v2425, %v1602
        %v2434 = vadd.f32 %v2426, %v1603
        %v2435 = vadd.f32 %v2427, %v1604
        %v2436 = vadd.f32 %v2428, %v1605
        %v2437 = vmax.f32 %v2429, 0.0
        %v2438 = vmax.f32 %v2430, 0.0
        %v2439 = vmax.f32 %v2431, 0.0
        %v2440 = vmax.f32 %v2432, 0.0
        %v2441 = vmax.f32 %v2433, 0.0
        %v2442 = vmax.f32 %v2434, 0.0
        %v2443 = vmax.f32 %v2435, 0.0
        %v2444 = vmax.f32 %v2436, 0.0
        %vm2445 = vcmp.ge.s32.totalorder %v736, 8
        %vm2446 = vcmp.ge.s32.totalorder %v737, 8
        %vm2447 = vcmp.ge.s32.totalorder %v738, 8
        %vm2448 = vcmp.ge.s32.totalorder %v739, 8
        %vm2449 = vcmp.ge.s32.totalorder %v740, 8
        %vm2450 = vcmp.ge.s32.totalorder %v741, 8
        %vm2451 = vcmp.ge.s32.totalorder %v742, 8
        %vm2452 = vcmp.ge.s32.totalorder %v743, 8
        %v2453 = vsel %vm2445, 1, 0
        %v2454 = vsel %vm2446, 1, 0
        %v2455 = vsel %vm2447, 1, 0
        %v2456 = vsel %vm2448, 1, 0
        %v2457 = vsel %vm2449, 1, 0
        %v2458 = vsel %vm2450, 1, 0
        %v2459 = vsel %vm2451, 1, 0
        %v2460 = vsel %vm2452, 1, 0
        %vm2461 = vcmp.eq.s32.totalorder %v2453, 1
        %vm2462 = vcmp.eq.s32.totalorder %v2454, 1
        %vm2463 = vcmp.eq.s32.totalorder %v2455, 1
        %vm2464 = vcmp.eq.s32.totalorder %v2456, 1
        %vm2465 = vcmp.eq.s32.totalorder %v2457, 1
        %vm2466 = vcmp.eq.s32.totalorder %v2458, 1
        %vm2467 = vcmp.eq.s32.totalorder %v2459, 1
        %vm2468 = vcmp.eq.s32.totalorder %v2460, 1
        %v2469 = vsel %vm2461, %v2444, 0.0
        %v2470 = vsel %vm2462, %v2437, 0.0
        %v2471 = vsel %vm2463, %v2438, 0.0
        %v2472 = vsel %vm2464, %v2439, 0.0
        %v2473 = vsel %vm2465, %v2440, 0.0
        %v2474 = vsel %vm2466, %v2441, 0.0
        %v2475 = vsel %vm2467, %v2442, 0.0
        %v2476 = vsel %vm2468, %v2443, 0.0
        %v2477 = vpack.c.bf16 %v2470, %v2469
        %v2478 = vpack.c.bf16 %v2472, %v2471
        %v2479 = vpack.c.bf16 %v2474, %v2473
        %v2480 = vpack.c.bf16 %v2476, %v2475
        %v2481 = vrot.slane %v2437, 4
        %v2482 = vrot.slane %v2438, 4
        %v2483 = vrot.slane %v2439, 4
        %v2484 = vrot.slane %v2440, 4
        %v2485 = vrot.slane %v2441, 4
        %v2486 = vrot.slane %v2442, 4
        %v2487 = vrot.slane %v2443, 4
        %v2488 = vrot.slane %v2444, 4
        %v2489 = vsel %vm1614, %v2487, %v2488
        %v2490 = vsel %vm1614, %v2486, %v2487
        %v2491 = vsel %vm1614, %v2485, %v2486
        %v2492 = vsel %vm1614, %v2484, %v2485
        %v2493 = vsel %vm1614, %v2483, %v2484
        %v2494 = vsel %vm1614, %v2482, %v2483
        %v2495 = vsel %vm1614, %v2481, %v2482
        %v2496 = vsel %vm1614, %v2488, %v2481
        %v2497 = vsel %vm1639, %v2496, 0.0
        %v2498 = vsel %vm1640, %v2495, 0.0
        %v2499 = vsel %vm1641, %v2494, 0.0
        %v2500 = vsel %vm1642, %v2493, 0.0
        %v2501 = vsel %vm1643, %v2492, 0.0
        %v2502 = vsel %vm1644, %v2491, 0.0
        %v2503 = vsel %vm1645, %v2490, 0.0
        %v2504 = vsel %vm1646, %v2489, 0.0
        %v2505 = vpack.c.bf16 %v2498, %v2497
        %v2506 = vpack.c.bf16 %v2500, %v2499
        %v2507 = vpack.c.bf16 %v2502, %v2501
        %v2508 = vpack.c.bf16 %v2504, %v2503
        %v2509 = vpack.c.bf16 %v2438, %v2437
        %v2510 = vpack.c.bf16 %v2440, %v2439
        %v2511 = vpack.c.bf16 %v2442, %v2441
        %v2512 = vpack.c.bf16 %v2444, %v2443
        %s2513 = scalar_lea.vmem [#allocation7], 768
        %v2514 = vld [vmem:[%s2513] sm:$0xf]
        %v2515 = vld [vmem:[%s2513 + $0x4] sm:$0xf]
        %v2516 = vld [vmem:[%s2513 + $0x8] sm:$0xf]
        %v2517 = vld [vmem:[%s2513 + $0xc] sm:$0xf]
        %v2518 = vld [vmem:[%s2513 + $0x10] sm:$0xf]
        %v2519 = vld [vmem:[%s2513 + $0x14] sm:$0xf]
        %v2520 = vld [vmem:[%s2513 + $0x18] sm:$0xf]
        %v2521 = vld [vmem:[%s2513 + $0x1c] sm:$0xf]
        %v2522 = vld [vmem:[%s2513 + $0x20] sm:$0xf]
        %v2523 = vld [vmem:[%s2513 + $0x24] sm:$0xf]
        %v2524 = vld [vmem:[%s2513 + $0x28] sm:$0xf]
        %v2525 = vld [vmem:[%s2513 + $0x2c] sm:$0xf]
        %v2526 = vld [vmem:[%s2513 + $0x30] sm:$0xf]
        %v2527 = vld [vmem:[%s2513 + $0x34] sm:$0xf]
        %v2528 = vld [vmem:[%s2513 + $0x38] sm:$0xf]
        %v2529 = vld [vmem:[%s2513 + $0x3c] sm:$0xf]
        %v2530 = vld [vmem:[%s2513 + $0x40] sm:$0xf]
        %v2531 = vld [vmem:[%s2513 + $0x44] sm:$0xf]
        %v2532 = vld [vmem:[%s2513 + $0x48] sm:$0xf]
        %v2533 = vld [vmem:[%s2513 + $0x4c] sm:$0xf]
        %v2534 = vld [vmem:[%s2513 + $0x50] sm:$0xf]
        %v2535 = vld [vmem:[%s2513 + $0x54] sm:$0xf]
        %v2536 = vld [vmem:[%s2513 + $0x58] sm:$0xf]
        %v2537 = vld [vmem:[%s2513 + $0x5c] sm:$0xf]
        %v2538 = vld [vmem:[%s2513 + $0x60] sm:$0xf]
        %v2539 = vld [vmem:[%s2513 + $0x64] sm:$0xf]
        %v2540 = vld [vmem:[%s2513 + $0x68] sm:$0xf]
        %v2541 = vld [vmem:[%s2513 + $0x6c] sm:$0xf]
        %v2542 = vld [vmem:[%s2513 + $0x70] sm:$0xf]
        %v2543 = vld [vmem:[%s2513 + $0x74] sm:$0xf]
        %v2544 = vld [vmem:[%s2513 + $0x78] sm:$0xf]
        %v2545 = vld [vmem:[%s2513 + $0x7c] sm:$0xf]
        %v2546 = vld [vmem:[%s2513 + $0x80] sm:$0xf]
        %v2547 = vld [vmem:[%s2513 + $0x84] sm:$0xf]
        %v2548 = vld [vmem:[%s2513 + $0x88] sm:$0xf]
        %v2549 = vld [vmem:[%s2513 + $0x8c] sm:$0xf]
        %v2550 = vld [vmem:[%s2513 + $0x90] sm:$0xf]
        %v2551 = vld [vmem:[%s2513 + $0x94] sm:$0xf]
        %v2552 = vld [vmem:[%s2513 + $0x98] sm:$0xf]
        %v2553 = vld [vmem:[%s2513 + $0x9c] sm:$0xf]
        %v2554 = vld [vmem:[%s2513 + $0xa0] sm:$0xf]
        %v2555 = vld [vmem:[%s2513 + $0xa4] sm:$0xf]
        %v2556 = vld [vmem:[%s2513 + $0xa8] sm:$0xf]
        %v2557 = vld [vmem:[%s2513 + $0xac] sm:$0xf]
        %v2558 = vld [vmem:[%s2513 + $0xb0] sm:$0xf]
        %v2559 = vld [vmem:[%s2513 + $0xb4] sm:$0xf]
        %v2560 = vld [vmem:[%s2513 + $0xb8] sm:$0xf]
        %v2561 = vld [vmem:[%s2513 + $0xbc] sm:$0xf]
        %s2562 = scalar_lea.vmem %s3, 4
        %v2563 = vld [vmem:[%s2562] sm:$0x1]
        %v2565 = vlaneseq
        %v2566 = vshrl.u32 %v2565, 7
        %v2567 = vsub.s32 0, %v2566
        %v2568 = vrot.slane %v2563, %v2567
        %v2618 = vunpack.c.l.b16 %v2514
        %v2619 = vunpack.c.l.b16 %v2515
        %v2620 = vunpack.c.l.b16 %v2516
        %v2621 = vunpack.c.l.b16 %v2517
        %v2622 = vunpack.c.l.b16 %v2518
        %v2623 = vunpack.c.l.b16 %v2519
        %v2624 = vunpack.c.l.b16 %v2520
        %v2625 = vunpack.c.l.b16 %v2521
        %v2626 = vunpack.c.l.b16 %v2522
        %v2627 = vunpack.c.l.b16 %v2523
        %v2628 = vunpack.c.l.b16 %v2524
        %v2629 = vunpack.c.l.b16 %v2525
        %v2630 = vunpack.c.l.b16 %v2526
        %v2631 = vunpack.c.l.b16 %v2527
        %v2632 = vunpack.c.l.b16 %v2528
        %v2633 = vunpack.c.l.b16 %v2529
        %v2634 = vunpack.c.l.b16 %v2530
        %v2635 = vunpack.c.l.b16 %v2531
        %v2636 = vunpack.c.l.b16 %v2532
        %v2637 = vunpack.c.l.b16 %v2533
        %v2638 = vunpack.c.l.b16 %v2534
        %v2639 = vunpack.c.l.b16 %v2535
        %v2640 = vunpack.c.l.b16 %v2536
        %v2641 = vunpack.c.l.b16 %v2537
        %v2642 = vunpack.c.l.b16 %v2538
        %v2643 = vunpack.c.l.b16 %v2539
        %v2644 = vunpack.c.l.b16 %v2540
        %v2645 = vunpack.c.l.b16 %v2541
        %v2646 = vunpack.c.l.b16 %v2542
        %v2647 = vunpack.c.l.b16 %v2543
        %v2648 = vunpack.c.l.b16 %v2544
        %v2649 = vunpack.c.l.b16 %v2545
        %v2650 = vunpack.c.l.b16 %v2546
        %v2651 = vunpack.c.l.b16 %v2547
        %v2652 = vunpack.c.l.b16 %v2548
        %v2653 = vunpack.c.l.b16 %v2549
        %v2654 = vunpack.c.l.b16 %v2550
        %v2655 = vunpack.c.l.b16 %v2551
        %v2656 = vunpack.c.l.b16 %v2552
        %v2657 = vunpack.c.l.b16 %v2553
        %v2658 = vunpack.c.l.b16 %v2554
        %v2659 = vunpack.c.l.b16 %v2555
        %v2660 = vunpack.c.l.b16 %v2556
        %v2661 = vunpack.c.l.b16 %v2557
        %v2662 = vunpack.c.l.b16 %v2558
        %v2663 = vunpack.c.l.b16 %v2559
        %v2664 = vunpack.c.l.b16 %v2560
        %v2665 = vunpack.c.l.b16 %v2561
        %v2666 = vpack.c.b16 %v2619, %v2618
        %v2667 = vpack.c.b16 %v2621, %v2620
        %v2668 = vpack.c.b16 %v2623, %v2622
        %v2669 = vpack.c.b16 %v2625, %v2624
        %v2670 = vpack.c.b16 %v2627, %v2626
        %v2671 = vpack.c.b16 %v2629, %v2628
        %v2672 = vpack.c.b16 %v2631, %v2630
        %v2673 = vpack.c.b16 %v2633, %v2632
        %v2674 = vpack.c.b16 %v2635, %v2634
        %v2675 = vpack.c.b16 %v2637, %v2636
        %v2676 = vpack.c.b16 %v2639, %v2638
        %v2677 = vpack.c.b16 %v2641, %v2640
        %v2678 = vpack.c.b16 %v2643, %v2642
        %v2679 = vpack.c.b16 %v2645, %v2644
        %v2680 = vpack.c.b16 %v2647, %v2646
        %v2681 = vpack.c.b16 %v2649, %v2648
        %v2682 = vpack.c.b16 %v2651, %v2650
        %v2683 = vpack.c.b16 %v2653, %v2652
        %v2684 = vpack.c.b16 %v2655, %v2654
        %v2685 = vpack.c.b16 %v2657, %v2656
        %v2686 = vpack.c.b16 %v2659, %v2658
        %v2687 = vpack.c.b16 %v2661, %v2660
        %v2688 = vpack.c.b16 %v2663, %v2662
        %v2689 = vpack.c.b16 %v2665, %v2664
        %2714 = vmatprep.subr.bf16.mxu0 0
        %2715 = vmatpush1.bf16.msra.mxu0 %v2666
        %2716 = vmatprep.subr.bf16.mxu0 0
        %2717 = vmatpush1.bf16.msra.mxu0 %v2667
        %2718 = vmatprep.subr.bf16.mxu0 0
        %2719 = vmatpush1.bf16.msra.mxu0 %v2668
        %2720 = vmatprep.subr.bf16.mxu0 0
        %2721 = vmatpush1.bf16.msra.mxu0 %v2669
        %2722 = vmatprep.subr.bf16.mxu0 0
        %2723 = vmatpush1.bf16.msra.mxu0 %v2670
        %2724 = vmatprep.subr.bf16.mxu0 0
        %2725 = vmatpush1.bf16.msra.mxu0 %v2671
        %2726 = vmatprep.subr.bf16.mxu0 0
        %2727 = vmatpush1.bf16.msra.mxu0 %v2672
        %2728 = vmatprep.subr.bf16.mxu0 0
        %2729 = vmatpush1.bf16.msra.mxu0 %v2673
        %2730 = vmatprep.subr.bf16.mxu0 0
        %2731 = vmatpush1.bf16.msra.mxu0 %v2674
        %2732 = vmatprep.subr.bf16.mxu0 0
        %2733 = vmatpush1.bf16.msra.mxu0 %v2675
        %2734 = vmatprep.subr.bf16.mxu0 0
        %2735 = vmatpush1.bf16.msra.mxu0 %v2676
        %2736 = vmatprep.subr.bf16.mxu0 0
        %2737 = vmatpush1.bf16.msra.mxu0 %v2677
        %2738 = vmatprep.subr.bf16.mxu0 0
        %2739 = vmatpush1.bf16.msra.mxu0 %v2678
        %2740 = vmatprep.subr.bf16.mxu0 0
        %2741 = vmatpush1.bf16.msra.mxu0 %v2679
        %2742 = vmatprep.subr.bf16.mxu0 0
        %2743 = vmatpush1.bf16.msra.mxu0 %v2680
        %2744 = vmatprep.subr.bf16.mxu0 0
        %2745 = vmatpush1.bf16.msra.mxu0 %v2681
        %2746 = vmatprep.mubr.bf16.mxu0 %v2505
        %2747 = vmatmul.mubr.bf16.gmra.mrb[0].mxu0 %v2477
        %v2748 = vpop.f32.mrb[0].mxu0
        %v2749 = vadd.f32 %v2568, %v2748
        %v2750 = vpop.f32.mrb[0].mxu0
        %v2751 = vpop.f32.mrb[0].mxu0
        %v2752 = vadd.f32 %v2568, %v2751
        %v2753 = vpop.f32.mrb[0].mxu0
        %2754 = vmatprep.mubr.bf16.mxu0 %v2506
        %2755 = vmatmul.mubr.bf16.gmra.mrb[0].mxu0 %v2478
        %v2756 = vpop.f32.mrb[0].mxu0
        %v2757 = vadd.f32 %v2568, %v2756
        %v2758 = vpop.f32.mrb[0].mxu0
        %v2759 = vpop.f32.mrb[0].mxu0
        %v2760 = vadd.f32 %v2568, %v2759
        %v2761 = vpop.f32.mrb[0].mxu0
        %2762 = vmatprep.mubr.bf16.mxu0 %v2507
        %2763 = vmatmul.mubr.bf16.gmra.mrb[0].mxu0 %v2479
        %v2764 = vpop.f32.mrb[0].mxu0
        %v2765 = vadd.f32 %v2568, %v2764
        %v2766 = vpop.f32.mrb[0].mxu0
        %v2767 = vpop.f32.mrb[0].mxu0
        %v2768 = vadd.f32 %v2568, %v2767
        %v2769 = vpop.f32.mrb[0].mxu0
        %2770 = vmatprep.mubr.bf16.mxu0 %v2508
        %2771 = vmatmul.mubr.bf16.gmra.mrb[0].mxu0 %v2480
        %v2772 = vpop.f32.mrb[0].mxu0
        %v2773 = vadd.f32 %v2568, %v2772
        %v2774 = vpop.f32.mrb[0].mxu0
        %v2775 = vpop.f32.mrb[0].mxu0
        %v2776 = vadd.f32 %v2568, %v2775
        %v2777 = vpop.f32.mrb[0].mxu0
        %2778 = vdwg.mxu0
        %2779 = vmatprep.subr.bf16.mxu0 0
        %2780 = vmatpush1.bf16.msra.mxu0 %v2682
        %2781 = vmatprep.subr.bf16.mxu0 0
        %2782 = vmatpush1.bf16.msra.mxu0 %v2683
        %2783 = vmatprep.subr.bf16.mxu0 0
        %2784 = vmatpush1.bf16.msra.mxu0 %v2684
        %2785 = vmatprep.subr.bf16.mxu0 0
        %2786 = vmatpush1.bf16.msra.mxu0 %v2685
        %2787 = vmatprep.subr.bf16.mxu0 0
        %2788 = vmatpush1.bf16.msra.mxu0 %v2686
        %2789 = vmatprep.subr.bf16.mxu0 0
        %2790 = vmatpush1.bf16.msra.mxu0 %v2687
        %2791 = vmatprep.subr.bf16.mxu0 0
        %2792 = vmatpush1.bf16.msra.mxu0 %v2688
        %2793 = vmatprep.subr.bf16.mxu0 0
        %2794 = vmatpush1.bf16.msra.mxu0 %v2689
        %2795 = vmatprep.subr.bf16.mxu0 0
        %2796 = vmatpush1.bf16.msra.mxu0 0
        %2797 = vmatprep.subr.bf16.mxu0 0
        %2798 = vmatpush1.bf16.msra.mxu0 0
        %2799 = vmatprep.subr.bf16.mxu0 0
        %2800 = vmatpush1.bf16.msra.mxu0 0
        %2801 = vmatprep.subr.bf16.mxu0 0
        %2802 = vmatpush1.bf16.msra.mxu0 0
        %2803 = vmatprep.subr.bf16.mxu0 0
        %2804 = vmatpush1.bf16.msra.mxu0 0
        %2805 = vmatprep.subr.bf16.mxu0 0
        %2806 = vmatpush1.bf16.msra.mxu0 0
        %2807 = vmatprep.subr.bf16.mxu0 0
        %2808 = vmatpush1.bf16.msra.mxu0 0
        %2809 = vmatprep.subr.bf16.mxu0 0
        %2810 = vmatpush1.bf16.msra.mxu0 0
        %2811 = vmatprep.mubr.bf16.mxu0 0
        %2812 = vmatmul.mubr.bf16.gmra.mrb[0].mxu0 %v2509
        %v2813 = vpop.f32.mrb[0].mxu0
        %v2814 = vadd.f32 %v2749, %v2813
        %v2815 = vpop.f32.mrb[0].mxu0
        %v2816 = vpop.f32.mrb[0].mxu0
        %v2817 = vadd.f32 %v2752, %v2816
        %v2818 = vpop.f32.mrb[0].mxu0
        %2819 = vmatprep.mubr.bf16.mxu0 0
        %2820 = vmatmul.mubr.bf16.gmra.mrb[0].mxu0 %v2510
        %v2821 = vpop.f32.mrb[0].mxu0
        %v2822 = vadd.f32 %v2757, %v2821
        %v2823 = vpop.f32.mrb[0].mxu0
        %v2824 = vpop.f32.mrb[0].mxu0
        %v2825 = vadd.f32 %v2760, %v2824
        %v2826 = vpop.f32.mrb[0].mxu0
        %2827 = vmatprep.mubr.bf16.mxu0 0
        %2828 = vmatmul.mubr.bf16.gmra.mrb[0].mxu0 %v2511
        %v2829 = vpop.f32.mrb[0].mxu0
        %v2830 = vadd.f32 %v2765, %v2829
        %v2831 = vpop.f32.mrb[0].mxu0
        %v2832 = vpop.f32.mrb[0].mxu0
        %v2833 = vadd.f32 %v2768, %v2832
        %v2834 = vpop.f32.mrb[0].mxu0
        %2835 = vmatprep.mubr.bf16.mxu0 0
        %2836 = vmatmul.mubr.bf16.gmra.mrb[0].mxu0 %v2512
        %v2837 = vpop.f32.mrb[0].mxu0
        %v2838 = vadd.f32 %v2773, %v2837
        %v2839 = vpop.f32.mrb[0].mxu0
        %v2840 = vpop.f32.mrb[0].mxu0
        %v2841 = vadd.f32 %v2776, %v2840
        %v2842 = vpop.f32.mrb[0].mxu0
        %2843 = vdwg.mxu0
        %v2844 = vmax.f32 %v2814, 0.0
        %v2845 = vmax.f32 %v2817, 0.0
        %v2846 = vmax.f32 %v2822, 0.0
        %v2847 = vmax.f32 %v2825, 0.0
        %v2848 = vmax.f32 %v2830, 0.0
        %v2849 = vmax.f32 %v2833, 0.0
        %v2850 = vmax.f32 %v2838, 0.0
        %v2851 = vmax.f32 %v2841, 0.0
        %v2852 = vsel %vm2461, %v2851, 0.0
        %v2853 = vsel %vm2462, %v2844, 0.0
        %v2854 = vsel %vm2463, %v2845, 0.0
        %v2855 = vsel %vm2464, %v2846, 0.0
        %v2856 = vsel %vm2465, %v2847, 0.0
        %v2857 = vsel %vm2466, %v2848, 0.0
        %v2858 = vsel %vm2467, %v2849, 0.0
        %v2859 = vsel %vm2468, %v2850, 0.0
        %v2860 = vpack.c.bf16 %v2853, %v2852
        %v2861 = vpack.c.bf16 %v2855, %v2854
        %v2862 = vpack.c.bf16 %v2857, %v2856
        %v2863 = vpack.c.bf16 %v2859, %v2858
        %v2864 = vrot.slane %v2844, 4
        %v2865 = vrot.slane %v2845, 4
        %v2866 = vrot.slane %v2846, 4
        %v2867 = vrot.slane %v2847, 4
        %v2868 = vrot.slane %v2848, 4
        %v2869 = vrot.slane %v2849, 4
        %v2870 = vrot.slane %v2850, 4
        %v2871 = vrot.slane %v2851, 4
        %v2872 = vsel %vm1614, %v2870, %v2871
        %v2873 = vsel %vm1614, %v2869, %v2870
        %v2874 = vsel %vm1614, %v2868, %v2869
        %v2875 = vsel %vm1614, %v2867, %v2868
        %v2876 = vsel %vm1614, %v2866, %v2867
        %v2877 = vsel %vm1614, %v2865, %v2866
        %v2878 = vsel %vm1614, %v2864, %v2865
        %v2879 = vsel %vm1614, %v2871, %v2864
        %v2880 = vsel %vm1639, %v2879, 0.0
        %v2881 = vsel %vm1640, %v2878, 0.0
        %v2882 = vsel %vm1641, %v2877, 0.0
        %v2883 = vsel %vm1642, %v2876, 0.0
        %v2884 = vsel %vm1643, %v2875, 0.0
        %v2885 = vsel %vm1644, %v2874, 0.0
        %v2886 = vsel %vm1645, %v2873, 0.0
        %v2887 = vsel %vm1646, %v2872, 0.0
        %v2888 = vpack.c.bf16 %v2881, %v2880
        %v2889 = vpack.c.bf16 %v2883, %v2882
        %v2890 = vpack.c.bf16 %v2885, %v2884
        %v2891 = vpack.c.bf16 %v2887, %v2886
        %v2892 = vpack.c.bf16 %v2845, %v2844
        %v2893 = vpack.c.bf16 %v2847, %v2846
        %v2894 = vpack.c.bf16 %v2849, %v2848
        %v2895 = vpack.c.bf16 %v2851, %v2850
        %s2896 = scalar_lea.vmem [#allocation7], 960
        %v2897 = vld [vmem:[%s2896] sm:$0xf]
        %v2898 = vld [vmem:[%s2896 + $0x4] sm:$0xf]
        %v2899 = vld [vmem:[%s2896 + $0x8] sm:$0xf]
        %v2900 = vld [vmem:[%s2896 + $0xc] sm:$0xf]
        %v2901 = vld [vmem:[%s2896 + $0x10] sm:$0xf]
        %v2902 = vld [vmem:[%s2896 + $0x14] sm:$0xf]
        %v2903 = vld [vmem:[%s2896 + $0x18] sm:$0xf]
        %v2904 = vld [vmem:[%s2896 + $0x1c] sm:$0xf]
        %v2905 = vld [vmem:[%s2896 + $0x20] sm:$0xf]
        %v2906 = vld [vmem:[%s2896 + $0x24] sm:$0xf]
        %v2907 = vld [vmem:[%s2896 + $0x28] sm:$0xf]
        %v2908 = vld [vmem:[%s2896 + $0x2c] sm:$0xf]
        %v2909 = vld [vmem:[%s2896 + $0x30] sm:$0xf]
        %v2910 = vld [vmem:[%s2896 + $0x34] sm:$0xf]
        %v2911 = vld [vmem:[%s2896 + $0x38] sm:$0xf]
        %v2912 = vld [vmem:[%s2896 + $0x3c] sm:$0xf]
        %v2913 = vld [vmem:[%s2896 + $0x40] sm:$0xf]
        %v2914 = vld [vmem:[%s2896 + $0x44] sm:$0xf]
        %v2915 = vld [vmem:[%s2896 + $0x48] sm:$0xf]
        %v2916 = vld [vmem:[%s2896 + $0x4c] sm:$0xf]
        %v2917 = vld [vmem:[%s2896 + $0x50] sm:$0xf]
        %v2918 = vld [vmem:[%s2896 + $0x54] sm:$0xf]
        %v2919 = vld [vmem:[%s2896 + $0x58] sm:$0xf]
        %v2920 = vld [vmem:[%s2896 + $0x5c] sm:$0xf]
        %v2921 = vld [vmem:[%s2896 + $0x60] sm:$0xf]
        %v2922 = vld [vmem:[%s2896 + $0x64] sm:$0xf]
        %v2923 = vld [vmem:[%s2896 + $0x68] sm:$0xf]
        %v2924 = vld [vmem:[%s2896 + $0x6c] sm:$0xf]
        %v2925 = vld [vmem:[%s2896 + $0x70] sm:$0xf]
        %v2926 = vld [vmem:[%s2896 + $0x74] sm:$0xf]
        %v2927 = vld [vmem:[%s2896 + $0x78] sm:$0xf]
        %v2928 = vld [vmem:[%s2896 + $0x7c] sm:$0xf]
        %v2929 = vld [vmem:[%s2896 + $0x80] sm:$0xf]
        %v2930 = vld [vmem:[%s2896 + $0x84] sm:$0xf]
        %v2931 = vld [vmem:[%s2896 + $0x88] sm:$0xf]
        %v2932 = vld [vmem:[%s2896 + $0x8c] sm:$0xf]
        %v2933 = vld [vmem:[%s2896 + $0x90] sm:$0xf]
        %v2934 = vld [vmem:[%s2896 + $0x94] sm:$0xf]
        %v2935 = vld [vmem:[%s2896 + $0x98] sm:$0xf]
        %v2936 = vld [vmem:[%s2896 + $0x9c] sm:$0xf]
        %v2937 = vld [vmem:[%s2896 + $0xa0] sm:$0xf]
        %v2938 = vld [vmem:[%s2896 + $0xa4] sm:$0xf]
        %v2939 = vld [vmem:[%s2896 + $0xa8] sm:$0xf]
        %v2940 = vld [vmem:[%s2896 + $0xac] sm:$0xf]
        %v2941 = vld [vmem:[%s2896 + $0xb0] sm:$0xf]
        %v2942 = vld [vmem:[%s2896 + $0xb4] sm:$0xf]
        %v2943 = vld [vmem:[%s2896 + $0xb8] sm:$0xf]
        %v2944 = vld [vmem:[%s2896 + $0xbc] sm:$0xf]
        %s2945 = scalar_lea.vmem %s3, 5
        %v2946 = vld [vmem:[%s2945] sm:$0x1]
        %v2948 = vlaneseq
        %v2949 = vshrl.u32 %v2948, 7
        %v2950 = vsub.s32 0, %v2949
        %v2951 = vrot.slane %v2946, %v2950
        %v3001 = vunpack.c.l.b16 %v2897
        %v3002 = vunpack.c.l.b16 %v2898
        %v3003 = vunpack.c.l.b16 %v2899
        %v3004 = vunpack.c.l.b16 %v2900
        %v3005 = vunpack.c.l.b16 %v2901
        %v3006 = vunpack.c.l.b16 %v2902
        %v3007 = vunpack.c.l.b16 %v2903
        %v3008 = vunpack.c.l.b16 %v2904
        %v3009 = vunpack.c.l.b16 %v2905
        %v3010 = vunpack.c.l.b16 %v2906
        %v3011 = vunpack.c.l.b16 %v2907
        %v3012 = vunpack.c.l.b16 %v2908
        %v3013 = vunpack.c.l.b16 %v2909
        %v3014 = vunpack.c.l.b16 %v2910
        %v3015 = vunpack.c.l.b16 %v2911
        %v3016 = vunpack.c.l.b16 %v2912
        %v3017 = vunpack.c.l.b16 %v2913
        %v3018 = vunpack.c.l.b16 %v2914
        %v3019 = vunpack.c.l.b16 %v2915
        %v3020 = vunpack.c.l.b16 %v2916
        %v3021 = vunpack.c.l.b16 %v2917
        %v3022 = vunpack.c.l.b16 %v2918
        %v3023 = vunpack.c.l.b16 %v2919
        %v3024 = vunpack.c.l.b16 %v2920
        %v3025 = vunpack.c.l.b16 %v2921
        %v3026 = vunpack.c.l.b16 %v2922
        %v3027 = vunpack.c.l.b16 %v2923
        %v3028 = vunpack.c.l.b16 %v2924
        %v3029 = vunpack.c.l.b16 %v2925
        %v3030 = vunpack.c.l.b16 %v2926
        %v3031 = vunpack.c.l.b16 %v2927
        %v3032 = vunpack.c.l.b16 %v2928
        %v3033 = vunpack.c.l.b16 %v2929
        %v3034 = vunpack.c.l.b16 %v2930
        %v3035 = vunpack.c.l.b16 %v2931
        %v3036 = vunpack.c.l.b16 %v2932
        %v3037 = vunpack.c.l.b16 %v2933
        %v3038 = vunpack.c.l.b16 %v2934
        %v3039 = vunpack.c.l.b16 %v2935
        %v3040 = vunpack.c.l.b16 %v2936
        %v3041 = vunpack.c.l.b16 %v2937
        %v3042 = vunpack.c.l.b16 %v2938
        %v3043 = vunpack.c.l.b16 %v2939
        %v3044 = vunpack.c.l.b16 %v2940
        %v3045 = vunpack.c.l.b16 %v2941
        %v3046 = vunpack.c.l.b16 %v2942
        %v3047 = vunpack.c.l.b16 %v2943
        %v3048 = vunpack.c.l.b16 %v2944
        %v3049 = vpack.c.b16 %v3002, %v3001
        %v3050 = vpack.c.b16 %v3004, %v3003
        %v3051 = vpack.c.b16 %v3006, %v3005
        %v3052 = vpack.c.b16 %v3008, %v3007
        %v3053 = vpack.c.b16 %v3010, %v3009
        %v3054 = vpack.c.b16 %v3012, %v3011
        %v3055 = vpack.c.b16 %v3014, %v3013
        %v3056 = vpack.c.b16 %v3016, %v3015
        %v3057 = vpack.c.b16 %v3018, %v3017
        %v3058 = vpack.c.b16 %v3020, %v3019
        %v3059 = vpack.c.b16 %v3022, %v3021
        %v3060 = vpack.c.b16 %v3024, %v3023
        %v3061 = vpack.c.b16 %v3026, %v3025
        %v3062 = vpack.c.b16 %v3028, %v3027
        %v3063 = vpack.c.b16 %v3030, %v3029
        %v3064 = vpack.c.b16 %v3032, %v3031
        %v3065 = vpack.c.b16 %v3034, %v3033
        %v3066 = vpack.c.b16 %v3036, %v3035
        %v3067 = vpack.c.b16 %v3038, %v3037
        %v3068 = vpack.c.b16 %v3040, %v3039
        %v3069 = vpack.c.b16 %v3042, %v3041
        %v3070 = vpack.c.b16 %v3044, %v3043
        %v3071 = vpack.c.b16 %v3046, %v3045
        %v3072 = vpack.c.b16 %v3048, %v3047
        %3097 = vmatprep.subr.bf16.mxu0 0
        %3098 = vmatpush1.bf16.msra.mxu0 %v3049
        %3099 = vmatprep.subr.bf16.mxu0 0
        %3100 = vmatpush1.bf16.msra.mxu0 %v3050
        %3101 = vmatprep.subr.bf16.mxu0 0
        %3102 = vmatpush1.bf16.msra.mxu0 %v3051
        %3103 = vmatprep.subr.bf16.mxu0 0
        %3104 = vmatpush1.bf16.msra.mxu0 %v3052
        %3105 = vmatprep.subr.bf16.mxu0 0
        %3106 = vmatpush1.bf16.msra.mxu0 %v3053
        %3107 = vmatprep.subr.bf16.mxu0 0
        %3108 = vmatpush1.bf16.msra.mxu0 %v3054
        %3109 = vmatprep.subr.bf16.mxu0 0
        %3110 = vmatpush1.bf16.msra.mxu0 %v3055
        %3111 = vmatprep.subr.bf16.mxu0 0
        %3112 = vmatpush1.bf16.msra.mxu0 %v3056
        %3113 = vmatprep.subr.bf16.mxu0 0
        %3114 = vmatpush1.bf16.msra.mxu0 %v3057
        %3115 = vmatprep.subr.bf16.mxu0 0
        %3116 = vmatpush1.bf16.msra.mxu0 %v3058
        %3117 = vmatprep.subr.bf16.mxu0 0
        %3118 = vmatpush1.bf16.msra.mxu0 %v3059
        %3119 = vmatprep.subr.bf16.mxu0 0
        %3120 = vmatpush1.bf16.msra.mxu0 %v3060
        %3121 = vmatprep.subr.bf16.mxu0 0
        %3122 = vmatpush1.bf16.msra.mxu0 %v3061
        %3123 = vmatprep.subr.bf16.mxu0 0
        %3124 = vmatpush1.bf16.msra.mxu0 %v3062
        %3125 = vmatprep.subr.bf16.mxu0 0
        %3126 = vmatpush1.bf16.msra.mxu0 %v3063
        %3127 = vmatprep.subr.bf16.mxu0 0
        %3128 = vmatpush1.bf16.msra.mxu0 %v3064
        %3129 = vmatprep.mubr.bf16.mxu0 %v2888
        %3130 = vmatmul.mubr.bf16.gmra.mrb[0].mxu0 %v2860
        %v3131 = vpop.f32.mrb[0].mxu0
        %v3132 = vadd.f32 %v2951, %v3131
        %v3133 = vpop.f32.mrb[0].mxu0
        %v3134 = vpop.f32.mrb[0].mxu0
        %v3135 = vadd.f32 %v2951, %v3134
        %v3136 = vpop.f32.mrb[0].mxu0
        %3137 = vmatprep.mubr.bf16.mxu0 %v2889
        %3138 = vmatmul.mubr.bf16.gmra.mrb[0].mxu0 %v2861
        %v3139 = vpop.f32.mrb[0].mxu0
        %v3140 = vadd.f32 %v2951, %v3139
        %v3141 = vpop.f32.mrb[0].mxu0
        %v3142 = vpop.f32.mrb[0].mxu0
        %v3143 = vadd.f32 %v2951, %v3142
        %v3144 = vpop.f32.mrb[0].mxu0
        %3145 = vmatprep.mubr.bf16.mxu0 %v2890
        %3146 = vmatmul.mubr.bf16.gmra.mrb[0].mxu0 %v2862
        %v3147 = vpop.f32.mrb[0].mxu0
        %v3148 = vadd.f32 %v2951, %v3147
        %v3149 = vpop.f32.mrb[0].mxu0
        %v3150 = vpop.f32.mrb[0].mxu0
        %v3151 = vadd.f32 %v2951, %v3150
        %v3152 = vpop.f32.mrb[0].mxu0
        %3153 = vmatprep.mubr.bf16.mxu0 %v2891
        %3154 = vmatmul.mubr.bf16.gmra.mrb[0].mxu0 %v2863
        %v3155 = vpop.f32.mrb[0].mxu0
        %v3156 = vadd.f32 %v2951, %v3155
        %v3157 = vpop.f32.mrb[0].mxu0
        %v3158 = vpop.f32.mrb[0].mxu0
        %v3159 = vadd.f32 %v2951, %v3158
        %v3160 = vpop.f32.mrb[0].mxu0
        %3161 = vdwg.mxu0
        %3162 = vmatprep.subr.bf16.mxu0 0
        %3163 = vmatpush1.bf16.msra.mxu0 %v3065
        %3164 = vmatprep.subr.bf16.mxu0 0
        %3165 = vmatpush1.bf16.msra.mxu0 %v3066
        %3166 = vmatprep.subr.bf16.mxu0 0
        %3167 = vmatpush1.bf16.msra.mxu0 %v3067
        %3168 = vmatprep.subr.bf16.mxu0 0
        %3169 = vmatpush1.bf16.msra.mxu0 %v3068
        %3170 = vmatprep.subr.bf16.mxu0 0
        %3171 = vmatpush1.bf16.msra.mxu0 %v3069
        %3172 = vmatprep.subr.bf16.mxu0 0
        %3173 = vmatpush1.bf16.msra.mxu0 %v3070
        %3174 = vmatprep.subr.bf16.mxu0 0
        %3175 = vmatpush1.bf16.msra.mxu0 %v3071
        %3176 = vmatprep.subr.bf16.mxu0 0
        %3177 = vmatpush1.bf16.msra.mxu0 %v3072
        %3178 = vmatprep.subr.bf16.mxu0 0
        %3179 = vmatpush1.bf16.msra.mxu0 0
        %3180 = vmatprep.subr.bf16.mxu0 0
        %3181 = vmatpush1.bf16.msra.mxu0 0
        %3182 = vmatprep.subr.bf16.mxu0 0
        %3183 = vmatpush1.bf16.msra.mxu0 0
        %3184 = vmatprep.subr.bf16.mxu0 0
        %3185 = vmatpush1.bf16.msra.mxu0 0
        %3186 = vmatprep.subr.bf16.mxu0 0
        %3187 = vmatpush1.bf16.msra.mxu0 0
        %3188 = vmatprep.subr.bf16.mxu0 0
        %3189 = vmatpush1.bf16.msra.mxu0 0
        %3190 = vmatprep.subr.bf16.mxu0 0
        %3191 = vmatpush1.bf16.msra.mxu0 0
        %3192 = vmatprep.subr.bf16.mxu0 0
        %3193 = vmatpush1.bf16.msra.mxu0 0
        %3194 = vmatprep.mubr.bf16.mxu0 0
        %3195 = vmatmul.mubr.bf16.gmra.mrb[0].mxu0 %v2892
        %v3196 = vpop.f32.mrb[0].mxu0
        %v3197 = vadd.f32 %v3132, %v3196
        %v3198 = vpop.f32.mrb[0].mxu0
        %v3199 = vpop.f32.mrb[0].mxu0
        %v3200 = vadd.f32 %v3135, %v3199
        %v3201 = vpop.f32.mrb[0].mxu0
        %3202 = vmatprep.mubr.bf16.mxu0 0
        %3203 = vmatmul.mubr.bf16.gmra.mrb[0].mxu0 %v2893
        %v3204 = vpop.f32.mrb[0].mxu0
        %v3205 = vadd.f32 %v3140, %v3204
        %v3206 = vpop.f32.mrb[0].mxu0
        %v3207 = vpop.f32.mrb[0].mxu0
        %v3208 = vadd.f32 %v3143, %v3207
        %v3209 = vpop.f32.mrb[0].mxu0
        %3210 = vmatprep.mubr.bf16.mxu0 0
        %3211 = vmatmul.mubr.bf16.gmra.mrb[0].mxu0 %v2894
        %v3212 = vpop.f32.mrb[0].mxu0
        %v3213 = vadd.f32 %v3148, %v3212
        %v3214 = vpop.f32.mrb[0].mxu0
        %v3215 = vpop.f32.mrb[0].mxu0
        %v3216 = vadd.f32 %v3151, %v3215
        %v3217 = vpop.f32.mrb[0].mxu0
        %3218 = vmatprep.mubr.bf16.mxu0 0
        %3219 = vmatmul.mubr.bf16.gmra.mrb[0].mxu0 %v2895
        %v3220 = vpop.f32.mrb[0].mxu0
        %v3221 = vadd.f32 %v3156, %v3220
        %v3222 = vpop.f32.mrb[0].mxu0
        %v3223 = vpop.f32.mrb[0].mxu0
        %v3224 = vadd.f32 %v3159, %v3223
        %v3225 = vpop.f32.mrb[0].mxu0
        %3226 = vdwg.mxu0
        %v3227 = vmax.f32 %v3197, 0.0
        %v3228 = vmax.f32 %v3200, 0.0
        %v3229 = vmax.f32 %v3205, 0.0
        %v3230 = vmax.f32 %v3208, 0.0
        %v3231 = vmax.f32 %v3213, 0.0
        %v3232 = vmax.f32 %v3216, 0.0
        %v3233 = vmax.f32 %v3221, 0.0
        %v3234 = vmax.f32 %v3224, 0.0
        %v3235 = vadd.f32 %v3227, %v2437
        %v3236 = vadd.f32 %v3228, %v2438
        %v3237 = vadd.f32 %v3229, %v2439
        %v3238 = vadd.f32 %v3230, %v2440
        %v3239 = vadd.f32 %v3231, %v2441
        %v3240 = vadd.f32 %v3232, %v2442
        %v3241 = vadd.f32 %v3233, %v2443
        %v3242 = vadd.f32 %v3234, %v2444
        %v3243 = vmax.f32 %v3235, 0.0
        %v3244 = vmax.f32 %v3236, 0.0
        %v3245 = vmax.f32 %v3237, 0.0
        %v3246 = vmax.f32 %v3238, 0.0
        %v3247 = vmax.f32 %v3239, 0.0
        %v3248 = vmax.f32 %v3240, 0.0
        %v3249 = vmax.f32 %v3241, 0.0
        %v3250 = vmax.f32 %v3242, 0.0
        %v3251 = vsel %vm2461, %v3250, 0.0
        %v3252 = vsel %vm2462, %v3243, 0.0
        %v3253 = vsel %vm2463, %v3244, 0.0
        %v3254 = vsel %vm2464, %v3245, 0.0
        %v3255 = vsel %vm2465, %v3246, 0.0
        %v3256 = vsel %vm2466, %v3247, 0.0
        %v3257 = vsel %vm2467, %v3248, 0.0
        %v3258 = vsel %vm2468, %v3249, 0.0
        %v3259 = vpack.c.bf16 %v3252, %v3251
        %v3260 = vpack.c.bf16 %v3254, %v3253
        %v3261 = vpack.c.bf16 %v3256, %v3255
        %v3262 = vpack.c.bf16 %v3258, %v3257
        %v3263 = vpack.c.bf16 %v3244, %v3243
        %v3264 = vpack.c.bf16 %v3246, %v3245
        %v3265 = vpack.c.bf16 %v3248, %v3247
        %v3266 = vpack.c.bf16 %v3250, %v3249
        %s3267 = scalar_lea.vmem [#allocation7], 1152
        %v3268 = vld [vmem:[%s3267 + $0x40] sm:$0xf]
        %v3269 = vld [vmem:[%s3267 + $0x44] sm:$0xf]
        %v3270 = vld [vmem:[%s3267 + $0x48] sm:$0xf]
        %v3271 = vld [vmem:[%s3267 + $0x4c] sm:$0xf]
        %v3272 = vld [vmem:[%s3267 + $0x50] sm:$0xf]
        %v3273 = vld [vmem:[%s3267 + $0x54] sm:$0xf]
        %v3274 = vld [vmem:[%s3267 + $0x58] sm:$0xf]
        %v3275 = vld [vmem:[%s3267 + $0x5c] sm:$0xf]
        %v3276 = vld [vmem:[%s3267 + $0x60] sm:$0xf]
        %v3277 = vld [vmem:[%s3267 + $0x64] sm:$0xf]
        %v3278 = vld [vmem:[%s3267 + $0x68] sm:$0xf]
        %v3279 = vld [vmem:[%s3267 + $0x6c] sm:$0xf]
        %v3280 = vld [vmem:[%s3267 + $0x70] sm:$0xf]
        %v3281 = vld [vmem:[%s3267 + $0x74] sm:$0xf]
        %v3282 = vld [vmem:[%s3267 + $0x78] sm:$0xf]
        %v3283 = vld [vmem:[%s3267 + $0x7c] sm:$0xf]
        %v3284 = vld [vmem:[%s3267 + $0x80] sm:$0xf]
        %v3285 = vld [vmem:[%s3267 + $0x84] sm:$0xf]
        %v3286 = vld [vmem:[%s3267 + $0x88] sm:$0xf]
        %v3287 = vld [vmem:[%s3267 + $0x8c] sm:$0xf]
        %v3288 = vld [vmem:[%s3267 + $0x90] sm:$0xf]
        %v3289 = vld [vmem:[%s3267 + $0x94] sm:$0xf]
        %v3290 = vld [vmem:[%s3267 + $0x98] sm:$0xf]
        %v3291 = vld [vmem:[%s3267 + $0x9c] sm:$0xf]
        %v3292 = vld [vmem:[%s3267 + $0xa0] sm:$0xf]
        %v3293 = vld [vmem:[%s3267 + $0xa4] sm:$0xf]
        %v3294 = vld [vmem:[%s3267 + $0xa8] sm:$0xf]
        %v3295 = vld [vmem:[%s3267 + $0xac] sm:$0xf]
        %v3296 = vld [vmem:[%s3267 + $0xb0] sm:$0xf]
        %v3297 = vld [vmem:[%s3267 + $0xb4] sm:$0xf]
        %v3298 = vld [vmem:[%s3267 + $0xb8] sm:$0xf]
        %v3299 = vld [vmem:[%s3267 + $0xbc] sm:$0xf]
        %s3300 = scalar_lea.vmem %s3, 6
        %v3301 = vld [vmem:[%s3300] sm:$0x1]
        %v3303 = vlaneseq
        %v3304 = vshrl.u32 %v3303, 7
        %v3305 = vsub.s32 0, %v3304
        %v3306 = vrot.slane %v3301, %v3305
        %v3340 = vunpack.c.l.b16 %v3268
        %v3341 = vunpack.c.l.b16 %v3269
        %v3342 = vunpack.c.l.b16 %v3270
        %v3343 = vunpack.c.l.b16 %v3271
        %v3344 = vunpack.c.l.b16 %v3272
        %v3345 = vunpack.c.l.b16 %v3273
        %v3346 = vunpack.c.l.b16 %v3274
        %v3347 = vunpack.c.l.b16 %v3275
        %v3348 = vunpack.c.l.b16 %v3276
        %v3349 = vunpack.c.l.b16 %v3277
        %v3350 = vunpack.c.l.b16 %v3278
        %v3351 = vunpack.c.l.b16 %v3279
        %v3352 = vunpack.c.l.b16 %v3280
        %v3353 = vunpack.c.l.b16 %v3281
        %v3354 = vunpack.c.l.b16 %v3282
        %v3355 = vunpack.c.l.b16 %v3283
        %v3356 = vunpack.c.l.b16 %v3284
        %v3357 = vunpack.c.l.b16 %v3285
        %v3358 = vunpack.c.l.b16 %v3286
        %v3359 = vunpack.c.l.b16 %v3287
        %v3360 = vunpack.c.l.b16 %v3288
        %v3361 = vunpack.c.l.b16 %v3289
        %v3362 = vunpack.c.l.b16 %v3290
        %v3363 = vunpack.c.l.b16 %v3291
        %v3364 = vunpack.c.l.b16 %v3292
        %v3365 = vunpack.c.l.b16 %v3293
        %v3366 = vunpack.c.l.b16 %v3294
        %v3367 = vunpack.c.l.b16 %v3295
        %v3368 = vunpack.c.l.b16 %v3296
        %v3369 = vunpack.c.l.b16 %v3297
        %v3370 = vunpack.c.l.b16 %v3298
        %v3371 = vunpack.c.l.b16 %v3299
        %v3372 = vpack.c.b16 %v3341, %v3340
        %v3373 = vpack.c.b16 %v3343, %v3342
        %v3374 = vpack.c.b16 %v3345, %v3344
        %v3375 = vpack.c.b16 %v3347, %v3346
        %v3376 = vpack.c.b16 %v3349, %v3348
        %v3377 = vpack.c.b16 %v3351, %v3350
        %v3378 = vpack.c.b16 %v3353, %v3352
        %v3379 = vpack.c.b16 %v3355, %v3354
        %v3380 = vpack.c.b16 %v3357, %v3356
        %v3381 = vpack.c.b16 %v3359, %v3358
        %v3382 = vpack.c.b16 %v3361, %v3360
        %v3383 = vpack.c.b16 %v3363, %v3362
        %v3384 = vpack.c.b16 %v3365, %v3364
        %v3385 = vpack.c.b16 %v3367, %v3366
        %v3386 = vpack.c.b16 %v3369, %v3368
        %v3387 = vpack.c.b16 %v3371, %v3370
        %3404 = vmatprep.subr.bf16.mxu0 0
        %3405 = vmatpush1.bf16.msra.mxu0 %v3372
        %3406 = vmatprep.subr.bf16.mxu0 0
        %3407 = vmatpush1.bf16.msra.mxu0 %v3373
        %3408 = vmatprep.subr.bf16.mxu0 0
        %3409 = vmatpush1.bf16.msra.mxu0 %v3374
        %3410 = vmatprep.subr.bf16.mxu0 0
        %3411 = vmatpush1.bf16.msra.mxu0 %v3375
        %3412 = vmatprep.subr.bf16.mxu0 0
        %3413 = vmatpush1.bf16.msra.mxu0 %v3376
        %3414 = vmatprep.subr.bf16.mxu0 0
        %3415 = vmatpush1.bf16.msra.mxu0 %v3377
        %3416 = vmatprep.subr.bf16.mxu0 0
        %3417 = vmatpush1.bf16.msra.mxu0 %v3378
        %3418 = vmatprep.subr.bf16.mxu0 0
        %3419 = vmatpush1.bf16.msra.mxu0 %v3379
        %3420 = vmatprep.subr.bf16.mxu0 0
        %3421 = vmatpush1.bf16.msra.mxu0 %v3380
        %3422 = vmatprep.subr.bf16.mxu0 0
        %3423 = vmatpush1.bf16.msra.mxu0 %v3381
        %3424 = vmatprep.subr.bf16.mxu0 0
        %3425 = vmatpush1.bf16.msra.mxu0 %v3382
        %3426 = vmatprep.subr.bf16.mxu0 0
        %3427 = vmatpush1.bf16.msra.mxu0 %v3383
        %3428 = vmatprep.subr.bf16.mxu0 0
        %3429 = vmatpush1.bf16.msra.mxu0 %v3384
        %3430 = vmatprep.subr.bf16.mxu0 0
        %3431 = vmatpush1.bf16.msra.mxu0 %v3385
        %3432 = vmatprep.subr.bf16.mxu0 0
        %3433 = vmatpush1.bf16.msra.mxu0 %v3386
        %3434 = vmatprep.subr.bf16.mxu0 0
        %3435 = vmatpush1.bf16.msra.mxu0 %v3387
        %3436 = vmatprep.mubr.bf16.mxu0 %v3263
        %3437 = vmatmul.mubr.bf16.gmra.mrb[0].mxu0 %v3259
        %v3438 = vpop.f32.mrb[0].mxu0
        %v3439 = vadd.f32 %v3306, %v3438
        %v3440 = vpop.f32.mrb[0].mxu0
        %v3441 = vpop.f32.mrb[0].mxu0
        %v3442 = vadd.f32 %v3306, %v3441
        %v3443 = vpop.f32.mrb[0].mxu0
        %3444 = vmatprep.mubr.bf16.mxu0 %v3264
        %3445 = vmatmul.mubr.bf16.gmra.mrb[0].mxu0 %v3260
        %v3446 = vpop.f32.mrb[0].mxu0
        %v3447 = vadd.f32 %v3306, %v3446
        %v3448 = vpop.f32.mrb[0].mxu0
        %v3449 = vpop.f32.mrb[0].mxu0
        %v3450 = vadd.f32 %v3306, %v3449
        %v3451 = vpop.f32.mrb[0].mxu0
        %3452 = vmatprep.mubr.bf16.mxu0 %v3265
        %3453 = vmatmul.mubr.bf16.gmra.mrb[0].mxu0 %v3261
        %v3454 = vpop.f32.mrb[0].mxu0
        %v3455 = vadd.f32 %v3306, %v3454
        %v3456 = vpop.f32.mrb[0].mxu0
        %v3457 = vpop.f32.mrb[0].mxu0
        %v3458 = vadd.f32 %v3306, %v3457
        %v3459 = vpop.f32.mrb[0].mxu0
        %3460 = vmatprep.mubr.bf16.mxu0 %v3266
        %3461 = vmatmul.mubr.bf16.gmra.mrb[0].mxu0 %v3262
        %v3462 = vpop.f32.mrb[0].mxu0
        %v3463 = vadd.f32 %v3306, %v3462
        %v3464 = vpop.f32.mrb[0].mxu0
        %v3465 = vpop.f32.mrb[0].mxu0
        %v3466 = vadd.f32 %v3306, %v3465
        %v3467 = vpop.f32.mrb[0].mxu0
        %3468 = vdwg.mxu0
        %v3469 = vmax.f32 %v3439, 0.0
        %v3470 = vmax.f32 %v3442, 0.0
        %v3471 = vmax.f32 %v3447, 0.0
        %v3472 = vmax.f32 %v3450, 0.0
        %v3473 = vmax.f32 %v3455, 0.0
        %v3474 = vmax.f32 %v3458, 0.0
        %v3475 = vmax.f32 %v3463, 0.0
        %v3476 = vmax.f32 %v3466, 0.0
        %v3477 = vsel %vm2461, %v3476, 0.0
        %v3478 = vsel %vm2462, %v3469, 0.0
        %v3479 = vsel %vm2463, %v3470, 0.0
        %v3480 = vsel %vm2464, %v3471, 0.0
        %v3481 = vsel %vm2465, %v3472, 0.0
        %v3482 = vsel %vm2466, %v3473, 0.0
        %v3483 = vsel %vm2467, %v3474, 0.0
        %v3484 = vsel %vm2468, %v3475, 0.0
        %v3485 = vpack.c.bf16 %v3478, %v3477
        %v3486 = vpack.c.bf16 %v3480, %v3479
        %v3487 = vpack.c.bf16 %v3482, %v3481
        %v3488 = vpack.c.bf16 %v3484, %v3483
        %v3489 = vpack.c.bf16 %v3470, %v3469
        %v3490 = vpack.c.bf16 %v3472, %v3471
        %v3491 = vpack.c.bf16 %v3474, %v3473
        %v3492 = vpack.c.bf16 %v3476, %v3475
        %s3493 = scalar_lea.vmem [#allocation7], 1344
        %v3494 = vld [vmem:[%s3493 + $0x40] sm:$0xf]
        %v3495 = vld [vmem:[%s3493 + $0x44] sm:$0xf]
        %v3496 = vld [vmem:[%s3493 + $0x48] sm:$0xf]
        %v3497 = vld [vmem:[%s3493 + $0x4c] sm:$0xf]
        %v3498 = vld [vmem:[%s3493 + $0x50] sm:$0xf]
        %v3499 = vld [vmem:[%s3493 + $0x54] sm:$0xf]
        %v3500 = vld [vmem:[%s3493 + $0x58] sm:$0xf]
        %v3501 = vld [vmem:[%s3493 + $0x5c] sm:$0xf]
        %v3502 = vld [vmem:[%s3493 + $0x60] sm:$0xf]
        %v3503 = vld [vmem:[%s3493 + $0x64] sm:$0xf]
        %v3504 = vld [vmem:[%s3493 + $0x68] sm:$0xf]
        %v3505 = vld [vmem:[%s3493 + $0x6c] sm:$0xf]
        %v3506 = vld [vmem:[%s3493 + $0x70] sm:$0xf]
        %v3507 = vld [vmem:[%s3493 + $0x74] sm:$0xf]
        %v3508 = vld [vmem:[%s3493 + $0x78] sm:$0xf]
        %v3509 = vld [vmem:[%s3493 + $0x7c] sm:$0xf]
        %v3510 = vld [vmem:[%s3493 + $0x80] sm:$0xf]
        %v3511 = vld [vmem:[%s3493 + $0x84] sm:$0xf]
        %v3512 = vld [vmem:[%s3493 + $0x88] sm:$0xf]
        %v3513 = vld [vmem:[%s3493 + $0x8c] sm:$0xf]
        %v3514 = vld [vmem:[%s3493 + $0x90] sm:$0xf]
        %v3515 = vld [vmem:[%s3493 + $0x94] sm:$0xf]
        %v3516 = vld [vmem:[%s3493 + $0x98] sm:$0xf]
        %v3517 = vld [vmem:[%s3493 + $0x9c] sm:$0xf]
        %v3518 = vld [vmem:[%s3493 + $0xa0] sm:$0xf]
        %v3519 = vld [vmem:[%s3493 + $0xa4] sm:$0xf]
        %v3520 = vld [vmem:[%s3493 + $0xa8] sm:$0xf]
        %v3521 = vld [vmem:[%s3493 + $0xac] sm:$0xf]
        %v3522 = vld [vmem:[%s3493 + $0xb0] sm:$0xf]
        %v3523 = vld [vmem:[%s3493 + $0xb4] sm:$0xf]
        %v3524 = vld [vmem:[%s3493 + $0xb8] sm:$0xf]
        %v3525 = vld [vmem:[%s3493 + $0xbc] sm:$0xf]
        %s3526 = scalar_lea.vmem %s3, 7
        %v3527 = vld [vmem:[%s3526] sm:$0x1]
        %v3529 = vlaneseq
        %v3530 = vshrl.u32 %v3529, 7
        %v3531 = vsub.s32 0, %v3530
        %v3532 = vrot.slane %v3527, %v3531
        %v3566 = vunpack.c.l.b16 %v3494
        %v3567 = vunpack.c.l.b16 %v3495
        %v3568 = vunpack.c.l.b16 %v3496
        %v3569 = vunpack.c.l.b16 %v3497
        %v3570 = vunpack.c.l.b16 %v3498
        %v3571 = vunpack.c.l.b16 %v3499
        %v3572 = vunpack.c.l.b16 %v3500
        %v3573 = vunpack.c.l.b16 %v3501
        %v3574 = vunpack.c.l.b16 %v3502
        %v3575 = vunpack.c.l.b16 %v3503
        %v3576 = vunpack.c.l.b16 %v3504
        %v3577 = vunpack.c.l.b16 %v3505
        %v3578 = vunpack.c.l.b16 %v3506
        %v3579 = vunpack.c.l.b16 %v3507
        %v3580 = vunpack.c.l.b16 %v3508
        %v3581 = vunpack.c.l.b16 %v3509
        %v3582 = vunpack.c.l.b16 %v3510
        %v3583 = vunpack.c.l.b16 %v3511
        %v3584 = vunpack.c.l.b16 %v3512
        %v3585 = vunpack.c.l.b16 %v3513
        %v3586 = vunpack.c.l.b16 %v3514
        %v3587 = vunpack.c.l.b16 %v3515
        %v3588 = vunpack.c.l.b16 %v3516
        %v3589 = vunpack.c.l.b16 %v3517
        %v3590 = vunpack.c.l.b16 %v3518
        %v3591 = vunpack.c.l.b16 %v3519
        %v3592 = vunpack.c.l.b16 %v3520
        %v3593 = vunpack.c.l.b16 %v3521
        %v3594 = vunpack.c.l.b16 %v3522
        %v3595 = vunpack.c.l.b16 %v3523
        %v3596 = vunpack.c.l.b16 %v3524
        %v3597 = vunpack.c.l.b16 %v3525
        %v3598 = vpack.c.b16 %v3567, %v3566
        %v3599 = vpack.c.b16 %v3569, %v3568
        %v3600 = vpack.c.b16 %v3571, %v3570
        %v3601 = vpack.c.b16 %v3573, %v3572
        %v3602 = vpack.c.b16 %v3575, %v3574
        %v3603 = vpack.c.b16 %v3577, %v3576
        %v3604 = vpack.c.b16 %v3579, %v3578
        %v3605 = vpack.c.b16 %v3581, %v3580
        %v3606 = vpack.c.b16 %v3583, %v3582
        %v3607 = vpack.c.b16 %v3585, %v3584
        %v3608 = vpack.c.b16 %v3587, %v3586
        %v3609 = vpack.c.b16 %v3589, %v3588
        %v3610 = vpack.c.b16 %v3591, %v3590
        %v3611 = vpack.c.b16 %v3593, %v3592
        %v3612 = vpack.c.b16 %v3595, %v3594
        %v3613 = vpack.c.b16 %v3597, %v3596
        %3630 = vmatprep.subr.bf16.mxu0 0
        %3631 = vmatpush1.bf16.msra.mxu0 %v3598
        %3632 = vmatprep.subr.bf16.mxu0 0
        %3633 = vmatpush1.bf16.msra.mxu0 %v3599
        %3634 = vmatprep.subr.bf16.mxu0 0
        %3635 = vmatpush1.bf16.msra.mxu0 %v3600
        %3636 = vmatprep.subr.bf16.mxu0 0
        %3637 = vmatpush1.bf16.msra.mxu0 %v3601
        %3638 = vmatprep.subr.bf16.mxu0 0
        %3639 = vmatpush1.bf16.msra.mxu0 %v3602
        %3640 = vmatprep.subr.bf16.mxu0 0
        %3641 = vmatpush1.bf16.msra.mxu0 %v3603
        %3642 = vmatprep.subr.bf16.mxu0 0
        %3643 = vmatpush1.bf16.msra.mxu0 %v3604
        %3644 = vmatprep.subr.bf16.mxu0 0
        %3645 = vmatpush1.bf16.msra.mxu0 %v3605
        %3646 = vmatprep.subr.bf16.mxu0 0
        %3647 = vmatpush1.bf16.msra.mxu0 %v3606
        %3648 = vmatprep.subr.bf16.mxu0 0
        %3649 = vmatpush1.bf16.msra.mxu0 %v3607
        %3650 = vmatprep.subr.bf16.mxu0 0
        %3651 = vmatpush1.bf16.msra.mxu0 %v3608
        %3652 = vmatprep.subr.bf16.mxu0 0
        %3653 = vmatpush1.bf16.msra.mxu0 %v3609
        %3654 = vmatprep.subr.bf16.mxu0 0
        %3655 = vmatpush1.bf16.msra.mxu0 %v3610
        %3656 = vmatprep.subr.bf16.mxu0 0
        %3657 = vmatpush1.bf16.msra.mxu0 %v3611
        %3658 = vmatprep.subr.bf16.mxu0 0
        %3659 = vmatpush1.bf16.msra.mxu0 %v3612
        %3660 = vmatprep.subr.bf16.mxu0 0
        %3661 = vmatpush1.bf16.msra.mxu0 %v3613
        %3662 = vmatprep.mubr.bf16.mxu0 %v3489
        %3663 = vmatmul.mubr.bf16.gmra.mrb[0].mxu0 %v3485
        %v3664 = vpop.f32.mrb[0].mxu0
        %v3665 = vadd.f32 %v3532, %v3664
        %v3666 = vpop.f32.mrb[0].mxu0
        %v3667 = vpop.f32.mrb[0].mxu0
        %v3668 = vadd.f32 %v3532, %v3667
        %v3669 = vpop.f32.mrb[0].mxu0
        %3670 = vmatprep.mubr.bf16.mxu0 %v3490
        %3671 = vmatmul.mubr.bf16.gmra.mrb[0].mxu0 %v3486
        %v3672 = vpop.f32.mrb[0].mxu0
        %v3673 = vadd.f32 %v3532, %v3672
        %v3674 = vpop.f32.mrb[0].mxu0
        %v3675 = vpop.f32.mrb[0].mxu0
        %v3676 = vadd.f32 %v3532, %v3675
        %v3677 = vpop.f32.mrb[0].mxu0
        %3678 = vmatprep.mubr.bf16.mxu0 %v3491
        %3679 = vmatmul.mubr.bf16.gmra.mrb[0].mxu0 %v3487
        %v3680 = vpop.f32.mrb[0].mxu0
        %v3681 = vadd.f32 %v3532, %v3680
        %v3682 = vpop.f32.mrb[0].mxu0
        %v3683 = vpop.f32.mrb[0].mxu0
        %v3684 = vadd.f32 %v3532, %v3683
        %v3685 = vpop.f32.mrb[0].mxu0
        %3686 = vmatprep.mubr.bf16.mxu0 %v3492
        %3687 = vmatmul.mubr.bf16.gmra.mrb[0].mxu0 %v3488
        %v3688 = vpop.f32.mrb[0].mxu0
        %v3689 = vadd.f32 %v3532, %v3688
        %v3690 = vpop.f32.mrb[0].mxu0
        %v3691 = vpop.f32.mrb[0].mxu0
        %v3692 = vadd.f32 %v3532, %v3691
        %v3693 = vpop.f32.mrb[0].mxu0
        %3694 = vdwg.mxu0
        %v3695 = vmax.f32 %v3665, 0.0
        %v3696 = vmax.f32 %v3668, 0.0
        %v3697 = vmax.f32 %v3673, 0.0
        %v3698 = vmax.f32 %v3676, 0.0
        %v3699 = vmax.f32 %v3681, 0.0
        %v3700 = vmax.f32 %v3684, 0.0
        %v3701 = vmax.f32 %v3689, 0.0
        %v3702 = vmax.f32 %v3692, 0.0
        %v3703 = vadd.f32 %v3695, %v3243
        %v3704 = vadd.f32 %v3696, %v3244
        %v3705 = vadd.f32 %v3697, %v3245
        %v3706 = vadd.f32 %v3698, %v3246
        %v3707 = vadd.f32 %v3699, %v3247
        %v3708 = vadd.f32 %v3700, %v3248
        %v3709 = vadd.f32 %v3701, %v3249
        %v3710 = vadd.f32 %v3702, %v3250
        %v3711 = vmax.f32 %v3703, 0.0
        %v3712 = vmax.f32 %v3704, 0.0
        %v3713 = vmax.f32 %v3705, 0.0
        %v3714 = vmax.f32 %v3706, 0.0
        %v3715 = vmax.f32 %v3707, 0.0
        %v3716 = vmax.f32 %v3708, 0.0
        %v3717 = vmax.f32 %v3709, 0.0
        %v3718 = vmax.f32 %v3710, 0.0
        %v3719 = vpack.c.bf16 %v3712, %v3711
        %v3720 = vpack.c.bf16 %v3714, %v3713
        %v3721 = vpack.c.bf16 %v3716, %v3715
        %v3722 = vpack.c.bf16 %v3718, %v3717
        %s3723 = scalar_lea.vmem [#allocation7], 1536
        %v3724 = vld [vmem:[%s3723 + $0x80] sm:$0xf]
        %v3725 = vld [vmem:[%s3723 + $0x84] sm:$0xf]
        %v3726 = vld [vmem:[%s3723 + $0x88] sm:$0xf]
        %v3727 = vld [vmem:[%s3723 + $0x8c] sm:$0xf]
        %v3728 = vld [vmem:[%s3723 + $0x90] sm:$0xf]
        %v3729 = vld [vmem:[%s3723 + $0x94] sm:$0xf]
        %v3730 = vld [vmem:[%s3723 + $0x98] sm:$0xf]
        %v3731 = vld [vmem:[%s3723 + $0x9c] sm:$0xf]
        %v3732 = vld [vmem:[%s3723 + $0xa0] sm:$0xf]
        %v3733 = vld [vmem:[%s3723 + $0xa4] sm:$0xf]
        %v3734 = vld [vmem:[%s3723 + $0xa8] sm:$0xf]
        %v3735 = vld [vmem:[%s3723 + $0xac] sm:$0xf]
        %v3736 = vld [vmem:[%s3723 + $0xb0] sm:$0xf]
        %v3737 = vld [vmem:[%s3723 + $0xb4] sm:$0xf]
        %v3738 = vld [vmem:[%s3723 + $0xb8] sm:$0xf]
        %v3739 = vld [vmem:[%s3723 + $0xbc] sm:$0xf]
        %s3740 = scalar_lea.vmem %s3, 8
        %v3741 = vld [vmem:[%s3740] sm:$0x1]
        %v3743 = vlaneseq
        %v3744 = vshrl.u32 %v3743, 7
        %v3745 = vsub.s32 0, %v3744
        %v3746 = vrot.slane %v3741, %v3745
        %v3764 = vunpack.c.l.b16 %v3724
        %v3765 = vunpack.c.l.b16 %v3725
        %v3766 = vunpack.c.l.b16 %v3726
        %v3767 = vunpack.c.l.b16 %v3727
        %v3768 = vunpack.c.l.b16 %v3728
        %v3769 = vunpack.c.l.b16 %v3729
        %v3770 = vunpack.c.l.b16 %v3730
        %v3771 = vunpack.c.l.b16 %v3731
        %v3772 = vunpack.c.l.b16 %v3732
        %v3773 = vunpack.c.l.b16 %v3733
        %v3774 = vunpack.c.l.b16 %v3734
        %v3775 = vunpack.c.l.b16 %v3735
        %v3776 = vunpack.c.l.b16 %v3736
        %v3777 = vunpack.c.l.b16 %v3737
        %v3778 = vunpack.c.l.b16 %v3738
        %v3779 = vunpack.c.l.b16 %v3739
        %v3780 = vpack.c.b16 %v3765, %v3764
        %v3781 = vpack.c.b16 %v3767, %v3766
        %v3782 = vpack.c.b16 %v3769, %v3768
        %v3783 = vpack.c.b16 %v3771, %v3770
        %v3784 = vpack.c.b16 %v3773, %v3772
        %v3785 = vpack.c.b16 %v3775, %v3774
        %v3786 = vpack.c.b16 %v3777, %v3776
        %v3787 = vpack.c.b16 %v3779, %v3778
        %3796 = vmatprep.subr.bf16.mxu0 0
        %3797 = vmatpush1.bf16.msra.mxu0 %v3780
        %3798 = vmatprep.subr.bf16.mxu0 0
        %3799 = vmatpush1.bf16.msra.mxu0 %v3781
        %3800 = vmatprep.subr.bf16.mxu0 0
        %3801 = vmatpush1.bf16.msra.mxu0 %v3782
        %3802 = vmatprep.subr.bf16.mxu0 0
        %3803 = vmatpush1.bf16.msra.mxu0 %v3783
        %3804 = vmatprep.subr.bf16.mxu0 0
        %3805 = vmatpush1.bf16.msra.mxu0 %v3784
        %3806 = vmatprep.subr.bf16.mxu0 0
        %3807 = vmatpush1.bf16.msra.mxu0 %v3785
        %3808 = vmatprep.subr.bf16.mxu0 0
        %3809 = vmatpush1.bf16.msra.mxu0 %v3786
        %3810 = vmatprep.subr.bf16.mxu0 0
        %3811 = vmatpush1.bf16.msra.mxu0 %v3787
        %3812 = vmatprep.subr.bf16.mxu0 0
        %3813 = vmatpush1.bf16.msra.mxu0 0
        %3814 = vmatprep.subr.bf16.mxu0 0
        %3815 = vmatpush1.bf16.msra.mxu0 0
        %3816 = vmatprep.subr.bf16.mxu0 0
        %3817 = vmatpush1.bf16.msra.mxu0 0
        %3818 = vmatprep.subr.bf16.mxu0 0
        %3819 = vmatpush1.bf16.msra.mxu0 0
        %3820 = vmatprep.subr.bf16.mxu0 0
        %3821 = vmatpush1.bf16.msra.mxu0 0
        %3822 = vmatprep.subr.bf16.mxu0 0
        %3823 = vmatpush1.bf16.msra.mxu0 0
        %3824 = vmatprep.subr.bf16.mxu0 0
        %3825 = vmatpush1.bf16.msra.mxu0 0
        %3826 = vmatprep.subr.bf16.mxu0 0
        %3827 = vmatpush1.bf16.msra.mxu0 0
        %3828 = vmatprep.mubr.bf16.mxu0 0
        %3829 = vmatmul.mubr.bf16.gmra.mrb[0].mxu0 %v3719
        %v3830 = vpop.f32.mrb[0].mxu0
        %v3831 = vadd.f32 %v3746, %v3830
        %v3832 = vpop.f32.mrb[0].mxu0
        %v3833 = vpop.f32.mrb[0].mxu0
        %v3834 = vadd.f32 %v3746, %v3833
        %v3835 = vpop.f32.mrb[0].mxu0
        %3836 = vmatprep.mubr.bf16.mxu0 0
        %3837 = vmatmul.mubr.bf16.gmra.mrb[0].mxu0 %v3720
        %v3838 = vpop.f32.mrb[0].mxu0
        %v3839 = vadd.f32 %v3746, %v3838
        %v3840 = vpop.f32.mrb[0].mxu0
        %v3841 = vpop.f32.mrb[0].mxu0
        %v3842 = vadd.f32 %v3746, %v3841
        %v3843 = vpop.f32.mrb[0].mxu0
        %3844 = vmatprep.mubr.bf16.mxu0 0
        %3845 = vmatmul.mubr.bf16.gmra.mrb[0].mxu0 %v3721
        %v3846 = vpop.f32.mrb[0].mxu0
        %v3847 = vadd.f32 %v3746, %v3846
        %v3848 = vpop.f32.mrb[0].mxu0
        %v3849 = vpop.f32.mrb[0].mxu0
        %v3850 = vadd.f32 %v3746, %v3849
        %v3851 = vpop.f32.mrb[0].mxu0
        %3852 = vmatprep.mubr.bf16.mxu0 0
        %3853 = vmatmul.mubr.bf16.gmra.mrb[0].mxu0 %v3722
        %v3854 = vpop.f32.mrb[0].mxu0
        %v3855 = vadd.f32 %v3746, %v3854
        %v3856 = vpop.f32.mrb[0].mxu0
        %v3857 = vpop.f32.mrb[0].mxu0
        %v3858 = vadd.f32 %v3746, %v3857
        %v3859 = vpop.f32.mrb[0].mxu0
        %3860 = vdwg.mxu0
        %v3861 = vmax.f32 %v3831, 0.0
        %v3862 = vmax.f32 %v3834, 0.0
        %v3863 = vmax.f32 %v3839, 0.0
        %v3864 = vmax.f32 %v3842, 0.0
        %v3865 = vmax.f32 %v3847, 0.0
        %v3866 = vmax.f32 %v3850, 0.0
        %v3867 = vmax.f32 %v3855, 0.0
        %v3868 = vmax.f32 %v3858, 0.0
        %v3869 = vpack.c.bf16 %v3862, %v3861
        %v3870 = vpack.c.bf16 %v3864, %v3863
        %v3871 = vpack.c.bf16 %v3866, %v3865
        %v3872 = vpack.c.bf16 %v3868, %v3867
        %s3873 = scalar_lea.vmem [#allocation7], 1728
        %v3874 = vld [vmem:[%s3873 + $0x80] sm:$0xf]
        %v3875 = vld [vmem:[%s3873 + $0x84] sm:$0xf]
        %v3876 = vld [vmem:[%s3873 + $0x88] sm:$0xf]
        %v3877 = vld [vmem:[%s3873 + $0x8c] sm:$0xf]
        %v3878 = vld [vmem:[%s3873 + $0x90] sm:$0xf]
        %v3879 = vld [vmem:[%s3873 + $0x94] sm:$0xf]
        %v3880 = vld [vmem:[%s3873 + $0x98] sm:$0xf]
        %v3881 = vld [vmem:[%s3873 + $0x9c] sm:$0xf]
        %v3882 = vld [vmem:[%s3873 + $0xa0] sm:$0xf]
        %v3883 = vld [vmem:[%s3873 + $0xa4] sm:$0xf]
        %v3884 = vld [vmem:[%s3873 + $0xa8] sm:$0xf]
        %v3885 = vld [vmem:[%s3873 + $0xac] sm:$0xf]
        %v3886 = vld [vmem:[%s3873 + $0xb0] sm:$0xf]
        %v3887 = vld [vmem:[%s3873 + $0xb4] sm:$0xf]
        %v3888 = vld [vmem:[%s3873 + $0xb8] sm:$0xf]
        %v3889 = vld [vmem:[%s3873 + $0xbc] sm:$0xf]
        %s3890 = scalar_lea.vmem %s3, 9
        %v3891 = vld [vmem:[%s3890] sm:$0x1]
        %v3893 = vlaneseq
        %v3894 = vshrl.u32 %v3893, 7
        %v3895 = vsub.s32 0, %v3894
        %v3896 = vrot.slane %v3891, %v3895
        %v3914 = vunpack.c.l.b16 %v3874
        %v3915 = vunpack.c.l.b16 %v3875
        %v3916 = vunpack.c.l.b16 %v3876
        %v3917 = vunpack.c.l.b16 %v3877
        %v3918 = vunpack.c.l.b16 %v3878
        %v3919 = vunpack.c.l.b16 %v3879
        %v3920 = vunpack.c.l.b16 %v3880
        %v3921 = vunpack.c.l.b16 %v3881
        %v3922 = vunpack.c.l.b16 %v3882
        %v3923 = vunpack.c.l.b16 %v3883
        %v3924 = vunpack.c.l.b16 %v3884
        %v3925 = vunpack.c.l.b16 %v3885
        %v3926 = vunpack.c.l.b16 %v3886
        %v3927 = vunpack.c.l.b16 %v3887
        %v3928 = vunpack.c.l.b16 %v3888
        %v3929 = vunpack.c.l.b16 %v3889
        %v3930 = vpack.c.b16 %v3915, %v3914
        %v3931 = vpack.c.b16 %v3917, %v3916
        %v3932 = vpack.c.b16 %v3919, %v3918
        %v3933 = vpack.c.b16 %v3921, %v3920
        %v3934 = vpack.c.b16 %v3923, %v3922
        %v3935 = vpack.c.b16 %v3925, %v3924
        %v3936 = vpack.c.b16 %v3927, %v3926
        %v3937 = vpack.c.b16 %v3929, %v3928
        %3946 = vmatprep.subr.bf16.mxu0 0
        %3947 = vmatpush1.bf16.msra.mxu0 %v3930
        %3948 = vmatprep.subr.bf16.mxu0 0
        %3949 = vmatpush1.bf16.msra.mxu0 %v3931
        %3950 = vmatprep.subr.bf16.mxu0 0
        %3951 = vmatpush1.bf16.msra.mxu0 %v3932
        %3952 = vmatprep.subr.bf16.mxu0 0
        %3953 = vmatpush1.bf16.msra.mxu0 %v3933
        %3954 = vmatprep.subr.bf16.mxu0 0
        %3955 = vmatpush1.bf16.msra.mxu0 %v3934
        %3956 = vmatprep.subr.bf16.mxu0 0
        %3957 = vmatpush1.bf16.msra.mxu0 %v3935
        %3958 = vmatprep.subr.bf16.mxu0 0
        %3959 = vmatpush1.bf16.msra.mxu0 %v3936
        %3960 = vmatprep.subr.bf16.mxu0 0
        %3961 = vmatpush1.bf16.msra.mxu0 %v3937
        %3962 = vmatprep.subr.bf16.mxu0 0
        %3963 = vmatpush1.bf16.msra.mxu0 0
        %3964 = vmatprep.subr.bf16.mxu0 0
        %3965 = vmatpush1.bf16.msra.mxu0 0
        %3966 = vmatprep.subr.bf16.mxu0 0
        %3967 = vmatpush1.bf16.msra.mxu0 0
        %3968 = vmatprep.subr.bf16.mxu0 0
        %3969 = vmatpush1.bf16.msra.mxu0 0
        %3970 = vmatprep.subr.bf16.mxu0 0
        %3971 = vmatpush1.bf16.msra.mxu0 0
        %3972 = vmatprep.subr.bf16.mxu0 0
        %3973 = vmatpush1.bf16.msra.mxu0 0
        %3974 = vmatprep.subr.bf16.mxu0 0
        %3975 = vmatpush1.bf16.msra.mxu0 0
        %3976 = vmatprep.subr.bf16.mxu0 0
        %3977 = vmatpush1.bf16.msra.mxu0 0
        %3978 = vmatprep.mubr.bf16.mxu0 0
        %3979 = vmatmul.mubr.bf16.gmra.mrb[0].mxu0 %v3869
        %v3980 = vpop.f32.mrb[0].mxu0
        %v3981 = vadd.f32 %v3896, %v3980
        %v3982 = vpop.f32.mrb[0].mxu0
        %v3983 = vpop.f32.mrb[0].mxu0
        %v3984 = vadd.f32 %v3896, %v3983
        %v3985 = vpop.f32.mrb[0].mxu0
        %3986 = vmatprep.mubr.bf16.mxu0 0
        %3987 = vmatmul.mubr.bf16.gmra.mrb[0].mxu0 %v3870
        %v3988 = vpop.f32.mrb[0].mxu0
        %v3989 = vadd.f32 %v3896, %v3988
        %v3990 = vpop.f32.mrb[0].mxu0
        %v3991 = vpop.f32.mrb[0].mxu0
        %v3992 = vadd.f32 %v3896, %v3991
        %v3993 = vpop.f32.mrb[0].mxu0
        %3994 = vmatprep.mubr.bf16.mxu0 0
        %3995 = vmatmul.mubr.bf16.gmra.mrb[0].mxu0 %v3871
        %v3996 = vpop.f32.mrb[0].mxu0
        %v3997 = vadd.f32 %v3896, %v3996
        %v3998 = vpop.f32.mrb[0].mxu0
        %v3999 = vpop.f32.mrb[0].mxu0
        %v4000 = vadd.f32 %v3896, %v3999
        %v4001 = vpop.f32.mrb[0].mxu0
        %4002 = vmatprep.mubr.bf16.mxu0 0
        %4003 = vmatmul.mubr.bf16.gmra.mrb[0].mxu0 %v3872
        %v4004 = vpop.f32.mrb[0].mxu0
        %v4005 = vadd.f32 %v3896, %v4004
        %v4006 = vpop.f32.mrb[0].mxu0
        %v4007 = vpop.f32.mrb[0].mxu0
        %v4008 = vadd.f32 %v3896, %v4007
        %v4009 = vpop.f32.mrb[0].mxu0
        %4010 = vdwg.mxu0
        %v4011 = vmax.f32 %v3981, 0.0
        %v4012 = vmax.f32 %v3984, 0.0
        %v4013 = vmax.f32 %v3989, 0.0
        %v4014 = vmax.f32 %v3992, 0.0
        %v4015 = vmax.f32 %v3997, 0.0
        %v4016 = vmax.f32 %v4000, 0.0
        %v4017 = vmax.f32 %v4005, 0.0
        %v4018 = vmax.f32 %v4008, 0.0
        %v4019 = vadd.f32 %v4011, %v3711
        %v4020 = vadd.f32 %v4012, %v3712
        %v4021 = vadd.f32 %v4013, %v3713
        %v4022 = vadd.f32 %v4014, %v3714
        %v4023 = vadd.f32 %v4015, %v3715
        %v4024 = vadd.f32 %v4016, %v3716
        %v4025 = vadd.f32 %v4017, %v3717
        %v4026 = vadd.f32 %v4018, %v3718
        %v4027 = vmax.f32 %v4019, 0.0
        %v4028 = vmax.f32 %v4020, 0.0
        %v4029 = vmax.f32 %v4021, 0.0
        %v4030 = vmax.f32 %v4022, 0.0
        %v4031 = vmax.f32 %v4023, 0.0
        %v4032 = vmax.f32 %v4024, 0.0
        %v4033 = vmax.f32 %v4025, 0.0
        %v4034 = vmax.f32 %v4026, 0.0
        %v4035 = vpack.c.bf16 %v4028, %v4027
        %v4036 = vpack.c.bf16 %v4030, %v4029
        %v4037 = vpack.c.bf16 %v4032, %v4031
        %v4038 = vpack.c.bf16 %v4034, %v4033
        %v4039 = vld [vmem:[#allocation8] sm:$0xff]
        %v4040 = vld [vmem:[#allocation8 + $0x8] sm:$0xf]
        %v4041 = vld [vmem:[#allocation8 + $0xc] sm:$0xff]
        %v4042 = vld [vmem:[#allocation8 + $0x14] sm:$0xf]
        %v4043 = vld [vmem:[#allocation8 + $0x18] sm:$0xff]
        %v4044 = vld [vmem:[#allocation8 + $0x20] sm:$0xf]
        %v4045 = vld [vmem:[#allocation8 + $0x24] sm:$0xff]
        %v4046 = vld [vmem:[#allocation8 + $0x2c] sm:$0xf]
        %v4047 = vld [vmem:[#allocation8 + $0x30] sm:$0xff]
        %v4048 = vld [vmem:[#allocation8 + $0x38] sm:$0xf]
        %v4049 = vld [vmem:[#allocation8 + $0x3c] sm:$0xff]
        %v4050 = vld [vmem:[#allocation8 + $0x44] sm:$0xf]
        %v4051 = vld [vmem:[#allocation8 + $0x48] sm:$0xff]
        %v4052 = vld [vmem:[#allocation8 + $0x50] sm:$0xf]
        %v4053 = vld [vmem:[#allocation8 + $0x54] sm:$0xff]
        %v4054 = vld [vmem:[#allocation8 + $0x5c] sm:$0xf]
        %v4055 = vld [vmem:[#allocation8 + $0x60] sm:$0xff]
        %v4056 = vld [vmem:[#allocation8 + $0x68] sm:$0xf]
        %v4057 = vld [vmem:[#allocation8 + $0x6c] sm:$0xff]
        %v4058 = vld [vmem:[#allocation8 + $0x74] sm:$0xf]
        %v4059 = vld [vmem:[#allocation8 + $0x78] sm:$0xff]
        %v4060 = vld [vmem:[#allocation8 + $0x80] sm:$0xf]
        %v4061 = vld [vmem:[#allocation8 + $0x84] sm:$0xff]
        %v4062 = vld [vmem:[#allocation8 + $0x8c] sm:$0xf]
        %v4063 = vld [vmem:[#allocation8 + $0x90] sm:$0xff]
        %v4064 = vld [vmem:[#allocation8 + $0x98] sm:$0xf]
        %v4065 = vld [vmem:[#allocation8 + $0x9c] sm:$0xff]
        %v4066 = vld [vmem:[#allocation8 + $0xa4] sm:$0xf]
        %v4067 = vld [vmem:[#allocation8 + $0xa8] sm:$0xff]
        %v4068 = vld [vmem:[#allocation8 + $0xb0] sm:$0xf]
        %v4069 = vld [vmem:[#allocation8 + $0xb4] sm:$0xff]
        %v4070 = vld [vmem:[#allocation8 + $0xbc] sm:$0xf]
        %v4071 = vld [vmem:[%s5] sm:$0x7]
        %v4073 = vlaneseq
        %v4074 = vshrl.u32 %v4073, 7
        %v4075 = vsub.s32 0, %v4074
        %v4076 = vrot.slane %v4071, %v4075
        %v4077 = vlaneseq
        %v4078 = vshrl.u32 %v4077, 7
        %v4079 = vsub.s32 1, %v4078
        %v4080 = vrot.slane %v4071, %v4079
        %v4081 = vlaneseq
        %v4082 = vshrl.u32 %v4081, 7
        %v4083 = vsub.s32 2, %v4082
        %v4084 = vrot.slane %v4071, %v4083
        %v4120 = vunpack.c.l.b16 %v4039
        %v4121 = vunpack.c.h.b16 %v4039
        %v4122 = vunpack.c.l.b16 %v4040
        %v4123 = vunpack.c.l.b16 %v4041
        %v4124 = vunpack.c.h.b16 %v4041
        %v4125 = vunpack.c.l.b16 %v4042
        %v4126 = vunpack.c.l.b16 %v4043
        %v4127 = vunpack.c.h.b16 %v4043
        %v4128 = vunpack.c.l.b16 %v4044
        %v4129 = vunpack.c.l.b16 %v4045
        %v4130 = vunpack.c.h.b16 %v4045
        %v4131 = vunpack.c.l.b16 %v4046
        %v4132 = vunpack.c.l.b16 %v4047
        %v4133 = vunpack.c.h.b16 %v4047
        %v4134 = vunpack.c.l.b16 %v4048
        %v4135 = vunpack.c.l.b16 %v4049
        %v4136 = vunpack.c.h.b16 %v4049
        %v4137 = vunpack.c.l.b16 %v4050
        %v4138 = vunpack.c.l.b16 %v4051
        %v4139 = vunpack.c.h.b16 %v4051
        %v4140 = vunpack.c.l.b16 %v4052
        %v4141 = vunpack.c.l.b16 %v4053
        %v4142 = vunpack.c.h.b16 %v4053
        %v4143 = vunpack.c.l.b16 %v4054
        %v4144 = vunpack.c.l.b16 %v4055
        %v4145 = vunpack.c.h.b16 %v4055
        %v4146 = vunpack.c.l.b16 %v4056
        %v4147 = vunpack.c.l.b16 %v4057
        %v4148 = vunpack.c.h.b16 %v4057
        %v4149 = vunpack.c.l.b16 %v4058
        %v4150 = vunpack.c.l.b16 %v4059
        %v4151 = vunpack.c.h.b16 %v4059
        %v4152 = vunpack.c.l.b16 %v4060
        %v4153 = vunpack.c.l.b16 %v4061
        %v4154 = vunpack.c.h.b16 %v4061
        %v4155 = vunpack.c.l.b16 %v4062
        %v4156 = vunpack.c.l.b16 %v4063
        %v4157 = vunpack.c.h.b16 %v4063
        %v4158 = vunpack.c.l.b16 %v4064
        %v4159 = vunpack.c.l.b16 %v4065
        %v4160 = vunpack.c.h.b16 %v4065
        %v4161 = vunpack.c.l.b16 %v4066
        %v4162 = vunpack.c.l.b16 %v4067
        %v4163 = vunpack.c.h.b16 %v4067
        %v4164 = vunpack.c.l.b16 %v4068
        %v4165 = vunpack.c.l.b16 %v4069
        %v4166 = vunpack.c.h.b16 %v4069
        %v4167 = vunpack.c.l.b16 %v4070
        %v4168 = vpack.c.b16 %v4123, %v4120
        %v4169 = vpack.c.b16 %v4124, %v4121
        %v4170 = vpack.c.b16 %v4125, %v4122
        %v4171 = vpack.c.b16 %v4129, %v4126
        %v4172 = vpack.c.b16 %v4130, %v4127
        %v4173 = vpack.c.b16 %v4131, %v4128
        %v4174 = vpack.c.b16 %v4135, %v4132
        %v4175 = vpack.c.b16 %v4136, %v4133
        %v4176 = vpack.c.b16 %v4137, %v4134
        %v4177 = vpack.c.b16 %v4141, %v4138
        %v4178 = vpack.c.b16 %v4142, %v4139
        %v4179 = vpack.c.b16 %v4143, %v4140
        %v4180 = vpack.c.b16 %v4147, %v4144
        %v4181 = vpack.c.b16 %v4148, %v4145
        %v4182 = vpack.c.b16 %v4149, %v4146
        %v4183 = vpack.c.b16 %v4153, %v4150
        %v4184 = vpack.c.b16 %v4154, %v4151
        %v4185 = vpack.c.b16 %v4155, %v4152
        %v4186 = vpack.c.b16 %v4159, %v4156
        %v4187 = vpack.c.b16 %v4160, %v4157
        %v4188 = vpack.c.b16 %v4161, %v4158
        %v4189 = vpack.c.b16 %v4165, %v4162
        %v4190 = vpack.c.b16 %v4166, %v4163
        %v4191 = vpack.c.b16 %v4167, %v4164
        %4216 = vmatprep.subr.bf16.mxu0 %v4169
        %4217 = vmatpush1.bf16.msra.mxu0 %v4168
        %4218 = vmatprep.subr.bf16.mxu0 %v4172
        %4219 = vmatpush1.bf16.msra.mxu0 %v4171
        %4220 = vmatprep.subr.bf16.mxu0 %v4175
        %4221 = vmatpush1.bf16.msra.mxu0 %v4174
        %4222 = vmatprep.subr.bf16.mxu0 %v4178
        %4223 = vmatpush1.bf16.msra.mxu0 %v4177
        %4224 = vmatprep.subr.bf16.mxu0 %v4181
        %4225 = vmatpush1.bf16.msra.mxu0 %v4180
        %4226 = vmatprep.subr.bf16.mxu0 %v4184
        %4227 = vmatpush1.bf16.msra.mxu0 %v4183
        %4228 = vmatprep.subr.bf16.mxu0 %v4187
        %4229 = vmatpush1.bf16.msra.mxu0 %v4186
        %4230 = vmatprep.subr.bf16.mxu0 %v4190
        %4231 = vmatpush1.bf16.msra.mxu0 %v4189
        %4232 = vmatprep.subr.bf16.mxu0 0
        %4233 = vmatpush1.bf16.msra.mxu0 0
        %4234 = vmatprep.subr.bf16.mxu0 0
        %4235 = vmatpush1.bf16.msra.mxu0 0
        %4236 = vmatprep.subr.bf16.mxu0 0
        %4237 = vmatpush1.bf16.msra.mxu0 0
        %4238 = vmatprep.subr.bf16.mxu0 0
        %4239 = vmatpush1.bf16.msra.mxu0 0
        %4240 = vmatprep.subr.bf16.mxu0 0
        %4241 = vmatpush1.bf16.msra.mxu0 0
        %4242 = vmatprep.subr.bf16.mxu0 0
        %4243 = vmatpush1.bf16.msra.mxu0 0
        %4244 = vmatprep.subr.bf16.mxu0 0
        %4245 = vmatpush1.bf16.msra.mxu0 0
        %4246 = vmatprep.subr.bf16.mxu0 0
        %4247 = vmatpush1.bf16.msra.mxu0 0
        %4248 = vmatprep.mubr.bf16.mxu0 0
        %4249 = vmatmul.mubr.bf16.gmra.mrb[0].mxu0 %v4035
        %v4250 = vpop.f32.mrb[0].mxu0
        %v4251 = vadd.f32 %v4076, %v4250
        %v4252 = vpop.f32.mrb[0].mxu0
        %v4253 = vadd.f32 %v4080, %v4252
        %v4254 = vpop.f32.mrb[0].mxu0
        %v4255 = vadd.f32 %v4076, %v4254
        %v4256 = vpop.f32.mrb[0].mxu0
        %v4257 = vadd.f32 %v4080, %v4256
        %4258 = vmatprep.mubr.bf16.mxu0 0
        %4259 = vmatmul.mubr.bf16.gmra.mrb[0].mxu0 %v4036
        %v4260 = vpop.f32.mrb[0].mxu0
        %v4261 = vadd.f32 %v4076, %v4260
        %v4262 = vpop.f32.mrb[0].mxu0
        %v4263 = vadd.f32 %v4080, %v4262
        %v4264 = vpop.f32.mrb[0].mxu0
        %v4265 = vadd.f32 %v4076, %v4264
        %v4266 = vpop.f32.mrb[0].mxu0
        %v4267 = vadd.f32 %v4080, %v4266
        %4268 = vmatprep.mubr.bf16.mxu0 0
        %4269 = vmatmul.mubr.bf16.gmra.mrb[0].mxu0 %v4037
        %v4270 = vpop.f32.mrb[0].mxu0
        %v4271 = vadd.f32 %v4076, %v4270
        %v4272 = vpop.f32.mrb[0].mxu0
        %v4273 = vadd.f32 %v4080, %v4272
        %v4274 = vpop.f32.mrb[0].mxu0
        %v4275 = vadd.f32 %v4076, %v4274
        %v4276 = vpop.f32.mrb[0].mxu0
        %v4277 = vadd.f32 %v4080, %v4276
        %4278 = vmatprep.mubr.bf16.mxu0 0
        %4279 = vmatmul.mubr.bf16.gmra.mrb[0].mxu0 %v4038
        %v4280 = vpop.f32.mrb[0].mxu0
        %v4281 = vadd.f32 %v4076, %v4280
        %v4282 = vpop.f32.mrb[0].mxu0
        %v4283 = vadd.f32 %v4080, %v4282
        %v4284 = vpop.f32.mrb[0].mxu0
        %v4285 = vadd.f32 %v4076, %v4284
        %v4286 = vpop.f32.mrb[0].mxu0
        %v4287 = vadd.f32 %v4080, %v4286
        %4288 = vdwg.mxu0
        %4289 = vmatprep.subr.bf16.mxu0 0
        %4290 = vmatpush1.bf16.msra.mxu0 %v4170
        %4291 = vmatprep.subr.bf16.mxu0 0
        %4292 = vmatpush1.bf16.msra.mxu0 %v4173
        %4293 = vmatprep.subr.bf16.mxu0 0
        %4294 = vmatpush1.bf16.msra.mxu0 %v4176
        %4295 = vmatprep.subr.bf16.mxu0 0
        %4296 = vmatpush1.bf16.msra.mxu0 %v4179
        %4297 = vmatprep.subr.bf16.mxu0 0
        %4298 = vmatpush1.bf16.msra.mxu0 %v4182
        %4299 = vmatprep.subr.bf16.mxu0 0
        %4300 = vmatpush1.bf16.msra.mxu0 %v4185
        %4301 = vmatprep.subr.bf16.mxu0 0
        %4302 = vmatpush1.bf16.msra.mxu0 %v4188
        %4303 = vmatprep.subr.bf16.mxu0 0
        %4304 = vmatpush1.bf16.msra.mxu0 %v4191
        %4305 = vmatprep.subr.bf16.mxu0 0
        %4306 = vmatpush1.bf16.msra.mxu0 0
        %4307 = vmatprep.subr.bf16.mxu0 0
        %4308 = vmatpush1.bf16.msra.mxu0 0
        %4309 = vmatprep.subr.bf16.mxu0 0
        %4310 = vmatpush1.bf16.msra.mxu0 0
        %4311 = vmatprep.subr.bf16.mxu0 0
        %4312 = vmatpush1.bf16.msra.mxu0 0
        %4313 = vmatprep.subr.bf16.mxu0 0
        %4314 = vmatpush1.bf16.msra.mxu0 0
        %4315 = vmatprep.subr.bf16.mxu0 0
        %4316 = vmatpush1.bf16.msra.mxu0 0
        %4317 = vmatprep.subr.bf16.mxu0 0
        %4318 = vmatpush1.bf16.msra.mxu0 0
        %4319 = vmatprep.subr.bf16.mxu0 0
        %4320 = vmatpush1.bf16.msra.mxu0 0
        %4321 = vmatprep.mubr.bf16.mxu0 0
        %4322 = vmatmul.mubr.bf16.gmra.mrb[0].mxu0 %v4035
        %v4323 = vpop.f32.mrb[0].mxu0
        %v4324 = vadd.f32 %v4084, %v4323
        %v4325 = vpop.f32.mrb[0].mxu0
        %v4326 = vpop.f32.mrb[0].mxu0
        %v4327 = vadd.f32 %v4084, %v4326
        %v4328 = vpop.f32.mrb[0].mxu0
        %4329 = vmatprep.mubr.bf16.mxu0 0
        %4330 = vmatmul.mubr.bf16.gmra.mrb[0].mxu0 %v4036
        %v4331 = vpop.f32.mrb[0].mxu0
        %v4332 = vadd.f32 %v4084, %v4331
        %v4333 = vpop.f32.mrb[0].mxu0
        %v4334 = vpop.f32.mrb[0].mxu0
        %v4335 = vadd.f32 %v4084, %v4334
        %v4336 = vpop.f32.mrb[0].mxu0
        %4337 = vmatprep.mubr.bf16.mxu0 0
        %4338 = vmatmul.mubr.bf16.gmra.mrb[0].mxu0 %v4037
        %v4339 = vpop.f32.mrb[0].mxu0
        %v4340 = vadd.f32 %v4084, %v4339
        %v4341 = vpop.f32.mrb[0].mxu0
        %v4342 = vpop.f32.mrb[0].mxu0
        %v4343 = vadd.f32 %v4084, %v4342
        %v4344 = vpop.f32.mrb[0].mxu0
        %4345 = vmatprep.mubr.bf16.mxu0 0
        %4346 = vmatmul.mubr.bf16.gmra.mrb[0].mxu0 %v4038
        %v4347 = vpop.f32.mrb[0].mxu0
        %v4348 = vadd.f32 %v4084, %v4347
        %v4349 = vpop.f32.mrb[0].mxu0
        %v4350 = vpop.f32.mrb[0].mxu0
        %v4351 = vadd.f32 %v4084, %v4350
        %v4352 = vpop.f32.mrb[0].mxu0
        %4353 = vdwg.mxu0
        %v4354 = vpack.c.bf16 %v4255, %v4251
        %v4355 = vpack.c.bf16 %v4265, %v4261
        %v4356 = vpack.c.bf16 %v4275, %v4271
        %v4357 = vpack.c.bf16 %v4285, %v4281
        %v4358 = vpack.c.bf16 %v4257, %v4253
        %v4359 = vpack.c.bf16 %v4267, %v4263
        %v4360 = vpack.c.bf16 %v4277, %v4273
        %v4361 = vpack.c.bf16 %v4287, %v4283
        %v4362 = vpack.c.bf16 %v4327, %v4324
        %v4363 = vpack.c.bf16 %v4335, %v4332
        %v4364 = vpack.c.bf16 %v4343, %v4340
        %v4365 = vpack.c.bf16 %v4351, %v4348
        %vm4366 = vcmask 261120
        %v4368 = vsel %vm4366, %v4354, 0
        %v4371 = vsel %vm4366, %v4358, 0
        %4373 = vmatprep.subr.bf16.mxu0 0
        %4374 = vmatpush1.bf16.xpose.msra.mxu0 %v4371
        %4375 = vmatprep.subr.bf16.mxu0 0
        %4376 = vmatpush1.bf16.xpose.msra.mxu0 0
        %4377 = vmatprep.subr.bf16.mxu0 0
        %4378 = vmatpush1.bf16.xpose.msra.mxu0 0
        %4379 = vmatprep.subr.bf16.mxu0 0
        %4380 = vmatpush1.bf16.xpose.msra.mxu0 0
        %4381 = vmatprep.subr.bf16.mxu0 0
        %4382 = vmatpush1.bf16.xpose.msra.mxu0 0
        %4383 = vmatprep.subr.bf16.mxu0 0
        %4384 = vmatpush1.bf16.xpose.msra.mxu0 0
        %4385 = vmatprep.subr.bf16.mxu0 0
        %4386 = vmatpush1.bf16.xpose.msra.mxu0 0
        %4387 = vmatprep.subr.bf16.mxu0 0
        %4388 = vmatpush1.bf16.xpose.msra.mxu0 0
        %4389 = vmatprep.subr.bf16.mxu0 0
        %4390 = vmatpush1.bf16.xpose.msra.mxu0 0
        %4391 = vmatprep.subr.bf16.mxu0 0
        %4392 = vmatpush1.bf16.xpose.msra.mxu0 0
        %4393 = vmatprep.subr.bf16.mxu0 0
        %4394 = vmatpush1.bf16.xpose.msra.mxu0 0
        %4395 = vmatprep.subr.bf16.mxu0 0
        %4396 = vmatpush1.bf16.xpose.msra.mxu0 0
        %4397 = vmatprep.subr.bf16.mxu0 0
        %4398 = vmatpush1.bf16.xpose.msra.mxu0 0
        %4399 = vmatprep.subr.bf16.mxu0 0
        %4400 = vmatpush1.bf16.xpose.msra.mxu0 0
        %4401 = vmatprep.subr.bf16.mxu0 0
        %4402 = vmatpush1.bf16.xpose.msra.mxu0 0
        %4403 = vmatprep.subr.bf16.mxu0 0
        %4404 = vmatpush1.bf16.xpose.msra.mxu0 0
        %4405 = vmatprep.mubr.bf16.mxu0 0
        %4406 = vmatmul.mubr.bf16.gmra.mrb[0].mxu0 %v4368
        %v4407 = vpop.f32.mrb[0].mxu0
        %v4408 = vadd.f32 0.0, %v4407
        %v4409 = vpop.f32.mrb[0].mxu0
        %v4410 = vpop.f32.mrb[0].mxu0
        %v4411 = vadd.f32 0.0, %v4410
        %v4412 = vpop.f32.mrb[0].mxu0
        %4413 = vdwg.mxu0
        %v4415 = vsel %vm4366, %v4355, 0
        %v4418 = vsel %vm4366, %v4359, 0
        %4420 = vmatprep.subr.bf16.mxu0 0
        %4421 = vmatpush1.bf16.xpose.msra.mxu0 %v4418
        %4422 = vmatprep.subr.bf16.mxu0 0
        %4423 = vmatpush1.bf16.xpose.msra.mxu0 0
        %4424 = vmatprep.subr.bf16.mxu0 0
        %4425 = vmatpush1.bf16.xpose.msra.mxu0 0
        %4426 = vmatprep.subr.bf16.mxu0 0
        %4427 = vmatpush1.bf16.xpose.msra.mxu0 0
        %4428 = vmatprep.subr.bf16.mxu0 0
        %4429 = vmatpush1.bf16.xpose.msra.mxu0 0
        %4430 = vmatprep.subr.bf16.mxu0 0
        %4431 = vmatpush1.bf16.xpose.msra.mxu0 0
        %4432 = vmatprep.subr.bf16.mxu0 0
        %4433 = vmatpush1.bf16.xpose.msra.mxu0 0
        %4434 = vmatprep.subr.bf16.mxu0 0
        %4435 = vmatpush1.bf16.xpose.msra.mxu0 0
        %4436 = vmatprep.subr.bf16.mxu0 0
        %4437 = vmatpush1.bf16.xpose.msra.mxu0 0
        %4438 = vmatprep.subr.bf16.mxu0 0
        %4439 = vmatpush1.bf16.xpose.msra.mxu0 0
        %4440 = vmatprep.subr.bf16.mxu0 0
        %4441 = vmatpush1.bf16.xpose.msra.mxu0 0
        %4442 = vmatprep.subr.bf16.mxu0 0
        %4443 = vmatpush1.bf16.xpose.msra.mxu0 0
        %4444 = vmatprep.subr.bf16.mxu0 0
        %4445 = vmatpush1.bf16.xpose.msra.mxu0 0
        %4446 = vmatprep.subr.bf16.mxu0 0
        %4447 = vmatpush1.bf16.xpose.msra.mxu0 0
        %4448 = vmatprep.subr.bf16.mxu0 0
        %4449 = vmatpush1.bf16.xpose.msra.mxu0 0
        %4450 = vmatprep.subr.bf16.mxu0 0
        %4451 = vmatpush1.bf16.xpose.msra.mxu0 0
        %4452 = vmatprep.mubr.bf16.mxu0 0
        %4453 = vmatmul.mubr.bf16.gmra.mrb[0].mxu0 %v4415
        %v4454 = vpop.f32.mrb[0].mxu0
        %v4455 = vadd.f32 0.0, %v4454
        %v4456 = vpop.f32.mrb[0].mxu0
        %v4457 = vpop.f32.mrb[0].mxu0
        %v4458 = vadd.f32 0.0, %v4457
        %v4459 = vpop.f32.mrb[0].mxu0
        %4460 = vdwg.mxu0
        %v4462 = vsel %vm4366, %v4356, 0
        %v4465 = vsel %vm4366, %v4360, 0
        %4467 = vmatprep.subr.bf16.mxu0 0
        %4468 = vmatpush1.bf16.xpose.msra.mxu0 %v4465
        %4469 = vmatprep.subr.bf16.mxu0 0
        %4470 = vmatpush1.bf16.xpose.msra.mxu0 0
        %4471 = vmatprep.subr.bf16.mxu0 0
        %4472 = vmatpush1.bf16.xpose.msra.mxu0 0
        %4473 = vmatprep.subr.bf16.mxu0 0
        %4474 = vmatpush1.bf16.xpose.msra.mxu0 0
        %4475 = vmatprep.subr.bf16.mxu0 0
        %4476 = vmatpush1.bf16.xpose.msra.mxu0 0
        %4477 = vmatprep.subr.bf16.mxu0 0
        %4478 = vmatpush1.bf16.xpose.msra.mxu0 0
        %4479 = vmatprep.subr.bf16.mxu0 0
        %4480 = vmatpush1.bf16.xpose.msra.mxu0 0
        %4481 = vmatprep.subr.bf16.mxu0 0
        %4482 = vmatpush1.bf16.xpose.msra.mxu0 0
        %4483 = vmatprep.subr.bf16.mxu0 0
        %4484 = vmatpush1.bf16.xpose.msra.mxu0 0
        %4485 = vmatprep.subr.bf16.mxu0 0
        %4486 = vmatpush1.bf16.xpose.msra.mxu0 0
        %4487 = vmatprep.subr.bf16.mxu0 0
        %4488 = vmatpush1.bf16.xpose.msra.mxu0 0
        %4489 = vmatprep.subr.bf16.mxu0 0
        %4490 = vmatpush1.bf16.xpose.msra.mxu0 0
        %4491 = vmatprep.subr.bf16.mxu0 0
        %4492 = vmatpush1.bf16.xpose.msra.mxu0 0
        %4493 = vmatprep.subr.bf16.mxu0 0
        %4494 = vmatpush1.bf16.xpose.msra.mxu0 0
        %4495 = vmatprep.subr.bf16.mxu0 0
        %4496 = vmatpush1.bf16.xpose.msra.mxu0 0
        %4497 = vmatprep.subr.bf16.mxu0 0
        %4498 = vmatpush1.bf16.xpose.msra.mxu0 0
        %4499 = vmatprep.mubr.bf16.mxu0 0
        %4500 = vmatmul.mubr.bf16.gmra.mrb[0].mxu0 %v4462
        %v4501 = vpop.f32.mrb[0].mxu0
        %v4502 = vadd.f32 0.0, %v4501
        %v4503 = vpop.f32.mrb[0].mxu0
        %v4504 = vpop.f32.mrb[0].mxu0
        %v4505 = vadd.f32 0.0, %v4504
        %v4506 = vpop.f32.mrb[0].mxu0
        %4507 = vdwg.mxu0
        %v4509 = vsel %vm4366, %v4357, 0
        %v4512 = vsel %vm4366, %v4361, 0
        %4514 = vmatprep.subr.bf16.mxu0 0
        %4515 = vmatpush1.bf16.xpose.msra.mxu0 %v4512
        %4516 = vmatprep.subr.bf16.mxu0 0
        %4517 = vmatpush1.bf16.xpose.msra.mxu0 0
        %4518 = vmatprep.subr.bf16.mxu0 0
        %4519 = vmatpush1.bf16.xpose.msra.mxu0 0
        %4520 = vmatprep.subr.bf16.mxu0 0
        %4521 = vmatpush1.bf16.xpose.msra.mxu0 0
        %4522 = vmatprep.subr.bf16.mxu0 0
        %4523 = vmatpush1.bf16.xpose.msra.mxu0 0
        %4524 = vmatprep.subr.bf16.mxu0 0
        %4525 = vmatpush1.bf16.xpose.msra.mxu0 0
        %4526 = vmatprep.subr.bf16.mxu0 0
        %4527 = vmatpush1.bf16.xpose.msra.mxu0 0
        %4528 = vmatprep.subr.bf16.mxu0 0
        %4529 = vmatpush1.bf16.xpose.msra.mxu0 0
        %4530 = vmatprep.subr.bf16.mxu0 0
        %4531 = vmatpush1.bf16.xpose.msra.mxu0 0
        %4532 = vmatprep.subr.bf16.mxu0 0
        %4533 = vmatpush1.bf16.xpose.msra.mxu0 0
        %4534 = vmatprep.subr.bf16.mxu0 0
        %4535 = vmatpush1.bf16.xpose.msra.mxu0 0
        %4536 = vmatprep.subr.bf16.mxu0 0
        %4537 = vmatpush1.bf16.xpose.msra.mxu0 0
        %4538 = vmatprep.subr.bf16.mxu0 0
        %4539 = vmatpush1.bf16.xpose.msra.mxu0 0
        %4540 = vmatprep.subr.bf16.mxu0 0
        %4541 = vmatpush1.bf16.xpose.msra.mxu0 0
        %4542 = vmatprep.subr.bf16.mxu0 0
        %4543 = vmatpush1.bf16.xpose.msra.mxu0 0
        %4544 = vmatprep.subr.bf16.mxu0 0
        %4545 = vmatpush1.bf16.xpose.msra.mxu0 0
        %4546 = vmatprep.mubr.bf16.mxu0 0
        %4547 = vmatmul.mubr.bf16.gmra.mrb[0].mxu0 %v4509
        %v4548 = vpop.f32.mrb[0].mxu0
        %v4549 = vadd.f32 0.0, %v4548
        %v4550 = vpop.f32.mrb[0].mxu0
        %v4551 = vpop.f32.mrb[0].mxu0
        %v4552 = vadd.f32 0.0, %v4551
        %v4553 = vpop.f32.mrb[0].mxu0
        %4554 = vdwg.mxu0
        %vm4555 = vcmask 130048
        %v4556 = vsel %vm4555, %v4408, -inf
        %4557 = vmax.xlane.f32.xlu0 %v4556
        %v4558 = vpop.xlane.xlu0 %4557
        %v4559 = vsel %vm4555, %v4411, -inf
        %4560 = vmax.xlane.f32.xlu0 %v4559
        %v4561 = vpop.xlane.xlu0 %4560
        %v4562 = vsel %vm4555, %v4455, -inf
        %4563 = vmax.xlane.f32.xlu0 %v4562
        %v4564 = vpop.xlane.xlu0 %4563
        %v4565 = vsel %vm4555, %v4458, -inf
        %4566 = vmax.xlane.f32.xlu0 %v4565
        %v4567 = vpop.xlane.xlu0 %4566
        %v4568 = vsel %vm4555, %v4502, -inf
        %4569 = vmax.xlane.f32.xlu0 %v4568
        %v4570 = vpop.xlane.xlu0 %4569
        %v4571 = vsel %vm4555, %v4505, -inf
        %4572 = vmax.xlane.f32.xlu0 %v4571
        %v4573 = vpop.xlane.xlu0 %4572
        %v4574 = vsel %vm4555, %v4549, -inf
        %4575 = vmax.xlane.f32.xlu0 %v4574
        %v4576 = vpop.xlane.xlu0 %4575
        %v4577 = vsel %vm4555, %v4552, -inf
        %4578 = vmax.xlane.f32.xlu0 %v4577
        %v4579 = vpop.xlane.xlu0 %4578
        %v4580 = vsub.f32 %v4408, %v4558
        %v4581 = vsub.f32 %v4411, %v4561
        %v4582 = vsub.f32 %v4455, %v4564
        %v4583 = vsub.f32 %v4458, %v4567
        %v4584 = vsub.f32 %v4502, %v4570
        %v4585 = vsub.f32 %v4505, %v4573
        %v4586 = vsub.f32 %v4549, %v4576
        %v4587 = vsub.f32 %v4552, %v4579
        %v4588 = vmul.f32 %v4580, 1.442695
        %v4589 = vpow.pop %v4588
        %v4590 = vmul.f32 %v4581, 1.442695
        %v4591 = vpow.pop %v4590
        %v4592 = vmul.f32 %v4582, 1.442695
        %v4593 = vpow.pop %v4592
        %v4594 = vmul.f32 %v4583, 1.442695
        %v4595 = vpow.pop %v4594
        %v4596 = vmul.f32 %v4584, 1.442695
        %v4597 = vpow.pop %v4596
        %v4598 = vmul.f32 %v4585, 1.442695
        %v4599 = vpow.pop %v4598
        %v4600 = vmul.f32 %v4586, 1.442695
        %v4601 = vpow.pop %v4600
        %v4602 = vmul.f32 %v4587, 1.442695
        %v4603 = vpow.pop %v4602
        %v4604 = vsel %vm4555, %v4589, 0.0
        %4605 = vadd.xlane.f32.xlu0 %v4604
        %v4606 = vpop.xlane.xlu0 %4605
        %v4607 = vsel %vm4555, %v4591, 0.0
        %4608 = vadd.xlane.f32.xlu0 %v4607
        %v4609 = vpop.xlane.xlu0 %4608
        %v4610 = vsel %vm4555, %v4593, 0.0
        %4611 = vadd.xlane.f32.xlu0 %v4610
        %v4612 = vpop.xlane.xlu0 %4611
        %v4613 = vsel %vm4555, %v4595, 0.0
        %4614 = vadd.xlane.f32.xlu0 %v4613
        %v4615 = vpop.xlane.xlu0 %4614
        %v4616 = vsel %vm4555, %v4597, 0.0
        %4617 = vadd.xlane.f32.xlu0 %v4616
        %v4618 = vpop.xlane.xlu0 %4617
        %v4619 = vsel %vm4555, %v4599, 0.0
        %4620 = vadd.xlane.f32.xlu0 %v4619
        %v4621 = vpop.xlane.xlu0 %4620
        %v4622 = vsel %vm4555, %v4601, 0.0
        %4623 = vadd.xlane.f32.xlu0 %v4622
        %v4624 = vpop.xlane.xlu0 %4623
        %v4625 = vsel %vm4555, %v4603, 0.0
        %4626 = vadd.xlane.f32.xlu0 %v4625
        %v4627 = vpop.xlane.xlu0 %4626
        %v4628 = vrcp.pop %v4606
        %v4629 = vrcp.pop %v4609
        %v4630 = vrcp.pop %v4612
        %v4631 = vrcp.pop %v4615
        %v4632 = vrcp.pop %v4618
        %v4633 = vrcp.pop %v4621
        %v4634 = vrcp.pop %v4624
        %v4635 = vrcp.pop %v4627
        %v4636 = vmul.f32 %v4589, %v4628
        %v4637 = vmul.f32 %v4591, %v4629
        %v4638 = vmul.f32 %v4593, %v4630
        %v4639 = vmul.f32 %v4595, %v4631
        %v4640 = vmul.f32 %v4597, %v4632
        %v4641 = vmul.f32 %v4599, %v4633
        %v4642 = vmul.f32 %v4601, %v4634
        %v4643 = vmul.f32 %v4603, %v4635
        %v4644 = vpack.c.bf16 %v4637, %v4636
        %v4645 = vpack.c.bf16 %v4639, %v4638
        %v4646 = vpack.c.bf16 %v4641, %v4640
        %v4647 = vpack.c.bf16 %v4643, %v4642
        %v4649 = vsel %vm4555, %v4644, 0
        %4651 = vmatprep.subr.bf16.mxu0 0
        %4652 = vmatpush1.bf16.msra.mxu0 %v4362
        %4653 = vmatprep.subr.bf16.mxu0 0
        %4654 = vmatpush1.bf16.msra.mxu0 0
        %4655 = vmatprep.subr.bf16.mxu0 0
        %4656 = vmatpush1.bf16.msra.mxu0 0
        %4657 = vmatprep.subr.bf16.mxu0 0
        %4658 = vmatpush1.bf16.msra.mxu0 0
        %4659 = vmatprep.subr.bf16.mxu0 0
        %4660 = vmatpush1.bf16.msra.mxu0 0
        %4661 = vmatprep.subr.bf16.mxu0 0
        %4662 = vmatpush1.bf16.msra.mxu0 0
        %4663 = vmatprep.subr.bf16.mxu0 0
        %4664 = vmatpush1.bf16.msra.mxu0 0
        %4665 = vmatprep.subr.bf16.mxu0 0
        %4666 = vmatpush1.bf16.msra.mxu0 0
        %4667 = vmatprep.subr.bf16.mxu0 0
        %4668 = vmatpush1.bf16.msra.mxu0 0
        %4669 = vmatprep.subr.bf16.mxu0 0
        %4670 = vmatpush1.bf16.msra.mxu0 0
        %4671 = vmatprep.subr.bf16.mxu0 0
        %4672 = vmatpush1.bf16.msra.mxu0 0
        %4673 = vmatprep.subr.bf16.mxu0 0
        %4674 = vmatpush1.bf16.msra.mxu0 0
        %4675 = vmatprep.subr.bf16.mxu0 0
        %4676 = vmatpush1.bf16.msra.mxu0 0
        %4677 = vmatprep.subr.bf16.mxu0 0
        %4678 = vmatpush1.bf16.msra.mxu0 0
        %4679 = vmatprep.subr.bf16.mxu0 0
        %4680 = vmatpush1.bf16.msra.mxu0 0
        %4681 = vmatprep.subr.bf16.mxu0 0
        %4682 = vmatpush1.bf16.msra.mxu0 0
        %4683 = vmatprep.mubr.bf16.mxu0 0
        %4684 = vmatmul.mubr.bf16.gmra.mrb[0].mxu0 %v4649
        %v4685 = vpop.f32.mrb[0].mxu0
        %v4686 = vadd.f32 0.0, %v4685
        %v4687 = vpop.f32.mrb[0].mxu0
        %v4688 = vpop.f32.mrb[0].mxu0
        %v4689 = vadd.f32 0.0, %v4688
        %v4690 = vpop.f32.mrb[0].mxu0
        %4691 = vdwg.mxu0
        %v4693 = vsel %vm4555, %v4645, 0
        %4695 = vmatprep.subr.bf16.mxu0 0
        %4696 = vmatpush1.bf16.msra.mxu0 %v4363
        %4697 = vmatprep.subr.bf16.mxu0 0
        %4698 = vmatpush1.bf16.msra.mxu0 0
        %4699 = vmatprep.subr.bf16.mxu0 0
        %4700 = vmatpush1.bf16.msra.mxu0 0
        %4701 = vmatprep.subr.bf16.mxu0 0
        %4702 = vmatpush1.bf16.msra.mxu0 0
        %4703 = vmatprep.subr.bf16.mxu0 0
        %4704 = vmatpush1.bf16.msra.mxu0 0
        %4705 = vmatprep.subr.bf16.mxu0 0
        %4706 = vmatpush1.bf16.msra.mxu0 0
        %4707 = vmatprep.subr.bf16.mxu0 0
        %4708 = vmatpush1.bf16.msra.mxu0 0
        %4709 = vmatprep.subr.bf16.mxu0 0
        %4710 = vmatpush1.bf16.msra.mxu0 0
        %4711 = vmatprep.subr.bf16.mxu0 0
        %4712 = vmatpush1.bf16.msra.mxu0 0
        %4713 = vmatprep.subr.bf16.mxu0 0
        %4714 = vmatpush1.bf16.msra.mxu0 0
        %4715 = vmatprep.subr.bf16.mxu0 0
        %4716 = vmatpush1.bf16.msra.mxu0 0
        %4717 = vmatprep.subr.bf16.mxu0 0
        %4718 = vmatpush1.bf16.msra.mxu0 0
        %4719 = vmatprep.subr.bf16.mxu0 0
        %4720 = vmatpush1.bf16.msra.mxu0 0
        %4721 = vmatprep.subr.bf16.mxu0 0
        %4722 = vmatpush1.bf16.msra.mxu0 0
        %4723 = vmatprep.subr.bf16.mxu0 0
        %4724 = vmatpush1.bf16.msra.mxu0 0
        %4725 = vmatprep.subr.bf16.mxu0 0
        %4726 = vmatpush1.bf16.msra.mxu0 0
        %4727 = vmatprep.mubr.bf16.mxu0 0
        %4728 = vmatmul.mubr.bf16.gmra.mrb[0].mxu0 %v4693
        %v4729 = vpop.f32.mrb[0].mxu0
        %v4730 = vadd.f32 0.0, %v4729
        %v4731 = vpop.f32.mrb[0].mxu0
        %v4732 = vpop.f32.mrb[0].mxu0
        %v4733 = vadd.f32 0.0, %v4732
        %v4734 = vpop.f32.mrb[0].mxu0
        %4735 = vdwg.mxu0
        %v4737 = vsel %vm4555, %v4646, 0
        %4739 = vmatprep.subr.bf16.mxu0 0
        %4740 = vmatpush1.bf16.msra.mxu0 %v4364
        %4741 = vmatprep.subr.bf16.mxu0 0
        %4742 = vmatpush1.bf16.msra.mxu0 0
        %4743 = vmatprep.subr.bf16.mxu0 0
        %4744 = vmatpush1.bf16.msra.mxu0 0
        %4745 = vmatprep.subr.bf16.mxu0 0
        %4746 = vmatpush1.bf16.msra.mxu0 0
        %4747 = vmatprep.subr.bf16.mxu0 0
        %4748 = vmatpush1.bf16.msra.mxu0 0
        %4749 = vmatprep.subr.bf16.mxu0 0
        %4750 = vmatpush1.bf16.msra.mxu0 0
        %4751 = vmatprep.subr.bf16.mxu0 0
        %4752 = vmatpush1.bf16.msra.mxu0 0
        %4753 = vmatprep.subr.bf16.mxu0 0
        %4754 = vmatpush1.bf16.msra.mxu0 0
        %4755 = vmatprep.subr.bf16.mxu0 0
        %4756 = vmatpush1.bf16.msra.mxu0 0
        %4757 = vmatprep.subr.bf16.mxu0 0
        %4758 = vmatpush1.bf16.msra.mxu0 0
        %4759 = vmatprep.subr.bf16.mxu0 0
        %4760 = vmatpush1.bf16.msra.mxu0 0
        %4761 = vmatprep.subr.bf16.mxu0 0
        %4762 = vmatpush1.bf16.msra.mxu0 0
        %4763 = vmatprep.subr.bf16.mxu0 0
        %4764 = vmatpush1.bf16.msra.mxu0 0
        %4765 = vmatprep.subr.bf16.mxu0 0
        %4766 = vmatpush1.bf16.msra.mxu0 0
        %4767 = vmatprep.subr.bf16.mxu0 0
        %4768 = vmatpush1.bf16.msra.mxu0 0
        %4769 = vmatprep.subr.bf16.mxu0 0
        %4770 = vmatpush1.bf16.msra.mxu0 0
        %4771 = vmatprep.mubr.bf16.mxu0 0
        %4772 = vmatmul.mubr.bf16.gmra.mrb[0].mxu0 %v4737
        %v4773 = vpop.f32.mrb[0].mxu0
        %v4774 = vadd.f32 0.0, %v4773
        %v4775 = vpop.f32.mrb[0].mxu0
        %v4776 = vpop.f32.mrb[0].mxu0
        %v4777 = vadd.f32 0.0, %v4776
        %v4778 = vpop.f32.mrb[0].mxu0
        %4779 = vdwg.mxu0
        %v4781 = vsel %vm4555, %v4647, 0
        %4783 = vmatprep.subr.bf16.mxu0 0
        %4784 = vmatpush1.bf16.msra.mxu0 %v4365
        %4785 = vmatprep.subr.bf16.mxu0 0
        %4786 = vmatpush1.bf16.msra.mxu0 0
        %4787 = vmatprep.subr.bf16.mxu0 0
        %4788 = vmatpush1.bf16.msra.mxu0 0
        %4789 = vmatprep.subr.bf16.mxu0 0
        %4790 = vmatpush1.bf16.msra.mxu0 0
        %4791 = vmatprep.subr.bf16.mxu0 0
        %4792 = vmatpush1.bf16.msra.mxu0 0
        %4793 = vmatprep.subr.bf16.mxu0 0
        %4794 = vmatpush1.bf16.msra.mxu0 0
        %4795 = vmatprep.subr.bf16.mxu0 0
        %4796 = vmatpush1.bf16.msra.mxu0 0
        %4797 = vmatprep.subr.bf16.mxu0 0
        %4798 = vmatpush1.bf16.msra.mxu0 0
        %4799 = vmatprep.subr.bf16.mxu0 0
        %4800 = vmatpush1.bf16.msra.mxu0 0
        %4801 = vmatprep.subr.bf16.mxu0 0
        %4802 = vmatpush1.bf16.msra.mxu0 0
        %4803 = vmatprep.subr.bf16.mxu0 0
        %4804 = vmatpush1.bf16.msra.mxu0 0
        %4805 = vmatprep.subr.bf16.mxu0 0
        %4806 = vmatpush1.bf16.msra.mxu0 0
        %4807 = vmatprep.subr.bf16.mxu0 0
        %4808 = vmatpush1.bf16.msra.mxu0 0
        %4809 = vmatprep.subr.bf16.mxu0 0
        %4810 = vmatpush1.bf16.msra.mxu0 0
        %4811 = vmatprep.subr.bf16.mxu0 0
        %4812 = vmatpush1.bf16.msra.mxu0 0
        %4813 = vmatprep.subr.bf16.mxu0 0
        %4814 = vmatpush1.bf16.msra.mxu0 0
        %4815 = vmatprep.mubr.bf16.mxu0 0
        %4816 = vmatmul.mubr.bf16.gmra.mrb[0].mxu0 %v4781
        %v4817 = vpop.f32.mrb[0].mxu0
        %v4818 = vadd.f32 0.0, %v4817
        %v4819 = vpop.f32.mrb[0].mxu0
        %v4820 = vpop.f32.mrb[0].mxu0
        %v4821 = vadd.f32 0.0, %v4820
        %v4822 = vpop.f32.mrb[0].mxu0
        %4823 = vdwg.mxu0
        %v4824 = vpack.c.bf16 %v4689, %v4686
        %v4825 = vpack.c.bf16 %v4733, %v4730
        %v4826 = vpack.c.bf16 %v4777, %v4774
        %v4827 = vpack.c.bf16 %v4821, %v4818
        %4829 = vrot.lane.b32.xlu0 %v4354, 96
        %v4830 = vpop.permute.xlu0 %4829
        %4832 = vrot.lane.b32.xlu0 %v4358, 96
        %v4833 = vpop.permute.xlu0 %4832
        %v4835 = vsel %vm4366, %v4830, 0
        %v4838 = vsel %vm4366, %v4833, 0
        %4840 = vmatprep.subr.bf16.mxu0 0
        %4841 = vmatpush1.bf16.xpose.msra.mxu0 %v4838
        %4842 = vmatprep.subr.bf16.mxu0 0
        %4843 = vmatpush1.bf16.xpose.msra.mxu0 0
        %4844 = vmatprep.subr.bf16.mxu0 0
        %4845 = vmatpush1.bf16.xpose.msra.mxu0 0
        %4846 = vmatprep.subr.bf16.mxu0 0
        %4847 = vmatpush1.bf16.xpose.msra.mxu0 0
        %4848 = vmatprep.subr.bf16.mxu0 0
        %4849 = vmatpush1.bf16.xpose.msra.mxu0 0
        %4850 = vmatprep.subr.bf16.mxu0 0
        %4851 = vmatpush1.bf16.xpose.msra.mxu0 0
        %4852 = vmatprep.subr.bf16.mxu0 0
        %4853 = vmatpush1.bf16.xpose.msra.mxu0 0
        %4854 = vmatprep.subr.bf16.mxu0 0
        %4855 = vmatpush1.bf16.xpose.msra.mxu0 0
        %4856 = vmatprep.subr.bf16.mxu0 0
        %4857 = vmatpush1.bf16.xpose.msra.mxu0 0
        %4858 = vmatprep.subr.bf16.mxu0 0
        %4859 = vmatpush1.bf16.xpose.msra.mxu0 0
        %4860 = vmatprep.subr.bf16.mxu0 0
        %4861 = vmatpush1.bf16.xpose.msra.mxu0 0
        %4862 = vmatprep.subr.bf16.mxu0 0
        %4863 = vmatpush1.bf16.xpose.msra.mxu0 0
        %4864 = vmatprep.subr.bf16.mxu0 0
        %4865 = vmatpush1.bf16.xpose.msra.mxu0 0
        %4866 = vmatprep.subr.bf16.mxu0 0
        %4867 = vmatpush1.bf16.xpose.msra.mxu0 0
        %4868 = vmatprep.subr.bf16.mxu0 0
        %4869 = vmatpush1.bf16.xpose.msra.mxu0 0
        %4870 = vmatprep.subr.bf16.mxu0 0
        %4871 = vmatpush1.bf16.xpose.msra.mxu0 0
        %4872 = vmatprep.mubr.bf16.mxu0 0
        %4873 = vmatmul.mubr.bf16.gmra.mrb[0].mxu0 %v4835
        %v4874 = vpop.f32.mrb[0].mxu0
        %v4875 = vadd.f32 0.0, %v4874
        %v4876 = vpop.f32.mrb[0].mxu0
        %v4877 = vpop.f32.mrb[0].mxu0
        %v4878 = vadd.f32 0.0, %v4877
        %v4879 = vpop.f32.mrb[0].mxu0
        %4880 = vdwg.mxu0
        %4882 = vrot.lane.b32.xlu0 %v4355, 96
        %v4883 = vpop.permute.xlu0 %4882
        %4885 = vrot.lane.b32.xlu0 %v4359, 96
        %v4886 = vpop.permute.xlu0 %4885
        %v4888 = vsel %vm4366, %v4883, 0
        %v4891 = vsel %vm4366, %v4886, 0
        %4893 = vmatprep.subr.bf16.mxu0 0
        %4894 = vmatpush1.bf16.xpose.msra.mxu0 %v4891
        %4895 = vmatprep.subr.bf16.mxu0 0
        %4896 = vmatpush1.bf16.xpose.msra.mxu0 0
        %4897 = vmatprep.subr.bf16.mxu0 0
        %4898 = vmatpush1.bf16.xpose.msra.mxu0 0
        %4899 = vmatprep.subr.bf16.mxu0 0
        %4900 = vmatpush1.bf16.xpose.msra.mxu0 0
        %4901 = vmatprep.subr.bf16.mxu0 0
        %4902 = vmatpush1.bf16.xpose.msra.mxu0 0
        %4903 = vmatprep.subr.bf16.mxu0 0
        %4904 = vmatpush1.bf16.xpose.msra.mxu0 0
        %4905 = vmatprep.subr.bf16.mxu0 0
        %4906 = vmatpush1.bf16.xpose.msra.mxu0 0
        %4907 = vmatprep.subr.bf16.mxu0 0
        %4908 = vmatpush1.bf16.xpose.msra.mxu0 0
        %4909 = vmatprep.subr.bf16.mxu0 0
        %4910 = vmatpush1.bf16.xpose.msra.mxu0 0
        %4911 = vmatprep.subr.bf16.mxu0 0
        %4912 = vmatpush1.bf16.xpose.msra.mxu0 0
        %4913 = vmatprep.subr.bf16.mxu0 0
        %4914 = vmatpush1.bf16.xpose.msra.mxu0 0
        %4915 = vmatprep.subr.bf16.mxu0 0
        %4916 = vmatpush1.bf16.xpose.msra.mxu0 0
        %4917 = vmatprep.subr.bf16.mxu0 0
        %4918 = vmatpush1.bf16.xpose.msra.mxu0 0
        %4919 = vmatprep.subr.bf16.mxu0 0
        %4920 = vmatpush1.bf16.xpose.msra.mxu0 0
        %4921 = vmatprep.subr.bf16.mxu0 0
        %4922 = vmatpush1.bf16.xpose.msra.mxu0 0
        %4923 = vmatprep.subr.bf16.mxu0 0
        %4924 = vmatpush1.bf16.xpose.msra.mxu0 0
        %4925 = vmatprep.mubr.bf16.mxu0 0
        %4926 = vmatmul.mubr.bf16.gmra.mrb[0].mxu0 %v4888
        %v4927 = vpop.f32.mrb[0].mxu0
        %v4928 = vadd.f32 0.0, %v4927
        %v4929 = vpop.f32.mrb[0].mxu0
        %v4930 = vpop.f32.mrb[0].mxu0
        %v4931 = vadd.f32 0.0, %v4930
        %v4932 = vpop.f32.mrb[0].mxu0
        %4933 = vdwg.mxu0
        %4935 = vrot.lane.b32.xlu0 %v4356, 96
        %v4936 = vpop.permute.xlu0 %4935
        %4938 = vrot.lane.b32.xlu0 %v4360, 96
        %v4939 = vpop.permute.xlu0 %4938
        %v4941 = vsel %vm4366, %v4936, 0
        %v4944 = vsel %vm4366, %v4939, 0
        %4946 = vmatprep.subr.bf16.mxu0 0
        %4947 = vmatpush1.bf16.xpose.msra.mxu0 %v4944
        %4948 = vmatprep.subr.bf16.mxu0 0
        %4949 = vmatpush1.bf16.xpose.msra.mxu0 0
        %4950 = vmatprep.subr.bf16.mxu0 0
        %4951 = vmatpush1.bf16.xpose.msra.mxu0 0
        %4952 = vmatprep.subr.bf16.mxu0 0
        %4953 = vmatpush1.bf16.xpose.msra.mxu0 0
        %4954 = vmatprep.subr.bf16.mxu0 0
        %4955 = vmatpush1.bf16.xpose.msra.mxu0 0
        %4956 = vmatprep.subr.bf16.mxu0 0
        %4957 = vmatpush1.bf16.xpose.msra.mxu0 0
        %4958 = vmatprep.subr.bf16.mxu0 0
        %4959 = vmatpush1.bf16.xpose.msra.mxu0 0
        %4960 = vmatprep.subr.bf16.mxu0 0
        %4961 = vmatpush1.bf16.xpose.msra.mxu0 0
        %4962 = vmatprep.subr.bf16.mxu0 0
        %4963 = vmatpush1.bf16.xpose.msra.mxu0 0
        %4964 = vmatprep.subr.bf16.mxu0 0
        %4965 = vmatpush1.bf16.xpose.msra.mxu0 0
        %4966 = vmatprep.subr.bf16.mxu0 0
        %4967 = vmatpush1.bf16.xpose.msra.mxu0 0
        %4968 = vmatprep.subr.bf16.mxu0 0
        %4969 = vmatpush1.bf16.xpose.msra.mxu0 0
        %4970 = vmatprep.subr.bf16.mxu0 0
        %4971 = vmatpush1.bf16.xpose.msra.mxu0 0
        %4972 = vmatprep.subr.bf16.mxu0 0
        %4973 = vmatpush1.bf16.xpose.msra.mxu0 0
        %4974 = vmatprep.subr.bf16.mxu0 0
        %4975 = vmatpush1.bf16.xpose.msra.mxu0 0
        %4976 = vmatprep.subr.bf16.mxu0 0
        %4977 = vmatpush1.bf16.xpose.msra.mxu0 0
        %4978 = vmatprep.mubr.bf16.mxu0 0
        %4979 = vmatmul.mubr.bf16.gmra.mrb[0].mxu0 %v4941
        %v4980 = vpop.f32.mrb[0].mxu0
        %v4981 = vadd.f32 0.0, %v4980
        %v4982 = vpop.f32.mrb[0].mxu0
        %v4983 = vpop.f32.mrb[0].mxu0
        %v4984 = vadd.f32 0.0, %v4983
        %v4985 = vpop.f32.mrb[0].mxu0
        %4986 = vdwg.mxu0
        %4988 = vrot.lane.b32.xlu0 %v4357, 96
        %v4989 = vpop.permute.xlu0 %4988
        %4991 = vrot.lane.b32.xlu0 %v4361, 96
        %v4992 = vpop.permute.xlu0 %4991
        %v4994 = vsel %vm4366, %v4989, 0
        %v4997 = vsel %vm4366, %v4992, 0
        %4999 = vmatprep.subr.bf16.mxu0 0
        %5000 = vmatpush1.bf16.xpose.msra.mxu0 %v4997
        %5001 = vmatprep.subr.bf16.mxu0 0
        %5002 = vmatpush1.bf16.xpose.msra.mxu0 0
        %5003 = vmatprep.subr.bf16.mxu0 0
        %5004 = vmatpush1.bf16.xpose.msra.mxu0 0
        %5005 = vmatprep.subr.bf16.mxu0 0
        %5006 = vmatpush1.bf16.xpose.msra.mxu0 0
        %5007 = vmatprep.subr.bf16.mxu0 0
        %5008 = vmatpush1.bf16.xpose.msra.mxu0 0
        %5009 = vmatprep.subr.bf16.mxu0 0
        %5010 = vmatpush1.bf16.xpose.msra.mxu0 0
        %5011 = vmatprep.subr.bf16.mxu0 0
        %5012 = vmatpush1.bf16.xpose.msra.mxu0 0
        %5013 = vmatprep.subr.bf16.mxu0 0
        %5014 = vmatpush1.bf16.xpose.msra.mxu0 0
        %5015 = vmatprep.subr.bf16.mxu0 0
        %5016 = vmatpush1.bf16.xpose.msra.mxu0 0
        %5017 = vmatprep.subr.bf16.mxu0 0
        %5018 = vmatpush1.bf16.xpose.msra.mxu0 0
        %5019 = vmatprep.subr.bf16.mxu0 0
        %5020 = vmatpush1.bf16.xpose.msra.mxu0 0
        %5021 = vmatprep.subr.bf16.mxu0 0
        %5022 = vmatpush1.bf16.xpose.msra.mxu0 0
        %5023 = vmatprep.subr.bf16.mxu0 0
        %5024 = vmatpush1.bf16.xpose.msra.mxu0 0
        %5025 = vmatprep.subr.bf16.mxu0 0
        %5026 = vmatpush1.bf16.xpose.msra.mxu0 0
        %5027 = vmatprep.subr.bf16.mxu0 0
        %5028 = vmatpush1.bf16.xpose.msra.mxu0 0
        %5029 = vmatprep.subr.bf16.mxu0 0
        %5030 = vmatpush1.bf16.xpose.msra.mxu0 0
        %5031 = vmatprep.mubr.bf16.mxu0 0
        %5032 = vmatmul.mubr.bf16.gmra.mrb[0].mxu0 %v4994
        %v5033 = vpop.f32.mrb[0].mxu0
        %v5034 = vadd.f32 0.0, %v5033
        %v5035 = vpop.f32.mrb[0].mxu0
        %v5036 = vpop.f32.mrb[0].mxu0
        %v5037 = vadd.f32 0.0, %v5036
        %v5038 = vpop.f32.mrb[0].mxu0
        %5039 = vdwg.mxu0
        %v5040 = vsel %vm4555, %v4875, -inf
        %5041 = vmax.xlane.f32.xlu0 %v5040
        %v5042 = vpop.xlane.xlu0 %5041
        %v5043 = vsel %vm4555, %v4878, -inf
        %5044 = vmax.xlane.f32.xlu0 %v5043
        %v5045 = vpop.xlane.xlu0 %5044
        %v5046 = vsel %vm4555, %v4928, -inf
        %5047 = vmax.xlane.f32.xlu0 %v5046
        %v5048 = vpop.xlane.xlu0 %5047
        %v5049 = vsel %vm4555, %v4931, -inf
        %5050 = vmax.xlane.f32.xlu0 %v5049
        %v5051 = vpop.xlane.xlu0 %5050
        %v5052 = vsel %vm4555, %v4981, -inf
        %5053 = vmax.xlane.f32.xlu0 %v5052
        %v5054 = vpop.xlane.xlu0 %5053
        %v5055 = vsel %vm4555, %v4984, -inf
        %5056 = vmax.xlane.f32.xlu0 %v5055
        %v5057 = vpop.xlane.xlu0 %5056
        %v5058 = vsel %vm4555, %v5034, -inf
        %5059 = vmax.xlane.f32.xlu0 %v5058
        %v5060 = vpop.xlane.xlu0 %5059
        %v5061 = vsel %vm4555, %v5037, -inf
        %5062 = vmax.xlane.f32.xlu0 %v5061
        %v5063 = vpop.xlane.xlu0 %5062
        %v5064 = vsub.f32 %v4875, %v5042
        %v5065 = vsub.f32 %v4878, %v5045
        %v5066 = vsub.f32 %v4928, %v5048
        %v5067 = vsub.f32 %v4931, %v5051
        %v5068 = vsub.f32 %v4981, %v5054
        %v5069 = vsub.f32 %v4984, %v5057
        %v5070 = vsub.f32 %v5034, %v5060
        %v5071 = vsub.f32 %v5037, %v5063
        %v5072 = vmul.f32 %v5064, 1.442695
        %v5073 = vpow.pop %v5072
        %v5074 = vmul.f32 %v5065, 1.442695
        %v5075 = vpow.pop %v5074
        %v5076 = vmul.f32 %v5066, 1.442695
        %v5077 = vpow.pop %v5076
        %v5078 = vmul.f32 %v5067, 1.442695
        %v5079 = vpow.pop %v5078
        %v5080 = vmul.f32 %v5068, 1.442695
        %v5081 = vpow.pop %v5080
        %v5082 = vmul.f32 %v5069, 1.442695
        %v5083 = vpow.pop %v5082
        %v5084 = vmul.f32 %v5070, 1.442695
        %v5085 = vpow.pop %v5084
        %v5086 = vmul.f32 %v5071, 1.442695
        %v5087 = vpow.pop %v5086
        %v5088 = vsel %vm4555, %v5073, 0.0
        %5089 = vadd.xlane.f32.xlu0 %v5088
        %v5090 = vpop.xlane.xlu0 %5089
        %v5091 = vsel %vm4555, %v5075, 0.0
        %5092 = vadd.xlane.f32.xlu0 %v5091
        %v5093 = vpop.xlane.xlu0 %5092
        %v5094 = vsel %vm4555, %v5077, 0.0
        %5095 = vadd.xlane.f32.xlu0 %v5094
        %v5096 = vpop.xlane.xlu0 %5095
        %v5097 = vsel %vm4555, %v5079, 0.0
        %5098 = vadd.xlane.f32.xlu0 %v5097
        %v5099 = vpop.xlane.xlu0 %5098
        %v5100 = vsel %vm4555, %v5081, 0.0
        %5101 = vadd.xlane.f32.xlu0 %v5100
        %v5102 = vpop.xlane.xlu0 %5101
        %v5103 = vsel %vm4555, %v5083, 0.0
        %5104 = vadd.xlane.f32.xlu0 %v5103
        %v5105 = vpop.xlane.xlu0 %5104
        %v5106 = vsel %vm4555, %v5085, 0.0
        %5107 = vadd.xlane.f32.xlu0 %v5106
        %v5108 = vpop.xlane.xlu0 %5107
        %v5109 = vsel %vm4555, %v5087, 0.0
        %5110 = vadd.xlane.f32.xlu0 %v5109
        %v5111 = vpop.xlane.xlu0 %5110
        %v5112 = vrcp.pop %v5090
        %v5113 = vrcp.pop %v5093
        %v5114 = vrcp.pop %v5096
        %v5115 = vrcp.pop %v5099
        %v5116 = vrcp.pop %v5102
        %v5117 = vrcp.pop %v5105
        %v5118 = vrcp.pop %v5108
        %v5119 = vrcp.pop %v5111
        %v5120 = vmul.f32 %v5073, %v5112
        %v5121 = vmul.f32 %v5075, %v5113
        %v5122 = vmul.f32 %v5077, %v5114
        %v5123 = vmul.f32 %v5079, %v5115
        %v5124 = vmul.f32 %v5081, %v5116
        %v5125 = vmul.f32 %v5083, %v5117
        %v5126 = vmul.f32 %v5085, %v5118
        %v5127 = vmul.f32 %v5087, %v5119
        %v5128 = vpack.c.bf16 %v5121, %v5120
        %v5129 = vpack.c.bf16 %v5123, %v5122
        %v5130 = vpack.c.bf16 %v5125, %v5124
        %v5131 = vpack.c.bf16 %v5127, %v5126
        %5133 = vrot.lane.b32.xlu0 %v4362, 96
        %v5134 = vpop.permute.xlu0 %5133
        %v5137 = vsel %vm4555, %v5128, 0
        %5139 = vmatprep.subr.bf16.mxu0 0
        %5140 = vmatpush1.bf16.msra.mxu0 %v5134
        %5141 = vmatprep.subr.bf16.mxu0 0
        %5142 = vmatpush1.bf16.msra.mxu0 0
        %5143 = vmatprep.subr.bf16.mxu0 0
        %5144 = vmatpush1.bf16.msra.mxu0 0
        %5145 = vmatprep.subr.bf16.mxu0 0
        %5146 = vmatpush1.bf16.msra.mxu0 0
        %5147 = vmatprep.subr.bf16.mxu0 0
        %5148 = vmatpush1.bf16.msra.mxu0 0
        %5149 = vmatprep.subr.bf16.mxu0 0
        %5150 = vmatpush1.bf16.msra.mxu0 0
        %5151 = vmatprep.subr.bf16.mxu0 0
        %5152 = vmatpush1.bf16.msra.mxu0 0
        %5153 = vmatprep.subr.bf16.mxu0 0
        %5154 = vmatpush1.bf16.msra.mxu0 0
        %5155 = vmatprep.subr.bf16.mxu0 0
        %5156 = vmatpush1.bf16.msra.mxu0 0
        %5157 = vmatprep.subr.bf16.mxu0 0
        %5158 = vmatpush1.bf16.msra.mxu0 0
        %5159 = vmatprep.subr.bf16.mxu0 0
        %5160 = vmatpush1.bf16.msra.mxu0 0
        %5161 = vmatprep.subr.bf16.mxu0 0
        %5162 = vmatpush1.bf16.msra.mxu0 0
        %5163 = vmatprep.subr.bf16.mxu0 0
        %5164 = vmatpush1.bf16.msra.mxu0 0
        %5165 = vmatprep.subr.bf16.mxu0 0
        %5166 = vmatpush1.bf16.msra.mxu0 0
        %5167 = vmatprep.subr.bf16.mxu0 0
        %5168 = vmatpush1.bf16.msra.mxu0 0
        %5169 = vmatprep.subr.bf16.mxu0 0
        %5170 = vmatpush1.bf16.msra.mxu0 0
        %5171 = vmatprep.mubr.bf16.mxu0 0
        %5172 = vmatmul.mubr.bf16.gmra.mrb[0].mxu0 %v5137
        %v5173 = vpop.f32.mrb[0].mxu0
        %v5174 = vadd.f32 0.0, %v5173
        %v5175 = vpop.f32.mrb[0].mxu0
        %v5176 = vpop.f32.mrb[0].mxu0
        %v5177 = vadd.f32 0.0, %v5176
        %v5178 = vpop.f32.mrb[0].mxu0
        %5179 = vdwg.mxu0
        %5181 = vrot.lane.b32.xlu0 %v4363, 96
        %v5182 = vpop.permute.xlu0 %5181
        %v5185 = vsel %vm4555, %v5129, 0
        %5187 = vmatprep.subr.bf16.mxu0 0
        %5188 = vmatpush1.bf16.msra.mxu0 %v5182
        %5189 = vmatprep.subr.bf16.mxu0 0
        %5190 = vmatpush1.bf16.msra.mxu0 0
        %5191 = vmatprep.subr.bf16.mxu0 0
        %5192 = vmatpush1.bf16.msra.mxu0 0
        %5193 = vmatprep.subr.bf16.mxu0 0
        %5194 = vmatpush1.bf16.msra.mxu0 0
        %5195 = vmatprep.subr.bf16.mxu0 0
        %5196 = vmatpush1.bf16.msra.mxu0 0
        %5197 = vmatprep.subr.bf16.mxu0 0
        %5198 = vmatpush1.bf16.msra.mxu0 0
        %5199 = vmatprep.subr.bf16.mxu0 0
        %5200 = vmatpush1.bf16.msra.mxu0 0
        %5201 = vmatprep.subr.bf16.mxu0 0
        %5202 = vmatpush1.bf16.msra.mxu0 0
        %5203 = vmatprep.subr.bf16.mxu0 0
        %5204 = vmatpush1.bf16.msra.mxu0 0
        %5205 = vmatprep.subr.bf16.mxu0 0
        %5206 = vmatpush1.bf16.msra.mxu0 0
        %5207 = vmatprep.subr.bf16.mxu0 0
        %5208 = vmatpush1.bf16.msra.mxu0 0
        %5209 = vmatprep.subr.bf16.mxu0 0
        %5210 = vmatpush1.bf16.msra.mxu0 0
        %5211 = vmatprep.subr.bf16.mxu0 0
        %5212 = vmatpush1.bf16.msra.mxu0 0
        %5213 = vmatprep.subr.bf16.mxu0 0
        %5214 = vmatpush1.bf16.msra.mxu0 0
        %5215 = vmatprep.subr.bf16.mxu0 0
        %5216 = vmatpush1.bf16.msra.mxu0 0
        %5217 = vmatprep.subr.bf16.mxu0 0
        %5218 = vmatpush1.bf16.msra.mxu0 0
        %5219 = vmatprep.mubr.bf16.mxu0 0
        %5220 = vmatmul.mubr.bf16.gmra.mrb[0].mxu0 %v5185
        %v5221 = vpop.f32.mrb[0].mxu0
        %v5222 = vadd.f32 0.0, %v5221
        %v5223 = vpop.f32.mrb[0].mxu0
        %v5224 = vpop.f32.mrb[0].mxu0
        %v5225 = vadd.f32 0.0, %v5224
        %v5226 = vpop.f32.mrb[0].mxu0
        %5227 = vdwg.mxu0
        %5229 = vrot.lane.b32.xlu0 %v4364, 96
        %v5230 = vpop.permute.xlu0 %5229
        %v5233 = vsel %vm4555, %v5130, 0
        %5235 = vmatprep.subr.bf16.mxu0 0
        %5236 = vmatpush1.bf16.msra.mxu0 %v5230
        %5237 = vmatprep.subr.bf16.mxu0 0
        %5238 = vmatpush1.bf16.msra.mxu0 0
        %5239 = vmatprep.subr.bf16.mxu0 0
        %5240 = vmatpush1.bf16.msra.mxu0 0
        %5241 = vmatprep.subr.bf16.mxu0 0
        %5242 = vmatpush1.bf16.msra.mxu0 0
        %5243 = vmatprep.subr.bf16.mxu0 0
        %5244 = vmatpush1.bf16.msra.mxu0 0
        %5245 = vmatprep.subr.bf16.mxu0 0
        %5246 = vmatpush1.bf16.msra.mxu0 0
        %5247 = vmatprep.subr.bf16.mxu0 0
        %5248 = vmatpush1.bf16.msra.mxu0 0
        %5249 = vmatprep.subr.bf16.mxu0 0
        %5250 = vmatpush1.bf16.msra.mxu0 0
        %5251 = vmatprep.subr.bf16.mxu0 0
        %5252 = vmatpush1.bf16.msra.mxu0 0
        %5253 = vmatprep.subr.bf16.mxu0 0
        %5254 = vmatpush1.bf16.msra.mxu0 0
        %5255 = vmatprep.subr.bf16.mxu0 0
        %5256 = vmatpush1.bf16.msra.mxu0 0
        %5257 = vmatprep.subr.bf16.mxu0 0
        %5258 = vmatpush1.bf16.msra.mxu0 0
        %5259 = vmatprep.subr.bf16.mxu0 0
        %5260 = vmatpush1.bf16.msra.mxu0 0
        %5261 = vmatprep.subr.bf16.mxu0 0
        %5262 = vmatpush1.bf16.msra.mxu0 0
        %5263 = vmatprep.subr.bf16.mxu0 0
        %5264 = vmatpush1.bf16.msra.mxu0 0
        %5265 = vmatprep.subr.bf16.mxu0 0
        %5266 = vmatpush1.bf16.msra.mxu0 0
        %5267 = vmatprep.mubr.bf16.mxu0 0
        %5268 = vmatmul.mubr.bf16.gmra.mrb[0].mxu0 %v5233
        %v5269 = vpop.f32.mrb[0].mxu0
        %v5270 = vadd.f32 0.0, %v5269
        %v5271 = vpop.f32.mrb[0].mxu0
        %v5272 = vpop.f32.mrb[0].mxu0
        %v5273 = vadd.f32 0.0, %v5272
        %v5274 = vpop.f32.mrb[0].mxu0
        %5275 = vdwg.mxu0
        %5277 = vrot.lane.b32.xlu0 %v4365, 96
        %v5278 = vpop.permute.xlu0 %5277
        %v5281 = vsel %vm4555, %v5131, 0
        %5283 = vmatprep.subr.bf16.mxu0 0
        %5284 = vmatpush1.bf16.msra.mxu0 %v5278
        %5285 = vmatprep.subr.bf16.mxu0 0
        %5286 = vmatpush1.bf16.msra.mxu0 0
        %5287 = vmatprep.subr.bf16.mxu0 0
        %5288 = vmatpush1.bf16.msra.mxu0 0
        %5289 = vmatprep.subr.bf16.mxu0 0
        %5290 = vmatpush1.bf16.msra.mxu0 0
        %5291 = vmatprep.subr.bf16.mxu0 0
        %5292 = vmatpush1.bf16.msra.mxu0 0
        %5293 = vmatprep.subr.bf16.mxu0 0
        %5294 = vmatpush1.bf16.msra.mxu0 0
        %5295 = vmatprep.subr.bf16.mxu0 0
        %5296 = vmatpush1.bf16.msra.mxu0 0
        %5297 = vmatprep.subr.bf16.mxu0 0
        %5298 = vmatpush1.bf16.msra.mxu0 0
        %5299 = vmatprep.subr.bf16.mxu0 0
        %5300 = vmatpush1.bf16.msra.mxu0 0
        %5301 = vmatprep.subr.bf16.mxu0 0
        %5302 = vmatpush1.bf16.msra.mxu0 0
        %5303 = vmatprep.subr.bf16.mxu0 0
        %5304 = vmatpush1.bf16.msra.mxu0 0
        %5305 = vmatprep.subr.bf16.mxu0 0
        %5306 = vmatpush1.bf16.msra.mxu0 0
        %5307 = vmatprep.subr.bf16.mxu0 0
        %5308 = vmatpush1.bf16.msra.mxu0 0
        %5309 = vmatprep.subr.bf16.mxu0 0
        %5310 = vmatpush1.bf16.msra.mxu0 0
        %5311 = vmatprep.subr.bf16.mxu0 0
        %5312 = vmatpush1.bf16.msra.mxu0 0
        %5313 = vmatprep.subr.bf16.mxu0 0
        %5314 = vmatpush1.bf16.msra.mxu0 0
        %5315 = vmatprep.mubr.bf16.mxu0 0
        %5316 = vmatmul.mubr.bf16.gmra.mrb[0].mxu0 %v5281
        %v5317 = vpop.f32.mrb[0].mxu0
        %v5318 = vadd.f32 0.0, %v5317
        %v5319 = vpop.f32.mrb[0].mxu0
        %v5320 = vpop.f32.mrb[0].mxu0
        %v5321 = vadd.f32 0.0, %v5320
        %v5322 = vpop.f32.mrb[0].mxu0
        %5323 = vdwg.mxu0
        %v5324 = vpack.c.bf16 %v5177, %v5174
        %v5325 = vpack.c.bf16 %v5225, %v5222
        %v5326 = vpack.c.bf16 %v5273, %v5270
        %v5327 = vpack.c.bf16 %v5321, %v5318
        %5328 = vrot.lane.b32.xlu0 %v4354, 64
        %v5329 = vpop.permute.xlu0 %5328
        %5330 = vrot.lane.b32.xlu0 %v4358, 64
        %v5331 = vpop.permute.xlu0 %5330
        %v5333 = vsel %vm4366, %v5329, 0
        %v5336 = vsel %vm4366, %v5331, 0
        %5338 = vmatprep.subr.bf16.mxu0 0
        %5339 = vmatpush1.bf16.xpose.msra.mxu0 %v5336
        %5340 = vmatprep.subr.bf16.mxu0 0
        %5341 = vmatpush1.bf16.xpose.msra.mxu0 0
        %5342 = vmatprep.subr.bf16.mxu0 0
        %5343 = vmatpush1.bf16.xpose.msra.mxu0 0
        %5344 = vmatprep.subr.bf16.mxu0 0
        %5345 = vmatpush1.bf16.xpose.msra.mxu0 0
        %5346 = vmatprep.subr.bf16.mxu0 0
        %5347 = vmatpush1.bf16.xpose.msra.mxu0 0
        %5348 = vmatprep.subr.bf16.mxu0 0
        %5349 = vmatpush1.bf16.xpose.msra.mxu0 0
        %5350 = vmatprep.subr.bf16.mxu0 0
        %5351 = vmatpush1.bf16.xpose.msra.mxu0 0
        %5352 = vmatprep.subr.bf16.mxu0 0
        %5353 = vmatpush1.bf16.xpose.msra.mxu0 0
        %5354 = vmatprep.subr.bf16.mxu0 0
        %5355 = vmatpush1.bf16.xpose.msra.mxu0 0
        %5356 = vmatprep.subr.bf16.mxu0 0
        %5357 = vmatpush1.bf16.xpose.msra.mxu0 0
        %5358 = vmatprep.subr.bf16.mxu0 0
        %5359 = vmatpush1.bf16.xpose.msra.mxu0 0
        %5360 = vmatprep.subr.bf16.mxu0 0
        %5361 = vmatpush1.bf16.xpose.msra.mxu0 0
        %5362 = vmatprep.subr.bf16.mxu0 0
        %5363 = vmatpush1.bf16.xpose.msra.mxu0 0
        %5364 = vmatprep.subr.bf16.mxu0 0
        %5365 = vmatpush1.bf16.xpose.msra.mxu0 0
        %5366 = vmatprep.subr.bf16.mxu0 0
        %5367 = vmatpush1.bf16.xpose.msra.mxu0 0
        %5368 = vmatprep.subr.bf16.mxu0 0
        %5369 = vmatpush1.bf16.xpose.msra.mxu0 0
        %5370 = vmatprep.mubr.bf16.mxu0 0
        %5371 = vmatmul.mubr.bf16.gmra.mrb[0].mxu0 %v5333
        %v5372 = vpop.f32.mrb[0].mxu0
        %v5373 = vadd.f32 0.0, %v5372
        %v5374 = vpop.f32.mrb[0].mxu0
        %v5375 = vpop.f32.mrb[0].mxu0
        %v5376 = vadd.f32 0.0, %v5375
        %v5377 = vpop.f32.mrb[0].mxu0
        %5378 = vdwg.mxu0
        %5379 = vrot.lane.b32.xlu0 %v4355, 64
        %v5380 = vpop.permute.xlu0 %5379
        %5381 = vrot.lane.b32.xlu0 %v4359, 64
        %v5382 = vpop.permute.xlu0 %5381
        %v5384 = vsel %vm4366, %v5380, 0
        %v5387 = vsel %vm4366, %v5382, 0
        %5389 = vmatprep.subr.bf16.mxu0 0
        %5390 = vmatpush1.bf16.xpose.msra.mxu0 %v5387
        %5391 = vmatprep.subr.bf16.mxu0 0
        %5392 = vmatpush1.bf16.xpose.msra.mxu0 0
        %5393 = vmatprep.subr.bf16.mxu0 0
        %5394 = vmatpush1.bf16.xpose.msra.mxu0 0
        %5395 = vmatprep.subr.bf16.mxu0 0
        %5396 = vmatpush1.bf16.xpose.msra.mxu0 0
        %5397 = vmatprep.subr.bf16.mxu0 0
        %5398 = vmatpush1.bf16.xpose.msra.mxu0 0
        %5399 = vmatprep.subr.bf16.mxu0 0
        %5400 = vmatpush1.bf16.xpose.msra.mxu0 0
        %5401 = vmatprep.subr.bf16.mxu0 0
        %5402 = vmatpush1.bf16.xpose.msra.mxu0 0
        %5403 = vmatprep.subr.bf16.mxu0 0
        %5404 = vmatpush1.bf16.xpose.msra.mxu0 0
        %5405 = vmatprep.subr.bf16.mxu0 0
        %5406 = vmatpush1.bf16.xpose.msra.mxu0 0
        %5407 = vmatprep.subr.bf16.mxu0 0
        %5408 = vmatpush1.bf16.xpose.msra.mxu0 0
        %5409 = vmatprep.subr.bf16.mxu0 0
        %5410 = vmatpush1.bf16.xpose.msra.mxu0 0
        %5411 = vmatprep.subr.bf16.mxu0 0
        %5412 = vmatpush1.bf16.xpose.msra.mxu0 0
        %5413 = vmatprep.subr.bf16.mxu0 0
        %5414 = vmatpush1.bf16.xpose.msra.mxu0 0
        %5415 = vmatprep.subr.bf16.mxu0 0
        %5416 = vmatpush1.bf16.xpose.msra.mxu0 0
        %5417 = vmatprep.subr.bf16.mxu0 0
        %5418 = vmatpush1.bf16.xpose.msra.mxu0 0
        %5419 = vmatprep.subr.bf16.mxu0 0
        %5420 = vmatpush1.bf16.xpose.msra.mxu0 0
        %5421 = vmatprep.mubr.bf16.mxu0 0
        %5422 = vmatmul.mubr.bf16.gmra.mrb[0].mxu0 %v5384
        %v5423 = vpop.f32.mrb[0].mxu0
        %v5424 = vadd.f32 0.0, %v5423
        %v5425 = vpop.f32.mrb[0].mxu0
        %v5426 = vpop.f32.mrb[0].mxu0
        %v5427 = vadd.f32 0.0, %v5426
        %v5428 = vpop.f32.mrb[0].mxu0
        %5429 = vdwg.mxu0
        %5430 = vrot.lane.b32.xlu0 %v4356, 64
        %v5431 = vpop.permute.xlu0 %5430
        %5432 = vrot.lane.b32.xlu0 %v4360, 64
        %v5433 = vpop.permute.xlu0 %5432
        %v5435 = vsel %vm4366, %v5431, 0
        %v5438 = vsel %vm4366, %v5433, 0
        %5440 = vmatprep.subr.bf16.mxu0 0
        %5441 = vmatpush1.bf16.xpose.msra.mxu0 %v5438
        %5442 = vmatprep.subr.bf16.mxu0 0
        %5443 = vmatpush1.bf16.xpose.msra.mxu0 0
        %5444 = vmatprep.subr.bf16.mxu0 0
        %5445 = vmatpush1.bf16.xpose.msra.mxu0 0
        %5446 = vmatprep.subr.bf16.mxu0 0
        %5447 = vmatpush1.bf16.xpose.msra.mxu0 0
        %5448 = vmatprep.subr.bf16.mxu0 0
        %5449 = vmatpush1.bf16.xpose.msra.mxu0 0
        %5450 = vmatprep.subr.bf16.mxu0 0
        %5451 = vmatpush1.bf16.xpose.msra.mxu0 0
        %5452 = vmatprep.subr.bf16.mxu0 0
        %5453 = vmatpush1.bf16.xpose.msra.mxu0 0
        %5454 = vmatprep.subr.bf16.mxu0 0
        %5455 = vmatpush1.bf16.xpose.msra.mxu0 0
        %5456 = vmatprep.subr.bf16.mxu0 0
        %5457 = vmatpush1.bf16.xpose.msra.mxu0 0
        %5458 = vmatprep.subr.bf16.mxu0 0
        %5459 = vmatpush1.bf16.xpose.msra.mxu0 0
        %5460 = vmatprep.subr.bf16.mxu0 0
        %5461 = vmatpush1.bf16.xpose.msra.mxu0 0
        %5462 = vmatprep.subr.bf16.mxu0 0
        %5463 = vmatpush1.bf16.xpose.msra.mxu0 0
        %5464 = vmatprep.subr.bf16.mxu0 0
        %5465 = vmatpush1.bf16.xpose.msra.mxu0 0
        %5466 = vmatprep.subr.bf16.mxu0 0
        %5467 = vmatpush1.bf16.xpose.msra.mxu0 0
        %5468 = vmatprep.subr.bf16.mxu0 0
        %5469 = vmatpush1.bf16.xpose.msra.mxu0 0
        %5470 = vmatprep.subr.bf16.mxu0 0
        %5471 = vmatpush1.bf16.xpose.msra.mxu0 0
        %5472 = vmatprep.mubr.bf16.mxu0 0
        %5473 = vmatmul.mubr.bf16.gmra.mrb[0].mxu0 %v5435
        %v5474 = vpop.f32.mrb[0].mxu0
        %v5475 = vadd.f32 0.0, %v5474
        %v5476 = vpop.f32.mrb[0].mxu0
        %v5477 = vpop.f32.mrb[0].mxu0
        %v5478 = vadd.f32 0.0, %v5477
        %v5479 = vpop.f32.mrb[0].mxu0
        %5480 = vdwg.mxu0
        %5481 = vrot.lane.b32.xlu0 %v4357, 64
        %v5482 = vpop.permute.xlu0 %5481
        %5483 = vrot.lane.b32.xlu0 %v4361, 64
        %v5484 = vpop.permute.xlu0 %5483
        %v5486 = vsel %vm4366, %v5482, 0
        %v5489 = vsel %vm4366, %v5484, 0
        %5491 = vmatprep.subr.bf16.mxu0 0
        %5492 = vmatpush1.bf16.xpose.msra.mxu0 %v5489
        %5493 = vmatprep.subr.bf16.mxu0 0
        %5494 = vmatpush1.bf16.xpose.msra.mxu0 0
        %5495 = vmatprep.subr.bf16.mxu0 0
        %5496 = vmatpush1.bf16.xpose.msra.mxu0 0
        %5497 = vmatprep.subr.bf16.mxu0 0
        %5498 = vmatpush1.bf16.xpose.msra.mxu0 0
        %5499 = vmatprep.subr.bf16.mxu0 0
        %5500 = vmatpush1.bf16.xpose.msra.mxu0 0
        %5501 = vmatprep.subr.bf16.mxu0 0
        %5502 = vmatpush1.bf16.xpose.msra.mxu0 0
        %5503 = vmatprep.subr.bf16.mxu0 0
        %5504 = vmatpush1.bf16.xpose.msra.mxu0 0
        %5505 = vmatprep.subr.bf16.mxu0 0
        %5506 = vmatpush1.bf16.xpose.msra.mxu0 0
        %5507 = vmatprep.subr.bf16.mxu0 0
        %5508 = vmatpush1.bf16.xpose.msra.mxu0 0
        %5509 = vmatprep.subr.bf16.mxu0 0
        %5510 = vmatpush1.bf16.xpose.msra.mxu0 0
        %5511 = vmatprep.subr.bf16.mxu0 0
        %5512 = vmatpush1.bf16.xpose.msra.mxu0 0
        %5513 = vmatprep.subr.bf16.mxu0 0
        %5514 = vmatpush1.bf16.xpose.msra.mxu0 0
        %5515 = vmatprep.subr.bf16.mxu0 0
        %5516 = vmatpush1.bf16.xpose.msra.mxu0 0
        %5517 = vmatprep.subr.bf16.mxu0 0
        %5518 = vmatpush1.bf16.xpose.msra.mxu0 0
        %5519 = vmatprep.subr.bf16.mxu0 0
        %5520 = vmatpush1.bf16.xpose.msra.mxu0 0
        %5521 = vmatprep.subr.bf16.mxu0 0
        %5522 = vmatpush1.bf16.xpose.msra.mxu0 0
        %5523 = vmatprep.mubr.bf16.mxu0 0
        %5524 = vmatmul.mubr.bf16.gmra.mrb[0].mxu0 %v5486
        %v5525 = vpop.f32.mrb[0].mxu0
        %v5526 = vadd.f32 0.0, %v5525
        %v5527 = vpop.f32.mrb[0].mxu0
        %v5528 = vpop.f32.mrb[0].mxu0
        %v5529 = vadd.f32 0.0, %v5528
        %v5530 = vpop.f32.mrb[0].mxu0
        %5531 = vdwg.mxu0
        %v5532 = vsel %vm4555, %v5373, -inf
        %5533 = vmax.xlane.f32.xlu0 %v5532
        %v5534 = vpop.xlane.xlu0 %5533
        %v5535 = vsel %vm4555, %v5376, -inf
        %5536 = vmax.xlane.f32.xlu0 %v5535
        %v5537 = vpop.xlane.xlu0 %5536
        %v5538 = vsel %vm4555, %v5424, -inf
        %5539 = vmax.xlane.f32.xlu0 %v5538
        %v5540 = vpop.xlane.xlu0 %5539
        %v5541 = vsel %vm4555, %v5427, -inf
        %5542 = vmax.xlane.f32.xlu0 %v5541
        %v5543 = vpop.xlane.xlu0 %5542
        %v5544 = vsel %vm4555, %v5475, -inf
        %5545 = vmax.xlane.f32.xlu0 %v5544
        %v5546 = vpop.xlane.xlu0 %5545
        %v5547 = vsel %vm4555, %v5478, -inf
        %5548 = vmax.xlane.f32.xlu0 %v5547
        %v5549 = vpop.xlane.xlu0 %5548
        %v5550 = vsel %vm4555, %v5526, -inf
        %5551 = vmax.xlane.f32.xlu0 %v5550
        %v5552 = vpop.xlane.xlu0 %5551
        %v5553 = vsel %vm4555, %v5529, -inf
        %5554 = vmax.xlane.f32.xlu0 %v5553
        %v5555 = vpop.xlane.xlu0 %5554
        %v5556 = vsub.f32 %v5373, %v5534
        %v5557 = vsub.f32 %v5376, %v5537
        %v5558 = vsub.f32 %v5424, %v5540
        %v5559 = vsub.f32 %v5427, %v5543
        %v5560 = vsub.f32 %v5475, %v5546
        %v5561 = vsub.f32 %v5478, %v5549
        %v5562 = vsub.f32 %v5526, %v5552
        %v5563 = vsub.f32 %v5529, %v5555
        %v5564 = vmul.f32 %v5556, 1.442695
        %v5565 = vpow.pop %v5564
        %v5566 = vmul.f32 %v5557, 1.442695
        %v5567 = vpow.pop %v5566
        %v5568 = vmul.f32 %v5558, 1.442695
        %v5569 = vpow.pop %v5568
        %v5570 = vmul.f32 %v5559, 1.442695
        %v5571 = vpow.pop %v5570
        %v5572 = vmul.f32 %v5560, 1.442695
        %v5573 = vpow.pop %v5572
        %v5574 = vmul.f32 %v5561, 1.442695
        %v5575 = vpow.pop %v5574
        %v5576 = vmul.f32 %v5562, 1.442695
        %v5577 = vpow.pop %v5576
        %v5578 = vmul.f32 %v5563, 1.442695
        %v5579 = vpow.pop %v5578
        %v5580 = vsel %vm4555, %v5565, 0.0
        %5581 = vadd.xlane.f32.xlu0 %v5580
        %v5582 = vpop.xlane.xlu0 %5581
        %v5583 = vsel %vm4555, %v5567, 0.0
        %5584 = vadd.xlane.f32.xlu0 %v5583
        %v5585 = vpop.xlane.xlu0 %5584
        %v5586 = vsel %vm4555, %v5569, 0.0
        %5587 = vadd.xlane.f32.xlu0 %v5586
        %v5588 = vpop.xlane.xlu0 %5587
        %v5589 = vsel %vm4555, %v5571, 0.0
        %5590 = vadd.xlane.f32.xlu0 %v5589
        %v5591 = vpop.xlane.xlu0 %5590
        %v5592 = vsel %vm4555, %v5573, 0.0
        %5593 = vadd.xlane.f32.xlu0 %v5592
        %v5594 = vpop.xlane.xlu0 %5593
        %v5595 = vsel %vm4555, %v5575, 0.0
        %5596 = vadd.xlane.f32.xlu0 %v5595
        %v5597 = vpop.xlane.xlu0 %5596
        %v5598 = vsel %vm4555, %v5577, 0.0
        %5599 = vadd.xlane.f32.xlu0 %v5598
        %v5600 = vpop.xlane.xlu0 %5599
        %v5601 = vsel %vm4555, %v5579, 0.0
        %5602 = vadd.xlane.f32.xlu0 %v5601
        %v5603 = vpop.xlane.xlu0 %5602
        %v5604 = vrcp.pop %v5582
        %v5605 = vrcp.pop %v5585
        %v5606 = vrcp.pop %v5588
        %v5607 = vrcp.pop %v5591
        %v5608 = vrcp.pop %v5594
        %v5609 = vrcp.pop %v5597
        %v5610 = vrcp.pop %v5600
        %v5611 = vrcp.pop %v5603
        %v5612 = vmul.f32 %v5565, %v5604
        %v5613 = vmul.f32 %v5567, %v5605
        %v5614 = vmul.f32 %v5569, %v5606
        %v5615 = vmul.f32 %v5571, %v5607
        %v5616 = vmul.f32 %v5573, %v5608
        %v5617 = vmul.f32 %v5575, %v5609
        %v5618 = vmul.f32 %v5577, %v5610
        %v5619 = vmul.f32 %v5579, %v5611
        %v5620 = vpack.c.bf16 %v5613, %v5612
        %v5621 = vpack.c.bf16 %v5615, %v5614
        %v5622 = vpack.c.bf16 %v5617, %v5616
        %v5623 = vpack.c.bf16 %v5619, %v5618
        %5624 = vrot.lane.b32.xlu0 %v4362, 64
        %v5625 = vpop.permute.xlu0 %5624
        %v5628 = vsel %vm4555, %v5620, 0
        %5630 = vmatprep.subr.bf16.mxu0 0
        %5631 = vmatpush1.bf16.msra.mxu0 %v5625
        %5632 = vmatprep.subr.bf16.mxu0 0
        %5633 = vmatpush1.bf16.msra.mxu0 0
        %5634 = vmatprep.subr.bf16.mxu0 0
        %5635 = vmatpush1.bf16.msra.mxu0 0
        %5636 = vmatprep.subr.bf16.mxu0 0
        %5637 = vmatpush1.bf16.msra.mxu0 0
        %5638 = vmatprep.subr.bf16.mxu0 0
        %5639 = vmatpush1.bf16.msra.mxu0 0
        %5640 = vmatprep.subr.bf16.mxu0 0
        %5641 = vmatpush1.bf16.msra.mxu0 0
        %5642 = vmatprep.subr.bf16.mxu0 0
        %5643 = vmatpush1.bf16.msra.mxu0 0
        %5644 = vmatprep.subr.bf16.mxu0 0
        %5645 = vmatpush1.bf16.msra.mxu0 0
        %5646 = vmatprep.subr.bf16.mxu0 0
        %5647 = vmatpush1.bf16.msra.mxu0 0
        %5648 = vmatprep.subr.bf16.mxu0 0
        %5649 = vmatpush1.bf16.msra.mxu0 0
        %5650 = vmatprep.subr.bf16.mxu0 0
        %5651 = vmatpush1.bf16.msra.mxu0 0
        %5652 = vmatprep.subr.bf16.mxu0 0
        %5653 = vmatpush1.bf16.msra.mxu0 0
        %5654 = vmatprep.subr.bf16.mxu0 0
        %5655 = vmatpush1.bf16.msra.mxu0 0
        %5656 = vmatprep.subr.bf16.mxu0 0
        %5657 = vmatpush1.bf16.msra.mxu0 0
        %5658 = vmatprep.subr.bf16.mxu0 0
        %5659 = vmatpush1.bf16.msra.mxu0 0
        %5660 = vmatprep.subr.bf16.mxu0 0
        %5661 = vmatpush1.bf16.msra.mxu0 0
        %5662 = vmatprep.mubr.bf16.mxu0 0
        %5663 = vmatmul.mubr.bf16.gmra.mrb[0].mxu0 %v5628
        %v5664 = vpop.f32.mrb[0].mxu0
        %v5665 = vadd.f32 0.0, %v5664
        %v5666 = vpop.f32.mrb[0].mxu0
        %v5667 = vpop.f32.mrb[0].mxu0
        %v5668 = vadd.f32 0.0, %v5667
        %v5669 = vpop.f32.mrb[0].mxu0
        %5670 = vdwg.mxu0
        %5671 = vrot.lane.b32.xlu0 %v4363, 64
        %v5672 = vpop.permute.xlu0 %5671
        %v5675 = vsel %vm4555, %v5621, 0
        %5677 = vmatprep.subr.bf16.mxu0 0
        %5678 = vmatpush1.bf16.msra.mxu0 %v5672
        %5679 = vmatprep.subr.bf16.mxu0 0
        %5680 = vmatpush1.bf16.msra.mxu0 0
        %5681 = vmatprep.subr.bf16.mxu0 0
        %5682 = vmatpush1.bf16.msra.mxu0 0
        %5683 = vmatprep.subr.bf16.mxu0 0
        %5684 = vmatpush1.bf16.msra.mxu0 0
        %5685 = vmatprep.subr.bf16.mxu0 0
        %5686 = vmatpush1.bf16.msra.mxu0 0
        %5687 = vmatprep.subr.bf16.mxu0 0
        %5688 = vmatpush1.bf16.msra.mxu0 0
        %5689 = vmatprep.subr.bf16.mxu0 0
        %5690 = vmatpush1.bf16.msra.mxu0 0
        %5691 = vmatprep.subr.bf16.mxu0 0
        %5692 = vmatpush1.bf16.msra.mxu0 0
        %5693 = vmatprep.subr.bf16.mxu0 0
        %5694 = vmatpush1.bf16.msra.mxu0 0
        %5695 = vmatprep.subr.bf16.mxu0 0
        %5696 = vmatpush1.bf16.msra.mxu0 0
        %5697 = vmatprep.subr.bf16.mxu0 0
        %5698 = vmatpush1.bf16.msra.mxu0 0
        %5699 = vmatprep.subr.bf16.mxu0 0
        %5700 = vmatpush1.bf16.msra.mxu0 0
        %5701 = vmatprep.subr.bf16.mxu0 0
        %5702 = vmatpush1.bf16.msra.mxu0 0
        %5703 = vmatprep.subr.bf16.mxu0 0
        %5704 = vmatpush1.bf16.msra.mxu0 0
        %5705 = vmatprep.subr.bf16.mxu0 0
        %5706 = vmatpush1.bf16.msra.mxu0 0
        %5707 = vmatprep.subr.bf16.mxu0 0
        %5708 = vmatpush1.bf16.msra.mxu0 0
        %5709 = vmatprep.mubr.bf16.mxu0 0
        %5710 = vmatmul.mubr.bf16.gmra.mrb[0].mxu0 %v5675
        %v5711 = vpop.f32.mrb[0].mxu0
        %v5712 = vadd.f32 0.0, %v5711
        %v5713 = vpop.f32.mrb[0].mxu0
        %v5714 = vpop.f32.mrb[0].mxu0
        %v5715 = vadd.f32 0.0, %v5714
        %v5716 = vpop.f32.mrb[0].mxu0
        %5717 = vdwg.mxu0
        %5718 = vrot.lane.b32.xlu0 %v4364, 64
        %v5719 = vpop.permute.xlu0 %5718
        %v5722 = vsel %vm4555, %v5622, 0
        %5724 = vmatprep.subr.bf16.mxu0 0
        %5725 = vmatpush1.bf16.msra.mxu0 %v5719
        %5726 = vmatprep.subr.bf16.mxu0 0
        %5727 = vmatpush1.bf16.msra.mxu0 0
        %5728 = vmatprep.subr.bf16.mxu0 0
        %5729 = vmatpush1.bf16.msra.mxu0 0
        %5730 = vmatprep.subr.bf16.mxu0 0
        %5731 = vmatpush1.bf16.msra.mxu0 0
        %5732 = vmatprep.subr.bf16.mxu0 0
        %5733 = vmatpush1.bf16.msra.mxu0 0
        %5734 = vmatprep.subr.bf16.mxu0 0
        %5735 = vmatpush1.bf16.msra.mxu0 0
        %5736 = vmatprep.subr.bf16.mxu0 0
        %5737 = vmatpush1.bf16.msra.mxu0 0
        %5738 = vmatprep.subr.bf16.mxu0 0
        %5739 = vmatpush1.bf16.msra.mxu0 0
        %5740 = vmatprep.subr.bf16.mxu0 0
        %5741 = vmatpush1.bf16.msra.mxu0 0
        %5742 = vmatprep.subr.bf16.mxu0 0
        %5743 = vmatpush1.bf16.msra.mxu0 0
        %5744 = vmatprep.subr.bf16.mxu0 0
        %5745 = vmatpush1.bf16.msra.mxu0 0
        %5746 = vmatprep.subr.bf16.mxu0 0
        %5747 = vmatpush1.bf16.msra.mxu0 0
        %5748 = vmatprep.subr.bf16.mxu0 0
        %5749 = vmatpush1.bf16.msra.mxu0 0
        %5750 = vmatprep.subr.bf16.mxu0 0
        %5751 = vmatpush1.bf16.msra.mxu0 0
        %5752 = vmatprep.subr.bf16.mxu0 0
        %5753 = vmatpush1.bf16.msra.mxu0 0
        %5754 = vmatprep.subr.bf16.mxu0 0
        %5755 = vmatpush1.bf16.msra.mxu0 0
        %5756 = vmatprep.mubr.bf16.mxu0 0
        %5757 = vmatmul.mubr.bf16.gmra.mrb[0].mxu0 %v5722
        %v5758 = vpop.f32.mrb[0].mxu0
        %v5759 = vadd.f32 0.0, %v5758
        %v5760 = vpop.f32.mrb[0].mxu0
        %v5761 = vpop.f32.mrb[0].mxu0
        %v5762 = vadd.f32 0.0, %v5761
        %v5763 = vpop.f32.mrb[0].mxu0
        %5764 = vdwg.mxu0
        %5765 = vrot.lane.b32.xlu0 %v4365, 64
        %v5766 = vpop.permute.xlu0 %5765
        %v5769 = vsel %vm4555, %v5623, 0
        %5771 = vmatprep.subr.bf16.mxu0 0
        %5772 = vmatpush1.bf16.msra.mxu0 %v5766
        %5773 = vmatprep.subr.bf16.mxu0 0
        %5774 = vmatpush1.bf16.msra.mxu0 0
        %5775 = vmatprep.subr.bf16.mxu0 0
        %5776 = vmatpush1.bf16.msra.mxu0 0
        %5777 = vmatprep.subr.bf16.mxu0 0
        %5778 = vmatpush1.bf16.msra.mxu0 0
        %5779 = vmatprep.subr.bf16.mxu0 0
        %5780 = vmatpush1.bf16.msra.mxu0 0
        %5781 = vmatprep.subr.bf16.mxu0 0
        %5782 = vmatpush1.bf16.msra.mxu0 0
        %5783 = vmatprep.subr.bf16.mxu0 0
        %5784 = vmatpush1.bf16.msra.mxu0 0
        %5785 = vmatprep.subr.bf16.mxu0 0
        %5786 = vmatpush1.bf16.msra.mxu0 0
        %5787 = vmatprep.subr.bf16.mxu0 0
        %5788 = vmatpush1.bf16.msra.mxu0 0
        %5789 = vmatprep.subr.bf16.mxu0 0
        %5790 = vmatpush1.bf16.msra.mxu0 0
        %5791 = vmatprep.subr.bf16.mxu0 0
        %5792 = vmatpush1.bf16.msra.mxu0 0
        %5793 = vmatprep.subr.bf16.mxu0 0
        %5794 = vmatpush1.bf16.msra.mxu0 0
        %5795 = vmatprep.subr.bf16.mxu0 0
        %5796 = vmatpush1.bf16.msra.mxu0 0
        %5797 = vmatprep.subr.bf16.mxu0 0
        %5798 = vmatpush1.bf16.msra.mxu0 0
        %5799 = vmatprep.subr.bf16.mxu0 0
        %5800 = vmatpush1.bf16.msra.mxu0 0
        %5801 = vmatprep.subr.bf16.mxu0 0
        %5802 = vmatpush1.bf16.msra.mxu0 0
        %5803 = vmatprep.mubr.bf16.mxu0 0
        %5804 = vmatmul.mubr.bf16.gmra.mrb[0].mxu0 %v5769
        %v5805 = vpop.f32.mrb[0].mxu0
        %v5806 = vadd.f32 0.0, %v5805
        %v5807 = vpop.f32.mrb[0].mxu0
        %v5808 = vpop.f32.mrb[0].mxu0
        %v5809 = vadd.f32 0.0, %v5808
        %v5810 = vpop.f32.mrb[0].mxu0
        %5811 = vdwg.mxu0
        %v5812 = vpack.c.bf16 %v5668, %v5665
        %v5813 = vpack.c.bf16 %v5715, %v5712
        %v5814 = vpack.c.bf16 %v5762, %v5759
        %v5815 = vpack.c.bf16 %v5809, %v5806
        %5816 = vrot.lane.b32.xlu0 %v4354, 32
        %v5817 = vpop.permute.xlu0 %5816
        %5818 = vrot.lane.b32.xlu0 %v4358, 32
        %v5819 = vpop.permute.xlu0 %5818
        %v5821 = vsel %vm4366, %v5817, 0
        %v5824 = vsel %vm4366, %v5819, 0
        %5826 = vmatprep.subr.bf16.mxu0 0
        %5827 = vmatpush1.bf16.xpose.msra.mxu0 %v5824
        %5828 = vmatprep.subr.bf16.mxu0 0
        %5829 = vmatpush1.bf16.xpose.msra.mxu0 0
        %5830 = vmatprep.subr.bf16.mxu0 0
        %5831 = vmatpush1.bf16.xpose.msra.mxu0 0
        %5832 = vmatprep.subr.bf16.mxu0 0
        %5833 = vmatpush1.bf16.xpose.msra.mxu0 0
        %5834 = vmatprep.subr.bf16.mxu0 0
        %5835 = vmatpush1.bf16.xpose.msra.mxu0 0
        %5836 = vmatprep.subr.bf16.mxu0 0
        %5837 = vmatpush1.bf16.xpose.msra.mxu0 0
        %5838 = vmatprep.subr.bf16.mxu0 0
        %5839 = vmatpush1.bf16.xpose.msra.mxu0 0
        %5840 = vmatprep.subr.bf16.mxu0 0
        %5841 = vmatpush1.bf16.xpose.msra.mxu0 0
        %5842 = vmatprep.subr.bf16.mxu0 0
        %5843 = vmatpush1.bf16.xpose.msra.mxu0 0
        %5844 = vmatprep.subr.bf16.mxu0 0
        %5845 = vmatpush1.bf16.xpose.msra.mxu0 0
        %5846 = vmatprep.subr.bf16.mxu0 0
        %5847 = vmatpush1.bf16.xpose.msra.mxu0 0
        %5848 = vmatprep.subr.bf16.mxu0 0
        %5849 = vmatpush1.bf16.xpose.msra.mxu0 0
        %5850 = vmatprep.subr.bf16.mxu0 0
        %5851 = vmatpush1.bf16.xpose.msra.mxu0 0
        %5852 = vmatprep.subr.bf16.mxu0 0
        %5853 = vmatpush1.bf16.xpose.msra.mxu0 0
        %5854 = vmatprep.subr.bf16.mxu0 0
        %5855 = vmatpush1.bf16.xpose.msra.mxu0 0
        %5856 = vmatprep.subr.bf16.mxu0 0
        %5857 = vmatpush1.bf16.xpose.msra.mxu0 0
        %5858 = vmatprep.mubr.bf16.mxu0 0
        %5859 = vmatmul.mubr.bf16.gmra.mrb[0].mxu0 %v5821
        %v5860 = vpop.f32.mrb[0].mxu0
        %v5861 = vadd.f32 0.0, %v5860
        %v5862 = vpop.f32.mrb[0].mxu0
        %v5863 = vpop.f32.mrb[0].mxu0
        %v5864 = vadd.f32 0.0, %v5863
        %v5865 = vpop.f32.mrb[0].mxu0
        %5866 = vdwg.mxu0
        %5867 = vrot.lane.b32.xlu0 %v4355, 32
        %v5868 = vpop.permute.xlu0 %5867
        %5869 = vrot.lane.b32.xlu0 %v4359, 32
        %v5870 = vpop.permute.xlu0 %5869
        %v5872 = vsel %vm4366, %v5868, 0
        %v5875 = vsel %vm4366, %v5870, 0
        %5877 = vmatprep.subr.bf16.mxu0 0
        %5878 = vmatpush1.bf16.xpose.msra.mxu0 %v5875
        %5879 = vmatprep.subr.bf16.mxu0 0
        %5880 = vmatpush1.bf16.xpose.msra.mxu0 0
        %5881 = vmatprep.subr.bf16.mxu0 0
        %5882 = vmatpush1.bf16.xpose.msra.mxu0 0
        %5883 = vmatprep.subr.bf16.mxu0 0
        %5884 = vmatpush1.bf16.xpose.msra.mxu0 0
        %5885 = vmatprep.subr.bf16.mxu0 0
        %5886 = vmatpush1.bf16.xpose.msra.mxu0 0
        %5887 = vmatprep.subr.bf16.mxu0 0
        %5888 = vmatpush1.bf16.xpose.msra.mxu0 0
        %5889 = vmatprep.subr.bf16.mxu0 0
        %5890 = vmatpush1.bf16.xpose.msra.mxu0 0
        %5891 = vmatprep.subr.bf16.mxu0 0
        %5892 = vmatpush1.bf16.xpose.msra.mxu0 0
        %5893 = vmatprep.subr.bf16.mxu0 0
        %5894 = vmatpush1.bf16.xpose.msra.mxu0 0
        %5895 = vmatprep.subr.bf16.mxu0 0
        %5896 = vmatpush1.bf16.xpose.msra.mxu0 0
        %5897 = vmatprep.subr.bf16.mxu0 0
        %5898 = vmatpush1.bf16.xpose.msra.mxu0 0
        %5899 = vmatprep.subr.bf16.mxu0 0
        %5900 = vmatpush1.bf16.xpose.msra.mxu0 0
        %5901 = vmatprep.subr.bf16.mxu0 0
        %5902 = vmatpush1.bf16.xpose.msra.mxu0 0
        %5903 = vmatprep.subr.bf16.mxu0 0
        %5904 = vmatpush1.bf16.xpose.msra.mxu0 0
        %5905 = vmatprep.subr.bf16.mxu0 0
        %5906 = vmatpush1.bf16.xpose.msra.mxu0 0
        %5907 = vmatprep.subr.bf16.mxu0 0
        %5908 = vmatpush1.bf16.xpose.msra.mxu0 0
        %5909 = vmatprep.mubr.bf16.mxu0 0
        %5910 = vmatmul.mubr.bf16.gmra.mrb[0].mxu0 %v5872
        %v5911 = vpop.f32.mrb[0].mxu0
        %v5912 = vadd.f32 0.0, %v5911
        %v5913 = vpop.f32.mrb[0].mxu0
        %v5914 = vpop.f32.mrb[0].mxu0
        %v5915 = vadd.f32 0.0, %v5914
        %v5916 = vpop.f32.mrb[0].mxu0
        %5917 = vdwg.mxu0
        %5918 = vrot.lane.b32.xlu0 %v4356, 32
        %v5919 = vpop.permute.xlu0 %5918
        %5920 = vrot.lane.b32.xlu0 %v4360, 32
        %v5921 = vpop.permute.xlu0 %5920
        %v5923 = vsel %vm4366, %v5919, 0
        %v5926 = vsel %vm4366, %v5921, 0
        %5928 = vmatprep.subr.bf16.mxu0 0
        %5929 = vmatpush1.bf16.xpose.msra.mxu0 %v5926
        %5930 = vmatprep.subr.bf16.mxu0 0
        %5931 = vmatpush1.bf16.xpose.msra.mxu0 0
        %5932 = vmatprep.subr.bf16.mxu0 0
        %5933 = vmatpush1.bf16.xpose.msra.mxu0 0
        %5934 = vmatprep.subr.bf16.mxu0 0
        %5935 = vmatpush1.bf16.xpose.msra.mxu0 0
        %5936 = vmatprep.subr.bf16.mxu0 0
        %5937 = vmatpush1.bf16.xpose.msra.mxu0 0
        %5938 = vmatprep.subr.bf16.mxu0 0
        %5939 = vmatpush1.bf16.xpose.msra.mxu0 0
        %5940 = vmatprep.subr.bf16.mxu0 0
        %5941 = vmatpush1.bf16.xpose.msra.mxu0 0
        %5942 = vmatprep.subr.bf16.mxu0 0
        %5943 = vmatpush1.bf16.xpose.msra.mxu0 0
        %5944 = vmatprep.subr.bf16.mxu0 0
        %5945 = vmatpush1.bf16.xpose.msra.mxu0 0
        %5946 = vmatprep.subr.bf16.mxu0 0
        %5947 = vmatpush1.bf16.xpose.msra.mxu0 0
        %5948 = vmatprep.subr.bf16.mxu0 0
        %5949 = vmatpush1.bf16.xpose.msra.mxu0 0
        %5950 = vmatprep.subr.bf16.mxu0 0
        %5951 = vmatpush1.bf16.xpose.msra.mxu0 0
        %5952 = vmatprep.subr.bf16.mxu0 0
        %5953 = vmatpush1.bf16.xpose.msra.mxu0 0
        %5954 = vmatprep.subr.bf16.mxu0 0
        %5955 = vmatpush1.bf16.xpose.msra.mxu0 0
        %5956 = vmatprep.subr.bf16.mxu0 0
        %5957 = vmatpush1.bf16.xpose.msra.mxu0 0
        %5958 = vmatprep.subr.bf16.mxu0 0
        %5959 = vmatpush1.bf16.xpose.msra.mxu0 0
        %5960 = vmatprep.mubr.bf16.mxu0 0
        %5961 = vmatmul.mubr.bf16.gmra.mrb[0].mxu0 %v5923
        %v5962 = vpop.f32.mrb[0].mxu0
        %v5963 = vadd.f32 0.0, %v5962
        %v5964 = vpop.f32.mrb[0].mxu0
        %v5965 = vpop.f32.mrb[0].mxu0
        %v5966 = vadd.f32 0.0, %v5965
        %v5967 = vpop.f32.mrb[0].mxu0
        %5968 = vdwg.mxu0
        %5969 = vrot.lane.b32.xlu0 %v4357, 32
        %v5970 = vpop.permute.xlu0 %5969
        %5971 = vrot.lane.b32.xlu0 %v4361, 32
        %v5972 = vpop.permute.xlu0 %5971
        %v5974 = vsel %vm4366, %v5970, 0
        %v5977 = vsel %vm4366, %v5972, 0
        %5979 = vmatprep.subr.bf16.mxu0 0
        %5980 = vmatpush1.bf16.xpose.msra.mxu0 %v5977
        %5981 = vmatprep.subr.bf16.mxu0 0
        %5982 = vmatpush1.bf16.xpose.msra.mxu0 0
        %5983 = vmatprep.subr.bf16.mxu0 0
        %5984 = vmatpush1.bf16.xpose.msra.mxu0 0
        %5985 = vmatprep.subr.bf16.mxu0 0
        %5986 = vmatpush1.bf16.xpose.msra.mxu0 0
        %5987 = vmatprep.subr.bf16.mxu0 0
        %5988 = vmatpush1.bf16.xpose.msra.mxu0 0
        %5989 = vmatprep.subr.bf16.mxu0 0
        %5990 = vmatpush1.bf16.xpose.msra.mxu0 0
        %5991 = vmatprep.subr.bf16.mxu0 0
        %5992 = vmatpush1.bf16.xpose.msra.mxu0 0
        %5993 = vmatprep.subr.bf16.mxu0 0
        %5994 = vmatpush1.bf16.xpose.msra.mxu0 0
        %5995 = vmatprep.subr.bf16.mxu0 0
        %5996 = vmatpush1.bf16.xpose.msra.mxu0 0
        %5997 = vmatprep.subr.bf16.mxu0 0
        %5998 = vmatpush1.bf16.xpose.msra.mxu0 0
        %5999 = vmatprep.subr.bf16.mxu0 0
        %6000 = vmatpush1.bf16.xpose.msra.mxu0 0
        %6001 = vmatprep.subr.bf16.mxu0 0
        %6002 = vmatpush1.bf16.xpose.msra.mxu0 0
        %6003 = vmatprep.subr.bf16.mxu0 0
        %6004 = vmatpush1.bf16.xpose.msra.mxu0 0
        %6005 = vmatprep.subr.bf16.mxu0 0
        %6006 = vmatpush1.bf16.xpose.msra.mxu0 0
        %6007 = vmatprep.subr.bf16.mxu0 0
        %6008 = vmatpush1.bf16.xpose.msra.mxu0 0
        %6009 = vmatprep.subr.bf16.mxu0 0
        %6010 = vmatpush1.bf16.xpose.msra.mxu0 0
        %6011 = vmatprep.mubr.bf16.mxu0 0
        %6012 = vmatmul.mubr.bf16.gmra.mrb[0].mxu0 %v5974
        %v6013 = vpop.f32.mrb[0].mxu0
        %v6014 = vadd.f32 0.0, %v6013
        %v6015 = vpop.f32.mrb[0].mxu0
        %v6016 = vpop.f32.mrb[0].mxu0
        %v6017 = vadd.f32 0.0, %v6016
        %v6018 = vpop.f32.mrb[0].mxu0
        %6019 = vdwg.mxu0
        %v6020 = vsel %vm4555, %v5861, -inf
        %6021 = vmax.xlane.f32.xlu0 %v6020
        %v6022 = vpop.xlane.xlu0 %6021
        %v6023 = vsel %vm4555, %v5864, -inf
        %6024 = vmax.xlane.f32.xlu0 %v6023
        %v6025 = vpop.xlane.xlu0 %6024
        %v6026 = vsel %vm4555, %v5912, -inf
        %6027 = vmax.xlane.f32.xlu0 %v6026
        %v6028 = vpop.xlane.xlu0 %6027
        %v6029 = vsel %vm4555, %v5915, -inf
        %6030 = vmax.xlane.f32.xlu0 %v6029
        %v6031 = vpop.xlane.xlu0 %6030
        %v6032 = vsel %vm4555, %v5963, -inf
        %6033 = vmax.xlane.f32.xlu0 %v6032
        %v6034 = vpop.xlane.xlu0 %6033
        %v6035 = vsel %vm4555, %v5966, -inf
        %6036 = vmax.xlane.f32.xlu0 %v6035
        %v6037 = vpop.xlane.xlu0 %6036
        %v6038 = vsel %vm4555, %v6014, -inf
        %6039 = vmax.xlane.f32.xlu0 %v6038
        %v6040 = vpop.xlane.xlu0 %6039
        %v6041 = vsel %vm4555, %v6017, -inf
        %6042 = vmax.xlane.f32.xlu0 %v6041
        %v6043 = vpop.xlane.xlu0 %6042
        %v6044 = vsub.f32 %v5861, %v6022
        %v6045 = vsub.f32 %v5864, %v6025
        %v6046 = vsub.f32 %v5912, %v6028
        %v6047 = vsub.f32 %v5915, %v6031
        %v6048 = vsub.f32 %v5963, %v6034
        %v6049 = vsub.f32 %v5966, %v6037
        %v6050 = vsub.f32 %v6014, %v6040
        %v6051 = vsub.f32 %v6017, %v6043
        %v6052 = vmul.f32 %v6044, 1.442695
        %v6053 = vpow.pop %v6052
        %v6054 = vmul.f32 %v6045, 1.442695
        %v6055 = vpow.pop %v6054
        %v6056 = vmul.f32 %v6046, 1.442695
        %v6057 = vpow.pop %v6056
        %v6058 = vmul.f32 %v6047, 1.442695
        %v6059 = vpow.pop %v6058
        %v6060 = vmul.f32 %v6048, 1.442695
        %v6061 = vpow.pop %v6060
        %v6062 = vmul.f32 %v6049, 1.442695
        %v6063 = vpow.pop %v6062
        %v6064 = vmul.f32 %v6050, 1.442695
        %v6065 = vpow.pop %v6064
        %v6066 = vmul.f32 %v6051, 1.442695
        %v6067 = vpow.pop %v6066
        %v6068 = vsel %vm4555, %v6053, 0.0
        %6069 = vadd.xlane.f32.xlu0 %v6068
        %v6070 = vpop.xlane.xlu0 %6069
        %v6071 = vsel %vm4555, %v6055, 0.0
        %6072 = vadd.xlane.f32.xlu0 %v6071
        %v6073 = vpop.xlane.xlu0 %6072
        %v6074 = vsel %vm4555, %v6057, 0.0
        %6075 = vadd.xlane.f32.xlu0 %v6074
        %v6076 = vpop.xlane.xlu0 %6075
        %v6077 = vsel %vm4555, %v6059, 0.0
        %6078 = vadd.xlane.f32.xlu0 %v6077
        %v6079 = vpop.xlane.xlu0 %6078
        %v6080 = vsel %vm4555, %v6061, 0.0
        %6081 = vadd.xlane.f32.xlu0 %v6080
        %v6082 = vpop.xlane.xlu0 %6081
        %v6083 = vsel %vm4555, %v6063, 0.0
        %6084 = vadd.xlane.f32.xlu0 %v6083
        %v6085 = vpop.xlane.xlu0 %6084
        %v6086 = vsel %vm4555, %v6065, 0.0
        %6087 = vadd.xlane.f32.xlu0 %v6086
        %v6088 = vpop.xlane.xlu0 %6087
        %v6089 = vsel %vm4555, %v6067, 0.0
        %6090 = vadd.xlane.f32.xlu0 %v6089
        %v6091 = vpop.xlane.xlu0 %6090
        %v6092 = vrcp.pop %v6070
        %v6093 = vrcp.pop %v6073
        %v6094 = vrcp.pop %v6076
        %v6095 = vrcp.pop %v6079
        %v6096 = vrcp.pop %v6082
        %v6097 = vrcp.pop %v6085
        %v6098 = vrcp.pop %v6088
        %v6099 = vrcp.pop %v6091
        %v6100 = vmul.f32 %v6053, %v6092
        %v6101 = vmul.f32 %v6055, %v6093
        %v6102 = vmul.f32 %v6057, %v6094
        %v6103 = vmul.f32 %v6059, %v6095
        %v6104 = vmul.f32 %v6061, %v6096
        %v6105 = vmul.f32 %v6063, %v6097
        %v6106 = vmul.f32 %v6065, %v6098
        %v6107 = vmul.f32 %v6067, %v6099
        %v6108 = vpack.c.bf16 %v6101, %v6100
        %v6109 = vpack.c.bf16 %v6103, %v6102
        %v6110 = vpack.c.bf16 %v6105, %v6104
        %v6111 = vpack.c.bf16 %v6107, %v6106
        %6112 = vrot.lane.b32.xlu0 %v4362, 32
        %v6113 = vpop.permute.xlu0 %6112
        %v6116 = vsel %vm4555, %v6108, 0
        %6118 = vmatprep.subr.bf16.mxu0 0
        %6119 = vmatpush1.bf16.msra.mxu0 %v6113
        %6120 = vmatprep.subr.bf16.mxu0 0
        %6121 = vmatpush1.bf16.msra.mxu0 0
        %6122 = vmatprep.subr.bf16.mxu0 0
        %6123 = vmatpush1.bf16.msra.mxu0 0
        %6124 = vmatprep.subr.bf16.mxu0 0
        %6125 = vmatpush1.bf16.msra.mxu0 0
        %6126 = vmatprep.subr.bf16.mxu0 0
        %6127 = vmatpush1.bf16.msra.mxu0 0
        %6128 = vmatprep.subr.bf16.mxu0 0
        %6129 = vmatpush1.bf16.msra.mxu0 0
        %6130 = vmatprep.subr.bf16.mxu0 0
        %6131 = vmatpush1.bf16.msra.mxu0 0
        %6132 = vmatprep.subr.bf16.mxu0 0
        %6133 = vmatpush1.bf16.msra.mxu0 0
        %6134 = vmatprep.subr.bf16.mxu0 0
        %6135 = vmatpush1.bf16.msra.mxu0 0
        %6136 = vmatprep.subr.bf16.mxu0 0
        %6137 = vmatpush1.bf16.msra.mxu0 0
        %6138 = vmatprep.subr.bf16.mxu0 0
        %6139 = vmatpush1.bf16.msra.mxu0 0
        %6140 = vmatprep.subr.bf16.mxu0 0
        %6141 = vmatpush1.bf16.msra.mxu0 0
        %6142 = vmatprep.subr.bf16.mxu0 0
        %6143 = vmatpush1.bf16.msra.mxu0 0
        %6144 = vmatprep.subr.bf16.mxu0 0
        %6145 = vmatpush1.bf16.msra.mxu0 0
        %6146 = vmatprep.subr.bf16.mxu0 0
        %6147 = vmatpush1.bf16.msra.mxu0 0
        %6148 = vmatprep.subr.bf16.mxu0 0
        %6149 = vmatpush1.bf16.msra.mxu0 0
        %6150 = vmatprep.mubr.bf16.mxu0 0
        %6151 = vmatmul.mubr.bf16.gmra.mrb[0].mxu0 %v6116
        %v6152 = vpop.f32.mrb[0].mxu0
        %v6153 = vadd.f32 0.0, %v6152
        %v6154 = vpop.f32.mrb[0].mxu0
        %v6155 = vpop.f32.mrb[0].mxu0
        %v6156 = vadd.f32 0.0, %v6155
        %v6157 = vpop.f32.mrb[0].mxu0
        %6158 = vdwg.mxu0
        %6159 = vrot.lane.b32.xlu0 %v4363, 32
        %v6160 = vpop.permute.xlu0 %6159
        %v6163 = vsel %vm4555, %v6109, 0
        %6165 = vmatprep.subr.bf16.mxu0 0
        %6166 = vmatpush1.bf16.msra.mxu0 %v6160
        %6167 = vmatprep.subr.bf16.mxu0 0
        %6168 = vmatpush1.bf16.msra.mxu0 0
        %6169 = vmatprep.subr.bf16.mxu0 0
        %6170 = vmatpush1.bf16.msra.mxu0 0
        %6171 = vmatprep.subr.bf16.mxu0 0
        %6172 = vmatpush1.bf16.msra.mxu0 0
        %6173 = vmatprep.subr.bf16.mxu0 0
        %6174 = vmatpush1.bf16.msra.mxu0 0
        %6175 = vmatprep.subr.bf16.mxu0 0
        %6176 = vmatpush1.bf16.msra.mxu0 0
        %6177 = vmatprep.subr.bf16.mxu0 0
        %6178 = vmatpush1.bf16.msra.mxu0 0
        %6179 = vmatprep.subr.bf16.mxu0 0
        %6180 = vmatpush1.bf16.msra.mxu0 0
        %6181 = vmatprep.subr.bf16.mxu0 0
        %6182 = vmatpush1.bf16.msra.mxu0 0
        %6183 = vmatprep.subr.bf16.mxu0 0
        %6184 = vmatpush1.bf16.msra.mxu0 0
        %6185 = vmatprep.subr.bf16.mxu0 0
        %6186 = vmatpush1.bf16.msra.mxu0 0
        %6187 = vmatprep.subr.bf16.mxu0 0
        %6188 = vmatpush1.bf16.msra.mxu0 0
        %6189 = vmatprep.subr.bf16.mxu0 0
        %6190 = vmatpush1.bf16.msra.mxu0 0
        %6191 = vmatprep.subr.bf16.mxu0 0
        %6192 = vmatpush1.bf16.msra.mxu0 0
        %6193 = vmatprep.subr.bf16.mxu0 0
        %6194 = vmatpush1.bf16.msra.mxu0 0
        %6195 = vmatprep.subr.bf16.mxu0 0
        %6196 = vmatpush1.bf16.msra.mxu0 0
        %6197 = vmatprep.mubr.bf16.mxu0 0
        %6198 = vmatmul.mubr.bf16.gmra.mrb[0].mxu0 %v6163
        %v6199 = vpop.f32.mrb[0].mxu0
        %v6200 = vadd.f32 0.0, %v6199
        %v6201 = vpop.f32.mrb[0].mxu0
        %v6202 = vpop.f32.mrb[0].mxu0
        %v6203 = vadd.f32 0.0, %v6202
        %v6204 = vpop.f32.mrb[0].mxu0
        %6205 = vdwg.mxu0
        %6206 = vrot.lane.b32.xlu0 %v4364, 32
        %v6207 = vpop.permute.xlu0 %6206
        %v6210 = vsel %vm4555, %v6110, 0
        %6212 = vmatprep.subr.bf16.mxu0 0
        %6213 = vmatpush1.bf16.msra.mxu0 %v6207
        %6214 = vmatprep.subr.bf16.mxu0 0
        %6215 = vmatpush1.bf16.msra.mxu0 0
        %6216 = vmatprep.subr.bf16.mxu0 0
        %6217 = vmatpush1.bf16.msra.mxu0 0
        %6218 = vmatprep.subr.bf16.mxu0 0
        %6219 = vmatpush1.bf16.msra.mxu0 0
        %6220 = vmatprep.subr.bf16.mxu0 0
        %6221 = vmatpush1.bf16.msra.mxu0 0
        %6222 = vmatprep.subr.bf16.mxu0 0
        %6223 = vmatpush1.bf16.msra.mxu0 0
        %6224 = vmatprep.subr.bf16.mxu0 0
        %6225 = vmatpush1.bf16.msra.mxu0 0
        %6226 = vmatprep.subr.bf16.mxu0 0
        %6227 = vmatpush1.bf16.msra.mxu0 0
        %6228 = vmatprep.subr.bf16.mxu0 0
        %6229 = vmatpush1.bf16.msra.mxu0 0
        %6230 = vmatprep.subr.bf16.mxu0 0
        %6231 = vmatpush1.bf16.msra.mxu0 0
        %6232 = vmatprep.subr.bf16.mxu0 0
        %6233 = vmatpush1.bf16.msra.mxu0 0
        %6234 = vmatprep.subr.bf16.mxu0 0
        %6235 = vmatpush1.bf16.msra.mxu0 0
        %6236 = vmatprep.subr.bf16.mxu0 0
        %6237 = vmatpush1.bf16.msra.mxu0 0
        %6238 = vmatprep.subr.bf16.mxu0 0
        %6239 = vmatpush1.bf16.msra.mxu0 0
        %6240 = vmatprep.subr.bf16.mxu0 0
        %6241 = vmatpush1.bf16.msra.mxu0 0
        %6242 = vmatprep.subr.bf16.mxu0 0
        %6243 = vmatpush1.bf16.msra.mxu0 0
        %6244 = vmatprep.mubr.bf16.mxu0 0
        %6245 = vmatmul.mubr.bf16.gmra.mrb[0].mxu0 %v6210
        %v6246 = vpop.f32.mrb[0].mxu0
        %v6247 = vadd.f32 0.0, %v6246
        %v6248 = vpop.f32.mrb[0].mxu0
        %v6249 = vpop.f32.mrb[0].mxu0
        %v6250 = vadd.f32 0.0, %v6249
        %v6251 = vpop.f32.mrb[0].mxu0
        %6252 = vdwg.mxu0
        %6253 = vrot.lane.b32.xlu0 %v4365, 32
        %v6254 = vpop.permute.xlu0 %6253
        %v6257 = vsel %vm4555, %v6111, 0
        %6259 = vmatprep.subr.bf16.mxu0 0
        %6260 = vmatpush1.bf16.msra.mxu0 %v6254
        %6261 = vmatprep.subr.bf16.mxu0 0
        %6262 = vmatpush1.bf16.msra.mxu0 0
        %6263 = vmatprep.subr.bf16.mxu0 0
        %6264 = vmatpush1.bf16.msra.mxu0 0
        %6265 = vmatprep.subr.bf16.mxu0 0
        %6266 = vmatpush1.bf16.msra.mxu0 0
        %6267 = vmatprep.subr.bf16.mxu0 0
        %6268 = vmatpush1.bf16.msra.mxu0 0
        %6269 = vmatprep.subr.bf16.mxu0 0
        %6270 = vmatpush1.bf16.msra.mxu0 0
        %6271 = vmatprep.subr.bf16.mxu0 0
        %6272 = vmatpush1.bf16.msra.mxu0 0
        %6273 = vmatprep.subr.bf16.mxu0 0
        %6274 = vmatpush1.bf16.msra.mxu0 0
        %6275 = vmatprep.subr.bf16.mxu0 0
        %6276 = vmatpush1.bf16.msra.mxu0 0
        %6277 = vmatprep.subr.bf16.mxu0 0
        %6278 = vmatpush1.bf16.msra.mxu0 0
        %6279 = vmatprep.subr.bf16.mxu0 0
        %6280 = vmatpush1.bf16.msra.mxu0 0
        %6281 = vmatprep.subr.bf16.mxu0 0
        %6282 = vmatpush1.bf16.msra.mxu0 0
        %6283 = vmatprep.subr.bf16.mxu0 0
        %6284 = vmatpush1.bf16.msra.mxu0 0
        %6285 = vmatprep.subr.bf16.mxu0 0
        %6286 = vmatpush1.bf16.msra.mxu0 0
        %6287 = vmatprep.subr.bf16.mxu0 0
        %6288 = vmatpush1.bf16.msra.mxu0 0
        %6289 = vmatprep.subr.bf16.mxu0 0
        %6290 = vmatpush1.bf16.msra.mxu0 0
        %6291 = vmatprep.mubr.bf16.mxu0 0
        %6292 = vmatmul.mubr.bf16.gmra.mrb[0].mxu0 %v6257
        %v6293 = vpop.f32.mrb[0].mxu0
        %v6294 = vadd.f32 0.0, %v6293
        %v6295 = vpop.f32.mrb[0].mxu0
        %v6296 = vpop.f32.mrb[0].mxu0
        %v6297 = vadd.f32 0.0, %v6296
        %v6298 = vpop.f32.mrb[0].mxu0
        %6299 = vdwg.mxu0
        %v6300 = vpack.c.bf16 %v6156, %v6153
        %v6301 = vpack.c.bf16 %v6203, %v6200
        %v6302 = vpack.c.bf16 %v6250, %v6247
        %v6303 = vpack.c.bf16 %v6297, %v6294
        %6308 = vrot.lane.b32.xlu0 %v5324, 32
        %v6309 = vpop.permute.xlu0 %6308
        %6310 = vrot.lane.b32.xlu0 %v5325, 32
        %v6311 = vpop.permute.xlu0 %6310
        %6312 = vrot.lane.b32.xlu0 %v5326, 32
        %v6313 = vpop.permute.xlu0 %6312
        %6314 = vrot.lane.b32.xlu0 %v5327, 32
        %v6315 = vpop.permute.xlu0 %6314
        %6320 = vrot.lane.b32.xlu0 %v5812, 64
        %v6321 = vpop.permute.xlu0 %6320
        %6322 = vrot.lane.b32.xlu0 %v5813, 64
        %v6323 = vpop.permute.xlu0 %6322
        %6324 = vrot.lane.b32.xlu0 %v5814, 64
        %v6325 = vpop.permute.xlu0 %6324
        %6326 = vrot.lane.b32.xlu0 %v5815, 64
        %v6327 = vpop.permute.xlu0 %6326
        %6332 = vrot.lane.b32.xlu0 %v6300, 96
        %v6333 = vpop.permute.xlu0 %6332
        %6334 = vrot.lane.b32.xlu0 %v6301, 96
        %v6335 = vpop.permute.xlu0 %6334
        %6336 = vrot.lane.b32.xlu0 %v6302, 96
        %v6337 = vpop.permute.xlu0 %6336
        %6338 = vrot.lane.b32.xlu0 %v6303, 96
        %v6339 = vpop.permute.xlu0 %6338
        %v6342 = vsel %vm4366, %v4824, %v6309
        %v6345 = vsel %vm4366, %v4825, %v6311
        %v6348 = vsel %vm4366, %v4826, %v6313
        %v6351 = vsel %vm4366, %v4827, %v6315
        %vm6352 = vcmask 523264
        %v6354 = vsel %vm6352, %v6342, %v6321
        %v6356 = vsel %vm6352, %v6345, %v6323
        %v6358 = vsel %vm6352, %v6348, %v6325
        %v6360 = vsel %vm6352, %v6351, %v6327
        %vm6361 = vcmask 785408
        %v6363 = vsel %vm6361, %v6354, %v6333
        %v6366 = vsel %vm6361, %v6356, %v6335
        %v6369 = vsel %vm6361, %v6358, %v6337
        %v6372 = vsel %vm6361, %v6360, %v6339
        %v6374 = vld [vmem:[#allocation11] sm:$0xf]
        %v6375 = vld [vmem:[#allocation11 + $0x4] sm:$0xf]
        %v6376 = vld [vmem:[#allocation11 + $0x8] sm:$0xf]
        %v6377 = vld [vmem:[#allocation11 + $0xc] sm:$0xf]
        %v6378 = vld [vmem:[#allocation11 + $0x10] sm:$0xf]
        %v6379 = vld [vmem:[#allocation11 + $0x14] sm:$0xf]
        %v6380 = vld [vmem:[#allocation11 + $0x18] sm:$0xf]
        %v6381 = vld [vmem:[#allocation11 + $0x1c] sm:$0xf]
        %v6382 = vld [vmem:[#allocation11 + $0x20] sm:$0xf]
        %v6383 = vld [vmem:[#allocation11 + $0x24] sm:$0xf]
        %v6384 = vld [vmem:[#allocation11 + $0x28] sm:$0xf]
        %v6385 = vld [vmem:[#allocation11 + $0x2c] sm:$0xf]
        %v6386 = vld [vmem:[#allocation11 + $0x30] sm:$0xf]
        %v6387 = vld [vmem:[#allocation11 + $0x34] sm:$0xf]
        %v6388 = vld [vmem:[#allocation11 + $0x38] sm:$0xf]
        %v6389 = vld [vmem:[#allocation11 + $0x3c] sm:$0xf]
        %v6390 = vld [vmem:[%s9] sm:$0x1]
        %v6392 = vlaneseq
        %v6393 = vshrl.u32 %v6392, 7
        %v6394 = vsub.s32 0, %v6393
        %v6395 = vrot.slane %v6390, %v6394
        %v6413 = vunpack.c.l.b16 %v6374
        %v6414 = vunpack.c.l.b16 %v6375
        %v6415 = vunpack.c.l.b16 %v6376
        %v6416 = vunpack.c.l.b16 %v6377
        %v6417 = vunpack.c.l.b16 %v6378
        %v6418 = vunpack.c.l.b16 %v6379
        %v6419 = vunpack.c.l.b16 %v6380
        %v6420 = vunpack.c.l.b16 %v6381
        %v6421 = vunpack.c.l.b16 %v6382
        %v6422 = vunpack.c.l.b16 %v6383
        %v6423 = vunpack.c.l.b16 %v6384
        %v6424 = vunpack.c.l.b16 %v6385
        %v6425 = vunpack.c.l.b16 %v6386
        %v6426 = vunpack.c.l.b16 %v6387
        %v6427 = vunpack.c.l.b16 %v6388
        %v6428 = vunpack.c.l.b16 %v6389
        %v6429 = vpack.c.b16 %v6414, %v6413
        %v6430 = vpack.c.b16 %v6416, %v6415
        %v6431 = vpack.c.b16 %v6418, %v6417
        %v6432 = vpack.c.b16 %v6420, %v6419
        %v6433 = vpack.c.b16 %v6422, %v6421
        %v6434 = vpack.c.b16 %v6424, %v6423
        %v6435 = vpack.c.b16 %v6426, %v6425
        %v6436 = vpack.c.b16 %v6428, %v6427
        %6445 = vmatprep.subr.bf16.mxu0 0
        %6446 = vmatpush1.bf16.msra.mxu0 %v6429
        %6447 = vmatprep.subr.bf16.mxu0 0
        %6448 = vmatpush1.bf16.msra.mxu0 %v6430
        %6449 = vmatprep.subr.bf16.mxu0 0
        %6450 = vmatpush1.bf16.msra.mxu0 %v6431
        %6451 = vmatprep.subr.bf16.mxu0 0
        %6452 = vmatpush1.bf16.msra.mxu0 %v6432
        %6453 = vmatprep.subr.bf16.mxu0 0
        %6454 = vmatpush1.bf16.msra.mxu0 %v6433
        %6455 = vmatprep.subr.bf16.mxu0 0
        %6456 = vmatpush1.bf16.msra.mxu0 %v6434
        %6457 = vmatprep.subr.bf16.mxu0 0
        %6458 = vmatpush1.bf16.msra.mxu0 %v6435
        %6459 = vmatprep.subr.bf16.mxu0 0
        %6460 = vmatpush1.bf16.msra.mxu0 %v6436
        %6461 = vmatprep.subr.bf16.mxu0 0
        %6462 = vmatpush1.bf16.msra.mxu0 0
        %6463 = vmatprep.subr.bf16.mxu0 0
        %6464 = vmatpush1.bf16.msra.mxu0 0
        %6465 = vmatprep.subr.bf16.mxu0 0
        %6466 = vmatpush1.bf16.msra.mxu0 0
        %6467 = vmatprep.subr.bf16.mxu0 0
        %6468 = vmatpush1.bf16.msra.mxu0 0
        %6469 = vmatprep.subr.bf16.mxu0 0
        %6470 = vmatpush1.bf16.msra.mxu0 0
        %6471 = vmatprep.subr.bf16.mxu0 0
        %6472 = vmatpush1.bf16.msra.mxu0 0
        %6473 = vmatprep.subr.bf16.mxu0 0
        %6474 = vmatpush1.bf16.msra.mxu0 0
        %6475 = vmatprep.subr.bf16.mxu0 0
        %6476 = vmatpush1.bf16.msra.mxu0 0
        %6477 = vmatprep.mubr.bf16.mxu0 0
        %6478 = vmatmul.mubr.bf16.gmra.mrb[0].mxu0 %v6363
        %v6479 = vpop.f32.mrb[0].mxu0
        %v6480 = vadd.f32 %v6395, %v6479
        %v6481 = vpop.f32.mrb[0].mxu0
        %v6482 = vpop.f32.mrb[0].mxu0
        %v6483 = vadd.f32 %v6395, %v6482
        %v6484 = vpop.f32.mrb[0].mxu0
        %6485 = vmatprep.mubr.bf16.mxu0 0
        %6486 = vmatmul.mubr.bf16.gmra.mrb[0].mxu0 %v6366
        %v6487 = vpop.f32.mrb[0].mxu0
        %v6488 = vadd.f32 %v6395, %v6487
        %v6489 = vpop.f32.mrb[0].mxu0
        %v6490 = vpop.f32.mrb[0].mxu0
        %v6491 = vadd.f32 %v6395, %v6490
        %v6492 = vpop.f32.mrb[0].mxu0
        %6493 = vmatprep.mubr.bf16.mxu0 0
        %6494 = vmatmul.mubr.bf16.gmra.mrb[0].mxu0 %v6369
        %v6495 = vpop.f32.mrb[0].mxu0
        %v6496 = vadd.f32 %v6395, %v6495
        %v6497 = vpop.f32.mrb[0].mxu0
        %v6498 = vpop.f32.mrb[0].mxu0
        %v6499 = vadd.f32 %v6395, %v6498
        %v6500 = vpop.f32.mrb[0].mxu0
        %6501 = vmatprep.mubr.bf16.mxu0 0
        %6502 = vmatmul.mubr.bf16.gmra.mrb[0].mxu0 %v6372
        %v6503 = vpop.f32.mrb[0].mxu0
        %v6504 = vadd.f32 %v6395, %v6503
        %v6505 = vpop.f32.mrb[0].mxu0
        %v6506 = vpop.f32.mrb[0].mxu0
        %v6507 = vadd.f32 %v6395, %v6506
        %v6508 = vpop.f32.mrb[0].mxu0
        %6509 = vdwg.mxu0
        %v6510 = vadd.f32 %v619, %v6480
        %v6511 = vadd.f32 %v620, %v6483
        %v6512 = vadd.f32 %v621, %v6488
        %v6513 = vadd.f32 %v622, %v6491
        %v6514 = vadd.f32 %v623, %v6496
        %v6515 = vadd.f32 %v624, %v6499
        %v6516 = vadd.f32 %v625, %v6504
        %v6517 = vadd.f32 %v626, %v6507
        %v6518 = vld [vmem:[%s12] sm:$0x1]
        %v6519 = vld [vmem:[%s13] sm:$0x1]
        %6520 = vadd.xlane.f32.xlu0 %v6510
        %v6521 = vpop.xlane.xlu0 %6520
        %6522 = vadd.xlane.f32.xlu0 %v6511
        %v6523 = vpop.xlane.xlu0 %6522
        %6524 = vadd.xlane.f32.xlu0 %v6512
        %v6525 = vpop.xlane.xlu0 %6524
        %6526 = vadd.xlane.f32.xlu0 %v6513
        %v6527 = vpop.xlane.xlu0 %6526
        %6528 = vadd.xlane.f32.xlu0 %v6514
        %v6529 = vpop.xlane.xlu0 %6528
        %6530 = vadd.xlane.f32.xlu0 %v6515
        %v6531 = vpop.xlane.xlu0 %6530
        %6532 = vadd.xlane.f32.xlu0 %v6516
        %v6533 = vpop.xlane.xlu0 %6532
        %6534 = vadd.xlane.f32.xlu0 %v6517
        %v6535 = vpop.xlane.xlu0 %6534
        %v6536 = vrcp.pop 128.0
        %v6537 = vmul.f32 %v6521, %v6536
        %v6538 = vmul.f32 %v6523, %v6536
        %v6539 = vmul.f32 %v6525, %v6536
        %v6540 = vmul.f32 %v6527, %v6536
        %v6541 = vmul.f32 %v6529, %v6536
        %v6542 = vmul.f32 %v6531, %v6536
        %v6543 = vmul.f32 %v6533, %v6536
        %v6544 = vmul.f32 %v6535, %v6536
        %v6545 = vmul.f32 %v6510, %v6510
        %v6546 = vmul.f32 %v6511, %v6511
        %v6547 = vmul.f32 %v6512, %v6512
        %v6548 = vmul.f32 %v6513, %v6513
        %v6549 = vmul.f32 %v6514, %v6514
        %v6550 = vmul.f32 %v6515, %v6515
        %v6551 = vmul.f32 %v6516, %v6516
        %v6552 = vmul.f32 %v6517, %v6517
        %6553 = vadd.xlane.f32.xlu0 %v6545
        %v6554 = vpop.xlane.xlu0 %6553
        %6555 = vadd.xlane.f32.xlu0 %v6546
        %v6556 = vpop.xlane.xlu0 %6555
        %6557 = vadd.xlane.f32.xlu0 %v6547
        %v6558 = vpop.xlane.xlu0 %6557
        %6559 = vadd.xlane.f32.xlu0 %v6548
        %v6560 = vpop.xlane.xlu0 %6559
        %6561 = vadd.xlane.f32.xlu0 %v6549
        %v6562 = vpop.xlane.xlu0 %6561
        %6563 = vadd.xlane.f32.xlu0 %v6550
        %v6564 = vpop.xlane.xlu0 %6563
        %6565 = vadd.xlane.f32.xlu0 %v6551
        %v6566 = vpop.xlane.xlu0 %6565
        %6567 = vadd.xlane.f32.xlu0 %v6552
        %v6568 = vpop.xlane.xlu0 %6567
        %v6569 = vmul.f32 %v6554, %v6536
        %v6570 = vmul.f32 %v6556, %v6536
        %v6571 = vmul.f32 %v6558, %v6536
        %v6572 = vmul.f32 %v6560, %v6536
        %v6573 = vmul.f32 %v6562, %v6536
        %v6574 = vmul.f32 %v6564, %v6536
        %v6575 = vmul.f32 %v6566, %v6536
        %v6576 = vmul.f32 %v6568, %v6536
        %v6577 = vmul.f32 %v6537, %v6537
        %v6578 = vmul.f32 %v6538, %v6538
        %v6579 = vmul.f32 %v6539, %v6539
        %v6580 = vmul.f32 %v6540, %v6540
        %v6581 = vmul.f32 %v6541, %v6541
        %v6582 = vmul.f32 %v6542, %v6542
        %v6583 = vmul.f32 %v6543, %v6543
        %v6584 = vmul.f32 %v6544, %v6544
        %v6585 = vsub.f32 %v6569, %v6577
        %v6586 = vsub.f32 %v6570, %v6578
        %v6587 = vsub.f32 %v6571, %v6579
        %v6588 = vsub.f32 %v6572, %v6580
        %v6589 = vsub.f32 %v6573, %v6581
        %v6590 = vsub.f32 %v6574, %v6582
        %v6591 = vsub.f32 %v6575, %v6583
        %v6592 = vsub.f32 %v6576, %v6584
        %v6593 = vsub.f32 %v6510, %v6537
        %v6594 = vsub.f32 %v6511, %v6538
        %v6595 = vsub.f32 %v6512, %v6539
        %v6596 = vsub.f32 %v6513, %v6540
        %v6597 = vsub.f32 %v6514, %v6541
        %v6598 = vsub.f32 %v6515, %v6542
        %v6599 = vsub.f32 %v6516, %v6543
        %v6600 = vsub.f32 %v6517, %v6544
        %v6601 = vadd.f32 %v6585, 1e-05
        %v6602 = vadd.f32 %v6586, 1e-05
        %v6603 = vadd.f32 %v6587, 1e-05
        %v6604 = vadd.f32 %v6588, 1e-05
        %v6605 = vadd.f32 %v6589, 1e-05
        %v6606 = vadd.f32 %v6590, 1e-05
        %v6607 = vadd.f32 %v6591, 1e-05
        %v6608 = vadd.f32 %v6592, 1e-05
        %v6609 = vrsqrt.pop %v6601
        %v6610 = vrsqrt.pop %v6602
        %v6611 = vrsqrt.pop %v6603
        %v6612 = vrsqrt.pop %v6604
        %v6613 = vrsqrt.pop %v6605
        %v6614 = vrsqrt.pop %v6606
        %v6615 = vrsqrt.pop %v6607
        %v6616 = vrsqrt.pop %v6608
        %v6617 = vmul.f32 %v6593, %v6609
        %v6618 = vmul.f32 %v6594, %v6610
        %v6619 = vmul.f32 %v6595, %v6611
        %v6620 = vmul.f32 %v6596, %v6612
        %v6621 = vmul.f32 %v6597, %v6613
        %v6622 = vmul.f32 %v6598, %v6614
        %v6623 = vmul.f32 %v6599, %v6615
        %v6624 = vmul.f32 %v6600, %v6616
        %v6626 = vlaneseq
        %v6627 = vshrl.u32 %v6626, 7
        %v6628 = vsub.s32 0, %v6627
        %v6629 = vrot.slane %v6518, %v6628
        %v6631 = vmul.f32 %v6617, %v6629
        %v6632 = vmul.f32 %v6618, %v6629
        %v6633 = vmul.f32 %v6619, %v6629
        %v6634 = vmul.f32 %v6620, %v6629
        %v6635 = vmul.f32 %v6621, %v6629
        %v6636 = vmul.f32 %v6622, %v6629
        %v6637 = vmul.f32 %v6623, %v6629
        %v6638 = vmul.f32 %v6624, %v6629
        %v6640 = vlaneseq
        %v6641 = vshrl.u32 %v6640, 7
        %v6642 = vsub.s32 0, %v6641
        %v6643 = vrot.slane %v6519, %v6642
        %v6645 = vadd.f32 %v6631, %v6643
        %v6646 = vadd.f32 %v6632, %v6643
        %v6647 = vadd.f32 %v6633, %v6643
        %v6648 = vadd.f32 %v6634, %v6643
        %v6649 = vadd.f32 %v6635, %v6643
        %v6650 = vadd.f32 %v6636, %v6643
        %v6651 = vadd.f32 %v6637, %v6643
        %v6652 = vadd.f32 %v6638, %v6643
        %v6653 = vpack.c.bf16 %v6646, %v6645
        %v6654 = vpack.c.bf16 %v6648, %v6647
        %v6655 = vpack.c.bf16 %v6650, %v6649
        %v6656 = vpack.c.bf16 %v6652, %v6651
        %s6657 = scalar_lea.vmem [#allocation11], 64
        %v6658 = vld [vmem:[%s6657] sm:$0xf]
        %v6659 = vld [vmem:[%s6657 + $0x4] sm:$0xf]
        %v6660 = vld [vmem:[%s6657 + $0x8] sm:$0xf]
        %v6661 = vld [vmem:[%s6657 + $0xc] sm:$0xf]
        %v6662 = vld [vmem:[%s6657 + $0x10] sm:$0xf]
        %v6663 = vld [vmem:[%s6657 + $0x14] sm:$0xf]
        %v6664 = vld [vmem:[%s6657 + $0x18] sm:$0xf]
        %v6665 = vld [vmem:[%s6657 + $0x1c] sm:$0xf]
        %v6666 = vld [vmem:[%s6657 + $0x20] sm:$0xf]
        %v6667 = vld [vmem:[%s6657 + $0x24] sm:$0xf]
        %v6668 = vld [vmem:[%s6657 + $0x28] sm:$0xf]
        %v6669 = vld [vmem:[%s6657 + $0x2c] sm:$0xf]
        %v6670 = vld [vmem:[%s6657 + $0x30] sm:$0xf]
        %v6671 = vld [vmem:[%s6657 + $0x34] sm:$0xf]
        %v6672 = vld [vmem:[%s6657 + $0x38] sm:$0xf]
        %v6673 = vld [vmem:[%s6657 + $0x3c] sm:$0xf]
        %s6674 = scalar_lea.vmem %s9, 1
        %v6675 = vld [vmem:[%s6674] sm:$0x1]
        %v6677 = vlaneseq
        %v6678 = vshrl.u32 %v6677, 7
        %v6679 = vsub.s32 0, %v6678
        %v6680 = vrot.slane %v6675, %v6679
        %v6698 = vunpack.c.l.b16 %v6658
        %v6699 = vunpack.c.l.b16 %v6659
        %v6700 = vunpack.c.l.b16 %v6660
        %v6701 = vunpack.c.l.b16 %v6661
        %v6702 = vunpack.c.l.b16 %v6662
        %v6703 = vunpack.c.l.b16 %v6663
        %v6704 = vunpack.c.l.b16 %v6664
        %v6705 = vunpack.c.l.b16 %v6665
        %v6706 = vunpack.c.l.b16 %v6666
        %v6707 = vunpack.c.l.b16 %v6667
        %v6708 = vunpack.c.l.b16 %v6668
        %v6709 = vunpack.c.l.b16 %v6669
        %v6710 = vunpack.c.l.b16 %v6670
        %v6711 = vunpack.c.l.b16 %v6671
        %v6712 = vunpack.c.l.b16 %v6672
        %v6713 = vunpack.c.l.b16 %v6673
        %v6714 = vpack.c.b16 %v6699, %v6698
        %v6715 = vpack.c.b16 %v6701, %v6700
        %v6716 = vpack.c.b16 %v6703, %v6702
        %v6717 = vpack.c.b16 %v6705, %v6704
        %v6718 = vpack.c.b16 %v6707, %v6706
        %v6719 = vpack.c.b16 %v6709, %v6708
        %v6720 = vpack.c.b16 %v6711, %v6710
        %v6721 = vpack.c.b16 %v6713, %v6712
        %6730 = vmatprep.subr.bf16.mxu0 0
        %6731 = vmatpush1.bf16.msra.mxu0 %v6714
        %6732 = vmatprep.subr.bf16.mxu0 0
        %6733 = vmatpush1.bf16.msra.mxu0 %v6715
        %6734 = vmatprep.subr.bf16.mxu0 0
        %6735 = vmatpush1.bf16.msra.mxu0 %v6716
        %6736 = vmatprep.subr.bf16.mxu0 0
        %6737 = vmatpush1.bf16.msra.mxu0 %v6717
        %6738 = vmatprep.subr.bf16.mxu0 0
        %6739 = vmatpush1.bf16.msra.mxu0 %v6718
        %6740 = vmatprep.subr.bf16.mxu0 0
        %6741 = vmatpush1.bf16.msra.mxu0 %v6719
        %6742 = vmatprep.subr.bf16.mxu0 0
        %6743 = vmatpush1.bf16.msra.mxu0 %v6720
        %6744 = vmatprep.subr.bf16.mxu0 0
        %6745 = vmatpush1.bf16.msra.mxu0 %v6721
        %6746 = vmatprep.subr.bf16.mxu0 0
        %6747 = vmatpush1.bf16.msra.mxu0 0
        %6748 = vmatprep.subr.bf16.mxu0 0
        %6749 = vmatpush1.bf16.msra.mxu0 0
        %6750 = vmatprep.subr.bf16.mxu0 0
        %6751 = vmatpush1.bf16.msra.mxu0 0
        %6752 = vmatprep.subr.bf16.mxu0 0
        %6753 = vmatpush1.bf16.msra.mxu0 0
        %6754 = vmatprep.subr.bf16.mxu0 0
        %6755 = vmatpush1.bf16.msra.mxu0 0
        %6756 = vmatprep.subr.bf16.mxu0 0
        %6757 = vmatpush1.bf16.msra.mxu0 0
        %6758 = vmatprep.subr.bf16.mxu0 0
        %6759 = vmatpush1.bf16.msra.mxu0 0
        %6760 = vmatprep.subr.bf16.mxu0 0
        %6761 = vmatpush1.bf16.msra.mxu0 0
        %6762 = vmatprep.mubr.bf16.mxu0 0
        %6763 = vmatmul.mubr.bf16.gmra.mrb[0].mxu0 %v6653
        %v6764 = vpop.f32.mrb[0].mxu0
        %v6765 = vadd.f32 %v6680, %v6764
        %v6766 = vpop.f32.mrb[0].mxu0
        %v6767 = vpop.f32.mrb[0].mxu0
        %v6768 = vadd.f32 %v6680, %v6767
        %v6769 = vpop.f32.mrb[0].mxu0
        %6770 = vmatprep.mubr.bf16.mxu0 0
        %6771 = vmatmul.mubr.bf16.gmra.mrb[0].mxu0 %v6654
        %v6772 = vpop.f32.mrb[0].mxu0
        %v6773 = vadd.f32 %v6680, %v6772
        %v6774 = vpop.f32.mrb[0].mxu0
        %v6775 = vpop.f32.mrb[0].mxu0
        %v6776 = vadd.f32 %v6680, %v6775
        %v6777 = vpop.f32.mrb[0].mxu0
        %6778 = vmatprep.mubr.bf16.mxu0 0
        %6779 = vmatmul.mubr.bf16.gmra.mrb[0].mxu0 %v6655
        %v6780 = vpop.f32.mrb[0].mxu0
        %v6781 = vadd.f32 %v6680, %v6780
        %v6782 = vpop.f32.mrb[0].mxu0
        %v6783 = vpop.f32.mrb[0].mxu0
        %v6784 = vadd.f32 %v6680, %v6783
        %v6785 = vpop.f32.mrb[0].mxu0
        %6786 = vmatprep.mubr.bf16.mxu0 0
        %6787 = vmatmul.mubr.bf16.gmra.mrb[0].mxu0 %v6656
        %v6788 = vpop.f32.mrb[0].mxu0
        %v6789 = vadd.f32 %v6680, %v6788
        %v6790 = vpop.f32.mrb[0].mxu0
        %v6791 = vpop.f32.mrb[0].mxu0
        %v6792 = vadd.f32 %v6680, %v6791
        %v6793 = vpop.f32.mrb[0].mxu0
        %6794 = vdwg.mxu0
        %v6795 = vpack.c.bf16 %v628, %v627
        %v6796 = vpack.c.bf16 %v630, %v629
        %v6797 = vpack.c.bf16 %v632, %v631
        %v6798 = vpack.c.bf16 %v634, %v633
        %v6799 = vpack.c.bf16 %v636, %v635
        %v6800 = vpack.c.bf16 %v638, %v637
        %v6801 = vld [vmem:[#allocation10] sm:$0xff]
        %v6802 = vld [vmem:[#allocation10 + $0x8] sm:$0xff]
        %v6803 = vld [vmem:[#allocation10 + $0x10] sm:$0xff]
        %v6804 = vld [vmem:[#allocation10 + $0x18] sm:$0xff]
        %v6805 = vld [vmem:[#allocation10 + $0x20] sm:$0xff]
        %v6806 = vld [vmem:[#allocation10 + $0x28] sm:$0xff]
        %v6807 = vld [vmem:[#allocation10 + $0x30] sm:$0xff]
        %v6808 = vld [vmem:[#allocation10 + $0x38] sm:$0xff]
        %v6809 = vld [vmem:[#allocation10 + $0x40] sm:$0xff]
        %v6810 = vld [vmem:[#allocation10 + $0x48] sm:$0xff]
        %v6811 = vld [vmem:[#allocation10 + $0x50] sm:$0xff]
        %v6812 = vld [vmem:[#allocation10 + $0x58] sm:$0xff]
        %v6813 = vld [vmem:[#allocation10 + $0x60] sm:$0xff]
        %v6814 = vld [vmem:[#allocation10 + $0x68] sm:$0xff]
        %v6815 = vld [vmem:[#allocation10 + $0x70] sm:$0xff]
        %v6816 = vld [vmem:[#allocation10 + $0x78] sm:$0xff]
        %v6817 = vld [vmem:[%s7] sm:$0x3]
        %v6819 = vlaneseq
        %v6820 = vshrl.u32 %v6819, 7
        %v6821 = vsub.s32 0, %v6820
        %v6822 = vrot.slane %v6817, %v6821
        %v6823 = vlaneseq
        %v6824 = vshrl.u32 %v6823, 7
        %v6825 = vsub.s32 1, %v6824
        %v6826 = vrot.slane %v6817, %v6825
        %v6845 = vunpack.c.l.b16 %v6801
        %v6846 = vunpack.c.h.b16 %v6801
        %v6847 = vunpack.c.l.b16 %v6802
        %v6848 = vunpack.c.h.b16 %v6802
        %v6849 = vunpack.c.l.b16 %v6803
        %v6850 = vunpack.c.h.b16 %v6803
        %v6851 = vunpack.c.l.b16 %v6804
        %v6852 = vunpack.c.h.b16 %v6804
        %v6853 = vunpack.c.l.b16 %v6805
        %v6854 = vunpack.c.h.b16 %v6805
        %v6855 = vunpack.c.l.b16 %v6806
        %v6856 = vunpack.c.h.b16 %v6806
        %v6857 = vunpack.c.l.b16 %v6807
        %v6858 = vunpack.c.h.b16 %v6807
        %v6859 = vunpack.c.l.b16 %v6808
        %v6860 = vunpack.c.h.b16 %v6808
        %v6861 = vunpack.c.l.b16 %v6809
        %v6862 = vunpack.c.h.b16 %v6809
        %v6863 = vunpack.c.l.b16 %v6810
        %v6864 = vunpack.c.h.b16 %v6810
        %v6865 = vunpack.c.l.b16 %v6811
        %v6866 = vunpack.c.h.b16 %v6811
        %v6867 = vunpack.c.l.b16 %v6812
        %v6868 = vunpack.c.h.b16 %v6812
        %v6869 = vunpack.c.l.b16 %v6813
        %v6870 = vunpack.c.h.b16 %v6813
        %v6871 = vunpack.c.l.b16 %v6814
        %v6872 = vunpack.c.h.b16 %v6814
        %v6873 = vunpack.c.l.b16 %v6815
        %v6874 = vunpack.c.h.b16 %v6815
        %v6875 = vunpack.c.l.b16 %v6816
        %v6876 = vunpack.c.h.b16 %v6816
        %v6877 = vpack.c.b16 %v6847, %v6845
        %v6878 = vpack.c.b16 %v6848, %v6846
        %v6879 = vpack.c.b16 %v6851, %v6849
        %v6880 = vpack.c.b16 %v6852, %v6850
        %v6881 = vpack.c.b16 %v6855, %v6853
        %v6882 = vpack.c.b16 %v6856, %v6854
        %v6883 = vpack.c.b16 %v6859, %v6857
        %v6884 = vpack.c.b16 %v6860, %v6858
        %v6885 = vpack.c.b16 %v6863, %v6861
        %v6886 = vpack.c.b16 %v6864, %v6862
        %v6887 = vpack.c.b16 %v6867, %v6865
        %v6888 = vpack.c.b16 %v6868, %v6866
        %v6889 = vpack.c.b16 %v6871, %v6869
        %v6890 = vpack.c.b16 %v6872, %v6870
        %v6891 = vpack.c.b16 %v6875, %v6873
        %v6892 = vpack.c.b16 %v6876, %v6874
        %6909 = vmatprep.subr.bf16.mxu0 %v6878
        %6910 = vmatpush1.bf16.msra.mxu0 %v6877
        %6911 = vmatprep.subr.bf16.mxu0 %v6880
        %6912 = vmatpush1.bf16.msra.mxu0 %v6879
        %6913 = vmatprep.subr.bf16.mxu0 %v6882
        %6914 = vmatpush1.bf16.msra.mxu0 %v6881
        %6915 = vmatprep.subr.bf16.mxu0 %v6884
        %6916 = vmatpush1.bf16.msra.mxu0 %v6883
        %6917 = vmatprep.subr.bf16.mxu0 %v6886
        %6918 = vmatpush1.bf16.msra.mxu0 %v6885
        %6919 = vmatprep.subr.bf16.mxu0 %v6888
        %6920 = vmatpush1.bf16.msra.mxu0 %v6887
        %6921 = vmatprep.subr.bf16.mxu0 %v6890
        %6922 = vmatpush1.bf16.msra.mxu0 %v6889
        %6923 = vmatprep.subr.bf16.mxu0 %v6892
        %6924 = vmatpush1.bf16.msra.mxu0 %v6891
        %6925 = vmatprep.subr.bf16.mxu0 0
        %6926 = vmatpush1.bf16.msra.mxu0 0
        %6927 = vmatprep.subr.bf16.mxu0 0
        %6928 = vmatpush1.bf16.msra.mxu0 0
        %6929 = vmatprep.subr.bf16.mxu0 0
        %6930 = vmatpush1.bf16.msra.mxu0 0
        %6931 = vmatprep.subr.bf16.mxu0 0
        %6932 = vmatpush1.bf16.msra.mxu0 0
        %6933 = vmatprep.subr.bf16.mxu0 0
        %6934 = vmatpush1.bf16.msra.mxu0 0
        %6935 = vmatprep.subr.bf16.mxu0 0
        %6936 = vmatpush1.bf16.msra.mxu0 0
        %6937 = vmatprep.subr.bf16.mxu0 0
        %6938 = vmatpush1.bf16.msra.mxu0 0
        %6939 = vmatprep.subr.bf16.mxu0 0
        %6940 = vmatpush1.bf16.msra.mxu0 0
        %6941 = vmatprep.mubr.bf16.mxu0 0
        %6942 = vmatmul.mubr.bf16.gmra.mrb[0].mxu0 %v6795
        %v6943 = vpop.f32.mrb[0].mxu0
        %v6944 = vadd.f32 %v6822, %v6943
        %v6945 = vpop.f32.mrb[0].mxu0
        %v6946 = vadd.f32 %v6826, %v6945
        %v6947 = vpop.f32.mrb[0].mxu0
        %v6948 = vadd.f32 %v6822, %v6947
        %v6949 = vpop.f32.mrb[0].mxu0
        %v6950 = vadd.f32 %v6826, %v6949
        %6951 = vmatprep.mubr.bf16.mxu0 0
        %6952 = vmatmul.mubr.bf16.gmra.mrb[0].mxu0 %v6796
        %v6953 = vpop.f32.mrb[0].mxu0
        %v6954 = vadd.f32 %v6822, %v6953
        %v6955 = vpop.f32.mrb[0].mxu0
        %v6956 = vadd.f32 %v6826, %v6955
        %v6957 = vpop.f32.mrb[0].mxu0
        %v6958 = vadd.f32 %v6822, %v6957
        %v6959 = vpop.f32.mrb[0].mxu0
        %v6960 = vadd.f32 %v6826, %v6959
        %6961 = vmatprep.mubr.bf16.mxu0 0
        %6962 = vmatmul.mubr.bf16.gmra.mrb[0].mxu0 %v6797
        %v6963 = vpop.f32.mrb[0].mxu0
        %v6964 = vadd.f32 %v6822, %v6963
        %v6965 = vpop.f32.mrb[0].mxu0
        %v6966 = vadd.f32 %v6826, %v6965
        %v6967 = vpop.f32.mrb[0].mxu0
        %v6968 = vadd.f32 %v6822, %v6967
        %v6969 = vpop.f32.mrb[0].mxu0
        %v6970 = vadd.f32 %v6826, %v6969
        %6971 = vmatprep.mubr.bf16.mxu0 0
        %6972 = vmatmul.mubr.bf16.gmra.mrb[0].mxu0 %v6798
        %v6973 = vpop.f32.mrb[0].mxu0
        %v6974 = vadd.f32 %v6822, %v6973
        %v6975 = vpop.f32.mrb[0].mxu0
        %v6976 = vadd.f32 %v6826, %v6975
        %v6977 = vpop.f32.mrb[0].mxu0
        %v6978 = vadd.f32 %v6822, %v6977
        %v6979 = vpop.f32.mrb[0].mxu0
        %v6980 = vadd.f32 %v6826, %v6979
        %6981 = vmatprep.mubr.bf16.mxu0 0
        %6982 = vmatmul.mubr.bf16.gmra.mrb[0].mxu0 %v6799
        %v6983 = vpop.f32.mrb[0].mxu0
        %v6984 = vadd.f32 %v6822, %v6983
        %v6985 = vpop.f32.mrb[0].mxu0
        %v6986 = vadd.f32 %v6826, %v6985
        %v6987 = vpop.f32.mrb[0].mxu0
        %v6988 = vadd.f32 %v6822, %v6987
        %v6989 = vpop.f32.mrb[0].mxu0
        %v6990 = vadd.f32 %v6826, %v6989
        %6991 = vmatprep.mubr.bf16.mxu0 0
        %6992 = vmatmul.mubr.bf16.gmra.mrb[0].mxu0 %v6800
        %v6993 = vpop.f32.mrb[0].mxu0
        %v6994 = vadd.f32 %v6822, %v6993
        %v6995 = vpop.f32.mrb[0].mxu0
        %v6996 = vadd.f32 %v6826, %v6995
        %v6997 = vpop.f32.mrb[0].mxu0
        %v6998 = vadd.f32 %v6822, %v6997
        %v6999 = vpop.f32.mrb[0].mxu0
        %v7000 = vadd.f32 %v6826, %v6999
        %7001 = vdwg.mxu0
        %v7002 = vpack.c.bf16 %v6768, %v6765
        %v7003 = vpack.c.bf16 %v6776, %v6773
        %v7004 = vpack.c.bf16 %v6784, %v6781
        %v7005 = vpack.c.bf16 %v6792, %v6789
        %v7006 = vpack.c.bf16 %v6948, %v6944
        %v7007 = vpack.c.bf16 %v6954, %v6954
        %v7008 = vpack.c.bf16 %v6964, %v6958
        %v7009 = vpack.c.bf16 %v6968, %v6968
        %v7010 = vpack.c.bf16 %v6978, %v6974
        %v7011 = vpack.c.bf16 %v6984, %v6984
        %v7012 = vpack.c.bf16 %v6994, %v6988
        %v7013 = vpack.c.bf16 %v6998, %v6998
        %v7014 = vpack.c.bf16 %v6950, %v6946
        %v7015 = vpack.c.bf16 %v6956, %v6956
        %v7016 = vpack.c.bf16 %v6966, %v6960
        %v7017 = vpack.c.bf16 %v6970, %v6970
        %v7018 = vpack.c.bf16 %v6980, %v6976
        %v7019 = vpack.c.bf16 %v6986, %v6986
        %v7020 = vpack.c.bf16 %v6996, %v6990
        %v7021 = vpack.c.bf16 %v7000, %v7000
        %v7023 = vsel %vm4366, %v7002, 0
        %v7026 = vsel %vm4366, %v7006, 0
        %v7029 = vsel %vm4366, %v7007, 0
        %7031 = vmatprep.subr.bf16.mxu0 0
        %7032 = vmatpush1.bf16.xpose.msra.mxu0 %v7026
        %7033 = vmatprep.subr.bf16.mxu0 0
        %7034 = vmatpush1.bf16.xpose.msra.mxu0 %v7029
        %7035 = vmatprep.subr.bf16.mxu0 0
        %7036 = vmatpush1.bf16.xpose.msra.mxu0 0
        %7037 = vmatprep.subr.bf16.mxu0 0
        %7038 = vmatpush1.bf16.xpose.msra.mxu0 0
        %7039 = vmatprep.subr.bf16.mxu0 0
        %7040 = vmatpush1.bf16.xpose.msra.mxu0 0
        %7041 = vmatprep.subr.bf16.mxu0 0
        %7042 = vmatpush1.bf16.xpose.msra.mxu0 0
        %7043 = vmatprep.subr.bf16.mxu0 0
        %7044 = vmatpush1.bf16.xpose.msra.mxu0 0
        %7045 = vmatprep.subr.bf16.mxu0 0
        %7046 = vmatpush1.bf16.xpose.msra.mxu0 0
        %7047 = vmatprep.subr.bf16.mxu0 0
        %7048 = vmatpush1.bf16.xpose.msra.mxu0 0
        %7049 = vmatprep.subr.bf16.mxu0 0
        %7050 = vmatpush1.bf16.xpose.msra.mxu0 0
        %7051 = vmatprep.subr.bf16.mxu0 0
        %7052 = vmatpush1.bf16.xpose.msra.mxu0 0
        %7053 = vmatprep.subr.bf16.mxu0 0
        %7054 = vmatpush1.bf16.xpose.msra.mxu0 0
        %7055 = vmatprep.subr.bf16.mxu0 0
        %7056 = vmatpush1.bf16.xpose.msra.mxu0 0
        %7057 = vmatprep.subr.bf16.mxu0 0
        %7058 = vmatpush1.bf16.xpose.msra.mxu0 0
        %7059 = vmatprep.subr.bf16.mxu0 0
        %7060 = vmatpush1.bf16.xpose.msra.mxu0 0
        %7061 = vmatprep.subr.bf16.mxu0 0
        %7062 = vmatpush1.bf16.xpose.msra.mxu0 0
        %7063 = vmatprep.mubr.bf16.mxu0 0
        %7064 = vmatmul.mubr.bf16.gmra.mrb[0].mxu0 %v7023
        %v7065 = vpop.f32.mrb[0].mxu0
        %v7066 = vadd.f32 0.0, %v7065
        %v7067 = vpop.f32.mrb[0].mxu0
        %v7068 = vpop.f32.mrb[0].mxu0
        %v7069 = vadd.f32 0.0, %v7068
        %v7070 = vpop.f32.mrb[0].mxu0
        %7071 = vdwg.mxu0
        %v7073 = vsel %vm4366, %v7003, 0
        %v7076 = vsel %vm4366, %v7008, 0
        %v7079 = vsel %vm4366, %v7009, 0
        %7081 = vmatprep.subr.bf16.mxu0 0
        %7082 = vmatpush1.bf16.xpose.msra.mxu0 %v7076
        %7083 = vmatprep.subr.bf16.mxu0 0
        %7084 = vmatpush1.bf16.xpose.msra.mxu0 %v7079
        %7085 = vmatprep.subr.bf16.mxu0 0
        %7086 = vmatpush1.bf16.xpose.msra.mxu0 0
        %7087 = vmatprep.subr.bf16.mxu0 0
        %7088 = vmatpush1.bf16.xpose.msra.mxu0 0
        %7089 = vmatprep.subr.bf16.mxu0 0
        %7090 = vmatpush1.bf16.xpose.msra.mxu0 0
        %7091 = vmatprep.subr.bf16.mxu0 0
        %7092 = vmatpush1.bf16.xpose.msra.mxu0 0
        %7093 = vmatprep.subr.bf16.mxu0 0
        %7094 = vmatpush1.bf16.xpose.msra.mxu0 0
        %7095 = vmatprep.subr.bf16.mxu0 0
        %7096 = vmatpush1.bf16.xpose.msra.mxu0 0
        %7097 = vmatprep.subr.bf16.mxu0 0
        %7098 = vmatpush1.bf16.xpose.msra.mxu0 0
        %7099 = vmatprep.subr.bf16.mxu0 0
        %7100 = vmatpush1.bf16.xpose.msra.mxu0 0
        %7101 = vmatprep.subr.bf16.mxu0 0
        %7102 = vmatpush1.bf16.xpose.msra.mxu0 0
        %7103 = vmatprep.subr.bf16.mxu0 0
        %7104 = vmatpush1.bf16.xpose.msra.mxu0 0
        %7105 = vmatprep.subr.bf16.mxu0 0
        %7106 = vmatpush1.bf16.xpose.msra.mxu0 0
        %7107 = vmatprep.subr.bf16.mxu0 0
        %7108 = vmatpush1.bf16.xpose.msra.mxu0 0
        %7109 = vmatprep.subr.bf16.mxu0 0
        %7110 = vmatpush1.bf16.xpose.msra.mxu0 0
        %7111 = vmatprep.subr.bf16.mxu0 0
        %7112 = vmatpush1.bf16.xpose.msra.mxu0 0
        %7113 = vmatprep.mubr.bf16.mxu0 0
        %7114 = vmatmul.mubr.bf16.gmra.mrb[0].mxu0 %v7073
        %v7115 = vpop.f32.mrb[0].mxu0
        %v7116 = vadd.f32 0.0, %v7115
        %v7117 = vpop.f32.mrb[0].mxu0
        %v7118 = vpop.f32.mrb[0].mxu0
        %v7119 = vadd.f32 0.0, %v7118
        %v7120 = vpop.f32.mrb[0].mxu0
        %7121 = vdwg.mxu0
        %v7123 = vsel %vm4366, %v7004, 0
        %v7126 = vsel %vm4366, %v7010, 0
        %v7129 = vsel %vm4366, %v7011, 0
        %7131 = vmatprep.subr.bf16.mxu0 0
        %7132 = vmatpush1.bf16.xpose.msra.mxu0 %v7126
        %7133 = vmatprep.subr.bf16.mxu0 0
        %7134 = vmatpush1.bf16.xpose.msra.mxu0 %v7129
        %7135 = vmatprep.subr.bf16.mxu0 0
        %7136 = vmatpush1.bf16.xpose.msra.mxu0 0
        %7137 = vmatprep.subr.bf16.mxu0 0
        %7138 = vmatpush1.bf16.xpose.msra.mxu0 0
        %7139 = vmatprep.subr.bf16.mxu0 0
        %7140 = vmatpush1.bf16.xpose.msra.mxu0 0
        %7141 = vmatprep.subr.bf16.mxu0 0
        %7142 = vmatpush1.bf16.xpose.msra.mxu0 0
        %7143 = vmatprep.subr.bf16.mxu0 0
        %7144 = vmatpush1.bf16.xpose.msra.mxu0 0
        %7145 = vmatprep.subr.bf16.mxu0 0
        %7146 = vmatpush1.bf16.xpose.msra.mxu0 0
        %7147 = vmatprep.subr.bf16.mxu0 0
        %7148 = vmatpush1.bf16.xpose.msra.mxu0 0
        %7149 = vmatprep.subr.bf16.mxu0 0
        %7150 = vmatpush1.bf16.xpose.msra.mxu0 0
        %7151 = vmatprep.subr.bf16.mxu0 0
        %7152 = vmatpush1.bf16.xpose.msra.mxu0 0
        %7153 = vmatprep.subr.bf16.mxu0 0
        %7154 = vmatpush1.bf16.xpose.msra.mxu0 0
        %7155 = vmatprep.subr.bf16.mxu0 0
        %7156 = vmatpush1.bf16.xpose.msra.mxu0 0
        %7157 = vmatprep.subr.bf16.mxu0 0
        %7158 = vmatpush1.bf16.xpose.msra.mxu0 0
        %7159 = vmatprep.subr.bf16.mxu0 0
        %7160 = vmatpush1.bf16.xpose.msra.mxu0 0
        %7161 = vmatprep.subr.bf16.mxu0 0
        %7162 = vmatpush1.bf16.xpose.msra.mxu0 0
        %7163 = vmatprep.mubr.bf16.mxu0 0
        %7164 = vmatmul.mubr.bf16.gmra.mrb[0].mxu0 %v7123
        %v7165 = vpop.f32.mrb[0].mxu0
        %v7166 = vadd.f32 0.0, %v7165
        %v7167 = vpop.f32.mrb[0].mxu0
        %v7168 = vpop.f32.mrb[0].mxu0
        %v7169 = vadd.f32 0.0, %v7168
        %v7170 = vpop.f32.mrb[0].mxu0
        %7171 = vdwg.mxu0
        %v7173 = vsel %vm4366, %v7005, 0
        %v7176 = vsel %vm4366, %v7012, 0
        %v7179 = vsel %vm4366, %v7013, 0
        %7181 = vmatprep.subr.bf16.mxu0 0
        %7182 = vmatpush1.bf16.xpose.msra.mxu0 %v7176
        %7183 = vmatprep.subr.bf16.mxu0 0
        %7184 = vmatpush1.bf16.xpose.msra.mxu0 %v7179
        %7185 = vmatprep.subr.bf16.mxu0 0
        %7186 = vmatpush1.bf16.xpose.msra.mxu0 0
        %7187 = vmatprep.subr.bf16.mxu0 0
        %7188 = vmatpush1.bf16.xpose.msra.mxu0 0
        %7189 = vmatprep.subr.bf16.mxu0 0
        %7190 = vmatpush1.bf16.xpose.msra.mxu0 0
        %7191 = vmatprep.subr.bf16.mxu0 0
        %7192 = vmatpush1.bf16.xpose.msra.mxu0 0
        %7193 = vmatprep.subr.bf16.mxu0 0
        %7194 = vmatpush1.bf16.xpose.msra.mxu0 0
        %7195 = vmatprep.subr.bf16.mxu0 0
        %7196 = vmatpush1.bf16.xpose.msra.mxu0 0
        %7197 = vmatprep.subr.bf16.mxu0 0
        %7198 = vmatpush1.bf16.xpose.msra.mxu0 0
        %7199 = vmatprep.subr.bf16.mxu0 0
        %7200 = vmatpush1.bf16.xpose.msra.mxu0 0
        %7201 = vmatprep.subr.bf16.mxu0 0
        %7202 = vmatpush1.bf16.xpose.msra.mxu0 0
        %7203 = vmatprep.subr.bf16.mxu0 0
        %7204 = vmatpush1.bf16.xpose.msra.mxu0 0
        %7205 = vmatprep.subr.bf16.mxu0 0
        %7206 = vmatpush1.bf16.xpose.msra.mxu0 0
        %7207 = vmatprep.subr.bf16.mxu0 0
        %7208 = vmatpush1.bf16.xpose.msra.mxu0 0
        %7209 = vmatprep.subr.bf16.mxu0 0
        %7210 = vmatpush1.bf16.xpose.msra.mxu0 0
        %7211 = vmatprep.subr.bf16.mxu0 0
        %7212 = vmatpush1.bf16.xpose.msra.mxu0 0
        %7213 = vmatprep.mubr.bf16.mxu0 0
        %7214 = vmatmul.mubr.bf16.gmra.mrb[0].mxu0 %v7173
        %v7215 = vpop.f32.mrb[0].mxu0
        %v7216 = vadd.f32 0.0, %v7215
        %v7217 = vpop.f32.mrb[0].mxu0
        %v7218 = vpop.f32.mrb[0].mxu0
        %v7219 = vadd.f32 0.0, %v7218
        %v7220 = vpop.f32.mrb[0].mxu0
        %7221 = vdwg.mxu0
        %vm7222 = vcmask 195584
        %v7223 = vsel %vm7222, %v7066, -inf
        %7224 = vmax.xlane.f32.xlu0 %v7223
        %v7225 = vpop.xlane.xlu0 %7224
        %v7226 = vsel %vm7222, %v7069, -inf
        %7227 = vmax.xlane.f32.xlu0 %v7226
        %v7228 = vpop.xlane.xlu0 %7227
        %v7229 = vsel %vm7222, %v7116, -inf
        %7230 = vmax.xlane.f32.xlu0 %v7229
        %v7231 = vpop.xlane.xlu0 %7230
        %v7232 = vsel %vm7222, %v7119, -inf
        %7233 = vmax.xlane.f32.xlu0 %v7232
        %v7234 = vpop.xlane.xlu0 %7233
        %v7235 = vsel %vm7222, %v7166, -inf
        %7236 = vmax.xlane.f32.xlu0 %v7235
        %v7237 = vpop.xlane.xlu0 %7236
        %v7238 = vsel %vm7222, %v7169, -inf
        %7239 = vmax.xlane.f32.xlu0 %v7238
        %v7240 = vpop.xlane.xlu0 %7239
        %v7241 = vsel %vm7222, %v7216, -inf
        %7242 = vmax.xlane.f32.xlu0 %v7241
        %v7243 = vpop.xlane.xlu0 %7242
        %v7244 = vsel %vm7222, %v7219, -inf
        %7245 = vmax.xlane.f32.xlu0 %v7244
        %v7246 = vpop.xlane.xlu0 %7245
        %v7247 = vsub.f32 %v7066, %v7225
        %v7248 = vsub.f32 %v7069, %v7228
        %v7249 = vsub.f32 %v7116, %v7231
        %v7250 = vsub.f32 %v7119, %v7234
        %v7251 = vsub.f32 %v7166, %v7237
        %v7252 = vsub.f32 %v7169, %v7240
        %v7253 = vsub.f32 %v7216, %v7243
        %v7254 = vsub.f32 %v7219, %v7246
        %v7255 = vmul.f32 %v7247, 1.442695
        %v7256 = vpow.pop %v7255
        %v7257 = vmul.f32 %v7248, 1.442695
        %v7258 = vpow.pop %v7257
        %v7259 = vmul.f32 %v7249, 1.442695
        %v7260 = vpow.pop %v7259
        %v7261 = vmul.f32 %v7250, 1.442695
        %v7262 = vpow.pop %v7261
        %v7263 = vmul.f32 %v7251, 1.442695
        %v7264 = vpow.pop %v7263
        %v7265 = vmul.f32 %v7252, 1.442695
        %v7266 = vpow.pop %v7265
        %v7267 = vmul.f32 %v7253, 1.442695
        %v7268 = vpow.pop %v7267
        %v7269 = vmul.f32 %v7254, 1.442695
        %v7270 = vpow.pop %v7269
        %v7271 = vsel %vm7222, %v7256, 0.0
        %7272 = vadd.xlane.f32.xlu0 %v7271
        %v7273 = vpop.xlane.xlu0 %7272
        %v7274 = vsel %vm7222, %v7258, 0.0
        %7275 = vadd.xlane.f32.xlu0 %v7274
        %v7276 = vpop.xlane.xlu0 %7275
        %v7277 = vsel %vm7222, %v7260, 0.0
        %7278 = vadd.xlane.f32.xlu0 %v7277
        %v7279 = vpop.xlane.xlu0 %7278
        %v7280 = vsel %vm7222, %v7262, 0.0
        %7281 = vadd.xlane.f32.xlu0 %v7280
        %v7282 = vpop.xlane.xlu0 %7281
        %v7283 = vsel %vm7222, %v7264, 0.0
        %7284 = vadd.xlane.f32.xlu0 %v7283
        %v7285 = vpop.xlane.xlu0 %7284
        %v7286 = vsel %vm7222, %v7266, 0.0
        %7287 = vadd.xlane.f32.xlu0 %v7286
        %v7288 = vpop.xlane.xlu0 %7287
        %v7289 = vsel %vm7222, %v7268, 0.0
        %7290 = vadd.xlane.f32.xlu0 %v7289
        %v7291 = vpop.xlane.xlu0 %7290
        %v7292 = vsel %vm7222, %v7270, 0.0
        %7293 = vadd.xlane.f32.xlu0 %v7292
        %v7294 = vpop.xlane.xlu0 %7293
        %v7295 = vrcp.pop %v7273
        %v7296 = vrcp.pop %v7276
        %v7297 = vrcp.pop %v7279
        %v7298 = vrcp.pop %v7282
        %v7299 = vrcp.pop %v7285
        %v7300 = vrcp.pop %v7288
        %v7301 = vrcp.pop %v7291
        %v7302 = vrcp.pop %v7294
        %v7303 = vmul.f32 %v7256, %v7295
        %v7304 = vmul.f32 %v7258, %v7296
        %v7305 = vmul.f32 %v7260, %v7297
        %v7306 = vmul.f32 %v7262, %v7298
        %v7307 = vmul.f32 %v7264, %v7299
        %v7308 = vmul.f32 %v7266, %v7300
        %v7309 = vmul.f32 %v7268, %v7301
        %v7310 = vmul.f32 %v7270, %v7302
        %v7311 = vpack.c.bf16 %v7304, %v7303
        %v7312 = vpack.c.bf16 %v7306, %v7305
        %v7313 = vpack.c.bf16 %v7308, %v7307
        %v7314 = vpack.c.bf16 %v7310, %v7309
        %v7316 = vsel %vm7222, %v7311, 0
        %vm7318 = vcmask 1043456
        %v7320 = vsel %vm7318, %v7015, 0
        %7322 = vmatprep.subr.bf16.mxu0 0
        %7323 = vmatpush1.bf16.msra.mxu0 %v7014
        %7324 = vmatprep.subr.bf16.mxu0 0
        %7325 = vmatpush1.bf16.msra.mxu0 %v7320
        %7326 = vmatprep.subr.bf16.mxu0 0
        %7327 = vmatpush1.bf16.msra.mxu0 0
        %7328 = vmatprep.subr.bf16.mxu0 0
        %7329 = vmatpush1.bf16.msra.mxu0 0
        %7330 = vmatprep.subr.bf16.mxu0 0
        %7331 = vmatpush1.bf16.msra.mxu0 0
        %7332 = vmatprep.subr.bf16.mxu0 0
        %7333 = vmatpush1.bf16.msra.mxu0 0
        %7334 = vmatprep.subr.bf16.mxu0 0
        %7335 = vmatpush1.bf16.msra.mxu0 0
        %7336 = vmatprep.subr.bf16.mxu0 0
        %7337 = vmatpush1.bf16.msra.mxu0 0
        %7338 = vmatprep.subr.bf16.mxu0 0
        %7339 = vmatpush1.bf16.msra.mxu0 0
        %7340 = vmatprep.subr.bf16.mxu0 0
        %7341 = vmatpush1.bf16.msra.mxu0 0
        %7342 = vmatprep.subr.bf16.mxu0 0
        %7343 = vmatpush1.bf16.msra.mxu0 0
        %7344 = vmatprep.subr.bf16.mxu0 0
        %7345 = vmatpush1.bf16.msra.mxu0 0
        %7346 = vmatprep.subr.bf16.mxu0 0
        %7347 = vmatpush1.bf16.msra.mxu0 0
        %7348 = vmatprep.subr.bf16.mxu0 0
        %7349 = vmatpush1.bf16.msra.mxu0 0
        %7350 = vmatprep.subr.bf16.mxu0 0
        %7351 = vmatpush1.bf16.msra.mxu0 0
        %7352 = vmatprep.subr.bf16.mxu0 0
        %7353 = vmatpush1.bf16.msra.mxu0 0
        %7354 = vmatprep.mubr.bf16.mxu0 0
        %7355 = vmatmul.mubr.bf16.gmra.mrb[0].mxu0 %v7316
        %v7356 = vpop.f32.mrb[0].mxu0
        %v7357 = vadd.f32 0.0, %v7356
        %v7358 = vpop.f32.mrb[0].mxu0
        %v7359 = vpop.f32.mrb[0].mxu0
        %v7360 = vadd.f32 0.0, %v7359
        %v7361 = vpop.f32.mrb[0].mxu0
        %7362 = vdwg.mxu0
        %v7364 = vsel %vm7222, %v7312, 0
        %v7367 = vsel %vm7318, %v7017, 0
        %7369 = vmatprep.subr.bf16.mxu0 0
        %7370 = vmatpush1.bf16.msra.mxu0 %v7016
        %7371 = vmatprep.subr.bf16.mxu0 0
        %7372 = vmatpush1.bf16.msra.mxu0 %v7367
        %7373 = vmatprep.subr.bf16.mxu0 0
        %7374 = vmatpush1.bf16.msra.mxu0 0
        %7375 = vmatprep.subr.bf16.mxu0 0
        %7376 = vmatpush1.bf16.msra.mxu0 0
        %7377 = vmatprep.subr.bf16.mxu0 0
        %7378 = vmatpush1.bf16.msra.mxu0 0
        %7379 = vmatprep.subr.bf16.mxu0 0
        %7380 = vmatpush1.bf16.msra.mxu0 0
        %7381 = vmatprep.subr.bf16.mxu0 0
        %7382 = vmatpush1.bf16.msra.mxu0 0
        %7383 = vmatprep.subr.bf16.mxu0 0
        %7384 = vmatpush1.bf16.msra.mxu0 0
        %7385 = vmatprep.subr.bf16.mxu0 0
        %7386 = vmatpush1.bf16.msra.mxu0 0
        %7387 = vmatprep.subr.bf16.mxu0 0
        %7388 = vmatpush1.bf16.msra.mxu0 0
        %7389 = vmatprep.subr.bf16.mxu0 0
        %7390 = vmatpush1.bf16.msra.mxu0 0
        %7391 = vmatprep.subr.bf16.mxu0 0
        %7392 = vmatpush1.bf16.msra.mxu0 0
        %7393 = vmatprep.subr.bf16.mxu0 0
        %7394 = vmatpush1.bf16.msra.mxu0 0
        %7395 = vmatprep.subr.bf16.mxu0 0
        %7396 = vmatpush1.bf16.msra.mxu0 0
        %7397 = vmatprep.subr.bf16.mxu0 0
        %7398 = vmatpush1.bf16.msra.mxu0 0
        %7399 = vmatprep.subr.bf16.mxu0 0
        %7400 = vmatpush1.bf16.msra.mxu0 0
        %7401 = vmatprep.mubr.bf16.mxu0 0
        %7402 = vmatmul.mubr.bf16.gmra.mrb[0].mxu0 %v7364
        %v7403 = vpop.f32.mrb[0].mxu0
        %v7404 = vadd.f32 0.0, %v7403
        %v7405 = vpop.f32.mrb[0].mxu0
        %v7406 = vpop.f32.mrb[0].mxu0
        %v7407 = vadd.f32 0.0, %v7406
        %v7408 = vpop.f32.mrb[0].mxu0
        %7409 = vdwg.mxu0
        %v7411 = vsel %vm7222, %v7313, 0
        %v7414 = vsel %vm7318, %v7019, 0
        %7416 = vmatprep.subr.bf16.mxu0 0
        %7417 = vmatpush1.bf16.msra.mxu0 %v7018
        %7418 = vmatprep.subr.bf16.mxu0 0
        %7419 = vmatpush1.bf16.msra.mxu0 %v7414
        %7420 = vmatprep.subr.bf16.mxu0 0
        %7421 = vmatpush1.bf16.msra.mxu0 0
        %7422 = vmatprep.subr.bf16.mxu0 0
        %7423 = vmatpush1.bf16.msra.mxu0 0
        %7424 = vmatprep.subr.bf16.mxu0 0
        %7425 = vmatpush1.bf16.msra.mxu0 0
        %7426 = vmatprep.subr.bf16.mxu0 0
        %7427 = vmatpush1.bf16.msra.mxu0 0
        %7428 = vmatprep.subr.bf16.mxu0 0
        %7429 = vmatpush1.bf16.msra.mxu0 0
        %7430 = vmatprep.subr.bf16.mxu0 0
        %7431 = vmatpush1.bf16.msra.mxu0 0
        %7432 = vmatprep.subr.bf16.mxu0 0
        %7433 = vmatpush1.bf16.msra.mxu0 0
        %7434 = vmatprep.subr.bf16.mxu0 0
        %7435 = vmatpush1.bf16.msra.mxu0 0
        %7436 = vmatprep.subr.bf16.mxu0 0
        %7437 = vmatpush1.bf16.msra.mxu0 0
        %7438 = vmatprep.subr.bf16.mxu0 0
        %7439 = vmatpush1.bf16.msra.mxu0 0
        %7440 = vmatprep.subr.bf16.mxu0 0
        %7441 = vmatpush1.bf16.msra.mxu0 0
        %7442 = vmatprep.subr.bf16.mxu0 0
        %7443 = vmatpush1.bf16.msra.mxu0 0
        %7444 = vmatprep.subr.bf16.mxu0 0
        %7445 = vmatpush1.bf16.msra.mxu0 0
        %7446 = vmatprep.subr.bf16.mxu0 0
        %7447 = vmatpush1.bf16.msra.mxu0 0
        %7448 = vmatprep.mubr.bf16.mxu0 0
        %7449 = vmatmul.mubr.bf16.gmra.mrb[0].mxu0 %v7411
        %v7450 = vpop.f32.mrb[0].mxu0
        %v7451 = vadd.f32 0.0, %v7450
        %v7452 = vpop.f32.mrb[0].mxu0
        %v7453 = vpop.f32.mrb[0].mxu0
        %v7454 = vadd.f32 0.0, %v7453
        %v7455 = vpop.f32.mrb[0].mxu0
        %7456 = vdwg.mxu0
        %v7458 = vsel %vm7222, %v7314, 0
        %v7461 = vsel %vm7318, %v7021, 0
        %7463 = vmatprep.subr.bf16.mxu0 0
        %7464 = vmatpush1.bf16.msra.mxu0 %v7020
        %7465 = vmatprep.subr.bf16.mxu0 0
        %7466 = vmatpush1.bf16.msra.mxu0 %v7461
        %7467 = vmatprep.subr.bf16.mxu0 0
        %7468 = vmatpush1.bf16.msra.mxu0 0
        %7469 = vmatprep.subr.bf16.mxu0 0
        %7470 = vmatpush1.bf16.msra.mxu0 0
        %7471 = vmatprep.subr.bf16.mxu0 0
        %7472 = vmatpush1.bf16.msra.mxu0 0
        %7473 = vmatprep.subr.bf16.mxu0 0
        %7474 = vmatpush1.bf16.msra.mxu0 0
        %7475 = vmatprep.subr.bf16.mxu0 0
        %7476 = vmatpush1.bf16.msra.mxu0 0
        %7477 = vmatprep.subr.bf16.mxu0 0
        %7478 = vmatpush1.bf16.msra.mxu0 0
        %7479 = vmatprep.subr.bf16.mxu0 0
        %7480 = vmatpush1.bf16.msra.mxu0 0
        %7481 = vmatprep.subr.bf16.mxu0 0
        %7482 = vmatpush1.bf16.msra.mxu0 0
        %7483 = vmatprep.subr.bf16.mxu0 0
        %7484 = vmatpush1.bf16.msra.mxu0 0
        %7485 = vmatprep.subr.bf16.mxu0 0
        %7486 = vmatpush1.bf16.msra.mxu0 0
        %7487 = vmatprep.subr.bf16.mxu0 0
        %7488 = vmatpush1.bf16.msra.mxu0 0
        %7489 = vmatprep.subr.bf16.mxu0 0
        %7490 = vmatpush1.bf16.msra.mxu0 0
        %7491 = vmatprep.subr.bf16.mxu0 0
        %7492 = vmatpush1.bf16.msra.mxu0 0
        %7493 = vmatprep.subr.bf16.mxu0 0
        %7494 = vmatpush1.bf16.msra.mxu0 0
        %7495 = vmatprep.mubr.bf16.mxu0 0
        %7496 = vmatmul.mubr.bf16.gmra.mrb[0].mxu0 %v7458
        %v7497 = vpop.f32.mrb[0].mxu0
        %v7498 = vadd.f32 0.0, %v7497
        %v7499 = vpop.f32.mrb[0].mxu0
        %v7500 = vpop.f32.mrb[0].mxu0
        %v7501 = vadd.f32 0.0, %v7500
        %v7502 = vpop.f32.mrb[0].mxu0
        %7503 = vdwg.mxu0
        %v7504 = vpack.c.bf16 %v7360, %v7357
        %v7505 = vpack.c.bf16 %v7407, %v7404
        %v7506 = vpack.c.bf16 %v7454, %v7451
        %v7507 = vpack.c.bf16 %v7501, %v7498
        %7509 = vrot.lane.b32.xlu0 %v7002, 96
        %v7510 = vpop.permute.xlu0 %7509
        %7513 = vrot.lane.b32.xlu0 %v7006, 96
        %v7514 = vpop.permute.xlu0 %7513
        %7515 = vrot.lane.b32.xlu0 %v7007, 96
        %v7516 = vpop.permute.xlu0 %7515
        %v7518 = vsel %vm4366, %v7510, 0
        %v7521 = vsel %vm4366, %v7514, 0
        %v7524 = vsel %vm4366, %v7516, 0
        %7526 = vmatprep.subr.bf16.mxu0 0
        %7527 = vmatpush1.bf16.xpose.msra.mxu0 %v7521
        %7528 = vmatprep.subr.bf16.mxu0 0
        %7529 = vmatpush1.bf16.xpose.msra.mxu0 %v7524
        %7530 = vmatprep.subr.bf16.mxu0 0
        %7531 = vmatpush1.bf16.xpose.msra.mxu0 0
        %7532 = vmatprep.subr.bf16.mxu0 0
        %7533 = vmatpush1.bf16.xpose.msra.mxu0 0
        %7534 = vmatprep.subr.bf16.mxu0 0
        %7535 = vmatpush1.bf16.xpose.msra.mxu0 0
        %7536 = vmatprep.subr.bf16.mxu0 0
        %7537 = vmatpush1.bf16.xpose.msra.mxu0 0
        %7538 = vmatprep.subr.bf16.mxu0 0
        %7539 = vmatpush1.bf16.xpose.msra.mxu0 0
        %7540 = vmatprep.subr.bf16.mxu0 0
        %7541 = vmatpush1.bf16.xpose.msra.mxu0 0
        %7542 = vmatprep.subr.bf16.mxu0 0
        %7543 = vmatpush1.bf16.xpose.msra.mxu0 0
        %7544 = vmatprep.subr.bf16.mxu0 0
        %7545 = vmatpush1.bf16.xpose.msra.mxu0 0
        %7546 = vmatprep.subr.bf16.mxu0 0
        %7547 = vmatpush1.bf16.xpose.msra.mxu0 0
        %7548 = vmatprep.subr.bf16.mxu0 0
        %7549 = vmatpush1.bf16.xpose.msra.mxu0 0
        %7550 = vmatprep.subr.bf16.mxu0 0
        %7551 = vmatpush1.bf16.xpose.msra.mxu0 0
        %7552 = vmatprep.subr.bf16.mxu0 0
        %7553 = vmatpush1.bf16.xpose.msra.mxu0 0
        %7554 = vmatprep.subr.bf16.mxu0 0
        %7555 = vmatpush1.bf16.xpose.msra.mxu0 0
        %7556 = vmatprep.subr.bf16.mxu0 0
        %7557 = vmatpush1.bf16.xpose.msra.mxu0 0
        %7558 = vmatprep.mubr.bf16.mxu0 0
        %7559 = vmatmul.mubr.bf16.gmra.mrb[0].mxu0 %v7518
        %v7560 = vpop.f32.mrb[0].mxu0
        %v7561 = vadd.f32 0.0, %v7560
        %v7562 = vpop.f32.mrb[0].mxu0
        %v7563 = vpop.f32.mrb[0].mxu0
        %v7564 = vadd.f32 0.0, %v7563
        %v7565 = vpop.f32.mrb[0].mxu0
        %7566 = vdwg.mxu0
        %7568 = vrot.lane.b32.xlu0 %v7003, 96
        %v7569 = vpop.permute.xlu0 %7568
        %7572 = vrot.lane.b32.xlu0 %v7008, 96
        %v7573 = vpop.permute.xlu0 %7572
        %7574 = vrot.lane.b32.xlu0 %v7009, 96
        %v7575 = vpop.permute.xlu0 %7574
        %v7577 = vsel %vm4366, %v7569, 0
        %v7580 = vsel %vm4366, %v7573, 0
        %v7583 = vsel %vm4366, %v7575, 0
        %7585 = vmatprep.subr.bf16.mxu0 0
        %7586 = vmatpush1.bf16.xpose.msra.mxu0 %v7580
        %7587 = vmatprep.subr.bf16.mxu0 0
        %7588 = vmatpush1.bf16.xpose.msra.mxu0 %v7583
        %7589 = vmatprep.subr.bf16.mxu0 0
        %7590 = vmatpush1.bf16.xpose.msra.mxu0 0
        %7591 = vmatprep.subr.bf16.mxu0 0
        %7592 = vmatpush1.bf16.xpose.msra.mxu0 0
        %7593 = vmatprep.subr.bf16.mxu0 0
        %7594 = vmatpush1.bf16.xpose.msra.mxu0 0
        %7595 = vmatprep.subr.bf16.mxu0 0
        %7596 = vmatpush1.bf16.xpose.msra.mxu0 0
        %7597 = vmatprep.subr.bf16.mxu0 0
        %7598 = vmatpush1.bf16.xpose.msra.mxu0 0
        %7599 = vmatprep.subr.bf16.mxu0 0
        %7600 = vmatpush1.bf16.xpose.msra.mxu0 0
        %7601 = vmatprep.subr.bf16.mxu0 0
        %7602 = vmatpush1.bf16.xpose.msra.mxu0 0
        %7603 = vmatprep.subr.bf16.mxu0 0
        %7604 = vmatpush1.bf16.xpose.msra.mxu0 0
        %7605 = vmatprep.subr.bf16.mxu0 0
        %7606 = vmatpush1.bf16.xpose.msra.mxu0 0
        %7607 = vmatprep.subr.bf16.mxu0 0
        %7608 = vmatpush1.bf16.xpose.msra.mxu0 0
        %7609 = vmatprep.subr.bf16.mxu0 0
        %7610 = vmatpush1.bf16.xpose.msra.mxu0 0
        %7611 = vmatprep.subr.bf16.mxu0 0
        %7612 = vmatpush1.bf16.xpose.msra.mxu0 0
        %7613 = vmatprep.subr.bf16.mxu0 0
        %7614 = vmatpush1.bf16.xpose.msra.mxu0 0
        %7615 = vmatprep.subr.bf16.mxu0 0
        %7616 = vmatpush1.bf16.xpose.msra.mxu0 0
        %7617 = vmatprep.mubr.bf16.mxu0 0
        %7618 = vmatmul.mubr.bf16.gmra.mrb[0].mxu0 %v7577
        %v7619 = vpop.f32.mrb[0].mxu0
        %v7620 = vadd.f32 0.0, %v7619
        %v7621 = vpop.f32.mrb[0].mxu0
        %v7622 = vpop.f32.mrb[0].mxu0
        %v7623 = vadd.f32 0.0, %v7622
        %v7624 = vpop.f32.mrb[0].mxu0
        %7625 = vdwg.mxu0
        %7627 = vrot.lane.b32.xlu0 %v7004, 96
        %v7628 = vpop.permute.xlu0 %7627
        %7631 = vrot.lane.b32.xlu0 %v7010, 96
        %v7632 = vpop.permute.xlu0 %7631
        %7633 = vrot.lane.b32.xlu0 %v7011, 96
        %v7634 = vpop.permute.xlu0 %7633
        %v7636 = vsel %vm4366, %v7628, 0
        %v7639 = vsel %vm4366, %v7632, 0
        %v7642 = vsel %vm4366, %v7634, 0
        %7644 = vmatprep.subr.bf16.mxu0 0
        %7645 = vmatpush1.bf16.xpose.msra.mxu0 %v7639
        %7646 = vmatprep.subr.bf16.mxu0 0
        %7647 = vmatpush1.bf16.xpose.msra.mxu0 %v7642
        %7648 = vmatprep.subr.bf16.mxu0 0
        %7649 = vmatpush1.bf16.xpose.msra.mxu0 0
        %7650 = vmatprep.subr.bf16.mxu0 0
        %7651 = vmatpush1.bf16.xpose.msra.mxu0 0
        %7652 = vmatprep.subr.bf16.mxu0 0
        %7653 = vmatpush1.bf16.xpose.msra.mxu0 0
        %7654 = vmatprep.subr.bf16.mxu0 0
        %7655 = vmatpush1.bf16.xpose.msra.mxu0 0
        %7656 = vmatprep.subr.bf16.mxu0 0
        %7657 = vmatpush1.bf16.xpose.msra.mxu0 0
        %7658 = vmatprep.subr.bf16.mxu0 0
        %7659 = vmatpush1.bf16.xpose.msra.mxu0 0
        %7660 = vmatprep.subr.bf16.mxu0 0
        %7661 = vmatpush1.bf16.xpose.msra.mxu0 0
        %7662 = vmatprep.subr.bf16.mxu0 0
        %7663 = vmatpush1.bf16.xpose.msra.mxu0 0
        %7664 = vmatprep.subr.bf16.mxu0 0
        %7665 = vmatpush1.bf16.xpose.msra.mxu0 0
        %7666 = vmatprep.subr.bf16.mxu0 0
        %7667 = vmatpush1.bf16.xpose.msra.mxu0 0
        %7668 = vmatprep.subr.bf16.mxu0 0
        %7669 = vmatpush1.bf16.xpose.msra.mxu0 0
        %7670 = vmatprep.subr.bf16.mxu0 0
        %7671 = vmatpush1.bf16.xpose.msra.mxu0 0
        %7672 = vmatprep.subr.bf16.mxu0 0
        %7673 = vmatpush1.bf16.xpose.msra.mxu0 0
        %7674 = vmatprep.subr.bf16.mxu0 0
        %7675 = vmatpush1.bf16.xpose.msra.mxu0 0
        %7676 = vmatprep.mubr.bf16.mxu0 0
        %7677 = vmatmul.mubr.bf16.gmra.mrb[0].mxu0 %v7636
        %v7678 = vpop.f32.mrb[0].mxu0
        %v7679 = vadd.f32 0.0, %v7678
        %v7680 = vpop.f32.mrb[0].mxu0
        %v7681 = vpop.f32.mrb[0].mxu0
        %v7682 = vadd.f32 0.0, %v7681
        %v7683 = vpop.f32.mrb[0].mxu0
        %7684 = vdwg.mxu0
        %7686 = vrot.lane.b32.xlu0 %v7005, 96
        %v7687 = vpop.permute.xlu0 %7686
        %7690 = vrot.lane.b32.xlu0 %v7012, 96
        %v7691 = vpop.permute.xlu0 %7690
        %7692 = vrot.lane.b32.xlu0 %v7013, 96
        %v7693 = vpop.permute.xlu0 %7692
        %v7695 = vsel %vm4366, %v7687, 0
        %v7698 = vsel %vm4366, %v7691, 0
        %v7701 = vsel %vm4366, %v7693, 0
        %7703 = vmatprep.subr.bf16.mxu0 0
        %7704 = vmatpush1.bf16.xpose.msra.mxu0 %v7698
        %7705 = vmatprep.subr.bf16.mxu0 0
        %7706 = vmatpush1.bf16.xpose.msra.mxu0 %v7701
        %7707 = vmatprep.subr.bf16.mxu0 0
        %7708 = vmatpush1.bf16.xpose.msra.mxu0 0
        %7709 = vmatprep.subr.bf16.mxu0 0
        %7710 = vmatpush1.bf16.xpose.msra.mxu0 0
        %7711 = vmatprep.subr.bf16.mxu0 0
        %7712 = vmatpush1.bf16.xpose.msra.mxu0 0
        %7713 = vmatprep.subr.bf16.mxu0 0
        %7714 = vmatpush1.bf16.xpose.msra.mxu0 0
        %7715 = vmatprep.subr.bf16.mxu0 0
        %7716 = vmatpush1.bf16.xpose.msra.mxu0 0
        %7717 = vmatprep.subr.bf16.mxu0 0
        %7718 = vmatpush1.bf16.xpose.msra.mxu0 0
        %7719 = vmatprep.subr.bf16.mxu0 0
        %7720 = vmatpush1.bf16.xpose.msra.mxu0 0
        %7721 = vmatprep.subr.bf16.mxu0 0
        %7722 = vmatpush1.bf16.xpose.msra.mxu0 0
        %7723 = vmatprep.subr.bf16.mxu0 0
        %7724 = vmatpush1.bf16.xpose.msra.mxu0 0
        %7725 = vmatprep.subr.bf16.mxu0 0
        %7726 = vmatpush1.bf16.xpose.msra.mxu0 0
        %7727 = vmatprep.subr.bf16.mxu0 0
        %7728 = vmatpush1.bf16.xpose.msra.mxu0 0
        %7729 = vmatprep.subr.bf16.mxu0 0
        %7730 = vmatpush1.bf16.xpose.msra.mxu0 0
        %7731 = vmatprep.subr.bf16.mxu0 0
        %7732 = vmatpush1.bf16.xpose.msra.mxu0 0
        %7733 = vmatprep.subr.bf16.mxu0 0
        %7734 = vmatpush1.bf16.xpose.msra.mxu0 0
        %7735 = vmatprep.mubr.bf16.mxu0 0
        %7736 = vmatmul.mubr.bf16.gmra.mrb[0].mxu0 %v7695
        %v7737 = vpop.f32.mrb[0].mxu0
        %v7738 = vadd.f32 0.0, %v7737
        %v7739 = vpop.f32.mrb[0].mxu0
        %v7740 = vpop.f32.mrb[0].mxu0
        %v7741 = vadd.f32 0.0, %v7740
        %v7742 = vpop.f32.mrb[0].mxu0
        %7743 = vdwg.mxu0
        %v7744 = vsel %vm7222, %v7561, -inf
        %7745 = vmax.xlane.f32.xlu0 %v7744
        %v7746 = vpop.xlane.xlu0 %7745
        %v7747 = vsel %vm7222, %v7564, -inf
        %7748 = vmax.xlane.f32.xlu0 %v7747
        %v7749 = vpop.xlane.xlu0 %7748
        %v7750 = vsel %vm7222, %v7620, -inf
        %7751 = vmax.xlane.f32.xlu0 %v7750
        %v7752 = vpop.xlane.xlu0 %7751
        %v7753 = vsel %vm7222, %v7623, -inf
        %7754 = vmax.xlane.f32.xlu0 %v7753
        %v7755 = vpop.xlane.xlu0 %7754
        %v7756 = vsel %vm7222, %v7679, -inf
        %7757 = vmax.xlane.f32.xlu0 %v7756
        %v7758 = vpop.xlane.xlu0 %7757
        %v7759 = vsel %vm7222, %v7682, -inf
        %7760 = vmax.xlane.f32.xlu0 %v7759
        %v7761 = vpop.xlane.xlu0 %7760
        %v7762 = vsel %vm7222, %v7738, -inf
        %7763 = vmax.xlane.f32.xlu0 %v7762
        %v7764 = vpop.xlane.xlu0 %7763
        %v7765 = vsel %vm7222, %v7741, -inf
        %7766 = vmax.xlane.f32.xlu0 %v7765
        %v7767 = vpop.xlane.xlu0 %7766
        %v7768 = vsub.f32 %v7561, %v7746
        %v7769 = vsub.f32 %v7564, %v7749
        %v7770 = vsub.f32 %v7620, %v7752
        %v7771 = vsub.f32 %v7623, %v7755
        %v7772 = vsub.f32 %v7679, %v7758
        %v7773 = vsub.f32 %v7682, %v7761
        %v7774 = vsub.f32 %v7738, %v7764
        %v7775 = vsub.f32 %v7741, %v7767
        %v7776 = vmul.f32 %v7768, 1.442695
        %v7777 = vpow.pop %v7776
        %v7778 = vmul.f32 %v7769, 1.442695
        %v7779 = vpow.pop %v7778
        %v7780 = vmul.f32 %v7770, 1.442695
        %v7781 = vpow.pop %v7780
        %v7782 = vmul.f32 %v7771, 1.442695
        %v7783 = vpow.pop %v7782
        %v7784 = vmul.f32 %v7772, 1.442695
        %v7785 = vpow.pop %v7784
        %v7786 = vmul.f32 %v7773, 1.442695
        %v7787 = vpow.pop %v7786
        %v7788 = vmul.f32 %v7774, 1.442695
        %v7789 = vpow.pop %v7788
        %v7790 = vmul.f32 %v7775, 1.442695
        %v7791 = vpow.pop %v7790
        %v7792 = vsel %vm7222, %v7777, 0.0
        %7793 = vadd.xlane.f32.xlu0 %v7792
        %v7794 = vpop.xlane.xlu0 %7793
        %v7795 = vsel %vm7222, %v7779, 0.0
        %7796 = vadd.xlane.f32.xlu0 %v7795
        %v7797 = vpop.xlane.xlu0 %7796
        %v7798 = vsel %vm7222, %v7781, 0.0
        %7799 = vadd.xlane.f32.xlu0 %v7798
        %v7800 = vpop.xlane.xlu0 %7799
        %v7801 = vsel %vm7222, %v7783, 0.0
        %7802 = vadd.xlane.f32.xlu0 %v7801
        %v7803 = vpop.xlane.xlu0 %7802
        %v7804 = vsel %vm7222, %v7785, 0.0
        %7805 = vadd.xlane.f32.xlu0 %v7804
        %v7806 = vpop.xlane.xlu0 %7805
        %v7807 = vsel %vm7222, %v7787, 0.0
        %7808 = vadd.xlane.f32.xlu0 %v7807
        %v7809 = vpop.xlane.xlu0 %7808
        %v7810 = vsel %vm7222, %v7789, 0.0
        %7811 = vadd.xlane.f32.xlu0 %v7810
        %v7812 = vpop.xlane.xlu0 %7811
        %v7813 = vsel %vm7222, %v7791, 0.0
        %7814 = vadd.xlane.f32.xlu0 %v7813
        %v7815 = vpop.xlane.xlu0 %7814
        %v7816 = vrcp.pop %v7794
        %v7817 = vrcp.pop %v7797
        %v7818 = vrcp.pop %v7800
        %v7819 = vrcp.pop %v7803
        %v7820 = vrcp.pop %v7806
        %v7821 = vrcp.pop %v7809
        %v7822 = vrcp.pop %v7812
        %v7823 = vrcp.pop %v7815
        %v7824 = vmul.f32 %v7777, %v7816
        %v7825 = vmul.f32 %v7779, %v7817
        %v7826 = vmul.f32 %v7781, %v7818
        %v7827 = vmul.f32 %v7783, %v7819
        %v7828 = vmul.f32 %v7785, %v7820
        %v7829 = vmul.f32 %v7787, %v7821
        %v7830 = vmul.f32 %v7789, %v7822
        %v7831 = vmul.f32 %v7791, %v7823
        %v7832 = vpack.c.bf16 %v7825, %v7824
        %v7833 = vpack.c.bf16 %v7827, %v7826
        %v7834 = vpack.c.bf16 %v7829, %v7828
        %v7835 = vpack.c.bf16 %v7831, %v7830
        %7838 = vrot.lane.b32.xlu0 %v7014, 96
        %v7839 = vpop.permute.xlu0 %7838
        %7840 = vrot.lane.b32.xlu0 %v7015, 96
        %v7841 = vpop.permute.xlu0 %7840
        %v7844 = vsel %vm7222, %v7832, 0
        %v7847 = vsel %vm7318, %v7841, 0
        %7849 = vmatprep.subr.bf16.mxu0 0
        %7850 = vmatpush1.bf16.msra.mxu0 %v7839
        %7851 = vmatprep.subr.bf16.mxu0 0
        %7852 = vmatpush1.bf16.msra.mxu0 %v7847
        %7853 = vmatprep.subr.bf16.mxu0 0
        %7854 = vmatpush1.bf16.msra.mxu0 0
        %7855 = vmatprep.subr.bf16.mxu0 0
        %7856 = vmatpush1.bf16.msra.mxu0 0
        %7857 = vmatprep.subr.bf16.mxu0 0
        %7858 = vmatpush1.bf16.msra.mxu0 0
        %7859 = vmatprep.subr.bf16.mxu0 0
        %7860 = vmatpush1.bf16.msra.mxu0 0
        %7861 = vmatprep.subr.bf16.mxu0 0
        %7862 = vmatpush1.bf16.msra.mxu0 0
        %7863 = vmatprep.subr.bf16.mxu0 0
        %7864 = vmatpush1.bf16.msra.mxu0 0
        %7865 = vmatprep.subr.bf16.mxu0 0
        %7866 = vmatpush1.bf16.msra.mxu0 0
        %7867 = vmatprep.subr.bf16.mxu0 0
        %7868 = vmatpush1.bf16.msra.mxu0 0
        %7869 = vmatprep.subr.bf16.mxu0 0
        %7870 = vmatpush1.bf16.msra.mxu0 0
        %7871 = vmatprep.subr.bf16.mxu0 0
        %7872 = vmatpush1.bf16.msra.mxu0 0
        %7873 = vmatprep.subr.bf16.mxu0 0
        %7874 = vmatpush1.bf16.msra.mxu0 0
        %7875 = vmatprep.subr.bf16.mxu0 0
        %7876 = vmatpush1.bf16.msra.mxu0 0
        %7877 = vmatprep.subr.bf16.mxu0 0
        %7878 = vmatpush1.bf16.msra.mxu0 0
        %7879 = vmatprep.subr.bf16.mxu0 0
        %7880 = vmatpush1.bf16.msra.mxu0 0
        %7881 = vmatprep.mubr.bf16.mxu0 0
        %7882 = vmatmul.mubr.bf16.gmra.mrb[0].mxu0 %v7844
        %v7883 = vpop.f32.mrb[0].mxu0
        %v7884 = vadd.f32 0.0, %v7883
        %v7885 = vpop.f32.mrb[0].mxu0
        %v7886 = vpop.f32.mrb[0].mxu0
        %v7887 = vadd.f32 0.0, %v7886
        %v7888 = vpop.f32.mrb[0].mxu0
        %7889 = vdwg.mxu0
        %7892 = vrot.lane.b32.xlu0 %v7016, 96
        %v7893 = vpop.permute.xlu0 %7892
        %7894 = vrot.lane.b32.xlu0 %v7017, 96
        %v7895 = vpop.permute.xlu0 %7894
        %v7898 = vsel %vm7222, %v7833, 0
        %v7901 = vsel %vm7318, %v7895, 0
        %7903 = vmatprep.subr.bf16.mxu0 0
        %7904 = vmatpush1.bf16.msra.mxu0 %v7893
        %7905 = vmatprep.subr.bf16.mxu0 0
        %7906 = vmatpush1.bf16.msra.mxu0 %v7901
        %7907 = vmatprep.subr.bf16.mxu0 0
        %7908 = vmatpush1.bf16.msra.mxu0 0
        %7909 = vmatprep.subr.bf16.mxu0 0
        %7910 = vmatpush1.bf16.msra.mxu0 0
        %7911 = vmatprep.subr.bf16.mxu0 0
        %7912 = vmatpush1.bf16.msra.mxu0 0
        %7913 = vmatprep.subr.bf16.mxu0 0
        %7914 = vmatpush1.bf16.msra.mxu0 0
        %7915 = vmatprep.subr.bf16.mxu0 0
        %7916 = vmatpush1.bf16.msra.mxu0 0
        %7917 = vmatprep.subr.bf16.mxu0 0
        %7918 = vmatpush1.bf16.msra.mxu0 0
        %7919 = vmatprep.subr.bf16.mxu0 0
        %7920 = vmatpush1.bf16.msra.mxu0 0
        %7921 = vmatprep.subr.bf16.mxu0 0
        %7922 = vmatpush1.bf16.msra.mxu0 0
        %7923 = vmatprep.subr.bf16.mxu0 0
        %7924 = vmatpush1.bf16.msra.mxu0 0
        %7925 = vmatprep.subr.bf16.mxu0 0
        %7926 = vmatpush1.bf16.msra.mxu0 0
        %7927 = vmatprep.subr.bf16.mxu0 0
        %7928 = vmatpush1.bf16.msra.mxu0 0
        %7929 = vmatprep.subr.bf16.mxu0 0
        %7930 = vmatpush1.bf16.msra.mxu0 0
        %7931 = vmatprep.subr.bf16.mxu0 0
        %7932 = vmatpush1.bf16.msra.mxu0 0
        %7933 = vmatprep.subr.bf16.mxu0 0
        %7934 = vmatpush1.bf16.msra.mxu0 0
        %7935 = vmatprep.mubr.bf16.mxu0 0
        %7936 = vmatmul.mubr.bf16.gmra.mrb[0].mxu0 %v7898
        %v7937 = vpop.f32.mrb[0].mxu0
        %v7938 = vadd.f32 0.0, %v7937
        %v7939 = vpop.f32.mrb[0].mxu0
        %v7940 = vpop.f32.mrb[0].mxu0
        %v7941 = vadd.f32 0.0, %v7940
        %v7942 = vpop.f32.mrb[0].mxu0
        %7943 = vdwg.mxu0
        %7946 = vrot.lane.b32.xlu0 %v7018, 96
        %v7947 = vpop.permute.xlu0 %7946
        %7948 = vrot.lane.b32.xlu0 %v7019, 96
        %v7949 = vpop.permute.xlu0 %7948
        %v7952 = vsel %vm7222, %v7834, 0
        %v7955 = vsel %vm7318, %v7949, 0
        %7957 = vmatprep.subr.bf16.mxu0 0
        %7958 = vmatpush1.bf16.msra.mxu0 %v7947
        %7959 = vmatprep.subr.bf16.mxu0 0
        %7960 = vmatpush1.bf16.msra.mxu0 %v7955
        %7961 = vmatprep.subr.bf16.mxu0 0
        %7962 = vmatpush1.bf16.msra.mxu0 0
        %7963 = vmatprep.subr.bf16.mxu0 0
        %7964 = vmatpush1.bf16.msra.mxu0 0
        %7965 = vmatprep.subr.bf16.mxu0 0
        %7966 = vmatpush1.bf16.msra.mxu0 0
        %7967 = vmatprep.subr.bf16.mxu0 0
        %7968 = vmatpush1.bf16.msra.mxu0 0
        %7969 = vmatprep.subr.bf16.mxu0 0
        %7970 = vmatpush1.bf16.msra.mxu0 0
        %7971 = vmatprep.subr.bf16.mxu0 0
        %7972 = vmatpush1.bf16.msra.mxu0 0
        %7973 = vmatprep.subr.bf16.mxu0 0
        %7974 = vmatpush1.bf16.msra.mxu0 0
        %7975 = vmatprep.subr.bf16.mxu0 0
        %7976 = vmatpush1.bf16.msra.mxu0 0
        %7977 = vmatprep.subr.bf16.mxu0 0
        %7978 = vmatpush1.bf16.msra.mxu0 0
        %7979 = vmatprep.subr.bf16.mxu0 0
        %7980 = vmatpush1.bf16.msra.mxu0 0
        %7981 = vmatprep.subr.bf16.mxu0 0
        %7982 = vmatpush1.bf16.msra.mxu0 0
        %7983 = vmatprep.subr.bf16.mxu0 0
        %7984 = vmatpush1.bf16.msra.mxu0 0
        %7985 = vmatprep.subr.bf16.mxu0 0
        %7986 = vmatpush1.bf16.msra.mxu0 0
        %7987 = vmatprep.subr.bf16.mxu0 0
        %7988 = vmatpush1.bf16.msra.mxu0 0
        %7989 = vmatprep.mubr.bf16.mxu0 0
        %7990 = vmatmul.mubr.bf16.gmra.mrb[0].mxu0 %v7952
        %v7991 = vpop.f32.mrb[0].mxu0
        %v7992 = vadd.f32 0.0, %v7991
        %v7993 = vpop.f32.mrb[0].mxu0
        %v7994 = vpop.f32.mrb[0].mxu0
        %v7995 = vadd.f32 0.0, %v7994
        %v7996 = vpop.f32.mrb[0].mxu0
        %7997 = vdwg.mxu0
        %8000 = vrot.lane.b32.xlu0 %v7020, 96
        %v8001 = vpop.permute.xlu0 %8000
        %8002 = vrot.lane.b32.xlu0 %v7021, 96
        %v8003 = vpop.permute.xlu0 %8002
        %v8006 = vsel %vm7222, %v7835, 0
        %v8009 = vsel %vm7318, %v8003, 0
        %8011 = vmatprep.subr.bf16.mxu0 0
        %8012 = vmatpush1.bf16.msra.mxu0 %v8001
        %8013 = vmatprep.subr.bf16.mxu0 0
        %8014 = vmatpush1.bf16.msra.mxu0 %v8009
        %8015 = vmatprep.subr.bf16.mxu0 0
        %8016 = vmatpush1.bf16.msra.mxu0 0
        %8017 = vmatprep.subr.bf16.mxu0 0
        %8018 = vmatpush1.bf16.msra.mxu0 0
        %8019 = vmatprep.subr.bf16.mxu0 0
        %8020 = vmatpush1.bf16.msra.mxu0 0
        %8021 = vmatprep.subr.bf16.mxu0 0
        %8022 = vmatpush1.bf16.msra.mxu0 0
        %8023 = vmatprep.subr.bf16.mxu0 0
        %8024 = vmatpush1.bf16.msra.mxu0 0
        %8025 = vmatprep.subr.bf16.mxu0 0
        %8026 = vmatpush1.bf16.msra.mxu0 0
        %8027 = vmatprep.subr.bf16.mxu0 0
        %8028 = vmatpush1.bf16.msra.mxu0 0
        %8029 = vmatprep.subr.bf16.mxu0 0
        %8030 = vmatpush1.bf16.msra.mxu0 0
        %8031 = vmatprep.subr.bf16.mxu0 0
        %8032 = vmatpush1.bf16.msra.mxu0 0
        %8033 = vmatprep.subr.bf16.mxu0 0
        %8034 = vmatpush1.bf16.msra.mxu0 0
        %8035 = vmatprep.subr.bf16.mxu0 0
        %8036 = vmatpush1.bf16.msra.mxu0 0
        %8037 = vmatprep.subr.bf16.mxu0 0
        %8038 = vmatpush1.bf16.msra.mxu0 0
        %8039 = vmatprep.subr.bf16.mxu0 0
        %8040 = vmatpush1.bf16.msra.mxu0 0
        %8041 = vmatprep.subr.bf16.mxu0 0
        %8042 = vmatpush1.bf16.msra.mxu0 0
        %8043 = vmatprep.mubr.bf16.mxu0 0
        %8044 = vmatmul.mubr.bf16.gmra.mrb[0].mxu0 %v8006
        %v8045 = vpop.f32.mrb[0].mxu0
        %v8046 = vadd.f32 0.0, %v8045
        %v8047 = vpop.f32.mrb[0].mxu0
        %v8048 = vpop.f32.mrb[0].mxu0
        %v8049 = vadd.f32 0.0, %v8048
        %v8050 = vpop.f32.mrb[0].mxu0
        %8051 = vdwg.mxu0
        %v8052 = vpack.c.bf16 %v7887, %v7884
        %v8053 = vpack.c.bf16 %v7941, %v7938
        %v8054 = vpack.c.bf16 %v7995, %v7992
        %v8055 = vpack.c.bf16 %v8049, %v8046
        %8056 = vrot.lane.b32.xlu0 %v7002, 64
        %v8057 = vpop.permute.xlu0 %8056
        %8058 = vrot.lane.b32.xlu0 %v7006, 64
        %v8059 = vpop.permute.xlu0 %8058
        %8060 = vrot.lane.b32.xlu0 %v7007, 64
        %v8061 = vpop.permute.xlu0 %8060
        %v8063 = vsel %vm4366, %v8057, 0
        %v8066 = vsel %vm4366, %v8059, 0
        %v8069 = vsel %vm4366, %v8061, 0
        %8071 = vmatprep.subr.bf16.mxu0 0
        %8072 = vmatpush1.bf16.xpose.msra.mxu0 %v8066
        %8073 = vmatprep.subr.bf16.mxu0 0
        %8074 = vmatpush1.bf16.xpose.msra.mxu0 %v8069
        %8075 = vmatprep.subr.bf16.mxu0 0
        %8076 = vmatpush1.bf16.xpose.msra.mxu0 0
        %8077 = vmatprep.subr.bf16.mxu0 0
        %8078 = vmatpush1.bf16.xpose.msra.mxu0 0
        %8079 = vmatprep.subr.bf16.mxu0 0
        %8080 = vmatpush1.bf16.xpose.msra.mxu0 0
        %8081 = vmatprep.subr.bf16.mxu0 0
        %8082 = vmatpush1.bf16.xpose.msra.mxu0 0
        %8083 = vmatprep.subr.bf16.mxu0 0
        %8084 = vmatpush1.bf16.xpose.msra.mxu0 0
        %8085 = vmatprep.subr.bf16.mxu0 0
        %8086 = vmatpush1.bf16.xpose.msra.mxu0 0
        %8087 = vmatprep.subr.bf16.mxu0 0
        %8088 = vmatpush1.bf16.xpose.msra.mxu0 0
        %8089 = vmatprep.subr.bf16.mxu0 0
        %8090 = vmatpush1.bf16.xpose.msra.mxu0 0
        %8091 = vmatprep.subr.bf16.mxu0 0
        %8092 = vmatpush1.bf16.xpose.msra.mxu0 0
        %8093 = vmatprep.subr.bf16.mxu0 0
        %8094 = vmatpush1.bf16.xpose.msra.mxu0 0
        %8095 = vmatprep.subr.bf16.mxu0 0
        %8096 = vmatpush1.bf16.xpose.msra.mxu0 0
        %8097 = vmatprep.subr.bf16.mxu0 0
        %8098 = vmatpush1.bf16.xpose.msra.mxu0 0
        %8099 = vmatprep.subr.bf16.mxu0 0
        %8100 = vmatpush1.bf16.xpose.msra.mxu0 0
        %8101 = vmatprep.subr.bf16.mxu0 0
        %8102 = vmatpush1.bf16.xpose.msra.mxu0 0
        %8103 = vmatprep.mubr.bf16.mxu0 0
        %8104 = vmatmul.mubr.bf16.gmra.mrb[0].mxu0 %v8063
        %v8105 = vpop.f32.mrb[0].mxu0
        %v8106 = vadd.f32 0.0, %v8105
        %v8107 = vpop.f32.mrb[0].mxu0
        %v8108 = vpop.f32.mrb[0].mxu0
        %v8109 = vadd.f32 0.0, %v8108
        %v8110 = vpop.f32.mrb[0].mxu0
        %8111 = vdwg.mxu0
        %8112 = vrot.lane.b32.xlu0 %v7003, 64
        %v8113 = vpop.permute.xlu0 %8112
        %8114 = vrot.lane.b32.xlu0 %v7008, 64
        %v8115 = vpop.permute.xlu0 %8114
        %8116 = vrot.lane.b32.xlu0 %v7009, 64
        %v8117 = vpop.permute.xlu0 %8116
        %v8119 = vsel %vm4366, %v8113, 0
        %v8122 = vsel %vm4366, %v8115, 0
        %v8125 = vsel %vm4366, %v8117, 0
        %8127 = vmatprep.subr.bf16.mxu0 0
        %8128 = vmatpush1.bf16.xpose.msra.mxu0 %v8122
        %8129 = vmatprep.subr.bf16.mxu0 0
        %8130 = vmatpush1.bf16.xpose.msra.mxu0 %v8125
        %8131 = vmatprep.subr.bf16.mxu0 0
        %8132 = vmatpush1.bf16.xpose.msra.mxu0 0
        %8133 = vmatprep.subr.bf16.mxu0 0
        %8134 = vmatpush1.bf16.xpose.msra.mxu0 0
        %8135 = vmatprep.subr.bf16.mxu0 0
        %8136 = vmatpush1.bf16.xpose.msra.mxu0 0
        %8137 = vmatprep.subr.bf16.mxu0 0
        %8138 = vmatpush1.bf16.xpose.msra.mxu0 0
        %8139 = vmatprep.subr.bf16.mxu0 0
        %8140 = vmatpush1.bf16.xpose.msra.mxu0 0
        %8141 = vmatprep.subr.bf16.mxu0 0
        %8142 = vmatpush1.bf16.xpose.msra.mxu0 0
        %8143 = vmatprep.subr.bf16.mxu0 0
        %8144 = vmatpush1.bf16.xpose.msra.mxu0 0
        %8145 = vmatprep.subr.bf16.mxu0 0
        %8146 = vmatpush1.bf16.xpose.msra.mxu0 0
        %8147 = vmatprep.subr.bf16.mxu0 0
        %8148 = vmatpush1.bf16.xpose.msra.mxu0 0
        %8149 = vmatprep.subr.bf16.mxu0 0
        %8150 = vmatpush1.bf16.xpose.msra.mxu0 0
        %8151 = vmatprep.subr.bf16.mxu0 0
        %8152 = vmatpush1.bf16.xpose.msra.mxu0 0
        %8153 = vmatprep.subr.bf16.mxu0 0
        %8154 = vmatpush1.bf16.xpose.msra.mxu0 0
        %8155 = vmatprep.subr.bf16.mxu0 0
        %8156 = vmatpush1.bf16.xpose.msra.mxu0 0
        %8157 = vmatprep.subr.bf16.mxu0 0
        %8158 = vmatpush1.bf16.xpose.msra.mxu0 0
        %8159 = vmatprep.mubr.bf16.mxu0 0
        %8160 = vmatmul.mubr.bf16.gmra.mrb[0].mxu0 %v8119
        %v8161 = vpop.f32.mrb[0].mxu0
        %v8162 = vadd.f32 0.0, %v8161
        %v8163 = vpop.f32.mrb[0].mxu0
        %v8164 = vpop.f32.mrb[0].mxu0
        %v8165 = vadd.f32 0.0, %v8164
        %v8166 = vpop.f32.mrb[0].mxu0
        %8167 = vdwg.mxu0
        %8168 = vrot.lane.b32.xlu0 %v7004, 64
        %v8169 = vpop.permute.xlu0 %8168
        %8170 = vrot.lane.b32.xlu0 %v7010, 64
        %v8171 = vpop.permute.xlu0 %8170
        %8172 = vrot.lane.b32.xlu0 %v7011, 64
        %v8173 = vpop.permute.xlu0 %8172
        %v8175 = vsel %vm4366, %v8169, 0
        %v8178 = vsel %vm4366, %v8171, 0
        %v8181 = vsel %vm4366, %v8173, 0
        %8183 = vmatprep.subr.bf16.mxu0 0
        %8184 = vmatpush1.bf16.xpose.msra.mxu0 %v8178
        %8185 = vmatprep.subr.bf16.mxu0 0
        %8186 = vmatpush1.bf16.xpose.msra.mxu0 %v8181
        %8187 = vmatprep.subr.bf16.mxu0 0
        %8188 = vmatpush1.bf16.xpose.msra.mxu0 0
        %8189 = vmatprep.subr.bf16.mxu0 0
        %8190 = vmatpush1.bf16.xpose.msra.mxu0 0
        %8191 = vmatprep.subr.bf16.mxu0 0
        %8192 = vmatpush1.bf16.xpose.msra.mxu0 0
        %8193 = vmatprep.subr.bf16.mxu0 0
        %8194 = vmatpush1.bf16.xpose.msra.mxu0 0
        %8195 = vmatprep.subr.bf16.mxu0 0
        %8196 = vmatpush1.bf16.xpose.msra.mxu0 0
        %8197 = vmatprep.subr.bf16.mxu0 0
        %8198 = vmatpush1.bf16.xpose.msra.mxu0 0
        %8199 = vmatprep.subr.bf16.mxu0 0
        %8200 = vmatpush1.bf16.xpose.msra.mxu0 0
        %8201 = vmatprep.subr.bf16.mxu0 0
        %8202 = vmatpush1.bf16.xpose.msra.mxu0 0
        %8203 = vmatprep.subr.bf16.mxu0 0
        %8204 = vmatpush1.bf16.xpose.msra.mxu0 0
        %8205 = vmatprep.subr.bf16.mxu0 0
        %8206 = vmatpush1.bf16.xpose.msra.mxu0 0
        %8207 = vmatprep.subr.bf16.mxu0 0
        %8208 = vmatpush1.bf16.xpose.msra.mxu0 0
        %8209 = vmatprep.subr.bf16.mxu0 0
        %8210 = vmatpush1.bf16.xpose.msra.mxu0 0
        %8211 = vmatprep.subr.bf16.mxu0 0
        %8212 = vmatpush1.bf16.xpose.msra.mxu0 0
        %8213 = vmatprep.subr.bf16.mxu0 0
        %8214 = vmatpush1.bf16.xpose.msra.mxu0 0
        %8215 = vmatprep.mubr.bf16.mxu0 0
        %8216 = vmatmul.mubr.bf16.gmra.mrb[0].mxu0 %v8175
        %v8217 = vpop.f32.mrb[0].mxu0
        %v8218 = vadd.f32 0.0, %v8217
        %v8219 = vpop.f32.mrb[0].mxu0
        %v8220 = vpop.f32.mrb[0].mxu0
        %v8221 = vadd.f32 0.0, %v8220
        %v8222 = vpop.f32.mrb[0].mxu0
        %8223 = vdwg.mxu0
        %8224 = vrot.lane.b32.xlu0 %v7005, 64
        %v8225 = vpop.permute.xlu0 %8224
        %8226 = vrot.lane.b32.xlu0 %v7012, 64
        %v8227 = vpop.permute.xlu0 %8226
        %8228 = vrot.lane.b32.xlu0 %v7013, 64
        %v8229 = vpop.permute.xlu0 %8228
        %v8231 = vsel %vm4366, %v8225, 0
        %v8234 = vsel %vm4366, %v8227, 0
        %v8237 = vsel %vm4366, %v8229, 0
        %8239 = vmatprep.subr.bf16.mxu0 0
        %8240 = vmatpush1.bf16.xpose.msra.mxu0 %v8234
        %8241 = vmatprep.subr.bf16.mxu0 0
        %8242 = vmatpush1.bf16.xpose.msra.mxu0 %v8237
        %8243 = vmatprep.subr.bf16.mxu0 0
        %8244 = vmatpush1.bf16.xpose.msra.mxu0 0
        %8245 = vmatprep.subr.bf16.mxu0 0
        %8246 = vmatpush1.bf16.xpose.msra.mxu0 0
        %8247 = vmatprep.subr.bf16.mxu0 0
        %8248 = vmatpush1.bf16.xpose.msra.mxu0 0
        %8249 = vmatprep.subr.bf16.mxu0 0
        %8250 = vmatpush1.bf16.xpose.msra.mxu0 0
        %8251 = vmatprep.subr.bf16.mxu0 0
        %8252 = vmatpush1.bf16.xpose.msra.mxu0 0
        %8253 = vmatprep.subr.bf16.mxu0 0
        %8254 = vmatpush1.bf16.xpose.msra.mxu0 0
        %8255 = vmatprep.subr.bf16.mxu0 0
        %8256 = vmatpush1.bf16.xpose.msra.mxu0 0
        %8257 = vmatprep.subr.bf16.mxu0 0
        %8258 = vmatpush1.bf16.xpose.msra.mxu0 0
        %8259 = vmatprep.subr.bf16.mxu0 0
        %8260 = vmatpush1.bf16.xpose.msra.mxu0 0
        %8261 = vmatprep.subr.bf16.mxu0 0
        %8262 = vmatpush1.bf16.xpose.msra.mxu0 0
        %8263 = vmatprep.subr.bf16.mxu0 0
        %8264 = vmatpush1.bf16.xpose.msra.mxu0 0
        %8265 = vmatprep.subr.bf16.mxu0 0
        %8266 = vmatpush1.bf16.xpose.msra.mxu0 0
        %8267 = vmatprep.subr.bf16.mxu0 0
        %8268 = vmatpush1.bf16.xpose.msra.mxu0 0
        %8269 = vmatprep.subr.bf16.mxu0 0
        %8270 = vmatpush1.bf16.xpose.msra.mxu0 0
        %8271 = vmatprep.mubr.bf16.mxu0 0
        %8272 = vmatmul.mubr.bf16.gmra.mrb[0].mxu0 %v8231
        %v8273 = vpop.f32.mrb[0].mxu0
        %v8274 = vadd.f32 0.0, %v8273
        %v8275 = vpop.f32.mrb[0].mxu0
        %v8276 = vpop.f32.mrb[0].mxu0
        %v8277 = vadd.f32 0.0, %v8276
        %v8278 = vpop.f32.mrb[0].mxu0
        %8279 = vdwg.mxu0
        %v8280 = vsel %vm7222, %v8106, -inf
        %8281 = vmax.xlane.f32.xlu0 %v8280
        %v8282 = vpop.xlane.xlu0 %8281
        %v8283 = vsel %vm7222, %v8109, -inf
        %8284 = vmax.xlane.f32.xlu0 %v8283
        %v8285 = vpop.xlane.xlu0 %8284
        %v8286 = vsel %vm7222, %v8162, -inf
        %8287 = vmax.xlane.f32.xlu0 %v8286
        %v8288 = vpop.xlane.xlu0 %8287
        %v8289 = vsel %vm7222, %v8165, -inf
        %8290 = vmax.xlane.f32.xlu0 %v8289
        %v8291 = vpop.xlane.xlu0 %8290
        %v8292 = vsel %vm7222, %v8218, -inf
        %8293 = vmax.xlane.f32.xlu0 %v8292
        %v8294 = vpop.xlane.xlu0 %8293
        %v8295 = vsel %vm7222, %v8221, -inf
        %8296 = vmax.xlane.f32.xlu0 %v8295
        %v8297 = vpop.xlane.xlu0 %8296
        %v8298 = vsel %vm7222, %v8274, -inf
        %8299 = vmax.xlane.f32.xlu0 %v8298
        %v8300 = vpop.xlane.xlu0 %8299
        %v8301 = vsel %vm7222, %v8277, -inf
        %8302 = vmax.xlane.f32.xlu0 %v8301
        %v8303 = vpop.xlane.xlu0 %8302
        %v8304 = vsub.f32 %v8106, %v8282
        %v8305 = vsub.f32 %v8109, %v8285
        %v8306 = vsub.f32 %v8162, %v8288
        %v8307 = vsub.f32 %v8165, %v8291
        %v8308 = vsub.f32 %v8218, %v8294
        %v8309 = vsub.f32 %v8221, %v8297
        %v8310 = vsub.f32 %v8274, %v8300
        %v8311 = vsub.f32 %v8277, %v8303
        %v8312 = vmul.f32 %v8304, 1.442695
        %v8313 = vpow.pop %v8312
        %v8314 = vmul.f32 %v8305, 1.442695
        %v8315 = vpow.pop %v8314
        %v8316 = vmul.f32 %v8306, 1.442695
        %v8317 = vpow.pop %v8316
        %v8318 = vmul.f32 %v8307, 1.442695
        %v8319 = vpow.pop %v8318
        %v8320 = vmul.f32 %v8308, 1.442695
        %v8321 = vpow.pop %v8320
        %v8322 = vmul.f32 %v8309, 1.442695
        %v8323 = vpow.pop %v8322
        %v8324 = vmul.f32 %v8310, 1.442695
        %v8325 = vpow.pop %v8324
        %v8326 = vmul.f32 %v8311, 1.442695
        %v8327 = vpow.pop %v8326
        %v8328 = vsel %vm7222, %v8313, 0.0
        %8329 = vadd.xlane.f32.xlu0 %v8328
        %v8330 = vpop.xlane.xlu0 %8329
        %v8331 = vsel %vm7222, %v8315, 0.0
        %8332 = vadd.xlane.f32.xlu0 %v8331
        %v8333 = vpop.xlane.xlu0 %8332
        %v8334 = vsel %vm7222, %v8317, 0.0
        %8335 = vadd.xlane.f32.xlu0 %v8334
        %v8336 = vpop.xlane.xlu0 %8335
        %v8337 = vsel %vm7222, %v8319, 0.0
        %8338 = vadd.xlane.f32.xlu0 %v8337
        %v8339 = vpop.xlane.xlu0 %8338
        %v8340 = vsel %vm7222, %v8321, 0.0
        %8341 = vadd.xlane.f32.xlu0 %v8340
        %v8342 = vpop.xlane.xlu0 %8341
        %v8343 = vsel %vm7222, %v8323, 0.0
        %8344 = vadd.xlane.f32.xlu0 %v8343
        %v8345 = vpop.xlane.xlu0 %8344
        %v8346 = vsel %vm7222, %v8325, 0.0
        %8347 = vadd.xlane.f32.xlu0 %v8346
        %v8348 = vpop.xlane.xlu0 %8347
        %v8349 = vsel %vm7222, %v8327, 0.0
        %8350 = vadd.xlane.f32.xlu0 %v8349
        %v8351 = vpop.xlane.xlu0 %8350
        %v8352 = vrcp.pop %v8330
        %v8353 = vrcp.pop %v8333
        %v8354 = vrcp.pop %v8336
        %v8355 = vrcp.pop %v8339
        %v8356 = vrcp.pop %v8342
        %v8357 = vrcp.pop %v8345
        %v8358 = vrcp.pop %v8348
        %v8359 = vrcp.pop %v8351
        %v8360 = vmul.f32 %v8313, %v8352
        %v8361 = vmul.f32 %v8315, %v8353
        %v8362 = vmul.f32 %v8317, %v8354
        %v8363 = vmul.f32 %v8319, %v8355
        %v8364 = vmul.f32 %v8321, %v8356
        %v8365 = vmul.f32 %v8323, %v8357
        %v8366 = vmul.f32 %v8325, %v8358
        %v8367 = vmul.f32 %v8327, %v8359
        %v8368 = vpack.c.bf16 %v8361, %v8360
        %v8369 = vpack.c.bf16 %v8363, %v8362
        %v8370 = vpack.c.bf16 %v8365, %v8364
        %v8371 = vpack.c.bf16 %v8367, %v8366
        %8372 = vrot.lane.b32.xlu0 %v7014, 64
        %v8373 = vpop.permute.xlu0 %8372
        %8374 = vrot.lane.b32.xlu0 %v7015, 64
        %v8375 = vpop.permute.xlu0 %8374
        %v8378 = vsel %vm7222, %v8368, 0
        %v8381 = vsel %vm7318, %v8375, 0
        %8383 = vmatprep.subr.bf16.mxu0 0
        %8384 = vmatpush1.bf16.msra.mxu0 %v8373
        %8385 = vmatprep.subr.bf16.mxu0 0
        %8386 = vmatpush1.bf16.msra.mxu0 %v8381
        %8387 = vmatprep.subr.bf16.mxu0 0
        %8388 = vmatpush1.bf16.msra.mxu0 0
        %8389 = vmatprep.subr.bf16.mxu0 0
        %8390 = vmatpush1.bf16.msra.mxu0 0
        %8391 = vmatprep.subr.bf16.mxu0 0
        %8392 = vmatpush1.bf16.msra.mxu0 0
        %8393 = vmatprep.subr.bf16.mxu0 0
        %8394 = vmatpush1.bf16.msra.mxu0 0
        %8395 = vmatprep.subr.bf16.mxu0 0
        %8396 = vmatpush1.bf16.msra.mxu0 0
        %8397 = vmatprep.subr.bf16.mxu0 0
        %8398 = vmatpush1.bf16.msra.mxu0 0
        %8399 = vmatprep.subr.bf16.mxu0 0
        %8400 = vmatpush1.bf16.msra.mxu0 0
        %8401 = vmatprep.subr.bf16.mxu0 0
        %8402 = vmatpush1.bf16.msra.mxu0 0
        %8403 = vmatprep.subr.bf16.mxu0 0
        %8404 = vmatpush1.bf16.msra.mxu0 0
        %8405 = vmatprep.subr.bf16.mxu0 0
        %8406 = vmatpush1.bf16.msra.mxu0 0
        %8407 = vmatprep.subr.bf16.mxu0 0
        %8408 = vmatpush1.bf16.msra.mxu0 0
        %8409 = vmatprep.subr.bf16.mxu0 0
        %8410 = vmatpush1.bf16.msra.mxu0 0
        %8411 = vmatprep.subr.bf16.mxu0 0
        %8412 = vmatpush1.bf16.msra.mxu0 0
        %8413 = vmatprep.subr.bf16.mxu0 0
        %8414 = vmatpush1.bf16.msra.mxu0 0
        %8415 = vmatprep.mubr.bf16.mxu0 0
        %8416 = vmatmul.mubr.bf16.gmra.mrb[0].mxu0 %v8378
        %v8417 = vpop.f32.mrb[0].mxu0
        %v8418 = vadd.f32 0.0, %v8417
        %v8419 = vpop.f32.mrb[0].mxu0
        %v8420 = vpop.f32.mrb[0].mxu0
        %v8421 = vadd.f32 0.0, %v8420
        %v8422 = vpop.f32.mrb[0].mxu0
        %8423 = vdwg.mxu0
        %8424 = vrot.lane.b32.xlu0 %v7016, 64
        %v8425 = vpop.permute.xlu0 %8424
        %8426 = vrot.lane.b32.xlu0 %v7017, 64
        %v8427 = vpop.permute.xlu0 %8426
        %v8430 = vsel %vm7222, %v8369, 0
        %v8433 = vsel %vm7318, %v8427, 0
        %8435 = vmatprep.subr.bf16.mxu0 0
        %8436 = vmatpush1.bf16.msra.mxu0 %v8425
        %8437 = vmatprep.subr.bf16.mxu0 0
        %8438 = vmatpush1.bf16.msra.mxu0 %v8433
        %8439 = vmatprep.subr.bf16.mxu0 0
        %8440 = vmatpush1.bf16.msra.mxu0 0
        %8441 = vmatprep.subr.bf16.mxu0 0
        %8442 = vmatpush1.bf16.msra.mxu0 0
        %8443 = vmatprep.subr.bf16.mxu0 0
        %8444 = vmatpush1.bf16.msra.mxu0 0
        %8445 = vmatprep.subr.bf16.mxu0 0
        %8446 = vmatpush1.bf16.msra.mxu0 0
        %8447 = vmatprep.subr.bf16.mxu0 0
        %8448 = vmatpush1.bf16.msra.mxu0 0
        %8449 = vmatprep.subr.bf16.mxu0 0
        %8450 = vmatpush1.bf16.msra.mxu0 0
        %8451 = vmatprep.subr.bf16.mxu0 0
        %8452 = vmatpush1.bf16.msra.mxu0 0
        %8453 = vmatprep.subr.bf16.mxu0 0
        %8454 = vmatpush1.bf16.msra.mxu0 0
        %8455 = vmatprep.subr.bf16.mxu0 0
        %8456 = vmatpush1.bf16.msra.mxu0 0
        %8457 = vmatprep.subr.bf16.mxu0 0
        %8458 = vmatpush1.bf16.msra.mxu0 0
        %8459 = vmatprep.subr.bf16.mxu0 0
        %8460 = vmatpush1.bf16.msra.mxu0 0
        %8461 = vmatprep.subr.bf16.mxu0 0
        %8462 = vmatpush1.bf16.msra.mxu0 0
        %8463 = vmatprep.subr.bf16.mxu0 0
        %8464 = vmatpush1.bf16.msra.mxu0 0
        %8465 = vmatprep.subr.bf16.mxu0 0
        %8466 = vmatpush1.bf16.msra.mxu0 0
        %8467 = vmatprep.mubr.bf16.mxu0 0
        %8468 = vmatmul.mubr.bf16.gmra.mrb[0].mxu0 %v8430
        %v8469 = vpop.f32.mrb[0].mxu0
        %v8470 = vadd.f32 0.0, %v8469
        %v8471 = vpop.f32.mrb[0].mxu0
        %v8472 = vpop.f32.mrb[0].mxu0
        %v8473 = vadd.f32 0.0, %v8472
        %v8474 = vpop.f32.mrb[0].mxu0
        %8475 = vdwg.mxu0
        %8476 = vrot.lane.b32.xlu0 %v7018, 64
        %v8477 = vpop.permute.xlu0 %8476
        %8478 = vrot.lane.b32.xlu0 %v7019, 64
        %v8479 = vpop.permute.xlu0 %8478
        %v8482 = vsel %vm7222, %v8370, 0
        %v8485 = vsel %vm7318, %v8479, 0
        %8487 = vmatprep.subr.bf16.mxu0 0
        %8488 = vmatpush1.bf16.msra.mxu0 %v8477
        %8489 = vmatprep.subr.bf16.mxu0 0
        %8490 = vmatpush1.bf16.msra.mxu0 %v8485
        %8491 = vmatprep.subr.bf16.mxu0 0
        %8492 = vmatpush1.bf16.msra.mxu0 0
        %8493 = vmatprep.subr.bf16.mxu0 0
        %8494 = vmatpush1.bf16.msra.mxu0 0
        %8495 = vmatprep.subr.bf16.mxu0 0
        %8496 = vmatpush1.bf16.msra.mxu0 0
        %8497 = vmatprep.subr.bf16.mxu0 0
        %8498 = vmatpush1.bf16.msra.mxu0 0
        %8499 = vmatprep.subr.bf16.mxu0 0
        %8500 = vmatpush1.bf16.msra.mxu0 0
        %8501 = vmatprep.subr.bf16.mxu0 0
        %8502 = vmatpush1.bf16.msra.mxu0 0
        %8503 = vmatprep.subr.bf16.mxu0 0
        %8504 = vmatpush1.bf16.msra.mxu0 0
        %8505 = vmatprep.subr.bf16.mxu0 0
        %8506 = vmatpush1.bf16.msra.mxu0 0
        %8507 = vmatprep.subr.bf16.mxu0 0
        %8508 = vmatpush1.bf16.msra.mxu0 0
        %8509 = vmatprep.subr.bf16.mxu0 0
        %8510 = vmatpush1.bf16.msra.mxu0 0
        %8511 = vmatprep.subr.bf16.mxu0 0
        %8512 = vmatpush1.bf16.msra.mxu0 0
        %8513 = vmatprep.subr.bf16.mxu0 0
        %8514 = vmatpush1.bf16.msra.mxu0 0
        %8515 = vmatprep.subr.bf16.mxu0 0
        %8516 = vmatpush1.bf16.msra.mxu0 0
        %8517 = vmatprep.subr.bf16.mxu0 0
        %8518 = vmatpush1.bf16.msra.mxu0 0
        %8519 = vmatprep.mubr.bf16.mxu0 0
        %8520 = vmatmul.mubr.bf16.gmra.mrb[0].mxu0 %v8482
        %v8521 = vpop.f32.mrb[0].mxu0
        %v8522 = vadd.f32 0.0, %v8521
        %v8523 = vpop.f32.mrb[0].mxu0
        %v8524 = vpop.f32.mrb[0].mxu0
        %v8525 = vadd.f32 0.0, %v8524
        %v8526 = vpop.f32.mrb[0].mxu0
        %8527 = vdwg.mxu0
        %8528 = vrot.lane.b32.xlu0 %v7020, 64
        %v8529 = vpop.permute.xlu0 %8528
        %8530 = vrot.lane.b32.xlu0 %v7021, 64
        %v8531 = vpop.permute.xlu0 %8530
        %v8534 = vsel %vm7222, %v8371, 0
        %v8537 = vsel %vm7318, %v8531, 0
        %8539 = vmatprep.subr.bf16.mxu0 0
        %8540 = vmatpush1.bf16.msra.mxu0 %v8529
        %8541 = vmatprep.subr.bf16.mxu0 0
        %8542 = vmatpush1.bf16.msra.mxu0 %v8537
        %8543 = vmatprep.subr.bf16.mxu0 0
        %8544 = vmatpush1.bf16.msra.mxu0 0
        %8545 = vmatprep.subr.bf16.mxu0 0
        %8546 = vmatpush1.bf16.msra.mxu0 0
        %8547 = vmatprep.subr.bf16.mxu0 0
        %8548 = vmatpush1.bf16.msra.mxu0 0
        %8549 = vmatprep.subr.bf16.mxu0 0
        %8550 = vmatpush1.bf16.msra.mxu0 0
        %8551 = vmatprep.subr.bf16.mxu0 0
        %8552 = vmatpush1.bf16.msra.mxu0 0
        %8553 = vmatprep.subr.bf16.mxu0 0
        %8554 = vmatpush1.bf16.msra.mxu0 0
        %8555 = vmatprep.subr.bf16.mxu0 0
        %8556 = vmatpush1.bf16.msra.mxu0 0
        %8557 = vmatprep.subr.bf16.mxu0 0
        %8558 = vmatpush1.bf16.msra.mxu0 0
        %8559 = vmatprep.subr.bf16.mxu0 0
        %8560 = vmatpush1.bf16.msra.mxu0 0
        %8561 = vmatprep.subr.bf16.mxu0 0
        %8562 = vmatpush1.bf16.msra.mxu0 0
        %8563 = vmatprep.subr.bf16.mxu0 0
        %8564 = vmatpush1.bf16.msra.mxu0 0
        %8565 = vmatprep.subr.bf16.mxu0 0
        %8566 = vmatpush1.bf16.msra.mxu0 0
        %8567 = vmatprep.subr.bf16.mxu0 0
        %8568 = vmatpush1.bf16.msra.mxu0 0
        %8569 = vmatprep.subr.bf16.mxu0 0
        %8570 = vmatpush1.bf16.msra.mxu0 0
        %8571 = vmatprep.mubr.bf16.mxu0 0
        %8572 = vmatmul.mubr.bf16.gmra.mrb[0].mxu0 %v8534
        %v8573 = vpop.f32.mrb[0].mxu0
        %v8574 = vadd.f32 0.0, %v8573
        %v8575 = vpop.f32.mrb[0].mxu0
        %v8576 = vpop.f32.mrb[0].mxu0
        %v8577 = vadd.f32 0.0, %v8576
        %v8578 = vpop.f32.mrb[0].mxu0
        %8579 = vdwg.mxu0
        %v8580 = vpack.c.bf16 %v8421, %v8418
        %v8581 = vpack.c.bf16 %v8473, %v8470
        %v8582 = vpack.c.bf16 %v8525, %v8522
        %v8583 = vpack.c.bf16 %v8577, %v8574
        %8584 = vrot.lane.b32.xlu0 %v7002, 32
        %v8585 = vpop.permute.xlu0 %8584
        %8586 = vrot.lane.b32.xlu0 %v7006, 32
        %v8587 = vpop.permute.xlu0 %8586
        %8588 = vrot.lane.b32.xlu0 %v7007, 32
        %v8589 = vpop.permute.xlu0 %8588
        %v8591 = vsel %vm4366, %v8585, 0
        %v8594 = vsel %vm4366, %v8587, 0
        %v8597 = vsel %vm4366, %v8589, 0
        %8599 = vmatprep.subr.bf16.mxu0 0
        %8600 = vmatpush1.bf16.xpose.msra.mxu0 %v8594
        %8601 = vmatprep.subr.bf16.mxu0 0
        %8602 = vmatpush1.bf16.xpose.msra.mxu0 %v8597
        %8603 = vmatprep.subr.bf16.mxu0 0
        %8604 = vmatpush1.bf16.xpose.msra.mxu0 0
        %8605 = vmatprep.subr.bf16.mxu0 0
        %8606 = vmatpush1.bf16.xpose.msra.mxu0 0
        %8607 = vmatprep.subr.bf16.mxu0 0
        %8608 = vmatpush1.bf16.xpose.msra.mxu0 0
        %8609 = vmatprep.subr.bf16.mxu0 0
        %8610 = vmatpush1.bf16.xpose.msra.mxu0 0
        %8611 = vmatprep.subr.bf16.mxu0 0
        %8612 = vmatpush1.bf16.xpose.msra.mxu0 0
        %8613 = vmatprep.subr.bf16.mxu0 0
        %8614 = vmatpush1.bf16.xpose.msra.mxu0 0
        %8615 = vmatprep.subr.bf16.mxu0 0
        %8616 = vmatpush1.bf16.xpose.msra.mxu0 0
        %8617 = vmatprep.subr.bf16.mxu0 0
        %8618 = vmatpush1.bf16.xpose.msra.mxu0 0
        %8619 = vmatprep.subr.bf16.mxu0 0
        %8620 = vmatpush1.bf16.xpose.msra.mxu0 0
        %8621 = vmatprep.subr.bf16.mxu0 0
        %8622 = vmatpush1.bf16.xpose.msra.mxu0 0
        %8623 = vmatprep.subr.bf16.mxu0 0
        %8624 = vmatpush1.bf16.xpose.msra.mxu0 0
        %8625 = vmatprep.subr.bf16.mxu0 0
        %8626 = vmatpush1.bf16.xpose.msra.mxu0 0
        %8627 = vmatprep.subr.bf16.mxu0 0
        %8628 = vmatpush1.bf16.xpose.msra.mxu0 0
        %8629 = vmatprep.subr.bf16.mxu0 0
        %8630 = vmatpush1.bf16.xpose.msra.mxu0 0
        %8631 = vmatprep.mubr.bf16.mxu0 0
        %8632 = vmatmul.mubr.bf16.gmra.mrb[0].mxu0 %v8591
        %v8633 = vpop.f32.mrb[0].mxu0
        %v8634 = vadd.f32 0.0, %v8633
        %v8635 = vpop.f32.mrb[0].mxu0
        %v8636 = vpop.f32.mrb[0].mxu0
        %v8637 = vadd.f32 0.0, %v8636
        %v8638 = vpop.f32.mrb[0].mxu0
        %8639 = vdwg.mxu0
        %8640 = vrot.lane.b32.xlu0 %v7003, 32
        %v8641 = vpop.permute.xlu0 %8640
        %8642 = vrot.lane.b32.xlu0 %v7008, 32
        %v8643 = vpop.permute.xlu0 %8642
        %8644 = vrot.lane.b32.xlu0 %v7009, 32
        %v8645 = vpop.permute.xlu0 %8644
        %v8647 = vsel %vm4366, %v8641, 0
        %v8650 = vsel %vm4366, %v8643, 0
        %v8653 = vsel %vm4366, %v8645, 0
        %8655 = vmatprep.subr.bf16.mxu0 0
        %8656 = vmatpush1.bf16.xpose.msra.mxu0 %v8650
        %8657 = vmatprep.subr.bf16.mxu0 0
        %8658 = vmatpush1.bf16.xpose.msra.mxu0 %v8653
        %8659 = vmatprep.subr.bf16.mxu0 0
        %8660 = vmatpush1.bf16.xpose.msra.mxu0 0
        %8661 = vmatprep.subr.bf16.mxu0 0
        %8662 = vmatpush1.bf16.xpose.msra.mxu0 0
        %8663 = vmatprep.subr.bf16.mxu0 0
        %8664 = vmatpush1.bf16.xpose.msra.mxu0 0
        %8665 = vmatprep.subr.bf16.mxu0 0
        %8666 = vmatpush1.bf16.xpose.msra.mxu0 0
        %8667 = vmatprep.subr.bf16.mxu0 0
        %8668 = vmatpush1.bf16.xpose.msra.mxu0 0
        %8669 = vmatprep.subr.bf16.mxu0 0
        %8670 = vmatpush1.bf16.xpose.msra.mxu0 0
        %8671 = vmatprep.subr.bf16.mxu0 0
        %8672 = vmatpush1.bf16.xpose.msra.mxu0 0
        %8673 = vmatprep.subr.bf16.mxu0 0
        %8674 = vmatpush1.bf16.xpose.msra.mxu0 0
        %8675 = vmatprep.subr.bf16.mxu0 0
        %8676 = vmatpush1.bf16.xpose.msra.mxu0 0
        %8677 = vmatprep.subr.bf16.mxu0 0
        %8678 = vmatpush1.bf16.xpose.msra.mxu0 0
        %8679 = vmatprep.subr.bf16.mxu0 0
        %8680 = vmatpush1.bf16.xpose.msra.mxu0 0
        %8681 = vmatprep.subr.bf16.mxu0 0
        %8682 = vmatpush1.bf16.xpose.msra.mxu0 0
        %8683 = vmatprep.subr.bf16.mxu0 0
        %8684 = vmatpush1.bf16.xpose.msra.mxu0 0
        %8685 = vmatprep.subr.bf16.mxu0 0
        %8686 = vmatpush1.bf16.xpose.msra.mxu0 0
        %8687 = vmatprep.mubr.bf16.mxu0 0
        %8688 = vmatmul.mubr.bf16.gmra.mrb[0].mxu0 %v8647
        %v8689 = vpop.f32.mrb[0].mxu0
        %v8690 = vadd.f32 0.0, %v8689
        %v8691 = vpop.f32.mrb[0].mxu0
        %v8692 = vpop.f32.mrb[0].mxu0
        %v8693 = vadd.f32 0.0, %v8692
        %v8694 = vpop.f32.mrb[0].mxu0
        %8695 = vdwg.mxu0
        %8696 = vrot.lane.b32.xlu0 %v7004, 32
        %v8697 = vpop.permute.xlu0 %8696
        %8698 = vrot.lane.b32.xlu0 %v7010, 32
        %v8699 = vpop.permute.xlu0 %8698
        %8700 = vrot.lane.b32.xlu0 %v7011, 32
        %v8701 = vpop.permute.xlu0 %8700
        %v8703 = vsel %vm4366, %v8697, 0
        %v8706 = vsel %vm4366, %v8699, 0
        %v8709 = vsel %vm4366, %v8701, 0
        %8711 = vmatprep.subr.bf16.mxu0 0
        %8712 = vmatpush1.bf16.xpose.msra.mxu0 %v8706
        %8713 = vmatprep.subr.bf16.mxu0 0
        %8714 = vmatpush1.bf16.xpose.msra.mxu0 %v8709
        %8715 = vmatprep.subr.bf16.mxu0 0
        %8716 = vmatpush1.bf16.xpose.msra.mxu0 0
        %8717 = vmatprep.subr.bf16.mxu0 0
        %8718 = vmatpush1.bf16.xpose.msra.mxu0 0
        %8719 = vmatprep.subr.bf16.mxu0 0
        %8720 = vmatpush1.bf16.xpose.msra.mxu0 0
        %8721 = vmatprep.subr.bf16.mxu0 0
        %8722 = vmatpush1.bf16.xpose.msra.mxu0 0
        %8723 = vmatprep.subr.bf16.mxu0 0
        %8724 = vmatpush1.bf16.xpose.msra.mxu0 0
        %8725 = vmatprep.subr.bf16.mxu0 0
        %8726 = vmatpush1.bf16.xpose.msra.mxu0 0
        %8727 = vmatprep.subr.bf16.mxu0 0
        %8728 = vmatpush1.bf16.xpose.msra.mxu0 0
        %8729 = vmatprep.subr.bf16.mxu0 0
        %8730 = vmatpush1.bf16.xpose.msra.mxu0 0
        %8731 = vmatprep.subr.bf16.mxu0 0
        %8732 = vmatpush1.bf16.xpose.msra.mxu0 0
        %8733 = vmatprep.subr.bf16.mxu0 0
        %8734 = vmatpush1.bf16.xpose.msra.mxu0 0
        %8735 = vmatprep.subr.bf16.mxu0 0
        %8736 = vmatpush1.bf16.xpose.msra.mxu0 0
        %8737 = vmatprep.subr.bf16.mxu0 0
        %8738 = vmatpush1.bf16.xpose.msra.mxu0 0
        %8739 = vmatprep.subr.bf16.mxu0 0
        %8740 = vmatpush1.bf16.xpose.msra.mxu0 0
        %8741 = vmatprep.subr.bf16.mxu0 0
        %8742 = vmatpush1.bf16.xpose.msra.mxu0 0
        %8743 = vmatprep.mubr.bf16.mxu0 0
        %8744 = vmatmul.mubr.bf16.gmra.mrb[0].mxu0 %v8703
        %v8745 = vpop.f32.mrb[0].mxu0
        %v8746 = vadd.f32 0.0, %v8745
        %v8747 = vpop.f32.mrb[0].mxu0
        %v8748 = vpop.f32.mrb[0].mxu0
        %v8749 = vadd.f32 0.0, %v8748
        %v8750 = vpop.f32.mrb[0].mxu0
        %8751 = vdwg.mxu0
        %8752 = vrot.lane.b32.xlu0 %v7005, 32
        %v8753 = vpop.permute.xlu0 %8752
        %8754 = vrot.lane.b32.xlu0 %v7012, 32
        %v8755 = vpop.permute.xlu0 %8754
        %8756 = vrot.lane.b32.xlu0 %v7013, 32
        %v8757 = vpop.permute.xlu0 %8756
        %v8759 = vsel %vm4366, %v8753, 0
        %v8762 = vsel %vm4366, %v8755, 0
        %v8765 = vsel %vm4366, %v8757, 0
        %8767 = vmatprep.subr.bf16.mxu0 0
        %8768 = vmatpush1.bf16.xpose.msra.mxu0 %v8762
        %8769 = vmatprep.subr.bf16.mxu0 0
        %8770 = vmatpush1.bf16.xpose.msra.mxu0 %v8765
        %8771 = vmatprep.subr.bf16.mxu0 0
        %8772 = vmatpush1.bf16.xpose.msra.mxu0 0
        %8773 = vmatprep.subr.bf16.mxu0 0
        %8774 = vmatpush1.bf16.xpose.msra.mxu0 0
        %8775 = vmatprep.subr.bf16.mxu0 0
        %8776 = vmatpush1.bf16.xpose.msra.mxu0 0
        %8777 = vmatprep.subr.bf16.mxu0 0
        %8778 = vmatpush1.bf16.xpose.msra.mxu0 0
        %8779 = vmatprep.subr.bf16.mxu0 0
        %8780 = vmatpush1.bf16.xpose.msra.mxu0 0
        %8781 = vmatprep.subr.bf16.mxu0 0
        %8782 = vmatpush1.bf16.xpose.msra.mxu0 0
        %8783 = vmatprep.subr.bf16.mxu0 0
        %8784 = vmatpush1.bf16.xpose.msra.mxu0 0
        %8785 = vmatprep.subr.bf16.mxu0 0
        %8786 = vmatpush1.bf16.xpose.msra.mxu0 0
        %8787 = vmatprep.subr.bf16.mxu0 0
        %8788 = vmatpush1.bf16.xpose.msra.mxu0 0
        %8789 = vmatprep.subr.bf16.mxu0 0
        %8790 = vmatpush1.bf16.xpose.msra.mxu0 0
        %8791 = vmatprep.subr.bf16.mxu0 0
        %8792 = vmatpush1.bf16.xpose.msra.mxu0 0
        %8793 = vmatprep.subr.bf16.mxu0 0
        %8794 = vmatpush1.bf16.xpose.msra.mxu0 0
        %8795 = vmatprep.subr.bf16.mxu0 0
        %8796 = vmatpush1.bf16.xpose.msra.mxu0 0
        %8797 = vmatprep.subr.bf16.mxu0 0
        %8798 = vmatpush1.bf16.xpose.msra.mxu0 0
        %8799 = vmatprep.mubr.bf16.mxu0 0
        %8800 = vmatmul.mubr.bf16.gmra.mrb[0].mxu0 %v8759
        %v8801 = vpop.f32.mrb[0].mxu0
        %v8802 = vadd.f32 0.0, %v8801
        %v8803 = vpop.f32.mrb[0].mxu0
        %v8804 = vpop.f32.mrb[0].mxu0
        %v8805 = vadd.f32 0.0, %v8804
        %v8806 = vpop.f32.mrb[0].mxu0
        %8807 = vdwg.mxu0
        %v8808 = vsel %vm7222, %v8634, -inf
        %8809 = vmax.xlane.f32.xlu0 %v8808
        %v8810 = vpop.xlane.xlu0 %8809
        %v8811 = vsel %vm7222, %v8637, -inf
        %8812 = vmax.xlane.f32.xlu0 %v8811
        %v8813 = vpop.xlane.xlu0 %8812
        %v8814 = vsel %vm7222, %v8690, -inf
        %8815 = vmax.xlane.f32.xlu0 %v8814
        %v8816 = vpop.xlane.xlu0 %8815
        %v8817 = vsel %vm7222, %v8693, -inf
        %8818 = vmax.xlane.f32.xlu0 %v8817
        %v8819 = vpop.xlane.xlu0 %8818
        %v8820 = vsel %vm7222, %v8746, -inf
        %8821 = vmax.xlane.f32.xlu0 %v8820
        %v8822 = vpop.xlane.xlu0 %8821
        %v8823 = vsel %vm7222, %v8749, -inf
        %8824 = vmax.xlane.f32.xlu0 %v8823
        %v8825 = vpop.xlane.xlu0 %8824
        %v8826 = vsel %vm7222, %v8802, -inf
        %8827 = vmax.xlane.f32.xlu0 %v8826
        %v8828 = vpop.xlane.xlu0 %8827
        %v8829 = vsel %vm7222, %v8805, -inf
        %8830 = vmax.xlane.f32.xlu0 %v8829
        %v8831 = vpop.xlane.xlu0 %8830
        %v8832 = vsub.f32 %v8634, %v8810
        %v8833 = vsub.f32 %v8637, %v8813
        %v8834 = vsub.f32 %v8690, %v8816
        %v8835 = vsub.f32 %v8693, %v8819
        %v8836 = vsub.f32 %v8746, %v8822
        %v8837 = vsub.f32 %v8749, %v8825
        %v8838 = vsub.f32 %v8802, %v8828
        %v8839 = vsub.f32 %v8805, %v8831
        %v8840 = vmul.f32 %v8832, 1.442695
        %v8841 = vpow.pop %v8840
        %v8842 = vmul.f32 %v8833, 1.442695
        %v8843 = vpow.pop %v8842
        %v8844 = vmul.f32 %v8834, 1.442695
        %v8845 = vpow.pop %v8844
        %v8846 = vmul.f32 %v8835, 1.442695
        %v8847 = vpow.pop %v8846
        %v8848 = vmul.f32 %v8836, 1.442695
        %v8849 = vpow.pop %v8848
        %v8850 = vmul.f32 %v8837, 1.442695
        %v8851 = vpow.pop %v8850
        %v8852 = vmul.f32 %v8838, 1.442695
        %v8853 = vpow.pop %v8852
        %v8854 = vmul.f32 %v8839, 1.442695
        %v8855 = vpow.pop %v8854
        %v8856 = vsel %vm7222, %v8841, 0.0
        %8857 = vadd.xlane.f32.xlu0 %v8856
        %v8858 = vpop.xlane.xlu0 %8857
        %v8859 = vsel %vm7222, %v8843, 0.0
        %8860 = vadd.xlane.f32.xlu0 %v8859
        %v8861 = vpop.xlane.xlu0 %8860
        %v8862 = vsel %vm7222, %v8845, 0.0
        %8863 = vadd.xlane.f32.xlu0 %v8862
        %v8864 = vpop.xlane.xlu0 %8863
        %v8865 = vsel %vm7222, %v8847, 0.0
        %8866 = vadd.xlane.f32.xlu0 %v8865
        %v8867 = vpop.xlane.xlu0 %8866
        %v8868 = vsel %vm7222, %v8849, 0.0
        %8869 = vadd.xlane.f32.xlu0 %v8868
        %v8870 = vpop.xlane.xlu0 %8869
        %v8871 = vsel %vm7222, %v8851, 0.0
        %8872 = vadd.xlane.f32.xlu0 %v8871
        %v8873 = vpop.xlane.xlu0 %8872
        %v8874 = vsel %vm7222, %v8853, 0.0
        %8875 = vadd.xlane.f32.xlu0 %v8874
        %v8876 = vpop.xlane.xlu0 %8875
        %v8877 = vsel %vm7222, %v8855, 0.0
        %8878 = vadd.xlane.f32.xlu0 %v8877
        %v8879 = vpop.xlane.xlu0 %8878
        %v8880 = vrcp.pop %v8858
        %v8881 = vrcp.pop %v8861
        %v8882 = vrcp.pop %v8864
        %v8883 = vrcp.pop %v8867
        %v8884 = vrcp.pop %v8870
        %v8885 = vrcp.pop %v8873
        %v8886 = vrcp.pop %v8876
        %v8887 = vrcp.pop %v8879
        %v8888 = vmul.f32 %v8841, %v8880
        %v8889 = vmul.f32 %v8843, %v8881
        %v8890 = vmul.f32 %v8845, %v8882
        %v8891 = vmul.f32 %v8847, %v8883
        %v8892 = vmul.f32 %v8849, %v8884
        %v8893 = vmul.f32 %v8851, %v8885
        %v8894 = vmul.f32 %v8853, %v8886
        %v8895 = vmul.f32 %v8855, %v8887
        %v8896 = vpack.c.bf16 %v8889, %v8888
        %v8897 = vpack.c.bf16 %v8891, %v8890
        %v8898 = vpack.c.bf16 %v8893, %v8892
        %v8899 = vpack.c.bf16 %v8895, %v8894
        %8900 = vrot.lane.b32.xlu0 %v7014, 32
        %v8901 = vpop.permute.xlu0 %8900
        %8902 = vrot.lane.b32.xlu0 %v7015, 32
        %v8903 = vpop.permute.xlu0 %8902
        %v8906 = vsel %vm7222, %v8896, 0
        %v8909 = vsel %vm7318, %v8903, 0
        %8911 = vmatprep.subr.bf16.mxu0 0
        %8912 = vmatpush1.bf16.msra.mxu0 %v8901
        %8913 = vmatprep.subr.bf16.mxu0 0
        %8914 = vmatpush1.bf16.msra.mxu0 %v8909
        %8915 = vmatprep.subr.bf16.mxu0 0
        %8916 = vmatpush1.bf16.msra.mxu0 0
        %8917 = vmatprep.subr.bf16.mxu0 0
        %8918 = vmatpush1.bf16.msra.mxu0 0
        %8919 = vmatprep.subr.bf16.mxu0 0
        %8920 = vmatpush1.bf16.msra.mxu0 0
        %8921 = vmatprep.subr.bf16.mxu0 0
        %8922 = vmatpush1.bf16.msra.mxu0 0
        %8923 = vmatprep.subr.bf16.mxu0 0
        %8924 = vmatpush1.bf16.msra.mxu0 0
        %8925 = vmatprep.subr.bf16.mxu0 0
        %8926 = vmatpush1.bf16.msra.mxu0 0
        %8927 = vmatprep.subr.bf16.mxu0 0
        %8928 = vmatpush1.bf16.msra.mxu0 0
        %8929 = vmatprep.subr.bf16.mxu0 0
        %8930 = vmatpush1.bf16.msra.mxu0 0
        %8931 = vmatprep.subr.bf16.mxu0 0
        %8932 = vmatpush1.bf16.msra.mxu0 0
        %8933 = vmatprep.subr.bf16.mxu0 0
        %8934 = vmatpush1.bf16.msra.mxu0 0
        %8935 = vmatprep.subr.bf16.mxu0 0
        %8936 = vmatpush1.bf16.msra.mxu0 0
        %8937 = vmatprep.subr.bf16.mxu0 0
        %8938 = vmatpush1.bf16.msra.mxu0 0
        %8939 = vmatprep.subr.bf16.mxu0 0
        %8940 = vmatpush1.bf16.msra.mxu0 0
        %8941 = vmatprep.subr.bf16.mxu0 0
        %8942 = vmatpush1.bf16.msra.mxu0 0
        %8943 = vmatprep.mubr.bf16.mxu0 0
        %8944 = vmatmul.mubr.bf16.gmra.mrb[0].mxu0 %v8906
        %v8945 = vpop.f32.mrb[0].mxu0
        %v8946 = vadd.f32 0.0, %v8945
        %v8947 = vpop.f32.mrb[0].mxu0
        %v8948 = vpop.f32.mrb[0].mxu0
        %v8949 = vadd.f32 0.0, %v8948
        %v8950 = vpop.f32.mrb[0].mxu0
        %8951 = vdwg.mxu0
        %8952 = vrot.lane.b32.xlu0 %v7016, 32
        %v8953 = vpop.permute.xlu0 %8952
        %8954 = vrot.lane.b32.xlu0 %v7017, 32
        %v8955 = vpop.permute.xlu0 %8954
        %v8958 = vsel %vm7222, %v8897, 0
        %v8961 = vsel %vm7318, %v8955, 0
        %8963 = vmatprep.subr.bf16.mxu0 0
        %8964 = vmatpush1.bf16.msra.mxu0 %v8953
        %8965 = vmatprep.subr.bf16.mxu0 0
        %8966 = vmatpush1.bf16.msra.mxu0 %v8961
        %8967 = vmatprep.subr.bf16.mxu0 0
        %8968 = vmatpush1.bf16.msra.mxu0 0
        %8969 = vmatprep.subr.bf16.mxu0 0
        %8970 = vmatpush1.bf16.msra.mxu0 0
        %8971 = vmatprep.subr.bf16.mxu0 0
        %8972 = vmatpush1.bf16.msra.mxu0 0
        %8973 = vmatprep.subr.bf16.mxu0 0
        %8974 = vmatpush1.bf16.msra.mxu0 0
        %8975 = vmatprep.subr.bf16.mxu0 0
        %8976 = vmatpush1.bf16.msra.mxu0 0
        %8977 = vmatprep.subr.bf16.mxu0 0
        %8978 = vmatpush1.bf16.msra.mxu0 0
        %8979 = vmatprep.subr.bf16.mxu0 0
        %8980 = vmatpush1.bf16.msra.mxu0 0
        %8981 = vmatprep.subr.bf16.mxu0 0
        %8982 = vmatpush1.bf16.msra.mxu0 0
        %8983 = vmatprep.subr.bf16.mxu0 0
        %8984 = vmatpush1.bf16.msra.mxu0 0
        %8985 = vmatprep.subr.bf16.mxu0 0
        %8986 = vmatpush1.bf16.msra.mxu0 0
        %8987 = vmatprep.subr.bf16.mxu0 0
        %8988 = vmatpush1.bf16.msra.mxu0 0
        %8989 = vmatprep.subr.bf16.mxu0 0
        %8990 = vmatpush1.bf16.msra.mxu0 0
        %8991 = vmatprep.subr.bf16.mxu0 0
        %8992 = vmatpush1.bf16.msra.mxu0 0
        %8993 = vmatprep.subr.bf16.mxu0 0
        %8994 = vmatpush1.bf16.msra.mxu0 0
        %8995 = vmatprep.mubr.bf16.mxu0 0
        %8996 = vmatmul.mubr.bf16.gmra.mrb[0].mxu0 %v8958
        %v8997 = vpop.f32.mrb[0].mxu0
        %v8998 = vadd.f32 0.0, %v8997
        %v8999 = vpop.f32.mrb[0].mxu0
        %v9000 = vpop.f32.mrb[0].mxu0
        %v9001 = vadd.f32 0.0, %v9000
        %v9002 = vpop.f32.mrb[0].mxu0
        %9003 = vdwg.mxu0
        %9004 = vrot.lane.b32.xlu0 %v7018, 32
        %v9005 = vpop.permute.xlu0 %9004
        %9006 = vrot.lane.b32.xlu0 %v7019, 32
        %v9007 = vpop.permute.xlu0 %9006
        %v9010 = vsel %vm7222, %v8898, 0
        %v9013 = vsel %vm7318, %v9007, 0
        %9015 = vmatprep.subr.bf16.mxu0 0
        %9016 = vmatpush1.bf16.msra.mxu0 %v9005
        %9017 = vmatprep.subr.bf16.mxu0 0
        %9018 = vmatpush1.bf16.msra.mxu0 %v9013
        %9019 = vmatprep.subr.bf16.mxu0 0
        %9020 = vmatpush1.bf16.msra.mxu0 0
        %9021 = vmatprep.subr.bf16.mxu0 0
        %9022 = vmatpush1.bf16.msra.mxu0 0
        %9023 = vmatprep.subr.bf16.mxu0 0
        %9024 = vmatpush1.bf16.msra.mxu0 0
        %9025 = vmatprep.subr.bf16.mxu0 0
        %9026 = vmatpush1.bf16.msra.mxu0 0
        %9027 = vmatprep.subr.bf16.mxu0 0
        %9028 = vmatpush1.bf16.msra.mxu0 0
        %9029 = vmatprep.subr.bf16.mxu0 0
        %9030 = vmatpush1.bf16.msra.mxu0 0
        %9031 = vmatprep.subr.bf16.mxu0 0
        %9032 = vmatpush1.bf16.msra.mxu0 0
        %9033 = vmatprep.subr.bf16.mxu0 0
        %9034 = vmatpush1.bf16.msra.mxu0 0
        %9035 = vmatprep.subr.bf16.mxu0 0
        %9036 = vmatpush1.bf16.msra.mxu0 0
        %9037 = vmatprep.subr.bf16.mxu0 0
        %9038 = vmatpush1.bf16.msra.mxu0 0
        %9039 = vmatprep.subr.bf16.mxu0 0
        %9040 = vmatpush1.bf16.msra.mxu0 0
        %9041 = vmatprep.subr.bf16.mxu0 0
        %9042 = vmatpush1.bf16.msra.mxu0 0
        %9043 = vmatprep.subr.bf16.mxu0 0
        %9044 = vmatpush1.bf16.msra.mxu0 0
        %9045 = vmatprep.subr.bf16.mxu0 0
        %9046 = vmatpush1.bf16.msra.mxu0 0
        %9047 = vmatprep.mubr.bf16.mxu0 0
        %9048 = vmatmul.mubr.bf16.gmra.mrb[0].mxu0 %v9010
        %v9049 = vpop.f32.mrb[0].mxu0
        %v9050 = vadd.f32 0.0, %v9049
        %v9051 = vpop.f32.mrb[0].mxu0
        %v9052 = vpop.f32.mrb[0].mxu0
        %v9053 = vadd.f32 0.0, %v9052
        %v9054 = vpop.f32.mrb[0].mxu0
        %9055 = vdwg.mxu0
        %9056 = vrot.lane.b32.xlu0 %v7020, 32
        %v9057 = vpop.permute.xlu0 %9056
        %9058 = vrot.lane.b32.xlu0 %v7021, 32
        %v9059 = vpop.permute.xlu0 %9058
        %v9062 = vsel %vm7222, %v8899, 0
        %v9065 = vsel %vm7318, %v9059, 0
        %9067 = vmatprep.subr.bf16.mxu0 0
        %9068 = vmatpush1.bf16.msra.mxu0 %v9057
        %9069 = vmatprep.subr.bf16.mxu0 0
        %9070 = vmatpush1.bf16.msra.mxu0 %v9065
        %9071 = vmatprep.subr.bf16.mxu0 0
        %9072 = vmatpush1.bf16.msra.mxu0 0
        %9073 = vmatprep.subr.bf16.mxu0 0
        %9074 = vmatpush1.bf16.msra.mxu0 0
        %9075 = vmatprep.subr.bf16.mxu0 0
        %9076 = vmatpush1.bf16.msra.mxu0 0
        %9077 = vmatprep.subr.bf16.mxu0 0
        %9078 = vmatpush1.bf16.msra.mxu0 0
        %9079 = vmatprep.subr.bf16.mxu0 0
        %9080 = vmatpush1.bf16.msra.mxu0 0
        %9081 = vmatprep.subr.bf16.mxu0 0
        %9082 = vmatpush1.bf16.msra.mxu0 0
        %9083 = vmatprep.subr.bf16.mxu0 0
        %9084 = vmatpush1.bf16.msra.mxu0 0
        %9085 = vmatprep.subr.bf16.mxu0 0
        %9086 = vmatpush1.bf16.msra.mxu0 0
        %9087 = vmatprep.subr.bf16.mxu0 0
        %9088 = vmatpush1.bf16.msra.mxu0 0
        %9089 = vmatprep.subr.bf16.mxu0 0
        %9090 = vmatpush1.bf16.msra.mxu0 0
        %9091 = vmatprep.subr.bf16.mxu0 0
        %9092 = vmatpush1.bf16.msra.mxu0 0
        %9093 = vmatprep.subr.bf16.mxu0 0
        %9094 = vmatpush1.bf16.msra.mxu0 0
        %9095 = vmatprep.subr.bf16.mxu0 0
        %9096 = vmatpush1.bf16.msra.mxu0 0
        %9097 = vmatprep.subr.bf16.mxu0 0
        %9098 = vmatpush1.bf16.msra.mxu0 0
        %9099 = vmatprep.mubr.bf16.mxu0 0
        %9100 = vmatmul.mubr.bf16.gmra.mrb[0].mxu0 %v9062
        %v9101 = vpop.f32.mrb[0].mxu0
        %v9102 = vadd.f32 0.0, %v9101
        %v9103 = vpop.f32.mrb[0].mxu0
        %v9104 = vpop.f32.mrb[0].mxu0
        %v9105 = vadd.f32 0.0, %v9104
        %v9106 = vpop.f32.mrb[0].mxu0
        %9107 = vdwg.mxu0
        %v9108 = vpack.c.bf16 %v8949, %v8946
        %v9109 = vpack.c.bf16 %v9001, %v8998
        %v9110 = vpack.c.bf16 %v9053, %v9050
        %v9111 = vpack.c.bf16 %v9105, %v9102
        %9116 = vrot.lane.b32.xlu0 %v8052, 32
        %v9117 = vpop.permute.xlu0 %9116
        %9118 = vrot.lane.b32.xlu0 %v8053, 32
        %v9119 = vpop.permute.xlu0 %9118
        %9120 = vrot.lane.b32.xlu0 %v8054, 32
        %v9121 = vpop.permute.xlu0 %9120
        %9122 = vrot.lane.b32.xlu0 %v8055, 32
        %v9123 = vpop.permute.xlu0 %9122
        %9128 = vrot.lane.b32.xlu0 %v8580, 64
        %v9129 = vpop.permute.xlu0 %9128
        %9130 = vrot.lane.b32.xlu0 %v8581, 64
        %v9131 = vpop.permute.xlu0 %9130
        %9132 = vrot.lane.b32.xlu0 %v8582, 64
        %v9133 = vpop.permute.xlu0 %9132
        %9134 = vrot.lane.b32.xlu0 %v8583, 64
        %v9135 = vpop.permute.xlu0 %9134
        %9140 = vrot.lane.b32.xlu0 %v9108, 96
        %v9141 = vpop.permute.xlu0 %9140
        %9142 = vrot.lane.b32.xlu0 %v9109, 96
        %v9143 = vpop.permute.xlu0 %9142
        %9144 = vrot.lane.b32.xlu0 %v9110, 96
        %v9145 = vpop.permute.xlu0 %9144
        %9146 = vrot.lane.b32.xlu0 %v9111, 96
        %v9147 = vpop.permute.xlu0 %9146
        %v9150 = vsel %vm4366, %v7504, %v9117
        %v9153 = vsel %vm4366, %v7505, %v9119
        %v9156 = vsel %vm4366, %v7506, %v9121
        %v9159 = vsel %vm4366, %v7507, %v9123
        %v9161 = vsel %vm6352, %v9150, %v9129
        %v9163 = vsel %vm6352, %v9153, %v9131
        %v9165 = vsel %vm6352, %v9156, %v9133
        %v9167 = vsel %vm6352, %v9159, %v9135
        %v9169 = vsel %vm6361, %v9161, %v9141
        %v9172 = vsel %vm6361, %v9163, %v9143
        %v9175 = vsel %vm6361, %v9165, %v9145
        %v9178 = vsel %vm6361, %v9167, %v9147
        %s9180 = scalar_lea.vmem [#allocation11], 128
        %v9181 = vld [vmem:[%s9180] sm:$0xf]
        %v9182 = vld [vmem:[%s9180 + $0x4] sm:$0xf]
        %v9183 = vld [vmem:[%s9180 + $0x8] sm:$0xf]
        %v9184 = vld [vmem:[%s9180 + $0xc] sm:$0xf]
        %v9185 = vld [vmem:[%s9180 + $0x10] sm:$0xf]
        %v9186 = vld [vmem:[%s9180 + $0x14] sm:$0xf]
        %v9187 = vld [vmem:[%s9180 + $0x18] sm:$0xf]
        %v9188 = vld [vmem:[%s9180 + $0x1c] sm:$0xf]
        %v9189 = vld [vmem:[%s9180 + $0x20] sm:$0xf]
        %v9190 = vld [vmem:[%s9180 + $0x24] sm:$0xf]
        %v9191 = vld [vmem:[%s9180 + $0x28] sm:$0xf]
        %v9192 = vld [vmem:[%s9180 + $0x2c] sm:$0xf]
        %v9193 = vld [vmem:[%s9180 + $0x30] sm:$0xf]
        %v9194 = vld [vmem:[%s9180 + $0x34] sm:$0xf]
        %v9195 = vld [vmem:[%s9180 + $0x38] sm:$0xf]
        %v9196 = vld [vmem:[%s9180 + $0x3c] sm:$0xf]
        %s9197 = scalar_lea.vmem %s9, 2
        %v9198 = vld [vmem:[%s9197] sm:$0x1]
        %v9200 = vlaneseq
        %v9201 = vshrl.u32 %v9200, 7
        %v9202 = vsub.s32 0, %v9201
        %v9203 = vrot.slane %v9198, %v9202
        %v9221 = vunpack.c.l.b16 %v9181
        %v9222 = vunpack.c.l.b16 %v9182
        %v9223 = vunpack.c.l.b16 %v9183
        %v9224 = vunpack.c.l.b16 %v9184
        %v9225 = vunpack.c.l.b16 %v9185
        %v9226 = vunpack.c.l.b16 %v9186
        %v9227 = vunpack.c.l.b16 %v9187
        %v9228 = vunpack.c.l.b16 %v9188
        %v9229 = vunpack.c.l.b16 %v9189
        %v9230 = vunpack.c.l.b16 %v9190
        %v9231 = vunpack.c.l.b16 %v9191
        %v9232 = vunpack.c.l.b16 %v9192
        %v9233 = vunpack.c.l.b16 %v9193
        %v9234 = vunpack.c.l.b16 %v9194
        %v9235 = vunpack.c.l.b16 %v9195
        %v9236 = vunpack.c.l.b16 %v9196
        %v9237 = vpack.c.b16 %v9222, %v9221
        %v9238 = vpack.c.b16 %v9224, %v9223
        %v9239 = vpack.c.b16 %v9226, %v9225
        %v9240 = vpack.c.b16 %v9228, %v9227
        %v9241 = vpack.c.b16 %v9230, %v9229
        %v9242 = vpack.c.b16 %v9232, %v9231
        %v9243 = vpack.c.b16 %v9234, %v9233
        %v9244 = vpack.c.b16 %v9236, %v9235
        %9253 = vmatprep.subr.bf16.mxu0 0
        %9254 = vmatpush1.bf16.msra.mxu0 %v9237
        %9255 = vmatprep.subr.bf16.mxu0 0
        %9256 = vmatpush1.bf16.msra.mxu0 %v9238
        %9257 = vmatprep.subr.bf16.mxu0 0
        %9258 = vmatpush1.bf16.msra.mxu0 %v9239
        %9259 = vmatprep.subr.bf16.mxu0 0
        %9260 = vmatpush1.bf16.msra.mxu0 %v9240
        %9261 = vmatprep.subr.bf16.mxu0 0
        %9262 = vmatpush1.bf16.msra.mxu0 %v9241
        %9263 = vmatprep.subr.bf16.mxu0 0
        %9264 = vmatpush1.bf16.msra.mxu0 %v9242
        %9265 = vmatprep.subr.bf16.mxu0 0
        %9266 = vmatpush1.bf16.msra.mxu0 %v9243
        %9267 = vmatprep.subr.bf16.mxu0 0
        %9268 = vmatpush1.bf16.msra.mxu0 %v9244
        %9269 = vmatprep.subr.bf16.mxu0 0
        %9270 = vmatpush1.bf16.msra.mxu0 0
        %9271 = vmatprep.subr.bf16.mxu0 0
        %9272 = vmatpush1.bf16.msra.mxu0 0
        %9273 = vmatprep.subr.bf16.mxu0 0
        %9274 = vmatpush1.bf16.msra.mxu0 0
        %9275 = vmatprep.subr.bf16.mxu0 0
        %9276 = vmatpush1.bf16.msra.mxu0 0
        %9277 = vmatprep.subr.bf16.mxu0 0
        %9278 = vmatpush1.bf16.msra.mxu0 0
        %9279 = vmatprep.subr.bf16.mxu0 0
        %9280 = vmatpush1.bf16.msra.mxu0 0
        %9281 = vmatprep.subr.bf16.mxu0 0
        %9282 = vmatpush1.bf16.msra.mxu0 0
        %9283 = vmatprep.subr.bf16.mxu0 0
        %9284 = vmatpush1.bf16.msra.mxu0 0
        %9285 = vmatprep.mubr.bf16.mxu0 0
        %9286 = vmatmul.mubr.bf16.gmra.mrb[0].mxu0 %v9169
        %v9287 = vpop.f32.mrb[0].mxu0
        %v9288 = vadd.f32 %v9203, %v9287
        %v9289 = vpop.f32.mrb[0].mxu0
        %v9290 = vpop.f32.mrb[0].mxu0
        %v9291 = vadd.f32 %v9203, %v9290
        %v9292 = vpop.f32.mrb[0].mxu0
        %9293 = vmatprep.mubr.bf16.mxu0 0
        %9294 = vmatmul.mubr.bf16.gmra.mrb[0].mxu0 %v9172
        %v9295 = vpop.f32.mrb[0].mxu0
        %v9296 = vadd.f32 %v9203, %v9295
        %v9297 = vpop.f32.mrb[0].mxu0
        %v9298 = vpop.f32.mrb[0].mxu0
        %v9299 = vadd.f32 %v9203, %v9298
        %v9300 = vpop.f32.mrb[0].mxu0
        %9301 = vmatprep.mubr.bf16.mxu0 0
        %9302 = vmatmul.mubr.bf16.gmra.mrb[0].mxu0 %v9175
        %v9303 = vpop.f32.mrb[0].mxu0
        %v9304 = vadd.f32 %v9203, %v9303
        %v9305 = vpop.f32.mrb[0].mxu0
        %v9306 = vpop.f32.mrb[0].mxu0
        %v9307 = vadd.f32 %v9203, %v9306
        %v9308 = vpop.f32.mrb[0].mxu0
        %9309 = vmatprep.mubr.bf16.mxu0 0
        %9310 = vmatmul.mubr.bf16.gmra.mrb[0].mxu0 %v9178
        %v9311 = vpop.f32.mrb[0].mxu0
        %v9312 = vadd.f32 %v9203, %v9311
        %v9313 = vpop.f32.mrb[0].mxu0
        %v9314 = vpop.f32.mrb[0].mxu0
        %v9315 = vadd.f32 %v9203, %v9314
        %v9316 = vpop.f32.mrb[0].mxu0
        %9317 = vdwg.mxu0
        %v9318 = vadd.f32 %v6645, %v9288
        %v9319 = vadd.f32 %v6646, %v9291
        %v9320 = vadd.f32 %v6647, %v9296
        %v9321 = vadd.f32 %v6648, %v9299
        %v9322 = vadd.f32 %v6649, %v9304
        %v9323 = vadd.f32 %v6650, %v9307
        %v9324 = vadd.f32 %v6651, %v9312
        %v9325 = vadd.f32 %v6652, %v9315
        %s9326 = scalar_lea.vmem %s12, 1
        %v9327 = vld [vmem:[%s9326] sm:$0x1]
        %s9328 = scalar_lea.vmem %s13, 1
        %v9329 = vld [vmem:[%s9328] sm:$0x1]
        %9330 = vadd.xlane.f32.xlu0 %v9318
        %v9331 = vpop.xlane.xlu0 %9330
        %9332 = vadd.xlane.f32.xlu0 %v9319
        %v9333 = vpop.xlane.xlu0 %9332
        %9334 = vadd.xlane.f32.xlu0 %v9320
        %v9335 = vpop.xlane.xlu0 %9334
        %9336 = vadd.xlane.f32.xlu0 %v9321
        %v9337 = vpop.xlane.xlu0 %9336
        %9338 = vadd.xlane.f32.xlu0 %v9322
        %v9339 = vpop.xlane.xlu0 %9338
        %9340 = vadd.xlane.f32.xlu0 %v9323
        %v9341 = vpop.xlane.xlu0 %9340
        %9342 = vadd.xlane.f32.xlu0 %v9324
        %v9343 = vpop.xlane.xlu0 %9342
        %9344 = vadd.xlane.f32.xlu0 %v9325
        %v9345 = vpop.xlane.xlu0 %9344
        %v9346 = vmul.f32 %v9331, %v6536
        %v9347 = vmul.f32 %v9333, %v6536
        %v9348 = vmul.f32 %v9335, %v6536
        %v9349 = vmul.f32 %v9337, %v6536
        %v9350 = vmul.f32 %v9339, %v6536
        %v9351 = vmul.f32 %v9341, %v6536
        %v9352 = vmul.f32 %v9343, %v6536
        %v9353 = vmul.f32 %v9345, %v6536
        %v9354 = vmul.f32 %v9318, %v9318
        %v9355 = vmul.f32 %v9319, %v9319
        %v9356 = vmul.f32 %v9320, %v9320
        %v9357 = vmul.f32 %v9321, %v9321
        %v9358 = vmul.f32 %v9322, %v9322
        %v9359 = vmul.f32 %v9323, %v9323
        %v9360 = vmul.f32 %v9324, %v9324
        %v9361 = vmul.f32 %v9325, %v9325
        %9362 = vadd.xlane.f32.xlu0 %v9354
        %v9363 = vpop.xlane.xlu0 %9362
        %9364 = vadd.xlane.f32.xlu0 %v9355
        %v9365 = vpop.xlane.xlu0 %9364
        %9366 = vadd.xlane.f32.xlu0 %v9356
        %v9367 = vpop.xlane.xlu0 %9366
        %9368 = vadd.xlane.f32.xlu0 %v9357
        %v9369 = vpop.xlane.xlu0 %9368
        %9370 = vadd.xlane.f32.xlu0 %v9358
        %v9371 = vpop.xlane.xlu0 %9370
        %9372 = vadd.xlane.f32.xlu0 %v9359
        %v9373 = vpop.xlane.xlu0 %9372
        %9374 = vadd.xlane.f32.xlu0 %v9360
        %v9375 = vpop.xlane.xlu0 %9374
        %9376 = vadd.xlane.f32.xlu0 %v9361
        %v9377 = vpop.xlane.xlu0 %9376
        %v9378 = vmul.f32 %v9363, %v6536
        %v9379 = vmul.f32 %v9365, %v6536
        %v9380 = vmul.f32 %v9367, %v6536
        %v9381 = vmul.f32 %v9369, %v6536
        %v9382 = vmul.f32 %v9371, %v6536
        %v9383 = vmul.f32 %v9373, %v6536
        %v9384 = vmul.f32 %v9375, %v6536
        %v9385 = vmul.f32 %v9377, %v6536
        %v9386 = vmul.f32 %v9346, %v9346
        %v9387 = vmul.f32 %v9347, %v9347
        %v9388 = vmul.f32 %v9348, %v9348
        %v9389 = vmul.f32 %v9349, %v9349
        %v9390 = vmul.f32 %v9350, %v9350
        %v9391 = vmul.f32 %v9351, %v9351
        %v9392 = vmul.f32 %v9352, %v9352
        %v9393 = vmul.f32 %v9353, %v9353
        %v9394 = vsub.f32 %v9378, %v9386
        %v9395 = vsub.f32 %v9379, %v9387
        %v9396 = vsub.f32 %v9380, %v9388
        %v9397 = vsub.f32 %v9381, %v9389
        %v9398 = vsub.f32 %v9382, %v9390
        %v9399 = vsub.f32 %v9383, %v9391
        %v9400 = vsub.f32 %v9384, %v9392
        %v9401 = vsub.f32 %v9385, %v9393
        %v9402 = vsub.f32 %v9318, %v9346
        %v9403 = vsub.f32 %v9319, %v9347
        %v9404 = vsub.f32 %v9320, %v9348
        %v9405 = vsub.f32 %v9321, %v9349
        %v9406 = vsub.f32 %v9322, %v9350
        %v9407 = vsub.f32 %v9323, %v9351
        %v9408 = vsub.f32 %v9324, %v9352
        %v9409 = vsub.f32 %v9325, %v9353
        %v9410 = vadd.f32 %v9394, 1e-05
        %v9411 = vadd.f32 %v9395, 1e-05
        %v9412 = vadd.f32 %v9396, 1e-05
        %v9413 = vadd.f32 %v9397, 1e-05
        %v9414 = vadd.f32 %v9398, 1e-05
        %v9415 = vadd.f32 %v9399, 1e-05
        %v9416 = vadd.f32 %v9400, 1e-05
        %v9417 = vadd.f32 %v9401, 1e-05
        %v9418 = vrsqrt.pop %v9410
        %v9419 = vrsqrt.pop %v9411
        %v9420 = vrsqrt.pop %v9412
        %v9421 = vrsqrt.pop %v9413
        %v9422 = vrsqrt.pop %v9414
        %v9423 = vrsqrt.pop %v9415
        %v9424 = vrsqrt.pop %v9416
        %v9425 = vrsqrt.pop %v9417
        %v9426 = vmul.f32 %v9402, %v9418
        %v9427 = vmul.f32 %v9403, %v9419
        %v9428 = vmul.f32 %v9404, %v9420
        %v9429 = vmul.f32 %v9405, %v9421
        %v9430 = vmul.f32 %v9406, %v9422
        %v9431 = vmul.f32 %v9407, %v9423
        %v9432 = vmul.f32 %v9408, %v9424
        %v9433 = vmul.f32 %v9409, %v9425
        %v9435 = vlaneseq
        %v9436 = vshrl.u32 %v9435, 7
        %v9437 = vsub.s32 0, %v9436
        %v9438 = vrot.slane %v9327, %v9437
        %v9440 = vmul.f32 %v9426, %v9438
        %v9441 = vmul.f32 %v9427, %v9438
        %v9442 = vmul.f32 %v9428, %v9438
        %v9443 = vmul.f32 %v9429, %v9438
        %v9444 = vmul.f32 %v9430, %v9438
        %v9445 = vmul.f32 %v9431, %v9438
        %v9446 = vmul.f32 %v9432, %v9438
        %v9447 = vmul.f32 %v9433, %v9438
        %v9449 = vlaneseq
        %v9450 = vshrl.u32 %v9449, 7
        %v9451 = vsub.s32 0, %v9450
        %v9452 = vrot.slane %v9329, %v9451
        %v9454 = vadd.f32 %v9440, %v9452
        %v9455 = vadd.f32 %v9441, %v9452
        %v9456 = vadd.f32 %v9442, %v9452
        %v9457 = vadd.f32 %v9443, %v9452
        %v9458 = vadd.f32 %v9444, %v9452
        %v9459 = vadd.f32 %v9445, %v9452
        %v9460 = vadd.f32 %v9446, %v9452
        %v9461 = vadd.f32 %v9447, %v9452
        %v9462 = vpack.c.bf16 %v9455, %v9454
        %v9463 = vpack.c.bf16 %v9457, %v9456
        %v9464 = vpack.c.bf16 %v9459, %v9458
        %v9465 = vpack.c.bf16 %v9461, %v9460
        %v9466 = vld [vmem:[#allocation13] sm:$0xff]
        %v9467 = vld [vmem:[#allocation13 + $0x8] sm:$0xff]
        %v9468 = vld [vmem:[#allocation13 + $0x10] sm:$0xff]
        %v9469 = vld [vmem:[#allocation13 + $0x18] sm:$0xff]
        %v9470 = vld [vmem:[#allocation13 + $0x20] sm:$0xff]
        %v9471 = vld [vmem:[#allocation13 + $0x28] sm:$0xff]
        %v9472 = vld [vmem:[#allocation13 + $0x30] sm:$0xff]
        %v9473 = vld [vmem:[#allocation13 + $0x38] sm:$0xff]
        %v9474 = vld [vmem:[#allocation13 + $0x40] sm:$0xff]
        %v9475 = vld [vmem:[#allocation13 + $0x48] sm:$0xff]
        %v9476 = vld [vmem:[#allocation13 + $0x50] sm:$0xff]
        %v9477 = vld [vmem:[#allocation13 + $0x58] sm:$0xff]
        %v9478 = vld [vmem:[#allocation13 + $0x60] sm:$0xff]
        %v9479 = vld [vmem:[#allocation13 + $0x68] sm:$0xff]
        %v9480 = vld [vmem:[#allocation13 + $0x70] sm:$0xff]
        %v9481 = vld [vmem:[#allocation13 + $0x78] sm:$0xff]
        %v9482 = vld [vmem:[#allocation13 + $0x80] sm:$0xff]
        %v9483 = vld [vmem:[#allocation13 + $0x88] sm:$0xff]
        %v9484 = vld [vmem:[#allocation13 + $0x90] sm:$0xff]
        %v9485 = vld [vmem:[#allocation13 + $0x98] sm:$0xff]
        %v9486 = vld [vmem:[#allocation13 + $0xa0] sm:$0xff]
        %v9487 = vld [vmem:[#allocation13 + $0xa8] sm:$0xff]
        %v9488 = vld [vmem:[#allocation13 + $0xb0] sm:$0xff]
        %v9489 = vld [vmem:[#allocation13 + $0xb8] sm:$0xff]
        %v9490 = vld [vmem:[#allocation13 + $0xc0] sm:$0xff]
        %v9491 = vld [vmem:[#allocation13 + $0xc8] sm:$0xff]
        %v9492 = vld [vmem:[#allocation13 + $0xd0] sm:$0xff]
        %v9493 = vld [vmem:[#allocation13 + $0xd8] sm:$0xff]
        %v9494 = vld [vmem:[#allocation13 + $0xe0] sm:$0xff]
        %v9495 = vld [vmem:[#allocation13 + $0xe8] sm:$0xff]
        %v9496 = vld [vmem:[#allocation13 + $0xf0] sm:$0xff]
        %v9497 = vld [vmem:[#allocation13 + $0xf8] sm:$0xff]
        %v9530 = vunpack.c.l.b16 %v9466
        %v9531 = vunpack.c.h.b16 %v9466
        %v9532 = vunpack.c.l.b16 %v9467
        %v9533 = vunpack.c.h.b16 %v9467
        %v9534 = vunpack.c.l.b16 %v9468
        %v9535 = vunpack.c.h.b16 %v9468
        %v9536 = vunpack.c.l.b16 %v9469
        %v9537 = vunpack.c.h.b16 %v9469
        %v9538 = vunpack.c.l.b16 %v9470
        %v9539 = vunpack.c.h.b16 %v9470
        %v9540 = vunpack.c.l.b16 %v9471
        %v9541 = vunpack.c.h.b16 %v9471
        %v9542 = vunpack.c.l.b16 %v9472
        %v9543 = vunpack.c.h.b16 %v9472
        %v9544 = vunpack.c.l.b16 %v9473
        %v9545 = vunpack.c.h.b16 %v9473
        %v9546 = vunpack.c.l.b16 %v9474
        %v9547 = vunpack.c.h.b16 %v9474
        %v9548 = vunpack.c.l.b16 %v9475
        %v9549 = vunpack.c.h.b16 %v9475
        %v9550 = vunpack.c.l.b16 %v9476
        %v9551 = vunpack.c.h.b16 %v9476
        %v9552 = vunpack.c.l.b16 %v9477
        %v9553 = vunpack.c.h.b16 %v9477
        %v9554 = vunpack.c.l.b16 %v9478
        %v9555 = vunpack.c.h.b16 %v9478
        %v9556 = vunpack.c.l.b16 %v9479
        %v9557 = vunpack.c.h.b16 %v9479
        %v9558 = vunpack.c.l.b16 %v9480
        %v9559 = vunpack.c.h.b16 %v9480
        %v9560 = vunpack.c.l.b16 %v9481
        %v9561 = vunpack.c.h.b16 %v9481
        %v9562 = vunpack.c.l.b16 %v9482
        %v9563 = vunpack.c.h.b16 %v9482
        %v9564 = vunpack.c.l.b16 %v9483
        %v9565 = vunpack.c.h.b16 %v9483
        %v9566 = vunpack.c.l.b16 %v9484
        %v9567 = vunpack.c.h.b16 %v9484
        %v9568 = vunpack.c.l.b16 %v9485
        %v9569 = vunpack.c.h.b16 %v9485
        %v9570 = vunpack.c.l.b16 %v9486
        %v9571 = vunpack.c.h.b16 %v9486
        %v9572 = vunpack.c.l.b16 %v9487
        %v9573 = vunpack.c.h.b16 %v9487
        %v9574 = vunpack.c.l.b16 %v9488
        %v9575 = vunpack.c.h.b16 %v9488
        %v9576 = vunpack.c.l.b16 %v9489
        %v9577 = vunpack.c.h.b16 %v9489
        %v9578 = vunpack.c.l.b16 %v9490
        %v9579 = vunpack.c.h.b16 %v9490
        %v9580 = vunpack.c.l.b16 %v9491
        %v9581 = vunpack.c.h.b16 %v9491
        %v9582 = vunpack.c.l.b16 %v9492
        %v9583 = vunpack.c.h.b16 %v9492
        %v9584 = vunpack.c.l.b16 %v9493
        %v9585 = vunpack.c.h.b16 %v9493
        %v9586 = vunpack.c.l.b16 %v9494
        %v9587 = vunpack.c.h.b16 %v9494
        %v9588 = vunpack.c.l.b16 %v9495
        %v9589 = vunpack.c.h.b16 %v9495
        %v9590 = vunpack.c.l.b16 %v9496
        %v9591 = vunpack.c.h.b16 %v9496
        %v9592 = vunpack.c.l.b16 %v9497
        %v9593 = vunpack.c.h.b16 %v9497
        %v9594 = vpack.c.b16 %v9534, %v9530
        %v9595 = vpack.c.b16 %v9535, %v9531
        %v9596 = vpack.c.b16 %v9536, %v9532
        %v9597 = vpack.c.b16 %v9537, %v9533
        %v9598 = vpack.c.b16 %v9542, %v9538
        %v9599 = vpack.c.b16 %v9543, %v9539
        %v9600 = vpack.c.b16 %v9544, %v9540
        %v9601 = vpack.c.b16 %v9545, %v9541
        %v9602 = vpack.c.b16 %v9550, %v9546
        %v9603 = vpack.c.b16 %v9551, %v9547
        %v9604 = vpack.c.b16 %v9552, %v9548
        %v9605 = vpack.c.b16 %v9553, %v9549
        %v9606 = vpack.c.b16 %v9558, %v9554
        %v9607 = vpack.c.b16 %v9559, %v9555
        %v9608 = vpack.c.b16 %v9560, %v9556
        %v9609 = vpack.c.b16 %v9561, %v9557
        %v9610 = vpack.c.b16 %v9566, %v9562
        %v9611 = vpack.c.b16 %v9567, %v9563
        %v9612 = vpack.c.b16 %v9568, %v9564
        %v9613 = vpack.c.b16 %v9569, %v9565
        %v9614 = vpack.c.b16 %v9574, %v9570
        %v9615 = vpack.c.b16 %v9575, %v9571
        %v9616 = vpack.c.b16 %v9576, %v9572
        %v9617 = vpack.c.b16 %v9577, %v9573
        %v9618 = vpack.c.b16 %v9582, %v9578
        %v9619 = vpack.c.b16 %v9583, %v9579
        %v9620 = vpack.c.b16 %v9584, %v9580
        %v9621 = vpack.c.b16 %v9585, %v9581
        %v9622 = vpack.c.b16 %v9590, %v9586
        %v9623 = vpack.c.b16 %v9591, %v9587
        %v9624 = vpack.c.b16 %v9592, %v9588
        %v9625 = vpack.c.b16 %v9593, %v9589
        %9658 = vmatprep.subr.bf16.mxu0 %v9595
        %9659 = vmatpush1.bf16.msra.mxu0 %v9594
        %9660 = vmatprep.subr.bf16.mxu0 %v9599
        %9661 = vmatpush1.bf16.msra.mxu0 %v9598
        %9662 = vmatprep.subr.bf16.mxu0 %v9603
        %9663 = vmatpush1.bf16.msra.mxu0 %v9602
        %9664 = vmatprep.subr.bf16.mxu0 %v9607
        %9665 = vmatpush1.bf16.msra.mxu0 %v9606
        %9666 = vmatprep.subr.bf16.mxu0 %v9611
        %9667 = vmatpush1.bf16.msra.mxu0 %v9610
        %9668 = vmatprep.subr.bf16.mxu0 %v9615
        %9669 = vmatpush1.bf16.msra.mxu0 %v9614
        %9670 = vmatprep.subr.bf16.mxu0 %v9619
        %9671 = vmatpush1.bf16.msra.mxu0 %v9618
        %9672 = vmatprep.subr.bf16.mxu0 %v9623
        %9673 = vmatpush1.bf16.msra.mxu0 %v9622
        %9674 = vmatprep.subr.bf16.mxu0 0
        %9675 = vmatpush1.bf16.msra.mxu0 0
        %9676 = vmatprep.subr.bf16.mxu0 0
        %9677 = vmatpush1.bf16.msra.mxu0 0
        %9678 = vmatprep.subr.bf16.mxu0 0
        %9679 = vmatpush1.bf16.msra.mxu0 0
        %9680 = vmatprep.subr.bf16.mxu0 0
        %9681 = vmatpush1.bf16.msra.mxu0 0
        %9682 = vmatprep.subr.bf16.mxu0 0
        %9683 = vmatpush1.bf16.msra.mxu0 0
        %9684 = vmatprep.subr.bf16.mxu0 0
        %9685 = vmatpush1.bf16.msra.mxu0 0
        %9686 = vmatprep.subr.bf16.mxu0 0
        %9687 = vmatpush1.bf16.msra.mxu0 0
        %9688 = vmatprep.subr.bf16.mxu0 0
        %9689 = vmatpush1.bf16.msra.mxu0 0
        %9690 = vmatprep.mubr.bf16.mxu0 0
        %9691 = vmatmul.mubr.bf16.gmra.mrb[0].mxu0 %v9462
        %v9692 = vpop.f32.mrb[0].mxu0
        %v9693 = vadd.f32 0.0, %v9692
        %v9694 = vpop.f32.mrb[0].mxu0
        %v9695 = vadd.f32 0.0, %v9694
        %v9696 = vpop.f32.mrb[0].mxu0
        %v9697 = vadd.f32 0.0, %v9696
        %v9698 = vpop.f32.mrb[0].mxu0
        %v9699 = vadd.f32 0.0, %v9698
        %9700 = vmatprep.mubr.bf16.mxu0 0
        %9701 = vmatmul.mubr.bf16.gmra.mrb[0].mxu0 %v9463
        %v9702 = vpop.f32.mrb[0].mxu0
        %v9703 = vadd.f32 0.0, %v9702
        %v9704 = vpop.f32.mrb[0].mxu0
        %v9705 = vadd.f32 0.0, %v9704
        %v9706 = vpop.f32.mrb[0].mxu0
        %v9707 = vadd.f32 0.0, %v9706
        %v9708 = vpop.f32.mrb[0].mxu0
        %v9709 = vadd.f32 0.0, %v9708
        %9710 = vmatprep.mubr.bf16.mxu0 0
        %9711 = vmatmul.mubr.bf16.gmra.mrb[0].mxu0 %v9464
        %v9712 = vpop.f32.mrb[0].mxu0
        %v9713 = vadd.f32 0.0, %v9712
        %v9714 = vpop.f32.mrb[0].mxu0
        %v9715 = vadd.f32 0.0, %v9714
        %v9716 = vpop.f32.mrb[0].mxu0
        %v9717 = vadd.f32 0.0, %v9716
        %v9718 = vpop.f32.mrb[0].mxu0
        %v9719 = vadd.f32 0.0, %v9718
        %9720 = vmatprep.mubr.bf16.mxu0 0
        %9721 = vmatmul.mubr.bf16.gmra.mrb[0].mxu0 %v9465
        %v9722 = vpop.f32.mrb[0].mxu0
        %v9723 = vadd.f32 0.0, %v9722
        %v9724 = vpop.f32.mrb[0].mxu0
        %v9725 = vadd.f32 0.0, %v9724
        %v9726 = vpop.f32.mrb[0].mxu0
        %v9727 = vadd.f32 0.0, %v9726
        %v9728 = vpop.f32.mrb[0].mxu0
        %v9729 = vadd.f32 0.0, %v9728
        %9730 = vdwg.mxu0
        %9731 = vmatprep.subr.bf16.mxu0 %v9597
        %9732 = vmatpush1.bf16.msra.mxu0 %v9596
        %9733 = vmatprep.subr.bf16.mxu0 %v9601
        %9734 = vmatpush1.bf16.msra.mxu0 %v9600
        %9735 = vmatprep.subr.bf16.mxu0 %v9605
        %9736 = vmatpush1.bf16.msra.mxu0 %v9604
        %9737 = vmatprep.subr.bf16.mxu0 %v9609
        %9738 = vmatpush1.bf16.msra.mxu0 %v9608
        %9739 = vmatprep.subr.bf16.mxu0 %v9613
        %9740 = vmatpush1.bf16.msra.mxu0 %v9612
        %9741 = vmatprep.subr.bf16.mxu0 %v9617
        %9742 = vmatpush1.bf16.msra.mxu0 %v9616
        %9743 = vmatprep.subr.bf16.mxu0 %v9621
        %9744 = vmatpush1.bf16.msra.mxu0 %v9620
        %9745 = vmatprep.subr.bf16.mxu0 %v9625
        %9746 = vmatpush1.bf16.msra.mxu0 %v9624
        %9747 = vmatprep.subr.bf16.mxu0 0
        %9748 = vmatpush1.bf16.msra.mxu0 0
        %9749 = vmatprep.subr.bf16.mxu0 0
        %9750 = vmatpush1.bf16.msra.mxu0 0
        %9751 = vmatprep.subr.bf16.mxu0 0
        %9752 = vmatpush1.bf16.msra.mxu0 0
        %9753 = vmatprep.subr.bf16.mxu0 0
        %9754 = vmatpush1.bf16.msra.mxu0 0
        %9755 = vmatprep.subr.bf16.mxu0 0
        %9756 = vmatpush1.bf16.msra.mxu0 0
        %9757 = vmatprep.subr.bf16.mxu0 0
        %9758 = vmatpush1.bf16.msra.mxu0 0
        %9759 = vmatprep.subr.bf16.mxu0 0
        %9760 = vmatpush1.bf16.msra.mxu0 0
        %9761 = vmatprep.subr.bf16.mxu0 0
        %9762 = vmatpush1.bf16.msra.mxu0 0
        %9763 = vmatprep.mubr.bf16.mxu0 0
        %9764 = vmatmul.mubr.bf16.gmra.mrb[0].mxu0 %v9462
        %v9765 = vpop.f32.mrb[0].mxu0
        %v9766 = vadd.f32 0.0, %v9765
        %v9767 = vpop.f32.mrb[0].mxu0
        %v9768 = vadd.f32 0.0, %v9767
        %v9769 = vpop.f32.mrb[0].mxu0
        %v9770 = vadd.f32 0.0, %v9769
        %v9771 = vpop.f32.mrb[0].mxu0
        %v9772 = vadd.f32 0.0, %v9771
        %9773 = vmatprep.mubr.bf16.mxu0 0
        %9774 = vmatmul.mubr.bf16.gmra.mrb[0].mxu0 %v9463
        %v9775 = vpop.f32.mrb[0].mxu0
        %v9776 = vadd.f32 0.0, %v9775
        %v9777 = vpop.f32.mrb[0].mxu0
        %v9778 = vadd.f32 0.0, %v9777
        %v9779 = vpop.f32.mrb[0].mxu0
        %v9780 = vadd.f32 0.0, %v9779
        %v9781 = vpop.f32.mrb[0].mxu0
        %v9782 = vadd.f32 0.0, %v9781
        %9783 = vmatprep.mubr.bf16.mxu0 0
        %9784 = vmatmul.mubr.bf16.gmra.mrb[0].mxu0 %v9464
        %v9785 = vpop.f32.mrb[0].mxu0
        %v9786 = vadd.f32 0.0, %v9785
        %v9787 = vpop.f32.mrb[0].mxu0
        %v9788 = vadd.f32 0.0, %v9787
        %v9789 = vpop.f32.mrb[0].mxu0
        %v9790 = vadd.f32 0.0, %v9789
        %v9791 = vpop.f32.mrb[0].mxu0
        %v9792 = vadd.f32 0.0, %v9791
        %9793 = vmatprep.mubr.bf16.mxu0 0
        %9794 = vmatmul.mubr.bf16.gmra.mrb[0].mxu0 %v9465
        %v9795 = vpop.f32.mrb[0].mxu0
        %v9796 = vadd.f32 0.0, %v9795
        %v9797 = vpop.f32.mrb[0].mxu0
        %v9798 = vadd.f32 0.0, %v9797
        %v9799 = vpop.f32.mrb[0].mxu0
        %v9800 = vadd.f32 0.0, %v9799
        %v9801 = vpop.f32.mrb[0].mxu0
        %v9802 = vadd.f32 0.0, %v9801
        %9803 = vdwg.mxu0
        %v9804 = vmax.f32 %v9693, 0.0
        %v9805 = vmax.f32 %v9695, 0.0
        %v9806 = vmax.f32 %v9766, 0.0
        %v9807 = vmax.f32 %v9768, 0.0
        %v9808 = vmax.f32 %v9697, 0.0
        %v9809 = vmax.f32 %v9699, 0.0
        %v9810 = vmax.f32 %v9770, 0.0
        %v9811 = vmax.f32 %v9772, 0.0
        %v9812 = vmax.f32 %v9703, 0.0
        %v9813 = vmax.f32 %v9705, 0.0
        %v9814 = vmax.f32 %v9776, 0.0
        %v9815 = vmax.f32 %v9778, 0.0
        %v9816 = vmax.f32 %v9707, 0.0
        %v9817 = vmax.f32 %v9709, 0.0
        %v9818 = vmax.f32 %v9780, 0.0
        %v9819 = vmax.f32 %v9782, 0.0
        %v9820 = vmax.f32 %v9713, 0.0
        %v9821 = vmax.f32 %v9715, 0.0
        %v9822 = vmax.f32 %v9786, 0.0
        %v9823 = vmax.f32 %v9788, 0.0
        %v9824 = vmax.f32 %v9717, 0.0
        %v9825 = vmax.f32 %v9719, 0.0
        %v9826 = vmax.f32 %v9790, 0.0
        %v9827 = vmax.f32 %v9792, 0.0
        %v9828 = vmax.f32 %v9723, 0.0
        %v9829 = vmax.f32 %v9725, 0.0
        %v9830 = vmax.f32 %v9796, 0.0
        %v9831 = vmax.f32 %v9798, 0.0
        %v9832 = vmax.f32 %v9727, 0.0
        %v9833 = vmax.f32 %v9729, 0.0
        %v9834 = vmax.f32 %v9800, 0.0
        %v9835 = vmax.f32 %v9802, 0.0
        %v9836 = vpack.c.bf16 %v9808, %v9804
        %v9837 = vpack.c.bf16 %v9809, %v9805
        %v9838 = vpack.c.bf16 %v9810, %v9806
        %v9839 = vpack.c.bf16 %v9811, %v9807
        %v9840 = vpack.c.bf16 %v9816, %v9812
        %v9841 = vpack.c.bf16 %v9817, %v9813
        %v9842 = vpack.c.bf16 %v9818, %v9814
        %v9843 = vpack.c.bf16 %v9819, %v9815
        %v9844 = vpack.c.bf16 %v9824, %v9820
        %v9845 = vpack.c.bf16 %v9825, %v9821
        %v9846 = vpack.c.bf16 %v9826, %v9822
        %v9847 = vpack.c.bf16 %v9827, %v9823
        %v9848 = vpack.c.bf16 %v9832, %v9828
        %v9849 = vpack.c.bf16 %v9833, %v9829
        %v9850 = vpack.c.bf16 %v9834, %v9830
        %v9851 = vpack.c.bf16 %v9835, %v9831
        %v9852 = vld [vmem:[#allocation14] sm:$0xf]
        %v9853 = vld [vmem:[#allocation14 + $0x4] sm:$0xf]
        %v9854 = vld [vmem:[#allocation14 + $0x8] sm:$0xf]
        %v9855 = vld [vmem:[#allocation14 + $0xc] sm:$0xf]
        %v9856 = vld [vmem:[#allocation14 + $0x10] sm:$0xf]
        %v9857 = vld [vmem:[#allocation14 + $0x14] sm:$0xf]
        %v9858 = vld [vmem:[#allocation14 + $0x18] sm:$0xf]
        %v9859 = vld [vmem:[#allocation14 + $0x1c] sm:$0xf]
        %v9860 = vld [vmem:[#allocation14 + $0x20] sm:$0xf]
        %v9861 = vld [vmem:[#allocation14 + $0x24] sm:$0xf]
        %v9862 = vld [vmem:[#allocation14 + $0x28] sm:$0xf]
        %v9863 = vld [vmem:[#allocation14 + $0x2c] sm:$0xf]
        %v9864 = vld [vmem:[#allocation14 + $0x30] sm:$0xf]
        %v9865 = vld [vmem:[#allocation14 + $0x34] sm:$0xf]
        %v9866 = vld [vmem:[#allocation14 + $0x38] sm:$0xf]
        %v9867 = vld [vmem:[#allocation14 + $0x3c] sm:$0xf]
        %v9868 = vld [vmem:[#allocation14 + $0x40] sm:$0xf]
        %v9869 = vld [vmem:[#allocation14 + $0x44] sm:$0xf]
        %v9870 = vld [vmem:[#allocation14 + $0x48] sm:$0xf]
        %v9871 = vld [vmem:[#allocation14 + $0x4c] sm:$0xf]
        %v9872 = vld [vmem:[#allocation14 + $0x50] sm:$0xf]
        %v9873 = vld [vmem:[#allocation14 + $0x54] sm:$0xf]
        %v9874 = vld [vmem:[#allocation14 + $0x58] sm:$0xf]
        %v9875 = vld [vmem:[#allocation14 + $0x5c] sm:$0xf]
        %v9876 = vld [vmem:[#allocation14 + $0x60] sm:$0xf]
        %v9877 = vld [vmem:[#allocation14 + $0x64] sm:$0xf]
        %v9878 = vld [vmem:[#allocation14 + $0x68] sm:$0xf]
        %v9879 = vld [vmem:[#allocation14 + $0x6c] sm:$0xf]
        %v9880 = vld [vmem:[#allocation14 + $0x70] sm:$0xf]
        %v9881 = vld [vmem:[#allocation14 + $0x74] sm:$0xf]
        %v9882 = vld [vmem:[#allocation14 + $0x78] sm:$0xf]
        %v9883 = vld [vmem:[#allocation14 + $0x7c] sm:$0xf]
        %v9884 = vld [vmem:[#allocation14 + $0x80] sm:$0xf]
        %v9885 = vld [vmem:[#allocation14 + $0x84] sm:$0xf]
        %v9886 = vld [vmem:[#allocation14 + $0x88] sm:$0xf]
        %v9887 = vld [vmem:[#allocation14 + $0x8c] sm:$0xf]
        %v9888 = vld [vmem:[#allocation14 + $0x90] sm:$0xf]
        %v9889 = vld [vmem:[#allocation14 + $0x94] sm:$0xf]
        %v9890 = vld [vmem:[#allocation14 + $0x98] sm:$0xf]
        %v9891 = vld [vmem:[#allocation14 + $0x9c] sm:$0xf]
        %v9892 = vld [vmem:[#allocation14 + $0xa0] sm:$0xf]
        %v9893 = vld [vmem:[#allocation14 + $0xa4] sm:$0xf]
        %v9894 = vld [vmem:[#allocation14 + $0xa8] sm:$0xf]
        %v9895 = vld [vmem:[#allocation14 + $0xac] sm:$0xf]
        %v9896 = vld [vmem:[#allocation14 + $0xb0] sm:$0xf]
        %v9897 = vld [vmem:[#allocation14 + $0xb4] sm:$0xf]
        %v9898 = vld [vmem:[#allocation14 + $0xb8] sm:$0xf]
        %v9899 = vld [vmem:[#allocation14 + $0xbc] sm:$0xf]
        %v9900 = vld [vmem:[#allocation14 + $0xc0] sm:$0xf]
        %v9901 = vld [vmem:[#allocation14 + $0xc4] sm:$0xf]
        %v9902 = vld [vmem:[#allocation14 + $0xc8] sm:$0xf]
        %v9903 = vld [vmem:[#allocation14 + $0xcc] sm:$0xf]
        %v9904 = vld [vmem:[#allocation14 + $0xd0] sm:$0xf]
        %v9905 = vld [vmem:[#allocation14 + $0xd4] sm:$0xf]
        %v9906 = vld [vmem:[#allocation14 + $0xd8] sm:$0xf]
        %v9907 = vld [vmem:[#allocation14 + $0xdc] sm:$0xf]
        %v9908 = vld [vmem:[#allocation14 + $0xe0] sm:$0xf]
        %v9909 = vld [vmem:[#allocation14 + $0xe4] sm:$0xf]
        %v9910 = vld [vmem:[#allocation14 + $0xe8] sm:$0xf]
        %v9911 = vld [vmem:[#allocation14 + $0xec] sm:$0xf]
        %v9912 = vld [vmem:[#allocation14 + $0xf0] sm:$0xf]
        %v9913 = vld [vmem:[#allocation14 + $0xf4] sm:$0xf]
        %v9914 = vld [vmem:[#allocation14 + $0xf8] sm:$0xf]
        %v9915 = vld [vmem:[#allocation14 + $0xfc] sm:$0xf]
        %v9980 = vunpack.c.l.b16 %v9852
        %v9981 = vunpack.c.l.b16 %v9853
        %v9982 = vunpack.c.l.b16 %v9854
        %v9983 = vunpack.c.l.b16 %v9855
        %v9984 = vunpack.c.l.b16 %v9856
        %v9985 = vunpack.c.l.b16 %v9857
        %v9986 = vunpack.c.l.b16 %v9858
        %v9987 = vunpack.c.l.b16 %v9859
        %v9988 = vunpack.c.l.b16 %v9860
        %v9989 = vunpack.c.l.b16 %v9861
        %v9990 = vunpack.c.l.b16 %v9862
        %v9991 = vunpack.c.l.b16 %v9863
        %v9992 = vunpack.c.l.b16 %v9864
        %v9993 = vunpack.c.l.b16 %v9865
        %v9994 = vunpack.c.l.b16 %v9866
        %v9995 = vunpack.c.l.b16 %v9867
        %v9996 = vunpack.c.l.b16 %v9868
        %v9997 = vunpack.c.l.b16 %v9869
        %v9998 = vunpack.c.l.b16 %v9870
        %v9999 = vunpack.c.l.b16 %v9871
        %v10000 = vunpack.c.l.b16 %v9872
        %v10001 = vunpack.c.l.b16 %v9873
        %v10002 = vunpack.c.l.b16 %v9874
        %v10003 = vunpack.c.l.b16 %v9875
        %v10004 = vunpack.c.l.b16 %v9876
        %v10005 = vunpack.c.l.b16 %v9877
        %v10006 = vunpack.c.l.b16 %v9878
        %v10007 = vunpack.c.l.b16 %v9879
        %v10008 = vunpack.c.l.b16 %v9880
        %v10009 = vunpack.c.l.b16 %v9881
        %v10010 = vunpack.c.l.b16 %v9882
        %v10011 = vunpack.c.l.b16 %v9883
        %v10012 = vunpack.c.l.b16 %v9884
        %v10013 = vunpack.c.l.b16 %v9885
        %v10014 = vunpack.c.l.b16 %v9886
        %v10015 = vunpack.c.l.b16 %v9887
        %v10016 = vunpack.c.l.b16 %v9888
        %v10017 = vunpack.c.l.b16 %v9889
        %v10018 = vunpack.c.l.b16 %v9890
        %v10019 = vunpack.c.l.b16 %v9891
        %v10020 = vunpack.c.l.b16 %v9892
        %v10021 = vunpack.c.l.b16 %v9893
        %v10022 = vunpack.c.l.b16 %v9894
        %v10023 = vunpack.c.l.b16 %v9895
        %v10024 = vunpack.c.l.b16 %v9896
        %v10025 = vunpack.c.l.b16 %v9897
        %v10026 = vunpack.c.l.b16 %v9898
        %v10027 = vunpack.c.l.b16 %v9899
        %v10028 = vunpack.c.l.b16 %v9900
        %v10029 = vunpack.c.l.b16 %v9901
        %v10030 = vunpack.c.l.b16 %v9902
        %v10031 = vunpack.c.l.b16 %v9903
        %v10032 = vunpack.c.l.b16 %v9904
        %v10033 = vunpack.c.l.b16 %v9905
        %v10034 = vunpack.c.l.b16 %v9906
        %v10035 = vunpack.c.l.b16 %v9907
        %v10036 = vunpack.c.l.b16 %v9908
        %v10037 = vunpack.c.l.b16 %v9909
        %v10038 = vunpack.c.l.b16 %v9910
        %v10039 = vunpack.c.l.b16 %v9911
        %v10040 = vunpack.c.l.b16 %v9912
        %v10041 = vunpack.c.l.b16 %v9913
        %v10042 = vunpack.c.l.b16 %v9914
        %v10043 = vunpack.c.l.b16 %v9915
        %v10044 = vpack.c.b16 %v9981, %v9980
        %v10045 = vpack.c.b16 %v9983, %v9982
        %v10046 = vpack.c.b16 %v9985, %v9984
        %v10047 = vpack.c.b16 %v9987, %v9986
        %v10048 = vpack.c.b16 %v9989, %v9988
        %v10049 = vpack.c.b16 %v9991, %v9990
        %v10050 = vpack.c.b16 %v9993, %v9992
        %v10051 = vpack.c.b16 %v9995, %v9994
        %v10052 = vpack.c.b16 %v9997, %v9996
        %v10053 = vpack.c.b16 %v9999, %v9998
        %v10054 = vpack.c.b16 %v10001, %v10000
        %v10055 = vpack.c.b16 %v10003, %v10002
        %v10056 = vpack.c.b16 %v10005, %v10004
        %v10057 = vpack.c.b16 %v10007, %v10006
        %v10058 = vpack.c.b16 %v10009, %v10008
        %v10059 = vpack.c.b16 %v10011, %v10010
        %v10060 = vpack.c.b16 %v10013, %v10012
        %v10061 = vpack.c.b16 %v10015, %v10014
        %v10062 = vpack.c.b16 %v10017, %v10016
        %v10063 = vpack.c.b16 %v10019, %v10018
        %v10064 = vpack.c.b16 %v10021, %v10020
        %v10065 = vpack.c.b16 %v10023, %v10022
        %v10066 = vpack.c.b16 %v10025, %v10024
        %v10067 = vpack.c.b16 %v10027, %v10026
        %v10068 = vpack.c.b16 %v10029, %v10028
        %v10069 = vpack.c.b16 %v10031, %v10030
        %v10070 = vpack.c.b16 %v10033, %v10032
        %v10071 = vpack.c.b16 %v10035, %v10034
        %v10072 = vpack.c.b16 %v10037, %v10036
        %v10073 = vpack.c.b16 %v10039, %v10038
        %v10074 = vpack.c.b16 %v10041, %v10040
        %v10075 = vpack.c.b16 %v10043, %v10042
        %10108 = vmatprep.subr.bf16.mxu0 0
        %10109 = vmatpush1.bf16.msra.mxu0 %v10044
        %10110 = vmatprep.subr.bf16.mxu0 0
        %10111 = vmatpush1.bf16.msra.mxu0 %v10045
        %10112 = vmatprep.subr.bf16.mxu0 0
        %10113 = vmatpush1.bf16.msra.mxu0 %v10046
        %10114 = vmatprep.subr.bf16.mxu0 0
        %10115 = vmatpush1.bf16.msra.mxu0 %v10047
        %10116 = vmatprep.subr.bf16.mxu0 0
        %10117 = vmatpush1.bf16.msra.mxu0 %v10048
        %10118 = vmatprep.subr.bf16.mxu0 0
        %10119 = vmatpush1.bf16.msra.mxu0 %v10049
        %10120 = vmatprep.subr.bf16.mxu0 0
        %10121 = vmatpush1.bf16.msra.mxu0 %v10050
        %10122 = vmatprep.subr.bf16.mxu0 0
        %10123 = vmatpush1.bf16.msra.mxu0 %v10051
        %10124 = vmatprep.subr.bf16.mxu0 0
        %10125 = vmatpush1.bf16.msra.mxu0 %v10052
        %10126 = vmatprep.subr.bf16.mxu0 0
        %10127 = vmatpush1.bf16.msra.mxu0 %v10053
        %10128 = vmatprep.subr.bf16.mxu0 0
        %10129 = vmatpush1.bf16.msra.mxu0 %v10054
        %10130 = vmatprep.subr.bf16.mxu0 0
        %10131 = vmatpush1.bf16.msra.mxu0 %v10055
        %10132 = vmatprep.subr.bf16.mxu0 0
        %10133 = vmatpush1.bf16.msra.mxu0 %v10056
        %10134 = vmatprep.subr.bf16.mxu0 0
        %10135 = vmatpush1.bf16.msra.mxu0 %v10057
        %10136 = vmatprep.subr.bf16.mxu0 0
        %10137 = vmatpush1.bf16.msra.mxu0 %v10058
        %10138 = vmatprep.subr.bf16.mxu0 0
        %10139 = vmatpush1.bf16.msra.mxu0 %v10059
        %10140 = vmatprep.mubr.bf16.mxu0 %v9837
        %10141 = vmatmul.mubr.bf16.gmra.mrb[0].mxu0 %v9836
        %v10142 = vpop.f32.mrb[0].mxu0
        %v10143 = vadd.f32 0.0, %v10142
        %v10144 = vpop.f32.mrb[0].mxu0
        %v10145 = vpop.f32.mrb[0].mxu0
        %v10146 = vadd.f32 0.0, %v10145
        %v10147 = vpop.f32.mrb[0].mxu0
        %10148 = vmatprep.mubr.bf16.mxu0 %v9841
        %10149 = vmatmul.mubr.bf16.gmra.mrb[0].mxu0 %v9840
        %v10150 = vpop.f32.mrb[0].mxu0
        %v10151 = vadd.f32 0.0, %v10150
        %v10152 = vpop.f32.mrb[0].mxu0
        %v10153 = vpop.f32.mrb[0].mxu0
        %v10154 = vadd.f32 0.0, %v10153
        %v10155 = vpop.f32.mrb[0].mxu0
        %10156 = vmatprep.mubr.bf16.mxu0 %v9845
        %10157 = vmatmul.mubr.bf16.gmra.mrb[0].mxu0 %v9844
        %v10158 = vpop.f32.mrb[0].mxu0
        %v10159 = vadd.f32 0.0, %v10158
        %v10160 = vpop.f32.mrb[0].mxu0
        %v10161 = vpop.f32.mrb[0].mxu0
        %v10162 = vadd.f32 0.0, %v10161
        %v10163 = vpop.f32.mrb[0].mxu0
        %10164 = vmatprep.mubr.bf16.mxu0 %v9849
        %10165 = vmatmul.mubr.bf16.gmra.mrb[0].mxu0 %v9848
        %v10166 = vpop.f32.mrb[0].mxu0
        %v10167 = vadd.f32 0.0, %v10166
        %v10168 = vpop.f32.mrb[0].mxu0
        %v10169 = vpop.f32.mrb[0].mxu0
        %v10170 = vadd.f32 0.0, %v10169
        %v10171 = vpop.f32.mrb[0].mxu0
        %10172 = vdwg.mxu0
        %10173 = vmatprep.subr.bf16.mxu0 0
        %10174 = vmatpush1.bf16.msra.mxu0 %v10060
        %10175 = vmatprep.subr.bf16.mxu0 0
        %10176 = vmatpush1.bf16.msra.mxu0 %v10061
        %10177 = vmatprep.subr.bf16.mxu0 0
        %10178 = vmatpush1.bf16.msra.mxu0 %v10062
        %10179 = vmatprep.subr.bf16.mxu0 0
        %10180 = vmatpush1.bf16.msra.mxu0 %v10063
        %10181 = vmatprep.subr.bf16.mxu0 0
        %10182 = vmatpush1.bf16.msra.mxu0 %v10064
        %10183 = vmatprep.subr.bf16.mxu0 0
        %10184 = vmatpush1.bf16.msra.mxu0 %v10065
        %10185 = vmatprep.subr.bf16.mxu0 0
        %10186 = vmatpush1.bf16.msra.mxu0 %v10066
        %10187 = vmatprep.subr.bf16.mxu0 0
        %10188 = vmatpush1.bf16.msra.mxu0 %v10067
        %10189 = vmatprep.subr.bf16.mxu0 0
        %10190 = vmatpush1.bf16.msra.mxu0 %v10068
        %10191 = vmatprep.subr.bf16.mxu0 0
        %10192 = vmatpush1.bf16.msra.mxu0 %v10069
        %10193 = vmatprep.subr.bf16.mxu0 0
        %10194 = vmatpush1.bf16.msra.mxu0 %v10070
        %10195 = vmatprep.subr.bf16.mxu0 0
        %10196 = vmatpush1.bf16.msra.mxu0 %v10071
        %10197 = vmatprep.subr.bf16.mxu0 0
        %10198 = vmatpush1.bf16.msra.mxu0 %v10072
        %10199 = vmatprep.subr.bf16.mxu0 0
        %10200 = vmatpush1.bf16.msra.mxu0 %v10073
        %10201 = vmatprep.subr.bf16.mxu0 0
        %10202 = vmatpush1.bf16.msra.mxu0 %v10074
        %10203 = vmatprep.subr.bf16.mxu0 0
        %10204 = vmatpush1.bf16.msra.mxu0 %v10075
        %10205 = vmatprep.mubr.bf16.mxu0 %v9839
        %10206 = vmatmul.mubr.bf16.gmra.mrb[0].mxu0 %v9838
        %v10207 = vpop.f32.mrb[0].mxu0
        %v10208 = vadd.f32 %v10143, %v10207
        %v10209 = vpop.f32.mrb[0].mxu0
        %v10210 = vpop.f32.mrb[0].mxu0
        %v10211 = vadd.f32 %v10146, %v10210
        %v10212 = vpop.f32.mrb[0].mxu0
        %10213 = vmatprep.mubr.bf16.mxu0 %v9843
        %10214 = vmatmul.mubr.bf16.gmra.mrb[0].mxu0 %v9842
        %v10215 = vpop.f32.mrb[0].mxu0
        %v10216 = vadd.f32 %v10151, %v10215
        %v10217 = vpop.f32.mrb[0].mxu0
        %v10218 = vpop.f32.mrb[0].mxu0
        %v10219 = vadd.f32 %v10154, %v10218
        %v10220 = vpop.f32.mrb[0].mxu0
        %10221 = vmatprep.mubr.bf16.mxu0 %v9847
        %10222 = vmatmul.mubr.bf16.gmra.mrb[0].mxu0 %v9846
        %v10223 = vpop.f32.mrb[0].mxu0
        %v10224 = vadd.f32 %v10159, %v10223
        %v10225 = vpop.f32.mrb[0].mxu0
        %v10226 = vpop.f32.mrb[0].mxu0
        %v10227 = vadd.f32 %v10162, %v10226
        %v10228 = vpop.f32.mrb[0].mxu0
        %10229 = vmatprep.mubr.bf16.mxu0 %v9851
        %10230 = vmatmul.mubr.bf16.gmra.mrb[0].mxu0 %v9850
        %v10231 = vpop.f32.mrb[0].mxu0
        %v10232 = vadd.f32 %v10167, %v10231
        %v10233 = vpop.f32.mrb[0].mxu0
        %v10234 = vpop.f32.mrb[0].mxu0
        %v10235 = vadd.f32 %v10170, %v10234
        %v10236 = vpop.f32.mrb[0].mxu0
        %10237 = vdwg.mxu0
        %v10238 = vadd.f32 %v9454, %v10208
        %v10239 = vadd.f32 %v9455, %v10211
        %v10240 = vadd.f32 %v9456, %v10216
        %v10241 = vadd.f32 %v9457, %v10219
        %v10242 = vadd.f32 %v9458, %v10224
        %v10243 = vadd.f32 %v9459, %v10227
        %v10244 = vadd.f32 %v9460, %v10232
        %v10245 = vadd.f32 %v9461, %v10235
        %s10246 = scalar_lea.vmem %s12, 2
        %v10247 = vld [vmem:[%s10246] sm:$0x1]
        %s10248 = scalar_lea.vmem %s13, 2
        %v10249 = vld [vmem:[%s10248] sm:$0x1]
        %10250 = vadd.xlane.f32.xlu0 %v10238
        %v10251 = vpop.xlane.xlu0 %10250
        %10252 = vadd.xlane.f32.xlu0 %v10239
        %v10253 = vpop.xlane.xlu0 %10252
        %10254 = vadd.xlane.f32.xlu0 %v10240
        %v10255 = vpop.xlane.xlu0 %10254
        %10256 = vadd.xlane.f32.xlu0 %v10241
        %v10257 = vpop.xlane.xlu0 %10256
        %10258 = vadd.xlane.f32.xlu0 %v10242
        %v10259 = vpop.xlane.xlu0 %10258
        %10260 = vadd.xlane.f32.xlu0 %v10243
        %v10261 = vpop.xlane.xlu0 %10260
        %10262 = vadd.xlane.f32.xlu0 %v10244
        %v10263 = vpop.xlane.xlu0 %10262
        %10264 = vadd.xlane.f32.xlu0 %v10245
        %v10265 = vpop.xlane.xlu0 %10264
        %v10266 = vmul.f32 %v10251, %v6536
        %v10267 = vmul.f32 %v10253, %v6536
        %v10268 = vmul.f32 %v10255, %v6536
        %v10269 = vmul.f32 %v10257, %v6536
        %v10270 = vmul.f32 %v10259, %v6536
        %v10271 = vmul.f32 %v10261, %v6536
        %v10272 = vmul.f32 %v10263, %v6536
        %v10273 = vmul.f32 %v10265, %v6536
        %v10274 = vmul.f32 %v10238, %v10238
        %v10275 = vmul.f32 %v10239, %v10239
        %v10276 = vmul.f32 %v10240, %v10240
        %v10277 = vmul.f32 %v10241, %v10241
        %v10278 = vmul.f32 %v10242, %v10242
        %v10279 = vmul.f32 %v10243, %v10243
        %v10280 = vmul.f32 %v10244, %v10244
        %v10281 = vmul.f32 %v10245, %v10245
        %10282 = vadd.xlane.f32.xlu0 %v10274
        %v10283 = vpop.xlane.xlu0 %10282
        %10284 = vadd.xlane.f32.xlu0 %v10275
        %v10285 = vpop.xlane.xlu0 %10284
        %10286 = vadd.xlane.f32.xlu0 %v10276
        %v10287 = vpop.xlane.xlu0 %10286
        %10288 = vadd.xlane.f32.xlu0 %v10277
        %v10289 = vpop.xlane.xlu0 %10288
        %10290 = vadd.xlane.f32.xlu0 %v10278
        %v10291 = vpop.xlane.xlu0 %10290
        %10292 = vadd.xlane.f32.xlu0 %v10279
        %v10293 = vpop.xlane.xlu0 %10292
        %10294 = vadd.xlane.f32.xlu0 %v10280
        %v10295 = vpop.xlane.xlu0 %10294
        %10296 = vadd.xlane.f32.xlu0 %v10281
        %v10297 = vpop.xlane.xlu0 %10296
        %v10298 = vmul.f32 %v10283, %v6536
        %v10299 = vmul.f32 %v10285, %v6536
        %v10300 = vmul.f32 %v10287, %v6536
        %v10301 = vmul.f32 %v10289, %v6536
        %v10302 = vmul.f32 %v10291, %v6536
        %v10303 = vmul.f32 %v10293, %v6536
        %v10304 = vmul.f32 %v10295, %v6536
        %v10305 = vmul.f32 %v10297, %v6536
        %v10306 = vmul.f32 %v10266, %v10266
        %v10307 = vmul.f32 %v10267, %v10267
        %v10308 = vmul.f32 %v10268, %v10268
        %v10309 = vmul.f32 %v10269, %v10269
        %v10310 = vmul.f32 %v10270, %v10270
        %v10311 = vmul.f32 %v10271, %v10271
        %v10312 = vmul.f32 %v10272, %v10272
        %v10313 = vmul.f32 %v10273, %v10273
        %v10314 = vsub.f32 %v10298, %v10306
        %v10315 = vsub.f32 %v10299, %v10307
        %v10316 = vsub.f32 %v10300, %v10308
        %v10317 = vsub.f32 %v10301, %v10309
        %v10318 = vsub.f32 %v10302, %v10310
        %v10319 = vsub.f32 %v10303, %v10311
        %v10320 = vsub.f32 %v10304, %v10312
        %v10321 = vsub.f32 %v10305, %v10313
        %v10322 = vsub.f32 %v10238, %v10266
        %v10323 = vsub.f32 %v10239, %v10267
        %v10324 = vsub.f32 %v10240, %v10268
        %v10325 = vsub.f32 %v10241, %v10269
        %v10326 = vsub.f32 %v10242, %v10270
        %v10327 = vsub.f32 %v10243, %v10271
        %v10328 = vsub.f32 %v10244, %v10272
        %v10329 = vsub.f32 %v10245, %v10273
        %v10330 = vadd.f32 %v10314, 1e-05
        %v10331 = vadd.f32 %v10315, 1e-05
        %v10332 = vadd.f32 %v10316, 1e-05
        %v10333 = vadd.f32 %v10317, 1e-05
        %v10334 = vadd.f32 %v10318, 1e-05
        %v10335 = vadd.f32 %v10319, 1e-05
        %v10336 = vadd.f32 %v10320, 1e-05
        %v10337 = vadd.f32 %v10321, 1e-05
        %v10338 = vrsqrt.pop %v10330
        %v10339 = vrsqrt.pop %v10331
        %v10340 = vrsqrt.pop %v10332
        %v10341 = vrsqrt.pop %v10333
        %v10342 = vrsqrt.pop %v10334
        %v10343 = vrsqrt.pop %v10335
        %v10344 = vrsqrt.pop %v10336
        %v10345 = vrsqrt.pop %v10337
        %v10346 = vmul.f32 %v10322, %v10338
        %v10347 = vmul.f32 %v10323, %v10339
        %v10348 = vmul.f32 %v10324, %v10340
        %v10349 = vmul.f32 %v10325, %v10341
        %v10350 = vmul.f32 %v10326, %v10342
        %v10351 = vmul.f32 %v10327, %v10343
        %v10352 = vmul.f32 %v10328, %v10344
        %v10353 = vmul.f32 %v10329, %v10345
        %v10355 = vlaneseq
        %v10356 = vshrl.u32 %v10355, 7
        %v10357 = vsub.s32 0, %v10356
        %v10358 = vrot.slane %v10247, %v10357
        %v10360 = vmul.f32 %v10346, %v10358
        %v10361 = vmul.f32 %v10347, %v10358
        %v10362 = vmul.f32 %v10348, %v10358
        %v10363 = vmul.f32 %v10349, %v10358
        %v10364 = vmul.f32 %v10350, %v10358
        %v10365 = vmul.f32 %v10351, %v10358
        %v10366 = vmul.f32 %v10352, %v10358
        %v10367 = vmul.f32 %v10353, %v10358
        %v10369 = vlaneseq
        %v10370 = vshrl.u32 %v10369, 7
        %v10371 = vsub.s32 0, %v10370
        %v10372 = vrot.slane %v10249, %v10371
        %v10374 = vadd.f32 %v10360, %v10372
        %v10375 = vadd.f32 %v10361, %v10372
        %v10376 = vadd.f32 %v10362, %v10372
        %v10377 = vadd.f32 %v10363, %v10372
        %v10378 = vadd.f32 %v10364, %v10372
        %v10379 = vadd.f32 %v10365, %v10372
        %v10380 = vadd.f32 %v10366, %v10372
        %v10381 = vadd.f32 %v10367, %v10372
        %10382 = vst [vmem:[%s614] sm:$0xff] %v10374
        %10383 = vst [vmem:[%s614 + $0x8] sm:$0xff] %v10375
        %10384 = vst [vmem:[%s614 + $0x10] sm:$0xff] %v10376
        %10385 = vst [vmem:[%s614 + $0x18] sm:$0xff] %v10377
        %10386 = vst [vmem:[%s614 + $0x20] sm:$0xff] %v10378
        %10387 = vst [vmem:[%s614 + $0x28] sm:$0xff] %v10379
        %10388 = vst [vmem:[%s614 + $0x30] sm:$0xff] %v10380
        %10389 = vst [vmem:[%s614 + $0x38] sm:$0xff] %v10381
        %s10390 = sand.u32 %s349, 1
        %s10391 = scalar_lea.sflag [#allocation4], %s10390
        %s10392 = sand.u32 %s349, 1
        %s10393 = smul.addr %s10392, 64
        %s10394 = scalar_lea.vmem [#allocation16], %s10393
        // Predicated region
        $region109: #{tpu_custom_call.1} parent=75 // pred_check
          %p10395 = pneg %p359
        $region110: #{tpu_custom_call.1} parent=75 // pred_check_branch
          %10397 = sbr.rel (%p10395) target = $region112
        $region111: #{tpu_custom_call.1} parent=75 // pred_region
          %s10398 = smul.u32 4, %s37
          %s10400 = ssub.s32 1024, 1024
          %10401 = vsyncadd %s10391, %s10400
          %s10402 = smul.addr %s10398, 2
          %s10403 = smul.addr %s10402, 128
          %s10404 = scalar_lea.hbm %s14, %s10403
          %s10405 = sshll.u32 %s10394, 4
          %s10406 = int_to_ptr.vmem [resolvable:$true] %s10405
          %10411 = dma.vmem_to_hbm [thread:$0]  %s10406, 1024, %s10404, %s10391, 128, 128, 8
        $region112: #{tpu_custom_call.1} parent=75 // pred_fallthru
          _
      $region76: #{tpu_custom_call.1} parent=5 // pred_fallthru
        _
      %p10412 = scmp.le.s32.totalorder 2, %s32
      // Predicated region
      $region113: #{tpu_custom_call.1} parent=5 // pred_check
        %p10413 = pneg %p10412
      $region114: #{tpu_custom_call.1} parent=5 // pred_check_branch
        %10415 = sbr.rel (%p10413) target = $region116
      $region115: #{tpu_custom_call.1} parent=5 // pred_region
        %s10416 = ssub.s32 %s32, 2
        // Predicated region
        $region117: #{tpu_custom_call.1} parent=115 // pred_check
          %p10417 = pneg %p365
        $region118: #{tpu_custom_call.1} parent=115 // pred_check_branch
          %10419 = sbr.rel (%p10417) target = $region120
        $region119: #{tpu_custom_call.1} parent=115 // pred_region
          %s10420 = sand.u32 %s350, 1
          %s10421 = scalar_lea.sflag [#allocation4], %s10420
          %s10422 = sand.u32 %s350, 1
          %s10423 = smul.addr %s10422, 64
          %s10424 = scalar_lea.vmem [#allocation16], %s10423
          %10425 = dma.done %s10421, 1024
        $region120: #{tpu_custom_call.1} parent=115 // pred_fallthru
          _
      $region116: #{tpu_custom_call.1} parent=5 // pred_fallthru
        _
    $region6: #{tpu_custom_call.1} parent=1 // loop_footer
      %s36 = sadd.s32 1, %s32
    $region7: #{tpu_custom_call.1} parent=1 // loop_footer_branch
      %31 = sbr.rel target = $region3
    $region8: #{tpu_custom_call.1} parent=1 // loop_exit
      _
    %10426 = vsyncpa [#allocation3], 1
    %s10427 = scalar_lea.sflag [#allocation3], 1
    %10428 = vsyncpa %s10427, 1
    %10429 = vsyncpa [#allocation6], 1
    %s10430 = scalar_lea.sflag [#allocation6], 1
    %10431 = vsyncpa %s10430, 1
    %10432 = vsyncpa [#allocation9], 1
    %10433 = vsyncpa [#allocation12], 1
    %10434 = vsyncpa [#allocation15], 1
    %10435 = vsyncpa [#allocation4], 1
    %s10436 = scalar_lea.sflag [#allocation4], 1
    %10437 = vsyncpa %s10436, 1

</llo_original>
